<compile_context>
chip_gen: v6e
topology: v6e:2x2x1
jax: 0.10.0
libtpu: 0.0.40
codegen_flags: <defaults>
</compile_context>

<pallas_src>
import math

import numpy as np
import jax
import jax.numpy as jnp
from jax.experimental import pallas as pl
from jax.experimental.pallas import tpu as pltpu

BN_EPS = 1e-5
NUM_CLASSES = 183
PADDED_CLASSES = 256          # next multiple of 128 >= 183 -> lane-dense final store

# (Cin, Cout, K, stride, pad) per conv block -- matches the module's __init__
CONV_CFG = [
    (2, 8, 5, 2, 2),
    (8, 16, 3, 2, 1),
    (16, 32, 3, 2, 1),
    (32, 64, 3, 2, 1),
    (64, 128, 3, 2, 1),
    (128, 256, 3, 2, 1),
]


# ------------------------------ kernel helpers ------------------------------ #

def _bias_relu_bn(y, a_ref):
    """Conv epilogue: +bias, ReLU, training-mode BatchNorm.  y: (M, C); a_ref: (3, C)."""
    bias, gamma, beta = a_ref[0:1, :], a_ref[1:2, :], a_ref[2:3, :]
    y = jnp.maximum(y + bias, 0.0)
    m = y.shape[0]
    # Row reductions on the XLU (cross-sublane reduce); MXU stays free.
    mean = jnp.sum(y, axis=0, keepdims=True) * (1.0 / m)
    d = y - mean
    var = jnp.sum(d * d, axis=0, keepdims=True) * (1.0 / m)   # centered (safer)
    return d * (jax.lax.rsqrt(var + BN_EPS) * gamma) + beta


def _selector_conv(x, t_ref, w_ref, a_ref, n):
    """One 3x3/stride-2 conv block via a batch-agnostic row-gather + ONE weight matmul.

    x:     (n*in_hw^2, Cin) activation, rows ordered (b, h, w).
    t_ref: (9*out_hw^2, in_hw^2) f32 0/1 gather matrix, rows ordered (tap, out_pos);
           all-zero rows encode the conv zero-padding.
    w_ref: (9*Cin, Cout) with rows ordered (kh, kw, Cin).  a_ref: (3, Cout).
    """
    kk_out, in_sq = t_ref.shape
    cin = x.shape[1]
    kk = w_ref.shape[0] // cin
    out_sq = kk_out // kk

    t = t_ref[...]
    w = w_ref[...]
    per_sample = []
    for b in range(n):                                     # n is static (trace time)
        g = jnp.dot(t, x[b * in_sq:(b + 1) * in_sq, :],
                    preferred_element_type=jnp.float32)     # (9*out_sq, Cin)
        # im2col slab for this sample: lanes ordered (tap, Cin)
        per_sample.append(jnp.concatenate(
            [g[tap * out_sq:(tap + 1) * out_sq, :] for tap in range(kk)], axis=-1))
    patches = per_sample[0] if n == 1 else jnp.concatenate(per_sample, axis=0)
    y = jnp.dot(patches, w, preferred_element_type=jnp.float32)   # (n*out_sq, Cout)
    return _bias_relu_bn(y, a_ref)


# --------------------------------- kernel ----------------------------------- #

def _audio_classifier_kernel(
    p1_ref, w1_ref, a1_ref,            # conv1 (patches pre-built in wrapper)
    w2_ref, a2_ref,                    # conv2 (parity-window patch slab, K=72 matmul)
    t3_ref, w3_ref, a3_ref,            # conv3..conv6 (batch-agnostic gather selectors)
    t4_ref, w4_ref, a4_ref,
    t5_ref, w5_ref, a5_ref,
    t6_ref, w6_ref, a6_ref,
    wl_ref, bl_ref,                    # Linear (256 -> 256 padded)
    o_ref,                             # (N, 256) lane-dense logits
):
    n = o_ref.shape[0]
    c1 = w1_ref.shape[1]

    # ---- conv1 + ReLU + BN; patch rows ordered (ph, pw, b, i, j) -------------
    y1 = _bias_relu_bn(
        jnp.dot(p1_ref[...], w1_ref[...], preferred_element_type=jnp.float32), a1_ref)

    # ---- conv2: build a (n*h2*h2, 72) im2col slab from the parity planes ------
    # conv1 output position (2i+ph, 2j+pw) lives at y1r[(ph*2+pw)*n + b, i, j, :].
    # Each stride-2 tap (kh, kw) of conv2 is parity plane q(kh,kw) shifted by
    # dh,dw in {-1, 0}; the -1 shift is a one-row/one-col zero shift (low edge only).
    h2 = math.isqrt(y1.shape[0] // (4 * n))          # conv2 output spatial size
    y1r = y1.reshape(4 * n, h2, h2, c1)
    taps = []
    for kh in range(3):
        ph, dh = (kh + 1) % 2, (-1 if kh == 0 else 0)
        for kw in range(3):
            pw, dw = (kw + 1) % 2, (-1 if kw == 0 else 0)
            q = ph * 2 + pw
            plane = y1r[q * n:(q + 1) * n]                       # (n, h2, h2, c1)
            if dh:   # shift down by one row, zero at the top
                plane = jnp.concatenate(
                    [jnp.zeros((n, 1, h2, c1), jnp.float32), plane[:, :-1]], axis=1)
            if dw:   # shift right by one column, zero at the left
                plane = jnp.concatenate(
                    [jnp.zeros((n, h2, 1, c1), jnp.float32), plane[:, :, :-1]], axis=2)
            taps.append(plane.reshape(n * h2 * h2, c1))
    patches2 = jnp.concatenate(taps, axis=-1)                    # (n*h2*h2, 9*c1)
    y2 = _bias_relu_bn(
        jnp.dot(patches2, w2_ref[...], preferred_element_type=jnp.float32), a2_ref)

    # ---- conv3 .. conv6 ------------------------------------------------------
    y3 = _selector_conv(y2, t3_ref, w3_ref, a3_ref, n)
    y4 = _selector_conv(y3, t4_ref, w4_ref, a4_ref, n)
    y5 = _selector_conv(y4, t5_ref, w5_ref, a5_ref, n)
    y6 = _selector_conv(y5, t6_ref, w6_ref, a6_ref, n)

    # ---- AdaptiveAvgPool2d(1): final spatial is 1x1 for 64x64 input ----------
    hw_sq = y6.shape[0] // n
    if hw_sq == 1:
        pooled = y6                                             # (n, 256) already
    else:
        pooled = jnp.mean(y6.reshape(n, hw_sq, y6.shape[1]), axis=1)

    # ---- Linear (output padded to 256 lanes) ---------------------------------
    o_ref[...] = (jnp.dot(pooled, wl_ref[...], preferred_element_type=jnp.float32)
                  + bl_ref[...])


# ----------------------------- wrapper helpers ------------------------------ #

def _conv1_patches(x_nhwc):
    """im2col for conv1 only, with rows ordered (ph, pw, n, i, j) where the output
    position is (oh, ow) = (2i+ph, 2j+pw); this parity ordering lets the kernel build
    conv2's patch slab from contiguous plane slices (no strided access in-kernel)."""
    n, h, w, cin = x_nhwc.shape
    _, _, k, stride, pad = CONV_CFG[0]
    oh = (h + 2 * pad - k) // stride + 1
    ow = (w + 2 * pad - k) // stride + 1
    assert oh % 2 == 0 and ow % 2 == 0
    xp = jnp.pad(x_nhwc, ((0, 0), (pad, pad), (pad, pad), (0, 0)))
    taps = [xp[:, kh:kh + stride * oh:stride, kw:kw + stride * ow:stride, :]
            for kh in range(k) for kw in range(k)]
    p = jnp.concatenate(taps, axis=-1)                       # (n, oh, ow, k*k*cin)
    p = p.reshape(n, oh // 2, 2, ow // 2, 2, k * k * cin)     # (n, i, ph, j, pw, f)
    p = jnp.transpose(p, (2, 4, 0, 1, 3, 5))                  # (ph, pw, n, i, j, f)
    return p.reshape(n * oh * ow, k * k * cin), oh


def _im2col_selector(in_hw, out_hw, k, stride, pad):
    """Batch-agnostic f32 0/1 gather matrix, rows ordered (tap, out_pos); zero rows
    encode conv zero-padding.  Shape (k*k*out_hw^2, in_hw^2) -- flat in batch size."""
    sel = np.zeros((k * k * out_hw * out_hw, in_hw * in_hw), np.float32)
    for kh in range(k):
        for kw in range(k):
            tap = kh * k + kw
            for oh in range(out_hw):
                ih = stride * oh + kh - pad
                if not 0 <= ih < in_hw:
                    continue
                for ow_ in range(out_hw):
                    iw = stride * ow_ + kw - pad
                    if 0 <= iw < in_hw:
                        sel[tap * out_hw * out_hw + oh * out_hw + ow_,
                            ih * in_hw + iw] = 1.0
    return jnp.asarray(sel)          # f32: no in-kernel cast, 0/1 exact


# ------------------------------- parameters --------------------------------- #

def init_params(key):
    """Deterministic re-implementation of the module's __init__ initializers."""
    conv_params = []
    a = 0.1
    gain = (2.0 / (1.0 + a * a)) ** 0.5            # kaiming_normal_(a=0.1), fan_in
    for (cin, cout, k, _s, _p) in CONV_CFG:
        key, wkey = jax.random.split(key)
        fan_in = cin * k * k
        std = gain / (fan_in ** 0.5)
        w = std * jax.random.normal(wkey, (k, k, cin, cout), jnp.float32)
        conv_params.append((w,
                            jnp.zeros((cout,), jnp.float32),   # conv bias zeroed
                            jnp.ones((cout,), jnp.float32),    # BN gamma
                            jnp.zeros((cout,), jnp.float32)))  # BN beta
    key, wkey, bkey = jax.random.split(key, 3)
    bound = 1.0 / (256 ** 0.5)                     # nn.Linear default init
    lin_w = jax.random.uniform(wkey, (256, NUM_CLASSES), jnp.float32, -bound, bound)
    lin_b = jax.random.uniform(bkey, (NUM_CLASSES,), jnp.float32, -bound, bound)
    return conv_params, lin_w, lin_b


# --------------------------------- forward ---------------------------------- #

@jax.jit
def forward(x_nchw, conv_params, lin_w, lin_b):
    n = x_nchw.shape[0]
    x = jnp.transpose(x_nchw, (0, 2, 3, 1)).astype(jnp.float32)   # NCHW -> NHWC

    # conv1 patches built once in the wrapper from the tiny network input.
    p1, s1 = _conv1_patches(x)

    # output spatial sizes of every conv block
    spatial = [s1]
    for (_ci, _co, k, st, pd) in CONV_CFG[1:]:
        spatial.append((spatial[-1] + 2 * pd - k) // st + 1)

    def pack_affine(b, g, bt):
        return jnp.stack([b, g, bt], axis=0)       # (3, C): [bias; gamma; beta]

    (w1, b1, g1, be1) = conv_params[0]
    args = [p1, w1.reshape(-1, w1.shape[-1]), pack_affine(b1, g1, be1)]

    (w2, b2, g2, be2) = conv_params[1]
    args += [w2.reshape(-1, w2.shape[-1]), pack_affine(b2, g2, be2)]   # (72, 16)

    for li in range(2, 6):
        (w, b, g, be) = conv_params[li]
        k = w.shape[0]
        _ci, _co, _k, st, pd = CONV_CFG[li]
        t = _im2col_selector(spatial[li - 1], spatial[li], k, st, pd)
        args += [t, w.reshape(-1, w.shape[-1]), pack_affine(b, g, be)]

    pad_cols = PADDED_CLASSES - lin_w.shape[1]
    args += [jnp.pad(lin_w, ((0, 0), (0, pad_cols))),
             jnp.pad(lin_b, (0, pad_cols)).reshape(1, PADDED_CLASSES)]

    out = pl.pallas_call(
        _audio_classifier_kernel,
        out_shape=jax.ShapeDtypeStruct((n, PADDED_CLASSES), jnp.float32),
        in_specs=[pl.BlockSpec(memory_space=pltpu.MemorySpace.VMEM)] * len(args),
        out_specs=pl.BlockSpec(memory_space=pltpu.MemorySpace.VMEM),
        cost_estimate=pl.CostEstimate(flops=30_000_000, transcendentals=512,
                                      bytes_accessed=3_000_000),
    )(*args)
    return out[:, :NUM_CLASSES]


if __name__ == "__main__":
    key = jax.random.PRNGKey(0)
    pkey, xkey = jax.random.split(key)
    conv_params, lin_w, lin_b = init_params(pkey)

    # Small spectrogram-like input: batch=2, 2 channels, 64x64 (NCHW like PyTorch).
    x = jax.random.normal(xkey, (2, 2, 64, 64), jnp.float32)

    out = forward(x, conv_params, lin_w, lin_b)
    out = jax.block_until_ready(out)

    assert out.shape == (2, NUM_CLASSES), out.shape
    assert bool(jnp.all(jnp.isfinite(out)))
    print("KERNEL_OK")
</pallas_src>

<mosaic_0001>
module attributes {stable_mosaic.version = 11 : i64} {
  func.func @_audio_classifier_kernel(%arg0: memref<2048x50xf32, #tpu.memory_space<vmem>>, %arg1: memref<50x8xf32, #tpu.memory_space<vmem>>, %arg2: memref<3x8xf32, #tpu.memory_space<vmem>>, %arg3: memref<72x16xf32, #tpu.memory_space<vmem>>, %arg4: memref<3x16xf32, #tpu.memory_space<vmem>>, %arg5: memref<576x256xf32, #tpu.memory_space<vmem>>, %arg6: memref<144x32xf32, #tpu.memory_space<vmem>>, %arg7: memref<3x32xf32, #tpu.memory_space<vmem>>, %arg8: memref<144x64xf32, #tpu.memory_space<vmem>>, %arg9: memref<288x64xf32, #tpu.memory_space<vmem>>, %arg10: memref<3x64xf32, #tpu.memory_space<vmem>>, %arg11: memref<36x16xf32, #tpu.memory_space<vmem>>, %arg12: memref<576x128xf32, #tpu.memory_space<vmem>>, %arg13: memref<3x128xf32, #tpu.memory_space<vmem>>, %arg14: memref<9x4xf32, #tpu.memory_space<vmem>>, %arg15: memref<1152x256xf32, #tpu.memory_space<vmem>>, %arg16: memref<3x256xf32, #tpu.memory_space<vmem>>, %arg17: memref<256x256xf32, #tpu.memory_space<vmem>>, %arg18: memref<1x256xf32, #tpu.memory_space<vmem>>, %arg19: memref<2x256xf32, #tpu.memory_space<vmem>>) attributes {dimension_semantics = [], scalar_prefetch = 0 : i64, scratch_operands = 0 : i64, tpu.core_type = #tpu.core_type<tc>} {
    %c0 = arith.constant 0 : index
    %c0_0 = arith.constant 0 : index
    %0 = vector.load %arg0[%c0, %c0_0] : memref<2048x50xf32, #tpu.memory_space<vmem>>, vector<2048x50xf32>
    %c0_1 = arith.constant 0 : index
    %c0_2 = arith.constant 0 : index
    %1 = vector.load %arg1[%c0_1, %c0_2] : memref<50x8xf32, #tpu.memory_space<vmem>>, vector<50x8xf32>
    %cst = arith.constant dense<0.000000e+00> : vector<2048x8xf32>
    %2 = tpu.matmul %0, %1, %cst {dimension_numbers = #tpu.dot_dimension_numbers<[1], [0], [0], [1], [0, 0, 1, 1], [], []>} : vector<2048x50xf32>, vector<50x8xf32>, vector<2048x8xf32> -> vector<2048x8xf32>
    %c0_3 = arith.constant 0 : index
    %c0_4 = arith.constant 0 : index
    %3 = vector.load %arg2[%c0_3, %c0_4] : memref<3x8xf32, #tpu.memory_space<vmem>>, vector<1x8xf32>
    %c1 = arith.constant 1 : index
    %c0_5 = arith.constant 0 : index
    %4 = vector.load %arg2[%c1, %c0_5] : memref<3x8xf32, #tpu.memory_space<vmem>>, vector<1x8xf32>
    %c2 = arith.constant 2 : index
    %c0_6 = arith.constant 0 : index
    %5 = vector.load %arg2[%c2, %c0_6] : memref<3x8xf32, #tpu.memory_space<vmem>>, vector<1x8xf32>
    %6 = vector.broadcast %3 : vector<1x8xf32> to vector<2048x8xf32>
    %7 = arith.addf %2, %6 : vector<2048x8xf32>
    %cst_7 = arith.constant 0.000000e+00 : f32
    %8 = vector.broadcast %cst_7 : f32 to vector<2048x8xf32>
    %9 = arith.maximumf %7, %8 : vector<2048x8xf32>
    %cst_8 = arith.constant dense<0.000000e+00> : vector<8xf32>
    %10 = vector.multi_reduction <add>, %9, %cst_8 [0] : vector<2048x8xf32> to vector<8xf32>
    %11 = vector.shape_cast %10 : vector<8xf32> to vector<1x8xf32>
    %cst_9 = arith.constant 4.8828125E-4 : f32
    %12 = vector.broadcast %cst_9 : f32 to vector<1x8xf32>
    %13 = arith.mulf %11, %12 : vector<1x8xf32>
    %14 = vector.broadcast %13 : vector<1x8xf32> to vector<2048x8xf32>
    %15 = arith.subf %9, %14 : vector<2048x8xf32>
    %16 = arith.mulf %15, %15 : vector<2048x8xf32>
    %cst_10 = arith.constant dense<0.000000e+00> : vector<8xf32>
    %17 = vector.multi_reduction <add>, %16, %cst_10 [0] : vector<2048x8xf32> to vector<8xf32>
    %18 = vector.shape_cast %17 : vector<8xf32> to vector<1x8xf32>
    %cst_11 = arith.constant 4.8828125E-4 : f32
    %19 = vector.broadcast %cst_11 : f32 to vector<1x8xf32>
    %20 = arith.mulf %18, %19 : vector<1x8xf32>
    %cst_12 = arith.constant 9.99999974E-6 : f32
    %21 = vector.broadcast %cst_12 : f32 to vector<1x8xf32>
    %22 = arith.addf %20, %21 : vector<1x8xf32>
    %23 = math.rsqrt %22 : vector<1x8xf32>
    %24 = arith.mulf %23, %4 : vector<1x8xf32>
    %25 = vector.broadcast %24 : vector<1x8xf32> to vector<2048x8xf32>
    %26 = arith.mulf %15, %25 : vector<2048x8xf32>
    %27 = vector.broadcast %5 : vector<1x8xf32> to vector<2048x8xf32>
    %28 = arith.addf %26, %27 : vector<2048x8xf32>
    %29 = vector.shape_cast %28 : vector<2048x8xf32> to vector<8x16x16x8xf32>
    %30 = vector.extract_strided_slice %29 {offsets = [6, 0, 0, 0], sizes = [2, 16, 16, 8], strides = [1, 1, 1, 1]} : vector<8x16x16x8xf32> to vector<2x16x16x8xf32>
    %cst_13 = arith.constant 0.000000e+00 : f32
    %31 = vector.broadcast %cst_13 : f32 to vector<2x1x16x8xf32>
    %32 = vector.extract_strided_slice %30 {offsets = [0, 0, 0, 0], sizes = [2, 15, 16, 8], strides = [1, 1, 1, 1]} : vector<2x16x16x8xf32> to vector<2x15x16x8xf32>
    %33 = tpu.concatenate %31, %32 in 1 : vector<2x1x16x8xf32>, vector<2x15x16x8xf32> -> vector<2x16x16x8xf32>
    %cst_14 = arith.constant 0.000000e+00 : f32
    %34 = vector.broadcast %cst_14 : f32 to vector<2x16x1x8xf32>
    %35 = vector.extract_strided_slice %33 {offsets = [0, 0, 0, 0], sizes = [2, 16, 15, 8], strides = [1, 1, 1, 1]} : vector<2x16x16x8xf32> to vector<2x16x15x8xf32>
    %36 = tpu.concatenate %34, %35 in 2 : vector<2x16x1x8xf32>, vector<2x16x15x8xf32> -> vector<2x16x16x8xf32>
    %37 = vector.shape_cast %36 : vector<2x16x16x8xf32> to vector<512x8xf32>
    %38 = vector.extract_strided_slice %29 {offsets = [4, 0, 0, 0], sizes = [2, 16, 16, 8], strides = [1, 1, 1, 1]} : vector<8x16x16x8xf32> to vector<2x16x16x8xf32>
    %cst_15 = arith.constant 0.000000e+00 : f32
    %39 = vector.broadcast %cst_15 : f32 to vector<2x1x16x8xf32>
    %40 = vector.extract_strided_slice %38 {offsets = [0, 0, 0, 0], sizes = [2, 15, 16, 8], strides = [1, 1, 1, 1]} : vector<2x16x16x8xf32> to vector<2x15x16x8xf32>
    %41 = tpu.concatenate %39, %40 in 1 : vector<2x1x16x8xf32>, vector<2x15x16x8xf32> -> vector<2x16x16x8xf32>
    %42 = vector.shape_cast %41 : vector<2x16x16x8xf32> to vector<512x8xf32>
    %43 = vector.extract_strided_slice %29 {offsets = [6, 0, 0, 0], sizes = [2, 16, 16, 8], strides = [1, 1, 1, 1]} : vector<8x16x16x8xf32> to vector<2x16x16x8xf32>
    %cst_16 = arith.constant 0.000000e+00 : f32
    %44 = vector.broadcast %cst_16 : f32 to vector<2x1x16x8xf32>
    %45 = vector.extract_strided_slice %43 {offsets = [0, 0, 0, 0], sizes = [2, 15, 16, 8], strides = [1, 1, 1, 1]} : vector<2x16x16x8xf32> to vector<2x15x16x8xf32>
    %46 = tpu.concatenate %44, %45 in 1 : vector<2x1x16x8xf32>, vector<2x15x16x8xf32> -> vector<2x16x16x8xf32>
    %47 = vector.shape_cast %46 : vector<2x16x16x8xf32> to vector<512x8xf32>
    %48 = vector.extract_strided_slice %29 {offsets = [2, 0, 0, 0], sizes = [2, 16, 16, 8], strides = [1, 1, 1, 1]} : vector<8x16x16x8xf32> to vector<2x16x16x8xf32>
    %cst_17 = arith.constant 0.000000e+00 : f32
    %49 = vector.broadcast %cst_17 : f32 to vector<2x16x1x8xf32>
    %50 = vector.extract_strided_slice %48 {offsets = [0, 0, 0, 0], sizes = [2, 16, 15, 8], strides = [1, 1, 1, 1]} : vector<2x16x16x8xf32> to vector<2x16x15x8xf32>
    %51 = tpu.concatenate %49, %50 in 2 : vector<2x16x1x8xf32>, vector<2x16x15x8xf32> -> vector<2x16x16x8xf32>
    %52 = vector.shape_cast %51 : vector<2x16x16x8xf32> to vector<512x8xf32>
    %53 = vector.extract_strided_slice %29 {offsets = [0, 0, 0, 0], sizes = [2, 16, 16, 8], strides = [1, 1, 1, 1]} : vector<8x16x16x8xf32> to vector<2x16x16x8xf32>
    %54 = vector.shape_cast %53 : vector<2x16x16x8xf32> to vector<512x8xf32>
    %55 = vector.extract_strided_slice %29 {offsets = [2, 0, 0, 0], sizes = [2, 16, 16, 8], strides = [1, 1, 1, 1]} : vector<8x16x16x8xf32> to vector<2x16x16x8xf32>
    %56 = vector.shape_cast %55 : vector<2x16x16x8xf32> to vector<512x8xf32>
    %57 = vector.extract_strided_slice %29 {offsets = [6, 0, 0, 0], sizes = [2, 16, 16, 8], strides = [1, 1, 1, 1]} : vector<8x16x16x8xf32> to vector<2x16x16x8xf32>
    %cst_18 = arith.constant 0.000000e+00 : f32
    %58 = vector.broadcast %cst_18 : f32 to vector<2x16x1x8xf32>
    %59 = vector.extract_strided_slice %57 {offsets = [0, 0, 0, 0], sizes = [2, 16, 15, 8], strides = [1, 1, 1, 1]} : vector<2x16x16x8xf32> to vector<2x16x15x8xf32>
    %60 = tpu.concatenate %58, %59 in 2 : vector<2x16x1x8xf32>, vector<2x16x15x8xf32> -> vector<2x16x16x8xf32>
    %61 = vector.shape_cast %60 : vector<2x16x16x8xf32> to vector<512x8xf32>
    %62 = vector.extract_strided_slice %29 {offsets = [4, 0, 0, 0], sizes = [2, 16, 16, 8], strides = [1, 1, 1, 1]} : vector<8x16x16x8xf32> to vector<2x16x16x8xf32>
    %63 = vector.shape_cast %62 : vector<2x16x16x8xf32> to vector<512x8xf32>
    %64 = vector.extract_strided_slice %29 {offsets = [6, 0, 0, 0], sizes = [2, 16, 16, 8], strides = [1, 1, 1, 1]} : vector<8x16x16x8xf32> to vector<2x16x16x8xf32>
    %65 = vector.shape_cast %64 : vector<2x16x16x8xf32> to vector<512x8xf32>
    %66 = tpu.concatenate %37, %42, %47, %52, %54, %56, %61, %63, %65 in 1 : vector<512x8xf32>, vector<512x8xf32>, vector<512x8xf32>, vector<512x8xf32>, vector<512x8xf32>, vector<512x8xf32>, vector<512x8xf32>, vector<512x8xf32>, vector<512x8xf32> -> vector<512x72xf32>
    %c0_19 = arith.constant 0 : index
    %c0_20 = arith.constant 0 : index
    %67 = vector.load %arg3[%c0_19, %c0_20] : memref<72x16xf32, #tpu.memory_space<vmem>>, vector<72x16xf32>
    %cst_21 = arith.constant dense<0.000000e+00> : vector<512x16xf32>
    %68 = tpu.matmul %66, %67, %cst_21 {dimension_numbers = #tpu.dot_dimension_numbers<[1], [0], [0], [1], [0, 0, 1, 1], [], []>} : vector<512x72xf32>, vector<72x16xf32>, vector<512x16xf32> -> vector<512x16xf32>
    %c0_22 = arith.constant 0 : index
    %c0_23 = arith.constant 0 : index
    %69 = vector.load %arg4[%c0_22, %c0_23] : memref<3x16xf32, #tpu.memory_space<vmem>>, vector<1x16xf32>
    %c1_24 = arith.constant 1 : index
    %c0_25 = arith.constant 0 : index
    %70 = vector.load %arg4[%c1_24, %c0_25] : memref<3x16xf32, #tpu.memory_space<vmem>>, vector<1x16xf32>
    %c2_26 = arith.constant 2 : index
    %c0_27 = arith.constant 0 : index
    %71 = vector.load %arg4[%c2_26, %c0_27] : memref<3x16xf32, #tpu.memory_space<vmem>>, vector<1x16xf32>
    %72 = vector.broadcast %69 : vector<1x16xf32> to vector<512x16xf32>
    %73 = arith.addf %68, %72 : vector<512x16xf32>
    %cst_28 = arith.constant 0.000000e+00 : f32
    %74 = vector.broadcast %cst_28 : f32 to vector<512x16xf32>
    %75 = arith.maximumf %73, %74 : vector<512x16xf32>
    %cst_29 = arith.constant dense<0.000000e+00> : vector<16xf32>
    %76 = vector.multi_reduction <add>, %75, %cst_29 [0] : vector<512x16xf32> to vector<16xf32>
    %77 = vector.shape_cast %76 : vector<16xf32> to vector<1x16xf32>
    %cst_30 = arith.constant 0.001953125 : f32
    %78 = vector.broadcast %cst_30 : f32 to vector<1x16xf32>
    %79 = arith.mulf %77, %78 : vector<1x16xf32>
    %80 = vector.broadcast %79 : vector<1x16xf32> to vector<512x16xf32>
    %81 = arith.subf %75, %80 : vector<512x16xf32>
    %82 = arith.mulf %81, %81 : vector<512x16xf32>
    %cst_31 = arith.constant dense<0.000000e+00> : vector<16xf32>
    %83 = vector.multi_reduction <add>, %82, %cst_31 [0] : vector<512x16xf32> to vector<16xf32>
    %84 = vector.shape_cast %83 : vector<16xf32> to vector<1x16xf32>
    %cst_32 = arith.constant 0.001953125 : f32
    %85 = vector.broadcast %cst_32 : f32 to vector<1x16xf32>
    %86 = arith.mulf %84, %85 : vector<1x16xf32>
    %cst_33 = arith.constant 9.99999974E-6 : f32
    %87 = vector.broadcast %cst_33 : f32 to vector<1x16xf32>
    %88 = arith.addf %86, %87 : vector<1x16xf32>
    %89 = math.rsqrt %88 : vector<1x16xf32>
    %90 = arith.mulf %89, %70 : vector<1x16xf32>
    %91 = vector.broadcast %90 : vector<1x16xf32> to vector<512x16xf32>
    %92 = arith.mulf %81, %91 : vector<512x16xf32>
    %93 = vector.broadcast %71 : vector<1x16xf32> to vector<512x16xf32>
    %94 = arith.addf %92, %93 : vector<512x16xf32>
    %c0_34 = arith.constant 0 : index
    %c0_35 = arith.constant 0 : index
    %95 = vector.load %arg5[%c0_34, %c0_35] : memref<576x256xf32, #tpu.memory_space<vmem>>, vector<576x256xf32>
    %c0_36 = arith.constant 0 : index
    %c0_37 = arith.constant 0 : index
    %96 = vector.load %arg6[%c0_36, %c0_37] : memref<144x32xf32, #tpu.memory_space<vmem>>, vector<144x32xf32>
    %97 = vector.extract_strided_slice %94 {offsets = [0, 0], sizes = [256, 16], strides = [1, 1]} : vector<512x16xf32> to vector<256x16xf32>
    %cst_38 = arith.constant dense<0.000000e+00> : vector<576x16xf32>
    %98 = tpu.matmul %95, %97, %cst_38 {dimension_numbers = #tpu.dot_dimension_numbers<[1], [0], [0], [1], [0, 0, 1, 1], [], []>} : vector<576x256xf32>, vector<256x16xf32>, vector<576x16xf32> -> vector<576x16xf32>
    %99 = vector.extract_strided_slice %98 {offsets = [0, 0], sizes = [64, 16], strides = [1, 1]} : vector<576x16xf32> to vector<64x16xf32>
    %100 = vector.extract_strided_slice %98 {offsets = [64, 0], sizes = [64, 16], strides = [1, 1]} : vector<576x16xf32> to vector<64x16xf32>
    %101 = vector.extract_strided_slice %98 {offsets = [128, 0], sizes = [64, 16], strides = [1, 1]} : vector<576x16xf32> to vector<64x16xf32>
    %102 = vector.extract_strided_slice %98 {offsets = [192, 0], sizes = [64, 16], strides = [1, 1]} : vector<576x16xf32> to vector<64x16xf32>
    %103 = vector.extract_strided_slice %98 {offsets = [256, 0], sizes = [64, 16], strides = [1, 1]} : vector<576x16xf32> to vector<64x16xf32>
    %104 = vector.extract_strided_slice %98 {offsets = [320, 0], sizes = [64, 16], strides = [1, 1]} : vector<576x16xf32> to vector<64x16xf32>
    %105 = vector.extract_strided_slice %98 {offsets = [384, 0], sizes = [64, 16], strides = [1, 1]} : vector<576x16xf32> to vector<64x16xf32>
    %106 = vector.extract_strided_slice %98 {offsets = [448, 0], sizes = [64, 16], strides = [1, 1]} : vector<576x16xf32> to vector<64x16xf32>
    %107 = vector.extract_strided_slice %98 {offsets = [512, 0], sizes = [64, 16], strides = [1, 1]} : vector<576x16xf32> to vector<64x16xf32>
    %108 = tpu.concatenate %99, %100, %101, %102, %103, %104, %105, %106, %107 in 1 : vector<64x16xf32>, vector<64x16xf32>, vector<64x16xf32>, vector<64x16xf32>, vector<64x16xf32>, vector<64x16xf32>, vector<64x16xf32>, vector<64x16xf32>, vector<64x16xf32> -> vector<64x144xf32>
    %109 = vector.extract_strided_slice %94 {offsets = [256, 0], sizes = [256, 16], strides = [1, 1]} : vector<512x16xf32> to vector<256x16xf32>
    %cst_39 = arith.constant dense<0.000000e+00> : vector<576x16xf32>
    %110 = tpu.matmul %95, %109, %cst_39 {dimension_numbers = #tpu.dot_dimension_numbers<[1], [0], [0], [1], [0, 0, 1, 1], [], []>} : vector<576x256xf32>, vector<256x16xf32>, vector<576x16xf32> -> vector<576x16xf32>
    %111 = vector.extract_strided_slice %110 {offsets = [0, 0], sizes = [64, 16], strides = [1, 1]} : vector<576x16xf32> to vector<64x16xf32>
    %112 = vector.extract_strided_slice %110 {offsets = [64, 0], sizes = [64, 16], strides = [1, 1]} : vector<576x16xf32> to vector<64x16xf32>
    %113 = vector.extract_strided_slice %110 {offsets = [128, 0], sizes = [64, 16], strides = [1, 1]} : vector<576x16xf32> to vector<64x16xf32>
    %114 = vector.extract_strided_slice %110 {offsets = [192, 0], sizes = [64, 16], strides = [1, 1]} : vector<576x16xf32> to vector<64x16xf32>
    %115 = vector.extract_strided_slice %110 {offsets = [256, 0], sizes = [64, 16], strides = [1, 1]} : vector<576x16xf32> to vector<64x16xf32>
    %116 = vector.extract_strided_slice %110 {offsets = [320, 0], sizes = [64, 16], strides = [1, 1]} : vector<576x16xf32> to vector<64x16xf32>
    %117 = vector.extract_strided_slice %110 {offsets = [384, 0], sizes = [64, 16], strides = [1, 1]} : vector<576x16xf32> to vector<64x16xf32>
    %118 = vector.extract_strided_slice %110 {offsets = [448, 0], sizes = [64, 16], strides = [1, 1]} : vector<576x16xf32> to vector<64x16xf32>
    %119 = vector.extract_strided_slice %110 {offsets = [512, 0], sizes = [64, 16], strides = [1, 1]} : vector<576x16xf32> to vector<64x16xf32>
    %120 = tpu.concatenate %111, %112, %113, %114, %115, %116, %117, %118, %119 in 1 : vector<64x16xf32>, vector<64x16xf32>, vector<64x16xf32>, vector<64x16xf32>, vector<64x16xf32>, vector<64x16xf32>, vector<64x16xf32>, vector<64x16xf32>, vector<64x16xf32> -> vector<64x144xf32>
    %121 = tpu.concatenate %108, %120 in 0 : vector<64x144xf32>, vector<64x144xf32> -> vector<128x144xf32>
    %cst_40 = arith.constant dense<0.000000e+00> : vector<128x32xf32>
    %122 = tpu.matmul %121, %96, %cst_40 {dimension_numbers = #tpu.dot_dimension_numbers<[1], [0], [0], [1], [0, 0, 1, 1], [], []>} : vector<128x144xf32>, vector<144x32xf32>, vector<128x32xf32> -> vector<128x32xf32>
    %c0_41 = arith.constant 0 : index
    %c0_42 = arith.constant 0 : index
    %123 = vector.load %arg7[%c0_41, %c0_42] : memref<3x32xf32, #tpu.memory_space<vmem>>, vector<1x32xf32>
    %c1_43 = arith.constant 1 : index
    %c0_44 = arith.constant 0 : index
    %124 = vector.load %arg7[%c1_43, %c0_44] : memref<3x32xf32, #tpu.memory_space<vmem>>, vector<1x32xf32>
    %c2_45 = arith.constant 2 : index
    %c0_46 = arith.constant 0 : index
    %125 = vector.load %arg7[%c2_45, %c0_46] : memref<3x32xf32, #tpu.memory_space<vmem>>, vector<1x32xf32>
    %126 = vector.broadcast %123 : vector<1x32xf32> to vector<128x32xf32>
    %127 = arith.addf %122, %126 : vector<128x32xf32>
    %cst_47 = arith.constant 0.000000e+00 : f32
    %128 = vector.broadcast %cst_47 : f32 to vector<128x32xf32>
    %129 = arith.maximumf %127, %128 : vector<128x32xf32>
    %cst_48 = arith.constant dense<0.000000e+00> : vector<32xf32>
    %130 = vector.multi_reduction <add>, %129, %cst_48 [0] : vector<128x32xf32> to vector<32xf32>
    %131 = vector.shape_cast %130 : vector<32xf32> to vector<1x32xf32>
    %cst_49 = arith.constant 7.812500e-03 : f32
    %132 = vector.broadcast %cst_49 : f32 to vector<1x32xf32>
    %133 = arith.mulf %131, %132 : vector<1x32xf32>
    %134 = vector.broadcast %133 : vector<1x32xf32> to vector<128x32xf32>
    %135 = arith.subf %129, %134 : vector<128x32xf32>
    %136 = arith.mulf %135, %135 : vector<128x32xf32>
    %cst_50 = arith.constant dense<0.000000e+00> : vector<32xf32>
    %137 = vector.multi_reduction <add>, %136, %cst_50 [0] : vector<128x32xf32> to vector<32xf32>
    %138 = vector.shape_cast %137 : vector<32xf32> to vector<1x32xf32>
    %cst_51 = arith.constant 7.812500e-03 : f32
    %139 = vector.broadcast %cst_51 : f32 to vector<1x32xf32>
    %140 = arith.mulf %138, %139 : vector<1x32xf32>
    %cst_52 = arith.constant 9.99999974E-6 : f32
    %141 = vector.broadcast %cst_52 : f32 to vector<1x32xf32>
    %142 = arith.addf %140, %141 : vector<1x32xf32>
    %143 = math.rsqrt %142 : vector<1x32xf32>
    %144 = arith.mulf %143, %124 : vector<1x32xf32>
    %145 = vector.broadcast %144 : vector<1x32xf32> to vector<128x32xf32>
    %146 = arith.mulf %135, %145 : vector<128x32xf32>
    %147 = vector.broadcast %125 : vector<1x32xf32> to vector<128x32xf32>
    %148 = arith.addf %146, %147 : vector<128x32xf32>
    %c0_53 = arith.constant 0 : index
    %c0_54 = arith.constant 0 : index
    %149 = vector.load %arg8[%c0_53, %c0_54] : memref<144x64xf32, #tpu.memory_space<vmem>>, vector<144x64xf32>
    %c0_55 = arith.constant 0 : index
    %c0_56 = arith.constant 0 : index
    %150 = vector.load %arg9[%c0_55, %c0_56] : memref<288x64xf32, #tpu.memory_space<vmem>>, vector<288x64xf32>
    %151 = vector.extract_strided_slice %148 {offsets = [0, 0], sizes = [64, 32], strides = [1, 1]} : vector<128x32xf32> to vector<64x32xf32>
    %cst_57 = arith.constant dense<0.000000e+00> : vector<144x32xf32>
    %152 = tpu.matmul %149, %151, %cst_57 {dimension_numbers = #tpu.dot_dimension_numbers<[1], [0], [0], [1], [0, 0, 1, 1], [], []>} : vector<144x64xf32>, vector<64x32xf32>, vector<144x32xf32> -> vector<144x32xf32>
    %153 = vector.extract_strided_slice %152 {offsets = [0, 0], sizes = [16, 32], strides = [1, 1]} : vector<144x32xf32> to vector<16x32xf32>
    %154 = vector.extract_strided_slice %152 {offsets = [16, 0], sizes = [16, 32], strides = [1, 1]} : vector<144x32xf32> to vector<16x32xf32>
    %155 = vector.extract_strided_slice %152 {offsets = [32, 0], sizes = [16, 32], strides = [1, 1]} : vector<144x32xf32> to vector<16x32xf32>
    %156 = vector.extract_strided_slice %152 {offsets = [48, 0], sizes = [16, 32], strides = [1, 1]} : vector<144x32xf32> to vector<16x32xf32>
    %157 = vector.extract_strided_slice %152 {offsets = [64, 0], sizes = [16, 32], strides = [1, 1]} : vector<144x32xf32> to vector<16x32xf32>
    %158 = vector.extract_strided_slice %152 {offsets = [80, 0], sizes = [16, 32], strides = [1, 1]} : vector<144x32xf32> to vector<16x32xf32>
    %159 = vector.extract_strided_slice %152 {offsets = [96, 0], sizes = [16, 32], strides = [1, 1]} : vector<144x32xf32> to vector<16x32xf32>
    %160 = vector.extract_strided_slice %152 {offsets = [112, 0], sizes = [16, 32], strides = [1, 1]} : vector<144x32xf32> to vector<16x32xf32>
    %161 = vector.extract_strided_slice %152 {offsets = [128, 0], sizes = [16, 32], strides = [1, 1]} : vector<144x32xf32> to vector<16x32xf32>
    %162 = tpu.concatenate %153, %154, %155, %156, %157, %158, %159, %160, %161 in 1 : vector<16x32xf32>, vector<16x32xf32>, vector<16x32xf32>, vector<16x32xf32>, vector<16x32xf32>, vector<16x32xf32>, vector<16x32xf32>, vector<16x32xf32>, vector<16x32xf32> -> vector<16x288xf32>
    %163 = vector.extract_strided_slice %148 {offsets = [64, 0], sizes = [64, 32], strides = [1, 1]} : vector<128x32xf32> to vector<64x32xf32>
    %cst_58 = arith.constant dense<0.000000e+00> : vector<144x32xf32>
    %164 = tpu.matmul %149, %163, %cst_58 {dimension_numbers = #tpu.dot_dimension_numbers<[1], [0], [0], [1], [0, 0, 1, 1], [], []>} : vector<144x64xf32>, vector<64x32xf32>, vector<144x32xf32> -> vector<144x32xf32>
    %165 = vector.extract_strided_slice %164 {offsets = [0, 0], sizes = [16, 32], strides = [1, 1]} : vector<144x32xf32> to vector<16x32xf32>
    %166 = vector.extract_strided_slice %164 {offsets = [16, 0], sizes = [16, 32], strides = [1, 1]} : vector<144x32xf32> to vector<16x32xf32>
    %167 = vector.extract_strided_slice %164 {offsets = [32, 0], sizes = [16, 32], strides = [1, 1]} : vector<144x32xf32> to vector<16x32xf32>
    %168 = vector.extract_strided_slice %164 {offsets = [48, 0], sizes = [16, 32], strides = [1, 1]} : vector<144x32xf32> to vector<16x32xf32>
    %169 = vector.extract_strided_slice %164 {offsets = [64, 0], sizes = [16, 32], strides = [1, 1]} : vector<144x32xf32> to vector<16x32xf32>
    %170 = vector.extract_strided_slice %164 {offsets = [80, 0], sizes = [16, 32], strides = [1, 1]} : vector<144x32xf32> to vector<16x32xf32>
    %171 = vector.extract_strided_slice %164 {offsets = [96, 0], sizes = [16, 32], strides = [1, 1]} : vector<144x32xf32> to vector<16x32xf32>
    %172 = vector.extract_strided_slice %164 {offsets = [112, 0], sizes = [16, 32], strides = [1, 1]} : vector<144x32xf32> to vector<16x32xf32>
    %173 = vector.extract_strided_slice %164 {offsets = [128, 0], sizes = [16, 32], strides = [1, 1]} : vector<144x32xf32> to vector<16x32xf32>
    %174 = tpu.concatenate %165, %166, %167, %168, %169, %170, %171, %172, %173 in 1 : vector<16x32xf32>, vector<16x32xf32>, vector<16x32xf32>, vector<16x32xf32>, vector<16x32xf32>, vector<16x32xf32>, vector<16x32xf32>, vector<16x32xf32>, vector<16x32xf32> -> vector<16x288xf32>
    %175 = tpu.concatenate %162, %174 in 0 : vector<16x288xf32>, vector<16x288xf32> -> vector<32x288xf32>
    %cst_59 = arith.constant dense<0.000000e+00> : vector<32x64xf32>
    %176 = tpu.matmul %175, %150, %cst_59 {dimension_numbers = #tpu.dot_dimension_numbers<[1], [0], [0], [1], [0, 0, 1, 1], [], []>} : vector<32x288xf32>, vector<288x64xf32>, vector<32x64xf32> -> vector<32x64xf32>
    %c0_60 = arith.constant 0 : index
    %c0_61 = arith.constant 0 : index
    %177 = vector.load %arg10[%c0_60, %c0_61] : memref<3x64xf32, #tpu.memory_space<vmem>>, vector<1x64xf32>
    %c1_62 = arith.constant 1 : index
    %c0_63 = arith.constant 0 : index
    %178 = vector.load %arg10[%c1_62, %c0_63] : memref<3x64xf32, #tpu.memory_space<vmem>>, vector<1x64xf32>
    %c2_64 = arith.constant 2 : index
    %c0_65 = arith.constant 0 : index
    %179 = vector.load %arg10[%c2_64, %c0_65] : memref<3x64xf32, #tpu.memory_space<vmem>>, vector<1x64xf32>
    %180 = vector.broadcast %177 : vector<1x64xf32> to vector<32x64xf32>
    %181 = arith.addf %176, %180 : vector<32x64xf32>
    %cst_66 = arith.constant 0.000000e+00 : f32
    %182 = vector.broadcast %cst_66 : f32 to vector<32x64xf32>
    %183 = arith.maximumf %181, %182 : vector<32x64xf32>
    %cst_67 = arith.constant dense<0.000000e+00> : vector<64xf32>
    %184 = vector.multi_reduction <add>, %183, %cst_67 [0] : vector<32x64xf32> to vector<64xf32>
    %185 = vector.shape_cast %184 : vector<64xf32> to vector<1x64xf32>
    %cst_68 = arith.constant 3.125000e-02 : f32
    %186 = vector.broadcast %cst_68 : f32 to vector<1x64xf32>
    %187 = arith.mulf %185, %186 : vector<1x64xf32>
    %188 = vector.broadcast %187 : vector<1x64xf32> to vector<32x64xf32>
    %189 = arith.subf %183, %188 : vector<32x64xf32>
    %190 = arith.mulf %189, %189 : vector<32x64xf32>
    %cst_69 = arith.constant dense<0.000000e+00> : vector<64xf32>
    %191 = vector.multi_reduction <add>, %190, %cst_69 [0] : vector<32x64xf32> to vector<64xf32>
    %192 = vector.shape_cast %191 : vector<64xf32> to vector<1x64xf32>
    %cst_70 = arith.constant 3.125000e-02 : f32
    %193 = vector.broadcast %cst_70 : f32 to vector<1x64xf32>
    %194 = arith.mulf %192, %193 : vector<1x64xf32>
    %cst_71 = arith.constant 9.99999974E-6 : f32
    %195 = vector.broadcast %cst_71 : f32 to vector<1x64xf32>
    %196 = arith.addf %194, %195 : vector<1x64xf32>
    %197 = math.rsqrt %196 : vector<1x64xf32>
    %198 = arith.mulf %197, %178 : vector<1x64xf32>
    %199 = vector.broadcast %198 : vector<1x64xf32> to vector<32x64xf32>
    %200 = arith.mulf %189, %199 : vector<32x64xf32>
    %201 = vector.broadcast %179 : vector<1x64xf32> to vector<32x64xf32>
    %202 = arith.addf %200, %201 : vector<32x64xf32>
    %c0_72 = arith.constant 0 : index
    %c0_73 = arith.constant 0 : index
    %203 = vector.load %arg11[%c0_72, %c0_73] : memref<36x16xf32, #tpu.memory_space<vmem>>, vector<36x16xf32>
    %c0_74 = arith.constant 0 : index
    %c0_75 = arith.constant 0 : index
    %204 = vector.load %arg12[%c0_74, %c0_75] : memref<576x128xf32, #tpu.memory_space<vmem>>, vector<576x128xf32>
    %205 = vector.extract_strided_slice %202 {offsets = [0, 0], sizes = [16, 64], strides = [1, 1]} : vector<32x64xf32> to vector<16x64xf32>
    %cst_76 = arith.constant dense<0.000000e+00> : vector<36x64xf32>
    %206 = tpu.matmul %203, %205, %cst_76 {dimension_numbers = #tpu.dot_dimension_numbers<[1], [0], [0], [1], [0, 0, 1, 1], [], []>} : vector<36x16xf32>, vector<16x64xf32>, vector<36x64xf32> -> vector<36x64xf32>
    %207 = vector.extract_strided_slice %206 {offsets = [0, 0], sizes = [4, 64], strides = [1, 1]} : vector<36x64xf32> to vector<4x64xf32>
    %208 = vector.extract_strided_slice %206 {offsets = [4, 0], sizes = [4, 64], strides = [1, 1]} : vector<36x64xf32> to vector<4x64xf32>
    %209 = vector.extract_strided_slice %206 {offsets = [8, 0], sizes = [4, 64], strides = [1, 1]} : vector<36x64xf32> to vector<4x64xf32>
    %210 = vector.extract_strided_slice %206 {offsets = [12, 0], sizes = [4, 64], strides = [1, 1]} : vector<36x64xf32> to vector<4x64xf32>
    %211 = vector.extract_strided_slice %206 {offsets = [16, 0], sizes = [4, 64], strides = [1, 1]} : vector<36x64xf32> to vector<4x64xf32>
    %212 = vector.extract_strided_slice %206 {offsets = [20, 0], sizes = [4, 64], strides = [1, 1]} : vector<36x64xf32> to vector<4x64xf32>
    %213 = vector.extract_strided_slice %206 {offsets = [24, 0], sizes = [4, 64], strides = [1, 1]} : vector<36x64xf32> to vector<4x64xf32>
    %214 = vector.extract_strided_slice %206 {offsets = [28, 0], sizes = [4, 64], strides = [1, 1]} : vector<36x64xf32> to vector<4x64xf32>
    %215 = vector.extract_strided_slice %206 {offsets = [32, 0], sizes = [4, 64], strides = [1, 1]} : vector<36x64xf32> to vector<4x64xf32>
    %216 = tpu.concatenate %207, %208, %209, %210, %211, %212, %213, %214, %215 in 1 : vector<4x64xf32>, vector<4x64xf32>, vector<4x64xf32>, vector<4x64xf32>, vector<4x64xf32>, vector<4x64xf32>, vector<4x64xf32>, vector<4x64xf32>, vector<4x64xf32> -> vector<4x576xf32>
    %217 = vector.extract_strided_slice %202 {offsets = [16, 0], sizes = [16, 64], strides = [1, 1]} : vector<32x64xf32> to vector<16x64xf32>
    %cst_77 = arith.constant dense<0.000000e+00> : vector<36x64xf32>
    %218 = tpu.matmul %203, %217, %cst_77 {dimension_numbers = #tpu.dot_dimension_numbers<[1], [0], [0], [1], [0, 0, 1, 1], [], []>} : vector<36x16xf32>, vector<16x64xf32>, vector<36x64xf32> -> vector<36x64xf32>
    %219 = vector.extract_strided_slice %218 {offsets = [0, 0], sizes = [4, 64], strides = [1, 1]} : vector<36x64xf32> to vector<4x64xf32>
    %220 = vector.extract_strided_slice %218 {offsets = [4, 0], sizes = [4, 64], strides = [1, 1]} : vector<36x64xf32> to vector<4x64xf32>
    %221 = vector.extract_strided_slice %218 {offsets = [8, 0], sizes = [4, 64], strides = [1, 1]} : vector<36x64xf32> to vector<4x64xf32>
    %222 = vector.extract_strided_slice %218 {offsets = [12, 0], sizes = [4, 64], strides = [1, 1]} : vector<36x64xf32> to vector<4x64xf32>
    %223 = vector.extract_strided_slice %218 {offsets = [16, 0], sizes = [4, 64], strides = [1, 1]} : vector<36x64xf32> to vector<4x64xf32>
    %224 = vector.extract_strided_slice %218 {offsets = [20, 0], sizes = [4, 64], strides = [1, 1]} : vector<36x64xf32> to vector<4x64xf32>
    %225 = vector.extract_strided_slice %218 {offsets = [24, 0], sizes = [4, 64], strides = [1, 1]} : vector<36x64xf32> to vector<4x64xf32>
    %226 = vector.extract_strided_slice %218 {offsets = [28, 0], sizes = [4, 64], strides = [1, 1]} : vector<36x64xf32> to vector<4x64xf32>
    %227 = vector.extract_strided_slice %218 {offsets = [32, 0], sizes = [4, 64], strides = [1, 1]} : vector<36x64xf32> to vector<4x64xf32>
    %228 = tpu.concatenate %219, %220, %221, %222, %223, %224, %225, %226, %227 in 1 : vector<4x64xf32>, vector<4x64xf32>, vector<4x64xf32>, vector<4x64xf32>, vector<4x64xf32>, vector<4x64xf32>, vector<4x64xf32>, vector<4x64xf32>, vector<4x64xf32> -> vector<4x576xf32>
    %229 = tpu.concatenate %216, %228 in 0 : vector<4x576xf32>, vector<4x576xf32> -> vector<8x576xf32>
    %cst_78 = arith.constant dense<0.000000e+00> : vector<8x128xf32>
    %230 = tpu.matmul %229, %204, %cst_78 {dimension_numbers = #tpu.dot_dimension_numbers<[1], [0], [0], [1], [0, 0, 1, 1], [], []>} : vector<8x576xf32>, vector<576x128xf32>, vector<8x128xf32> -> vector<8x128xf32>
    %c0_79 = arith.constant 0 : index
    %c0_80 = arith.constant 0 : index
    %231 = vector.load %arg13[%c0_79, %c0_80] : memref<3x128xf32, #tpu.memory_space<vmem>>, vector<1x128xf32>
    %c1_81 = arith.constant 1 : index
    %c0_82 = arith.constant 0 : index
    %232 = vector.load %arg13[%c1_81, %c0_82] : memref<3x128xf32, #tpu.memory_space<vmem>>, vector<1x128xf32>
    %c2_83 = arith.constant 2 : index
    %c0_84 = arith.constant 0 : index
    %233 = vector.load %arg13[%c2_83, %c0_84] : memref<3x128xf32, #tpu.memory_space<vmem>>, vector<1x128xf32>
    %234 = vector.broadcast %231 : vector<1x128xf32> to vector<8x128xf32>
    %235 = arith.addf %230, %234 : vector<8x128xf32>
    %cst_85 = arith.constant 0.000000e+00 : f32
    %236 = vector.broadcast %cst_85 : f32 to vector<8x128xf32>
    %237 = arith.maximumf %235, %236 : vector<8x128xf32>
    %cst_86 = arith.constant dense<0.000000e+00> : vector<128xf32>
    %238 = vector.multi_reduction <add>, %237, %cst_86 [0] : vector<8x128xf32> to vector<128xf32>
    %239 = vector.shape_cast %238 : vector<128xf32> to vector<1x128xf32>
    %cst_87 = arith.constant 1.250000e-01 : f32
    %240 = vector.broadcast %cst_87 : f32 to vector<1x128xf32>
    %241 = arith.mulf %239, %240 : vector<1x128xf32>
    %242 = vector.broadcast %241 : vector<1x128xf32> to vector<8x128xf32>
    %243 = arith.subf %237, %242 : vector<8x128xf32>
    %244 = arith.mulf %243, %243 : vector<8x128xf32>
    %cst_88 = arith.constant dense<0.000000e+00> : vector<128xf32>
    %245 = vector.multi_reduction <add>, %244, %cst_88 [0] : vector<8x128xf32> to vector<128xf32>
    %246 = vector.shape_cast %245 : vector<128xf32> to vector<1x128xf32>
    %cst_89 = arith.constant 1.250000e-01 : f32
    %247 = vector.broadcast %cst_89 : f32 to vector<1x128xf32>
    %248 = arith.mulf %246, %247 : vector<1x128xf32>
    %cst_90 = arith.constant 9.99999974E-6 : f32
    %249 = vector.broadcast %cst_90 : f32 to vector<1x128xf32>
    %250 = arith.addf %248, %249 : vector<1x128xf32>
    %251 = math.rsqrt %250 : vector<1x128xf32>
    %252 = arith.mulf %251, %232 : vector<1x128xf32>
    %253 = vector.broadcast %252 : vector<1x128xf32> to vector<8x128xf32>
    %254 = arith.mulf %243, %253 : vector<8x128xf32>
    %255 = vector.broadcast %233 : vector<1x128xf32> to vector<8x128xf32>
    %256 = arith.addf %254, %255 : vector<8x128xf32>
    %c0_91 = arith.constant 0 : index
    %c0_92 = arith.constant 0 : index
    %257 = vector.load %arg14[%c0_91, %c0_92] : memref<9x4xf32, #tpu.memory_space<vmem>>, vector<9x4xf32>
    %c0_93 = arith.constant 0 : index
    %c0_94 = arith.constant 0 : index
    %258 = vector.load %arg15[%c0_93, %c0_94] : memref<1152x256xf32, #tpu.memory_space<vmem>>, vector<1152x256xf32>
    %259 = vector.extract_strided_slice %256 {offsets = [0, 0], sizes = [4, 128], strides = [1, 1]} : vector<8x128xf32> to vector<4x128xf32>
    %cst_95 = arith.constant dense<0.000000e+00> : vector<9x128xf32>
    %260 = tpu.matmul %257, %259, %cst_95 {dimension_numbers = #tpu.dot_dimension_numbers<[1], [0], [0], [1], [0, 0, 1, 1], [], []>} : vector<9x4xf32>, vector<4x128xf32>, vector<9x128xf32> -> vector<9x128xf32>
    %261 = vector.extract_strided_slice %260 {offsets = [0, 0], sizes = [1, 128], strides = [1, 1]} : vector<9x128xf32> to vector<1x128xf32>
    %262 = vector.extract_strided_slice %260 {offsets = [1, 0], sizes = [1, 128], strides = [1, 1]} : vector<9x128xf32> to vector<1x128xf32>
    %263 = vector.extract_strided_slice %260 {offsets = [2, 0], sizes = [1, 128], strides = [1, 1]} : vector<9x128xf32> to vector<1x128xf32>
    %264 = vector.extract_strided_slice %260 {offsets = [3, 0], sizes = [1, 128], strides = [1, 1]} : vector<9x128xf32> to vector<1x128xf32>
    %265 = vector.extract_strided_slice %260 {offsets = [4, 0], sizes = [1, 128], strides = [1, 1]} : vector<9x128xf32> to vector<1x128xf32>
    %266 = vector.extract_strided_slice %260 {offsets = [5, 0], sizes = [1, 128], strides = [1, 1]} : vector<9x128xf32> to vector<1x128xf32>
    %267 = vector.extract_strided_slice %260 {offsets = [6, 0], sizes = [1, 128], strides = [1, 1]} : vector<9x128xf32> to vector<1x128xf32>
    %268 = vector.extract_strided_slice %260 {offsets = [7, 0], sizes = [1, 128], strides = [1, 1]} : vector<9x128xf32> to vector<1x128xf32>
    %269 = vector.extract_strided_slice %260 {offsets = [8, 0], sizes = [1, 128], strides = [1, 1]} : vector<9x128xf32> to vector<1x128xf32>
    %270 = tpu.concatenate %261, %262, %263, %264, %265, %266, %267, %268, %269 in 1 : vector<1x128xf32>, vector<1x128xf32>, vector<1x128xf32>, vector<1x128xf32>, vector<1x128xf32>, vector<1x128xf32>, vector<1x128xf32>, vector<1x128xf32>, vector<1x128xf32> -> vector<1x1152xf32>
    %271 = vector.extract_strided_slice %256 {offsets = [4, 0], sizes = [4, 128], strides = [1, 1]} : vector<8x128xf32> to vector<4x128xf32>
    %cst_96 = arith.constant dense<0.000000e+00> : vector<9x128xf32>
    %272 = tpu.matmul %257, %271, %cst_96 {dimension_numbers = #tpu.dot_dimension_numbers<[1], [0], [0], [1], [0, 0, 1, 1], [], []>} : vector<9x4xf32>, vector<4x128xf32>, vector<9x128xf32> -> vector<9x128xf32>
    %273 = vector.extract_strided_slice %272 {offsets = [0, 0], sizes = [1, 128], strides = [1, 1]} : vector<9x128xf32> to vector<1x128xf32>
    %274 = vector.extract_strided_slice %272 {offsets = [1, 0], sizes = [1, 128], strides = [1, 1]} : vector<9x128xf32> to vector<1x128xf32>
    %275 = vector.extract_strided_slice %272 {offsets = [2, 0], sizes = [1, 128], strides = [1, 1]} : vector<9x128xf32> to vector<1x128xf32>
    %276 = vector.extract_strided_slice %272 {offsets = [3, 0], sizes = [1, 128], strides = [1, 1]} : vector<9x128xf32> to vector<1x128xf32>
    %277 = vector.extract_strided_slice %272 {offsets = [4, 0], sizes = [1, 128], strides = [1, 1]} : vector<9x128xf32> to vector<1x128xf32>
    %278 = vector.extract_strided_slice %272 {offsets = [5, 0], sizes = [1, 128], strides = [1, 1]} : vector<9x128xf32> to vector<1x128xf32>
    %279 = vector.extract_strided_slice %272 {offsets = [6, 0], sizes = [1, 128], strides = [1, 1]} : vector<9x128xf32> to vector<1x128xf32>
    %280 = vector.extract_strided_slice %272 {offsets = [7, 0], sizes = [1, 128], strides = [1, 1]} : vector<9x128xf32> to vector<1x128xf32>
    %281 = vector.extract_strided_slice %272 {offsets = [8, 0], sizes = [1, 128], strides = [1, 1]} : vector<9x128xf32> to vector<1x128xf32>
    %282 = tpu.concatenate %273, %274, %275, %276, %277, %278, %279, %280, %281 in 1 : vector<1x128xf32>, vector<1x128xf32>, vector<1x128xf32>, vector<1x128xf32>, vector<1x128xf32>, vector<1x128xf32>, vector<1x128xf32>, vector<1x128xf32>, vector<1x128xf32> -> vector<1x1152xf32>
    %283 = tpu.concatenate %270, %282 in 0 : vector<1x1152xf32>, vector<1x1152xf32> -> vector<2x1152xf32>
    %cst_97 = arith.constant dense<0.000000e+00> : vector<2x256xf32>
    %284 = tpu.matmul %283, %258, %cst_97 {dimension_numbers = #tpu.dot_dimension_numbers<[1], [0], [0], [1], [0, 0, 1, 1], [], []>} : vector<2x1152xf32>, vector<1152x256xf32>, vector<2x256xf32> -> vector<2x256xf32>
    %c0_98 = arith.constant 0 : index
    %c0_99 = arith.constant 0 : index
    %285 = vector.load %arg16[%c0_98, %c0_99] : memref<3x256xf32, #tpu.memory_space<vmem>>, vector<1x256xf32>
    %c1_100 = arith.constant 1 : index
    %c0_101 = arith.constant 0 : index
    %286 = vector.load %arg16[%c1_100, %c0_101] : memref<3x256xf32, #tpu.memory_space<vmem>>, vector<1x256xf32>
    %c2_102 = arith.constant 2 : index
    %c0_103 = arith.constant 0 : index
    %287 = vector.load %arg16[%c2_102, %c0_103] : memref<3x256xf32, #tpu.memory_space<vmem>>, vector<1x256xf32>
    %288 = vector.broadcast %285 : vector<1x256xf32> to vector<2x256xf32>
    %289 = arith.addf %284, %288 : vector<2x256xf32>
    %cst_104 = arith.constant 0.000000e+00 : f32
    %290 = vector.broadcast %cst_104 : f32 to vector<2x256xf32>
    %291 = arith.maximumf %289, %290 : vector<2x256xf32>
    %cst_105 = arith.constant dense<0.000000e+00> : vector<256xf32>
    %292 = vector.multi_reduction <add>, %291, %cst_105 [0] : vector<2x256xf32> to vector<256xf32>
    %293 = vector.shape_cast %292 : vector<256xf32> to vector<1x256xf32>
    %cst_106 = arith.constant 5.000000e-01 : f32
    %294 = vector.broadcast %cst_106 : f32 to vector<1x256xf32>
    %295 = arith.mulf %293, %294 : vector<1x256xf32>
    %296 = vector.broadcast %295 : vector<1x256xf32> to vector<2x256xf32>
    %297 = arith.subf %291, %296 : vector<2x256xf32>
    %298 = arith.mulf %297, %297 : vector<2x256xf32>
    %cst_107 = arith.constant dense<0.000000e+00> : vector<256xf32>
    %299 = vector.multi_reduction <add>, %298, %cst_107 [0] : vector<2x256xf32> to vector<256xf32>
    %300 = vector.shape_cast %299 : vector<256xf32> to vector<1x256xf32>
    %cst_108 = arith.constant 5.000000e-01 : f32
    %301 = vector.broadcast %cst_108 : f32 to vector<1x256xf32>
    %302 = arith.mulf %300, %301 : vector<1x256xf32>
    %cst_109 = arith.constant 9.99999974E-6 : f32
    %303 = vector.broadcast %cst_109 : f32 to vector<1x256xf32>
    %304 = arith.addf %302, %303 : vector<1x256xf32>
    %305 = math.rsqrt %304 : vector<1x256xf32>
    %306 = arith.mulf %305, %286 : vector<1x256xf32>
    %307 = vector.broadcast %306 : vector<1x256xf32> to vector<2x256xf32>
    %308 = arith.mulf %297, %307 : vector<2x256xf32>
    %309 = vector.broadcast %287 : vector<1x256xf32> to vector<2x256xf32>
    %310 = arith.addf %308, %309 : vector<2x256xf32>
    %c0_110 = arith.constant 0 : index
    %c0_111 = arith.constant 0 : index
    %311 = vector.load %arg17[%c0_110, %c0_111] : memref<256x256xf32, #tpu.memory_space<vmem>>, vector<256x256xf32>
    %cst_112 = arith.constant dense<0.000000e+00> : vector<2x256xf32>
    %312 = tpu.matmul %310, %311, %cst_112 {dimension_numbers = #tpu.dot_dimension_numbers<[1], [0], [0], [1], [0, 0, 1, 1], [], []>} : vector<2x256xf32>, vector<256x256xf32>, vector<2x256xf32> -> vector<2x256xf32>
    %c0_113 = arith.constant 0 : index
    %c0_114 = arith.constant 0 : index
    %313 = vector.load %arg18[%c0_113, %c0_114] : memref<1x256xf32, #tpu.memory_space<vmem>>, vector<1x256xf32>
    %314 = vector.broadcast %313 : vector<1x256xf32> to vector<2x256xf32>
    %315 = arith.addf %312, %314 : vector<2x256xf32>
    %c0_115 = arith.constant 0 : index
    %c0_116 = arith.constant 0 : index
    %316 = vector.load %arg19[%c0_115, %c0_116] : memref<2x256xf32, #tpu.memory_space<vmem>>, vector<2x256xf32>
    tpu.vector_store %arg19[%c0_115, %c0_116], %315 {strides = array<i32>} : memref<2x256xf32, #tpu.memory_space<vmem>>, vector<2x256xf32>,
    return
  }
}

</mosaic_0001>

<llo_original>
// kernel: forward.1
$region0: #{forward.1}
  #allocation0 [shape = 'u32[]', space=smem, size = 0x4, offset = 0x4, fixed_abs, tag = 'smem constant byte address 0x4 - core index']
  #allocation1 [shape = 'u32[144,128]{1,0:T(1,128)}', space=vmem, size = 0x12000, scoped, tag = 'internal scratch']
  %s0 = inlined_call_operand.vmem [shape: f32[2048,50], index: 0, kind: input, shape index: {}]
  %s1 = inlined_call_operand.vmem [shape: f32[50,8], index: 1, kind: input, shape index: {}]
  %s2 = inlined_call_operand.vmem [shape: f32[3,8], index: 2, kind: input, shape index: {}]
  %s3 = inlined_call_operand.vmem [shape: f32[72,16], index: 3, kind: input, shape index: {}]
  %s4 = inlined_call_operand.vmem [shape: f32[3,16], index: 4, kind: input, shape index: {}]
  %s5 = inlined_call_operand.vmem [shape: f32[576,256], index: 5, kind: input, shape index: {}]
  %s6 = inlined_call_operand.vmem [shape: f32[144,32], index: 6, kind: input, shape index: {}]
  %s7 = inlined_call_operand.vmem [shape: f32[3,32], index: 7, kind: input, shape index: {}]
  %s8 = inlined_call_operand.vmem [shape: f32[144,64], index: 8, kind: input, shape index: {}]
  %s9 = inlined_call_operand.vmem [shape: f32[288,64], index: 9, kind: input, shape index: {}]
  %s10 = inlined_call_operand.vmem [shape: f32[3,64], index: 10, kind: input, shape index: {}]
  %s11 = inlined_call_operand.vmem [shape: f32[36,16], index: 11, kind: input, shape index: {}]
  %s12 = inlined_call_operand.vmem [shape: f32[576,128], index: 12, kind: input, shape index: {}]
  %s13 = inlined_call_operand.vmem [shape: f32[3,128], index: 13, kind: input, shape index: {}]
  %s14 = inlined_call_operand.vmem [shape: f32[9,4], index: 14, kind: input, shape index: {}]
  %s15 = inlined_call_operand.vmem [shape: f32[1152,256], index: 15, kind: input, shape index: {}]
  %s16 = inlined_call_operand.vmem [shape: f32[3,256], index: 16, kind: input, shape index: {}]
  %s17 = inlined_call_operand.vmem [shape: f32[256,256], index: 17, kind: input, shape index: {}]
  %s18 = inlined_call_operand.vmem [shape: f32[1,256], index: 18, kind: input, shape index: {}]
  %s19 = inlined_call_operand.hbm [shape: f32[2,256], index: 19, kind: output, shape index: {}]
  %s20 = sld [smem:[#allocation0]]
  $region86: #{forward.1} parent=0
    _
  %s22 = ssub.s32 1, %s20
  %s23 = scalar_select 0, %s22, %s20
  $region1: #{forward.1} parent=0
    #allocation2 [shape = 'u8[2048]{0}', space=vmem, size = 0x800, scoped, tag = 'output window, operand 0, single buffered']
    #allocation3 [shape = 's32[1]{0}', space=sflag, size = 0x4, scoped, tag = 'scoped memory for forward.1']
    %24 = vsyncpa [#allocation3], 0
    // Predicated region
    $region2: #{forward.1} parent=1 // pred_check
      _
    $region3: #{forward.1} parent=1 // pred_check_branch
      %26 = sbr.rel (0) target = $region5
    $region4: #{forward.1} parent=1 // pred_region
      _
    $region5: #{forward.1} parent=1 // pred_fallthru
      _
    // Predicated region
    $region6: #{forward.1} parent=1 // pred_check
      _
    $region7: #{forward.1} parent=1 // pred_check_branch
      %28 = sbr.rel (0) target = $region9
    $region8: #{forward.1} parent=1 // pred_region
      _
    $region9: #{forward.1} parent=1 // pred_fallthru
      _
    // Predicated region
    $region10: #{forward.1} parent=1 // pred_check
      _
    $region11: #{forward.1} parent=1 // pred_check_branch
      %30 = sbr.rel (0) target = $region13
    $region12: #{forward.1} parent=1 // pred_region
      _
    $region13: #{forward.1} parent=1 // pred_fallthru
      _
    // Predicated region
    $region14: #{forward.1} parent=1 // pred_check
      _
    $region15: #{forward.1} parent=1 // pred_check_branch
      %32 = sbr.rel (0) target = $region17
    $region16: #{forward.1} parent=1 // pred_region
      _
    $region17: #{forward.1} parent=1 // pred_fallthru
      _
    // Predicated region
    $region18: #{forward.1} parent=1 // pred_check
      _
    $region19: #{forward.1} parent=1 // pred_check_branch
      %34 = sbr.rel (0) target = $region21
    $region20: #{forward.1} parent=1 // pred_region
      _
    $region21: #{forward.1} parent=1 // pred_fallthru
      _
    // Predicated region
    $region22: #{forward.1} parent=1 // pred_check
      _
    $region23: #{forward.1} parent=1 // pred_check_branch
      %36 = sbr.rel (0) target = $region25
    $region24: #{forward.1} parent=1 // pred_region
      _
    $region25: #{forward.1} parent=1 // pred_fallthru
      _
    // Predicated region
    $region26: #{forward.1} parent=1 // pred_check
      _
    $region27: #{forward.1} parent=1 // pred_check_branch
      %38 = sbr.rel (0) target = $region29
    $region28: #{forward.1} parent=1 // pred_region
      _
    $region29: #{forward.1} parent=1 // pred_fallthru
      _
    // Predicated region
    $region30: #{forward.1} parent=1 // pred_check
      _
    $region31: #{forward.1} parent=1 // pred_check_branch
      %40 = sbr.rel (0) target = $region33
    $region32: #{forward.1} parent=1 // pred_region
      _
    $region33: #{forward.1} parent=1 // pred_fallthru
      _
    // Predicated region
    $region34: #{forward.1} parent=1 // pred_check
      _
    $region35: #{forward.1} parent=1 // pred_check_branch
      %42 = sbr.rel (0) target = $region37
    $region36: #{forward.1} parent=1 // pred_region
      _
    $region37: #{forward.1} parent=1 // pred_fallthru
      _
    // Predicated region
    $region38: #{forward.1} parent=1 // pred_check
      _
    $region39: #{forward.1} parent=1 // pred_check_branch
      %44 = sbr.rel (0) target = $region41
    $region40: #{forward.1} parent=1 // pred_region
      _
    $region41: #{forward.1} parent=1 // pred_fallthru
      _
    // Predicated region
    $region42: #{forward.1} parent=1 // pred_check
      _
    $region43: #{forward.1} parent=1 // pred_check_branch
      %46 = sbr.rel (0) target = $region45
    $region44: #{forward.1} parent=1 // pred_region
      _
    $region45: #{forward.1} parent=1 // pred_fallthru
      _
    // Predicated region
    $region46: #{forward.1} parent=1 // pred_check
      _
    $region47: #{forward.1} parent=1 // pred_check_branch
      %48 = sbr.rel (0) target = $region49
    $region48: #{forward.1} parent=1 // pred_region
      _
    $region49: #{forward.1} parent=1 // pred_fallthru
      _
    // Predicated region
    $region50: #{forward.1} parent=1 // pred_check
      _
    $region51: #{forward.1} parent=1 // pred_check_branch
      %50 = sbr.rel (0) target = $region53
    $region52: #{forward.1} parent=1 // pred_region
      _
    $region53: #{forward.1} parent=1 // pred_fallthru
      _
    // Predicated region
    $region54: #{forward.1} parent=1 // pred_check
      _
    $region55: #{forward.1} parent=1 // pred_check_branch
      %52 = sbr.rel (0) target = $region57
    $region56: #{forward.1} parent=1 // pred_region
      _
    $region57: #{forward.1} parent=1 // pred_fallthru
      _
    // Predicated region
    $region58: #{forward.1} parent=1 // pred_check
      _
    $region59: #{forward.1} parent=1 // pred_check_branch
      %54 = sbr.rel (0) target = $region61
    $region60: #{forward.1} parent=1 // pred_region
      _
    $region61: #{forward.1} parent=1 // pred_fallthru
      _
    // Predicated region
    $region62: #{forward.1} parent=1 // pred_check
      _
    $region63: #{forward.1} parent=1 // pred_check_branch
      %56 = sbr.rel (0) target = $region65
    $region64: #{forward.1} parent=1 // pred_region
      _
    $region65: #{forward.1} parent=1 // pred_fallthru
      _
    // Predicated region
    $region66: #{forward.1} parent=1 // pred_check
      _
    $region67: #{forward.1} parent=1 // pred_check_branch
      %58 = sbr.rel (0) target = $region69
    $region68: #{forward.1} parent=1 // pred_region
      _
    $region69: #{forward.1} parent=1 // pred_fallthru
      _
    // Predicated region
    $region70: #{forward.1} parent=1 // pred_check
      _
    $region71: #{forward.1} parent=1 // pred_check_branch
      %60 = sbr.rel (0) target = $region73
    $region72: #{forward.1} parent=1 // pred_region
      _
    $region73: #{forward.1} parent=1 // pred_fallthru
      _
    // Predicated region
    $region74: #{forward.1} parent=1 // pred_check
      _
    $region75: #{forward.1} parent=1 // pred_check_branch
      %62 = sbr.rel (0) target = $region77
    $region76: #{forward.1} parent=1 // pred_region
      _
    $region77: #{forward.1} parent=1 // pred_fallthru
      _
    %v63 = vld [vmem:[%s0] sm:$0xff]
    %v64 = vld [vmem:[%s0 + $0x8] sm:$0xff]
    %v65 = vld [vmem:[%s0 + $0x10] sm:$0xff]
    %v66 = vld [vmem:[%s0 + $0x18] sm:$0xff]
    %v67 = vld [vmem:[%s0 + $0x20] sm:$0xff]
    %v68 = vld [vmem:[%s0 + $0x28] sm:$0xff]
    %v69 = vld [vmem:[%s0 + $0x30] sm:$0xff]
    %v70 = vld [vmem:[%s0 + $0x38] sm:$0xff]
    %v71 = vld [vmem:[%s0 + $0x40] sm:$0xff]
    %v72 = vld [vmem:[%s0 + $0x48] sm:$0xff]
    %v73 = vld [vmem:[%s0 + $0x50] sm:$0xff]
    %v74 = vld [vmem:[%s0 + $0x58] sm:$0xff]
    %v75 = vld [vmem:[%s0 + $0x60] sm:$0xff]
    %v76 = vld [vmem:[%s0 + $0x68] sm:$0xff]
    %v77 = vld [vmem:[%s0 + $0x70] sm:$0xff]
    %v78 = vld [vmem:[%s0 + $0x78] sm:$0xff]
    %v79 = vld [vmem:[%s0 + $0x80] sm:$0xff]
    %v80 = vld [vmem:[%s0 + $0x88] sm:$0xff]
    %v81 = vld [vmem:[%s0 + $0x90] sm:$0xff]
    %v82 = vld [vmem:[%s0 + $0x98] sm:$0xff]
    %v83 = vld [vmem:[%s0 + $0xa0] sm:$0xff]
    %v84 = vld [vmem:[%s0 + $0xa8] sm:$0xff]
    %v85 = vld [vmem:[%s0 + $0xb0] sm:$0xff]
    %v86 = vld [vmem:[%s0 + $0xb8] sm:$0xff]
    %v87 = vld [vmem:[%s0 + $0xc0] sm:$0xff]
    %v88 = vld [vmem:[%s0 + $0xc8] sm:$0xff]
    %v89 = vld [vmem:[%s0 + $0xd0] sm:$0xff]
    %v90 = vld [vmem:[%s0 + $0xd8] sm:$0xff]
    %v91 = vld [vmem:[%s0 + $0xe0] sm:$0xff]
    %v92 = vld [vmem:[%s0 + $0xe8] sm:$0xff]
    %v93 = vld [vmem:[%s0 + $0xf0] sm:$0xff]
    %v94 = vld [vmem:[%s0 + $0xf8] sm:$0xff]
    %v95 = vld [vmem:[%s0 + $0x100] sm:$0xff]
    %v96 = vld [vmem:[%s0 + $0x108] sm:$0xff]
    %v97 = vld [vmem:[%s0 + $0x110] sm:$0xff]
    %v98 = vld [vmem:[%s0 + $0x118] sm:$0xff]
    %v99 = vld [vmem:[%s0 + $0x120] sm:$0xff]
    %v100 = vld [vmem:[%s0 + $0x128] sm:$0xff]
    %v101 = vld [vmem:[%s0 + $0x130] sm:$0xff]
    %v102 = vld [vmem:[%s0 + $0x138] sm:$0xff]
    %v103 = vld [vmem:[%s0 + $0x140] sm:$0xff]
    %v104 = vld [vmem:[%s0 + $0x148] sm:$0xff]
    %v105 = vld [vmem:[%s0 + $0x150] sm:$0xff]
    %v106 = vld [vmem:[%s0 + $0x158] sm:$0xff]
    %v107 = vld [vmem:[%s0 + $0x160] sm:$0xff]
    %v108 = vld [vmem:[%s0 + $0x168] sm:$0xff]
    %v109 = vld [vmem:[%s0 + $0x170] sm:$0xff]
    %v110 = vld [vmem:[%s0 + $0x178] sm:$0xff]
    %v111 = vld [vmem:[%s0 + $0x180] sm:$0xff]
    %v112 = vld [vmem:[%s0 + $0x188] sm:$0xff]
    %v113 = vld [vmem:[%s0 + $0x190] sm:$0xff]
    %v114 = vld [vmem:[%s0 + $0x198] sm:$0xff]
    %v115 = vld [vmem:[%s0 + $0x1a0] sm:$0xff]
    %v116 = vld [vmem:[%s0 + $0x1a8] sm:$0xff]
    %v117 = vld [vmem:[%s0 + $0x1b0] sm:$0xff]
    %v118 = vld [vmem:[%s0 + $0x1b8] sm:$0xff]
    %v119 = vld [vmem:[%s0 + $0x1c0] sm:$0xff]
    %v120 = vld [vmem:[%s0 + $0x1c8] sm:$0xff]
    %v121 = vld [vmem:[%s0 + $0x1d0] sm:$0xff]
    %v122 = vld [vmem:[%s0 + $0x1d8] sm:$0xff]
    %v123 = vld [vmem:[%s0 + $0x1e0] sm:$0xff]
    %v124 = vld [vmem:[%s0 + $0x1e8] sm:$0xff]
    %v125 = vld [vmem:[%s0 + $0x1f0] sm:$0xff]
    %v126 = vld [vmem:[%s0 + $0x1f8] sm:$0xff]
    %v127 = vld [vmem:[%s0 + $0x200] sm:$0xff]
    %v128 = vld [vmem:[%s0 + $0x208] sm:$0xff]
    %v129 = vld [vmem:[%s0 + $0x210] sm:$0xff]
    %v130 = vld [vmem:[%s0 + $0x218] sm:$0xff]
    %v131 = vld [vmem:[%s0 + $0x220] sm:$0xff]
    %v132 = vld [vmem:[%s0 + $0x228] sm:$0xff]
    %v133 = vld [vmem:[%s0 + $0x230] sm:$0xff]
    %v134 = vld [vmem:[%s0 + $0x238] sm:$0xff]
    %v135 = vld [vmem:[%s0 + $0x240] sm:$0xff]
    %v136 = vld [vmem:[%s0 + $0x248] sm:$0xff]
    %v137 = vld [vmem:[%s0 + $0x250] sm:$0xff]
    %v138 = vld [vmem:[%s0 + $0x258] sm:$0xff]
    %v139 = vld [vmem:[%s0 + $0x260] sm:$0xff]
    %v140 = vld [vmem:[%s0 + $0x268] sm:$0xff]
    %v141 = vld [vmem:[%s0 + $0x270] sm:$0xff]
    %v142 = vld [vmem:[%s0 + $0x278] sm:$0xff]
    %v143 = vld [vmem:[%s0 + $0x280] sm:$0xff]
    %v144 = vld [vmem:[%s0 + $0x288] sm:$0xff]
    %v145 = vld [vmem:[%s0 + $0x290] sm:$0xff]
    %v146 = vld [vmem:[%s0 + $0x298] sm:$0xff]
    %v147 = vld [vmem:[%s0 + $0x2a0] sm:$0xff]
    %v148 = vld [vmem:[%s0 + $0x2a8] sm:$0xff]
    %v149 = vld [vmem:[%s0 + $0x2b0] sm:$0xff]
    %v150 = vld [vmem:[%s0 + $0x2b8] sm:$0xff]
    %v151 = vld [vmem:[%s0 + $0x2c0] sm:$0xff]
    %v152 = vld [vmem:[%s0 + $0x2c8] sm:$0xff]
    %v153 = vld [vmem:[%s0 + $0x2d0] sm:$0xff]
    %v154 = vld [vmem:[%s0 + $0x2d8] sm:$0xff]
    %v155 = vld [vmem:[%s0 + $0x2e0] sm:$0xff]
    %v156 = vld [vmem:[%s0 + $0x2e8] sm:$0xff]
    %v157 = vld [vmem:[%s0 + $0x2f0] sm:$0xff]
    %v158 = vld [vmem:[%s0 + $0x2f8] sm:$0xff]
    %v159 = vld [vmem:[%s0 + $0x300] sm:$0xff]
    %v160 = vld [vmem:[%s0 + $0x308] sm:$0xff]
    %v161 = vld [vmem:[%s0 + $0x310] sm:$0xff]
    %v162 = vld [vmem:[%s0 + $0x318] sm:$0xff]
    %v163 = vld [vmem:[%s0 + $0x320] sm:$0xff]
    %v164 = vld [vmem:[%s0 + $0x328] sm:$0xff]
    %v165 = vld [vmem:[%s0 + $0x330] sm:$0xff]
    %v166 = vld [vmem:[%s0 + $0x338] sm:$0xff]
    %v167 = vld [vmem:[%s0 + $0x340] sm:$0xff]
    %v168 = vld [vmem:[%s0 + $0x348] sm:$0xff]
    %v169 = vld [vmem:[%s0 + $0x350] sm:$0xff]
    %v170 = vld [vmem:[%s0 + $0x358] sm:$0xff]
    %v171 = vld [vmem:[%s0 + $0x360] sm:$0xff]
    %v172 = vld [vmem:[%s0 + $0x368] sm:$0xff]
    %v173 = vld [vmem:[%s0 + $0x370] sm:$0xff]
    %v174 = vld [vmem:[%s0 + $0x378] sm:$0xff]
    %v175 = vld [vmem:[%s0 + $0x380] sm:$0xff]
    %v176 = vld [vmem:[%s0 + $0x388] sm:$0xff]
    %v177 = vld [vmem:[%s0 + $0x390] sm:$0xff]
    %v178 = vld [vmem:[%s0 + $0x398] sm:$0xff]
    %v179 = vld [vmem:[%s0 + $0x3a0] sm:$0xff]
    %v180 = vld [vmem:[%s0 + $0x3a8] sm:$0xff]
    %v181 = vld [vmem:[%s0 + $0x3b0] sm:$0xff]
    %v182 = vld [vmem:[%s0 + $0x3b8] sm:$0xff]
    %v183 = vld [vmem:[%s0 + $0x3c0] sm:$0xff]
    %v184 = vld [vmem:[%s0 + $0x3c8] sm:$0xff]
    %v185 = vld [vmem:[%s0 + $0x3d0] sm:$0xff]
    %v186 = vld [vmem:[%s0 + $0x3d8] sm:$0xff]
    %v187 = vld [vmem:[%s0 + $0x3e0] sm:$0xff]
    %v188 = vld [vmem:[%s0 + $0x3e8] sm:$0xff]
    %v189 = vld [vmem:[%s0 + $0x3f0] sm:$0xff]
    %v190 = vld [vmem:[%s0 + $0x3f8] sm:$0xff]
    %v191 = vld [vmem:[%s0 + $0x400] sm:$0xff]
    %v192 = vld [vmem:[%s0 + $0x408] sm:$0xff]
    %v193 = vld [vmem:[%s0 + $0x410] sm:$0xff]
    %v194 = vld [vmem:[%s0 + $0x418] sm:$0xff]
    %v195 = vld [vmem:[%s0 + $0x420] sm:$0xff]
    %v196 = vld [vmem:[%s0 + $0x428] sm:$0xff]
    %v197 = vld [vmem:[%s0 + $0x430] sm:$0xff]
    %v198 = vld [vmem:[%s0 + $0x438] sm:$0xff]
    %v199 = vld [vmem:[%s0 + $0x440] sm:$0xff]
    %v200 = vld [vmem:[%s0 + $0x448] sm:$0xff]
    %v201 = vld [vmem:[%s0 + $0x450] sm:$0xff]
    %v202 = vld [vmem:[%s0 + $0x458] sm:$0xff]
    %v203 = vld [vmem:[%s0 + $0x460] sm:$0xff]
    %v204 = vld [vmem:[%s0 + $0x468] sm:$0xff]
    %v205 = vld [vmem:[%s0 + $0x470] sm:$0xff]
    %v206 = vld [vmem:[%s0 + $0x478] sm:$0xff]
    %v207 = vld [vmem:[%s0 + $0x480] sm:$0xff]
    %v208 = vld [vmem:[%s0 + $0x488] sm:$0xff]
    %v209 = vld [vmem:[%s0 + $0x490] sm:$0xff]
    %v210 = vld [vmem:[%s0 + $0x498] sm:$0xff]
    %v211 = vld [vmem:[%s0 + $0x4a0] sm:$0xff]
    %v212 = vld [vmem:[%s0 + $0x4a8] sm:$0xff]
    %v213 = vld [vmem:[%s0 + $0x4b0] sm:$0xff]
    %v214 = vld [vmem:[%s0 + $0x4b8] sm:$0xff]
    %v215 = vld [vmem:[%s0 + $0x4c0] sm:$0xff]
    %v216 = vld [vmem:[%s0 + $0x4c8] sm:$0xff]
    %v217 = vld [vmem:[%s0 + $0x4d0] sm:$0xff]
    %v218 = vld [vmem:[%s0 + $0x4d8] sm:$0xff]
    %v219 = vld [vmem:[%s0 + $0x4e0] sm:$0xff]
    %v220 = vld [vmem:[%s0 + $0x4e8] sm:$0xff]
    %v221 = vld [vmem:[%s0 + $0x4f0] sm:$0xff]
    %v222 = vld [vmem:[%s0 + $0x4f8] sm:$0xff]
    %v223 = vld [vmem:[%s0 + $0x500] sm:$0xff]
    %v224 = vld [vmem:[%s0 + $0x508] sm:$0xff]
    %v225 = vld [vmem:[%s0 + $0x510] sm:$0xff]
    %v226 = vld [vmem:[%s0 + $0x518] sm:$0xff]
    %v227 = vld [vmem:[%s0 + $0x520] sm:$0xff]
    %v228 = vld [vmem:[%s0 + $0x528] sm:$0xff]
    %v229 = vld [vmem:[%s0 + $0x530] sm:$0xff]
    %v230 = vld [vmem:[%s0 + $0x538] sm:$0xff]
    %v231 = vld [vmem:[%s0 + $0x540] sm:$0xff]
    %v232 = vld [vmem:[%s0 + $0x548] sm:$0xff]
    %v233 = vld [vmem:[%s0 + $0x550] sm:$0xff]
    %v234 = vld [vmem:[%s0 + $0x558] sm:$0xff]
    %v235 = vld [vmem:[%s0 + $0x560] sm:$0xff]
    %v236 = vld [vmem:[%s0 + $0x568] sm:$0xff]
    %v237 = vld [vmem:[%s0 + $0x570] sm:$0xff]
    %v238 = vld [vmem:[%s0 + $0x578] sm:$0xff]
    %v239 = vld [vmem:[%s0 + $0x580] sm:$0xff]
    %v240 = vld [vmem:[%s0 + $0x588] sm:$0xff]
    %v241 = vld [vmem:[%s0 + $0x590] sm:$0xff]
    %v242 = vld [vmem:[%s0 + $0x598] sm:$0xff]
    %v243 = vld [vmem:[%s0 + $0x5a0] sm:$0xff]
    %v244 = vld [vmem:[%s0 + $0x5a8] sm:$0xff]
    %v245 = vld [vmem:[%s0 + $0x5b0] sm:$0xff]
    %v246 = vld [vmem:[%s0 + $0x5b8] sm:$0xff]
    %v247 = vld [vmem:[%s0 + $0x5c0] sm:$0xff]
    %v248 = vld [vmem:[%s0 + $0x5c8] sm:$0xff]
    %v249 = vld [vmem:[%s0 + $0x5d0] sm:$0xff]
    %v250 = vld [vmem:[%s0 + $0x5d8] sm:$0xff]
    %v251 = vld [vmem:[%s0 + $0x5e0] sm:$0xff]
    %v252 = vld [vmem:[%s0 + $0x5e8] sm:$0xff]
    %v253 = vld [vmem:[%s0 + $0x5f0] sm:$0xff]
    %v254 = vld [vmem:[%s0 + $0x5f8] sm:$0xff]
    %v255 = vld [vmem:[%s0 + $0x600] sm:$0xff]
    %v256 = vld [vmem:[%s0 + $0x608] sm:$0xff]
    %v257 = vld [vmem:[%s0 + $0x610] sm:$0xff]
    %v258 = vld [vmem:[%s0 + $0x618] sm:$0xff]
    %v259 = vld [vmem:[%s0 + $0x620] sm:$0xff]
    %v260 = vld [vmem:[%s0 + $0x628] sm:$0xff]
    %v261 = vld [vmem:[%s0 + $0x630] sm:$0xff]
    %v262 = vld [vmem:[%s0 + $0x638] sm:$0xff]
    %v263 = vld [vmem:[%s0 + $0x640] sm:$0xff]
    %v264 = vld [vmem:[%s0 + $0x648] sm:$0xff]
    %v265 = vld [vmem:[%s0 + $0x650] sm:$0xff]
    %v266 = vld [vmem:[%s0 + $0x658] sm:$0xff]
    %v267 = vld [vmem:[%s0 + $0x660] sm:$0xff]
    %v268 = vld [vmem:[%s0 + $0x668] sm:$0xff]
    %v269 = vld [vmem:[%s0 + $0x670] sm:$0xff]
    %v270 = vld [vmem:[%s0 + $0x678] sm:$0xff]
    %v271 = vld [vmem:[%s0 + $0x680] sm:$0xff]
    %v272 = vld [vmem:[%s0 + $0x688] sm:$0xff]
    %v273 = vld [vmem:[%s0 + $0x690] sm:$0xff]
    %v274 = vld [vmem:[%s0 + $0x698] sm:$0xff]
    %v275 = vld [vmem:[%s0 + $0x6a0] sm:$0xff]
    %v276 = vld [vmem:[%s0 + $0x6a8] sm:$0xff]
    %v277 = vld [vmem:[%s0 + $0x6b0] sm:$0xff]
    %v278 = vld [vmem:[%s0 + $0x6b8] sm:$0xff]
    %v279 = vld [vmem:[%s0 + $0x6c0] sm:$0xff]
    %v280 = vld [vmem:[%s0 + $0x6c8] sm:$0xff]
    %v281 = vld [vmem:[%s0 + $0x6d0] sm:$0xff]
    %v282 = vld [vmem:[%s0 + $0x6d8] sm:$0xff]
    %v283 = vld [vmem:[%s0 + $0x6e0] sm:$0xff]
    %v284 = vld [vmem:[%s0 + $0x6e8] sm:$0xff]
    %v285 = vld [vmem:[%s0 + $0x6f0] sm:$0xff]
    %v286 = vld [vmem:[%s0 + $0x6f8] sm:$0xff]
    %v287 = vld [vmem:[%s0 + $0x700] sm:$0xff]
    %v288 = vld [vmem:[%s0 + $0x708] sm:$0xff]
    %v289 = vld [vmem:[%s0 + $0x710] sm:$0xff]
    %v290 = vld [vmem:[%s0 + $0x718] sm:$0xff]
    %v291 = vld [vmem:[%s0 + $0x720] sm:$0xff]
    %v292 = vld [vmem:[%s0 + $0x728] sm:$0xff]
    %v293 = vld [vmem:[%s0 + $0x730] sm:$0xff]
    %v294 = vld [vmem:[%s0 + $0x738] sm:$0xff]
    %v295 = vld [vmem:[%s0 + $0x740] sm:$0xff]
    %v296 = vld [vmem:[%s0 + $0x748] sm:$0xff]
    %v297 = vld [vmem:[%s0 + $0x750] sm:$0xff]
    %v298 = vld [vmem:[%s0 + $0x758] sm:$0xff]
    %v299 = vld [vmem:[%s0 + $0x760] sm:$0xff]
    %v300 = vld [vmem:[%s0 + $0x768] sm:$0xff]
    %v301 = vld [vmem:[%s0 + $0x770] sm:$0xff]
    %v302 = vld [vmem:[%s0 + $0x778] sm:$0xff]
    %v303 = vld [vmem:[%s0 + $0x780] sm:$0xff]
    %v304 = vld [vmem:[%s0 + $0x788] sm:$0xff]
    %v305 = vld [vmem:[%s0 + $0x790] sm:$0xff]
    %v306 = vld [vmem:[%s0 + $0x798] sm:$0xff]
    %v307 = vld [vmem:[%s0 + $0x7a0] sm:$0xff]
    %v308 = vld [vmem:[%s0 + $0x7a8] sm:$0xff]
    %v309 = vld [vmem:[%s0 + $0x7b0] sm:$0xff]
    %v310 = vld [vmem:[%s0 + $0x7b8] sm:$0xff]
    %v311 = vld [vmem:[%s0 + $0x7c0] sm:$0xff]
    %v312 = vld [vmem:[%s0 + $0x7c8] sm:$0xff]
    %v313 = vld [vmem:[%s0 + $0x7d0] sm:$0xff]
    %v314 = vld [vmem:[%s0 + $0x7d8] sm:$0xff]
    %v315 = vld [vmem:[%s0 + $0x7e0] sm:$0xff]
    %v316 = vld [vmem:[%s0 + $0x7e8] sm:$0xff]
    %v317 = vld [vmem:[%s0 + $0x7f0] sm:$0xff]
    %v318 = vld [vmem:[%s0 + $0x7f8] sm:$0xff]
    %v319 = vld [vmem:[%s1] sm:$0xff]
    %v320 = vld [vmem:[%s1 + $0x8] sm:$0xff]
    %v321 = vld [vmem:[%s1 + $0x10] sm:$0xff]
    %v322 = vld [vmem:[%s1 + $0x18] sm:$0xff]
    %v323 = vld [vmem:[%s1 + $0x20] sm:$0xff]
    %v324 = vld [vmem:[%s1 + $0x28] sm:$0xff]
    %v325 = vld [vmem:[%s1 + $0x30] sm:$0x3]
    %v326 = vld [vmem:[%s2] sm:$0x1]
    %v327 = vld [vmem:[%s2 + $0x1] sm:$0x1]
    %v328 = vld [vmem:[%s2 + $0x2] sm:$0x1]
    %v329 = vlaneseq
    %v330 = vshrl.u32 %v329, 7
    %v331 = vsub.s32 0, %v330
    %v332 = vrot.slane %v326, %v331
    %vm333 = vcmask 408576
    %v335 = vsel %vm333, %v63, 0
    %v338 = vsel %vm333, %v64, 0
    %v341 = vsel %vm333, %v65, 0
    %v344 = vsel %vm333, %v66, 0
    %v347 = vsel %vm333, %v67, 0
    %v350 = vsel %vm333, %v68, 0
    %v353 = vsel %vm333, %v69, 0
    %v356 = vsel %vm333, %v70, 0
    %v359 = vsel %vm333, %v71, 0
    %v362 = vsel %vm333, %v72, 0
    %v365 = vsel %vm333, %v73, 0
    %v368 = vsel %vm333, %v74, 0
    %v371 = vsel %vm333, %v75, 0
    %v374 = vsel %vm333, %v76, 0
    %v377 = vsel %vm333, %v77, 0
    %v380 = vsel %vm333, %v78, 0
    %v383 = vsel %vm333, %v79, 0
    %v386 = vsel %vm333, %v80, 0
    %v389 = vsel %vm333, %v81, 0
    %v392 = vsel %vm333, %v82, 0
    %v395 = vsel %vm333, %v83, 0
    %v398 = vsel %vm333, %v84, 0
    %v401 = vsel %vm333, %v85, 0
    %v404 = vsel %vm333, %v86, 0
    %v407 = vsel %vm333, %v87, 0
    %v410 = vsel %vm333, %v88, 0
    %v413 = vsel %vm333, %v89, 0
    %v416 = vsel %vm333, %v90, 0
    %v419 = vsel %vm333, %v91, 0
    %v422 = vsel %vm333, %v92, 0
    %v425 = vsel %vm333, %v93, 0
    %v428 = vsel %vm333, %v94, 0
    %v431 = vsel %vm333, %v95, 0
    %v434 = vsel %vm333, %v96, 0
    %v437 = vsel %vm333, %v97, 0
    %v440 = vsel %vm333, %v98, 0
    %v443 = vsel %vm333, %v99, 0
    %v446 = vsel %vm333, %v100, 0
    %v449 = vsel %vm333, %v101, 0
    %v452 = vsel %vm333, %v102, 0
    %v455 = vsel %vm333, %v103, 0
    %v458 = vsel %vm333, %v104, 0
    %v461 = vsel %vm333, %v105, 0
    %v464 = vsel %vm333, %v106, 0
    %v467 = vsel %vm333, %v107, 0
    %v470 = vsel %vm333, %v108, 0
    %v473 = vsel %vm333, %v109, 0
    %v476 = vsel %vm333, %v110, 0
    %v479 = vsel %vm333, %v111, 0
    %v482 = vsel %vm333, %v112, 0
    %v485 = vsel %vm333, %v113, 0
    %v488 = vsel %vm333, %v114, 0
    %v491 = vsel %vm333, %v115, 0
    %v494 = vsel %vm333, %v116, 0
    %v497 = vsel %vm333, %v117, 0
    %v500 = vsel %vm333, %v118, 0
    %v503 = vsel %vm333, %v119, 0
    %v506 = vsel %vm333, %v120, 0
    %v509 = vsel %vm333, %v121, 0
    %v512 = vsel %vm333, %v122, 0
    %v515 = vsel %vm333, %v123, 0
    %v518 = vsel %vm333, %v124, 0
    %v521 = vsel %vm333, %v125, 0
    %v524 = vsel %vm333, %v126, 0
    %v527 = vsel %vm333, %v127, 0
    %v530 = vsel %vm333, %v128, 0
    %v533 = vsel %vm333, %v129, 0
    %v536 = vsel %vm333, %v130, 0
    %v539 = vsel %vm333, %v131, 0
    %v542 = vsel %vm333, %v132, 0
    %v545 = vsel %vm333, %v133, 0
    %v548 = vsel %vm333, %v134, 0
    %v551 = vsel %vm333, %v135, 0
    %v554 = vsel %vm333, %v136, 0
    %v557 = vsel %vm333, %v137, 0
    %v560 = vsel %vm333, %v138, 0
    %v563 = vsel %vm333, %v139, 0
    %v566 = vsel %vm333, %v140, 0
    %v569 = vsel %vm333, %v141, 0
    %v572 = vsel %vm333, %v142, 0
    %v575 = vsel %vm333, %v143, 0
    %v578 = vsel %vm333, %v144, 0
    %v581 = vsel %vm333, %v145, 0
    %v584 = vsel %vm333, %v146, 0
    %v587 = vsel %vm333, %v147, 0
    %v590 = vsel %vm333, %v148, 0
    %v593 = vsel %vm333, %v149, 0
    %v596 = vsel %vm333, %v150, 0
    %v599 = vsel %vm333, %v151, 0
    %v602 = vsel %vm333, %v152, 0
    %v605 = vsel %vm333, %v153, 0
    %v608 = vsel %vm333, %v154, 0
    %v611 = vsel %vm333, %v155, 0
    %v614 = vsel %vm333, %v156, 0
    %v617 = vsel %vm333, %v157, 0
    %v620 = vsel %vm333, %v158, 0
    %v623 = vsel %vm333, %v159, 0
    %v626 = vsel %vm333, %v160, 0
    %v629 = vsel %vm333, %v161, 0
    %v632 = vsel %vm333, %v162, 0
    %v635 = vsel %vm333, %v163, 0
    %v638 = vsel %vm333, %v164, 0
    %v641 = vsel %vm333, %v165, 0
    %v644 = vsel %vm333, %v166, 0
    %v647 = vsel %vm333, %v167, 0
    %v650 = vsel %vm333, %v168, 0
    %v653 = vsel %vm333, %v169, 0
    %v656 = vsel %vm333, %v170, 0
    %v659 = vsel %vm333, %v171, 0
    %v662 = vsel %vm333, %v172, 0
    %v665 = vsel %vm333, %v173, 0
    %v668 = vsel %vm333, %v174, 0
    %v671 = vsel %vm333, %v175, 0
    %v674 = vsel %vm333, %v176, 0
    %v677 = vsel %vm333, %v177, 0
    %v680 = vsel %vm333, %v178, 0
    %v683 = vsel %vm333, %v179, 0
    %v686 = vsel %vm333, %v180, 0
    %v689 = vsel %vm333, %v181, 0
    %v692 = vsel %vm333, %v182, 0
    %v695 = vsel %vm333, %v183, 0
    %v698 = vsel %vm333, %v184, 0
    %v701 = vsel %vm333, %v185, 0
    %v704 = vsel %vm333, %v186, 0
    %v707 = vsel %vm333, %v187, 0
    %v710 = vsel %vm333, %v188, 0
    %v713 = vsel %vm333, %v189, 0
    %v716 = vsel %vm333, %v190, 0
    %v719 = vsel %vm333, %v191, 0
    %v722 = vsel %vm333, %v192, 0
    %v725 = vsel %vm333, %v193, 0
    %v728 = vsel %vm333, %v194, 0
    %v731 = vsel %vm333, %v195, 0
    %v734 = vsel %vm333, %v196, 0
    %v737 = vsel %vm333, %v197, 0
    %v740 = vsel %vm333, %v198, 0
    %v743 = vsel %vm333, %v199, 0
    %v746 = vsel %vm333, %v200, 0
    %v749 = vsel %vm333, %v201, 0
    %v752 = vsel %vm333, %v202, 0
    %v755 = vsel %vm333, %v203, 0
    %v758 = vsel %vm333, %v204, 0
    %v761 = vsel %vm333, %v205, 0
    %v764 = vsel %vm333, %v206, 0
    %v767 = vsel %vm333, %v207, 0
    %v770 = vsel %vm333, %v208, 0
    %v773 = vsel %vm333, %v209, 0
    %v776 = vsel %vm333, %v210, 0
    %v779 = vsel %vm333, %v211, 0
    %v782 = vsel %vm333, %v212, 0
    %v785 = vsel %vm333, %v213, 0
    %v788 = vsel %vm333, %v214, 0
    %v791 = vsel %vm333, %v215, 0
    %v794 = vsel %vm333, %v216, 0
    %v797 = vsel %vm333, %v217, 0
    %v800 = vsel %vm333, %v218, 0
    %v803 = vsel %vm333, %v219, 0
    %v806 = vsel %vm333, %v220, 0
    %v809 = vsel %vm333, %v221, 0
    %v812 = vsel %vm333, %v222, 0
    %v815 = vsel %vm333, %v223, 0
    %v818 = vsel %vm333, %v224, 0
    %v821 = vsel %vm333, %v225, 0
    %v824 = vsel %vm333, %v226, 0
    %v827 = vsel %vm333, %v227, 0
    %v830 = vsel %vm333, %v228, 0
    %v833 = vsel %vm333, %v229, 0
    %v836 = vsel %vm333, %v230, 0
    %v839 = vsel %vm333, %v231, 0
    %v842 = vsel %vm333, %v232, 0
    %v845 = vsel %vm333, %v233, 0
    %v848 = vsel %vm333, %v234, 0
    %v851 = vsel %vm333, %v235, 0
    %v854 = vsel %vm333, %v236, 0
    %v857 = vsel %vm333, %v237, 0
    %v860 = vsel %vm333, %v238, 0
    %v863 = vsel %vm333, %v239, 0
    %v866 = vsel %vm333, %v240, 0
    %v869 = vsel %vm333, %v241, 0
    %v872 = vsel %vm333, %v242, 0
    %v875 = vsel %vm333, %v243, 0
    %v878 = vsel %vm333, %v244, 0
    %v881 = vsel %vm333, %v245, 0
    %v884 = vsel %vm333, %v246, 0
    %v887 = vsel %vm333, %v247, 0
    %v890 = vsel %vm333, %v248, 0
    %v893 = vsel %vm333, %v249, 0
    %v896 = vsel %vm333, %v250, 0
    %v899 = vsel %vm333, %v251, 0
    %v902 = vsel %vm333, %v252, 0
    %v905 = vsel %vm333, %v253, 0
    %v908 = vsel %vm333, %v254, 0
    %v911 = vsel %vm333, %v255, 0
    %v914 = vsel %vm333, %v256, 0
    %v917 = vsel %vm333, %v257, 0
    %v920 = vsel %vm333, %v258, 0
    %v923 = vsel %vm333, %v259, 0
    %v926 = vsel %vm333, %v260, 0
    %v929 = vsel %vm333, %v261, 0
    %v932 = vsel %vm333, %v262, 0
    %v935 = vsel %vm333, %v263, 0
    %v938 = vsel %vm333, %v264, 0
    %v941 = vsel %vm333, %v265, 0
    %v944 = vsel %vm333, %v266, 0
    %v947 = vsel %vm333, %v267, 0
    %v950 = vsel %vm333, %v268, 0
    %v953 = vsel %vm333, %v269, 0
    %v956 = vsel %vm333, %v270, 0
    %v959 = vsel %vm333, %v271, 0
    %v962 = vsel %vm333, %v272, 0
    %v965 = vsel %vm333, %v273, 0
    %v968 = vsel %vm333, %v274, 0
    %v971 = vsel %vm333, %v275, 0
    %v974 = vsel %vm333, %v276, 0
    %v977 = vsel %vm333, %v277, 0
    %v980 = vsel %vm333, %v278, 0
    %v983 = vsel %vm333, %v279, 0
    %v986 = vsel %vm333, %v280, 0
    %v989 = vsel %vm333, %v281, 0
    %v992 = vsel %vm333, %v282, 0
    %v995 = vsel %vm333, %v283, 0
    %v998 = vsel %vm333, %v284, 0
    %v1001 = vsel %vm333, %v285, 0
    %v1004 = vsel %vm333, %v286, 0
    %v1007 = vsel %vm333, %v287, 0
    %v1010 = vsel %vm333, %v288, 0
    %v1013 = vsel %vm333, %v289, 0
    %v1016 = vsel %vm333, %v290, 0
    %v1019 = vsel %vm333, %v291, 0
    %v1022 = vsel %vm333, %v292, 0
    %v1025 = vsel %vm333, %v293, 0
    %v1028 = vsel %vm333, %v294, 0
    %v1031 = vsel %vm333, %v295, 0
    %v1034 = vsel %vm333, %v296, 0
    %v1037 = vsel %vm333, %v297, 0
    %v1040 = vsel %vm333, %v298, 0
    %v1043 = vsel %vm333, %v299, 0
    %v1046 = vsel %vm333, %v300, 0
    %v1049 = vsel %vm333, %v301, 0
    %v1052 = vsel %vm333, %v302, 0
    %v1055 = vsel %vm333, %v303, 0
    %v1058 = vsel %vm333, %v304, 0
    %v1061 = vsel %vm333, %v305, 0
    %v1064 = vsel %vm333, %v306, 0
    %v1067 = vsel %vm333, %v307, 0
    %v1070 = vsel %vm333, %v308, 0
    %v1073 = vsel %vm333, %v309, 0
    %v1076 = vsel %vm333, %v310, 0
    %v1079 = vsel %vm333, %v311, 0
    %v1082 = vsel %vm333, %v312, 0
    %v1085 = vsel %vm333, %v313, 0
    %v1088 = vsel %vm333, %v314, 0
    %v1091 = vsel %vm333, %v315, 0
    %v1094 = vsel %vm333, %v316, 0
    %v1097 = vsel %vm333, %v317, 0
    %v1100 = vsel %vm333, %v318, 0
    %vm1102 = vcmask 1041408
    %v1104 = vsel %vm1102, %v325, 0
    %1106 = vmatprep.subr.mxu0 0.0
    %1107 = vmatpush1.msra.mxu0 0.0
    %1108 = vmatprep.subr.mxu0 0.0
    %1109 = vmatpush1.msra.mxu0 0.0
    %1110 = vmatprep.subr.mxu0 0.0
    %1111 = vmatpush1.msra.mxu0 0.0
    %1112 = vmatprep.subr.mxu0 0.0
    %1113 = vmatpush1.msra.mxu0 0.0
    %1114 = vmatprep.subr.mxu0 0.0
    %1115 = vmatpush1.msra.mxu0 0.0
    %1116 = vmatprep.subr.mxu0 0.0
    %1117 = vmatpush1.msra.mxu0 0.0
    %1118 = vmatprep.subr.mxu0 0.0
    %1119 = vmatpush1.msra.mxu0 0.0
    %1120 = vmatprep.subr.mxu0 0.0
    %1121 = vmatpush1.msra.mxu0 0.0
    %1122 = vmatprep.subr.mxu0 0.0
    %1123 = vmatpush1.msra.mxu0 0.0
    %1124 = vmatprep.subr.mxu0 0.0
    %1125 = vmatpush1.msra.mxu0 %v1104
    %1126 = vmatprep.subr.mxu0 0.0
    %1127 = vmatpush1.msra.mxu0 %v324
    %1128 = vmatprep.subr.mxu0 0.0
    %1129 = vmatpush1.msra.mxu0 %v323
    %1130 = vmatprep.subr.mxu0 0.0
    %1131 = vmatpush1.msra.mxu0 %v322
    %1132 = vmatprep.subr.mxu0 0.0
    %1133 = vmatpush1.msra.mxu0 %v321
    %1134 = vmatprep.subr.mxu0 0.0
    %1135 = vmatpush1.msra.mxu0 %v320
    %1136 = vmatprep.subr.mxu0 0.0
    %1137 = vmatpush1.msra.mxu0 %v319
    %1138 = vmatprep.subr.mxu0 0.0
    %1139 = vmatpush2.msra.mxu0 0.0
    %1140 = vmatprep.subr.mxu0 0.0
    %1141 = vmatpush2.msra.mxu0 0.0
    %1142 = vmatprep.subr.mxu0 0.0
    %1143 = vmatpush2.msra.mxu0 0.0
    %1144 = vmatprep.subr.mxu0 0.0
    %1145 = vmatpush2.msra.mxu0 0.0
    %1146 = vmatprep.subr.mxu0 0.0
    %1147 = vmatpush2.msra.mxu0 0.0
    %1148 = vmatprep.subr.mxu0 0.0
    %1149 = vmatpush2.msra.mxu0 0.0
    %1150 = vmatprep.subr.mxu0 0.0
    %1151 = vmatpush2.msra.mxu0 0.0
    %1152 = vmatprep.subr.mxu0 0.0
    %1153 = vmatpush2.msra.mxu0 0.0
    %1154 = vmatprep.subr.mxu0 0.0
    %1155 = vmatpush2.msra.mxu0 0.0
    %1156 = vmatprep.subr.mxu0 0.0
    %1157 = vmatpush2.msra.mxu0 0.0
    %1158 = vmatprep.subr.mxu0 0.0
    %1159 = vmatpush2.msra.mxu0 0.0
    %1160 = vmatprep.subr.mxu0 0.0
    %1161 = vmatpush2.msra.mxu0 0.0
    %1162 = vmatprep.subr.mxu0 0.0
    %1163 = vmatpush2.msra.mxu0 0.0
    %1164 = vmatprep.subr.mxu0 0.0
    %1165 = vmatpush2.msra.mxu0 0.0
    %1166 = vmatprep.subr.mxu0 0.0
    %1167 = vmatpush2.msra.mxu0 0.0
    %1168 = vmatprep.subr.mxu0 0.0
    %1169 = vmatpush2.msra.mxu0 0.0
    %1170 = vmatprep.mubr.f32.mxu0 0.0
    %1171 = vmatmul.mubr.f32.gmra.mxu0 %v335
    %v1172 = vpop.f32.mrf.mxu0
    %v1173 = vadd.f32 %v332, %v1172
    %v1174 = vpop.f32.mrf.mxu0
    %1175 = vmatprep.mubr.f32.mxu0 0.0
    %1176 = vmatmul.mubr.f32.gmra.mxu0 %v338
    %v1177 = vpop.f32.mrf.mxu0
    %v1178 = vadd.f32 %v332, %v1177
    %v1179 = vpop.f32.mrf.mxu0
    %1180 = vmatprep.mubr.f32.mxu0 0.0
    %1181 = vmatmul.mubr.f32.gmra.mxu0 %v341
    %v1182 = vpop.f32.mrf.mxu0
    %v1183 = vadd.f32 %v332, %v1182
    %v1184 = vpop.f32.mrf.mxu0
    %1185 = vmatprep.mubr.f32.mxu0 0.0
    %1186 = vmatmul.mubr.f32.gmra.mxu0 %v344
    %v1187 = vpop.f32.mrf.mxu0
    %v1188 = vadd.f32 %v332, %v1187
    %v1189 = vpop.f32.mrf.mxu0
    %1190 = vmatprep.mubr.f32.mxu0 0.0
    %1191 = vmatmul.mubr.f32.gmra.mxu0 %v347
    %v1192 = vpop.f32.mrf.mxu0
    %v1193 = vadd.f32 %v332, %v1192
    %v1194 = vpop.f32.mrf.mxu0
    %1195 = vmatprep.mubr.f32.mxu0 0.0
    %1196 = vmatmul.mubr.f32.gmra.mxu0 %v350
    %v1197 = vpop.f32.mrf.mxu0
    %v1198 = vadd.f32 %v332, %v1197
    %v1199 = vpop.f32.mrf.mxu0
    %1200 = vmatprep.mubr.f32.mxu0 0.0
    %1201 = vmatmul.mubr.f32.gmra.mxu0 %v353
    %v1202 = vpop.f32.mrf.mxu0
    %v1203 = vadd.f32 %v332, %v1202
    %v1204 = vpop.f32.mrf.mxu0
    %1205 = vmatprep.mubr.f32.mxu0 0.0
    %1206 = vmatmul.mubr.f32.gmra.mxu0 %v356
    %v1207 = vpop.f32.mrf.mxu0
    %v1208 = vadd.f32 %v332, %v1207
    %v1209 = vpop.f32.mrf.mxu0
    %1210 = vmatprep.mubr.f32.mxu0 0.0
    %1211 = vmatmul.mubr.f32.gmra.mxu0 %v359
    %v1212 = vpop.f32.mrf.mxu0
    %v1213 = vadd.f32 %v332, %v1212
    %v1214 = vpop.f32.mrf.mxu0
    %1215 = vmatprep.mubr.f32.mxu0 0.0
    %1216 = vmatmul.mubr.f32.gmra.mxu0 %v362
    %v1217 = vpop.f32.mrf.mxu0
    %v1218 = vadd.f32 %v332, %v1217
    %v1219 = vpop.f32.mrf.mxu0
    %1220 = vmatprep.mubr.f32.mxu0 0.0
    %1221 = vmatmul.mubr.f32.gmra.mxu0 %v365
    %v1222 = vpop.f32.mrf.mxu0
    %v1223 = vadd.f32 %v332, %v1222
    %v1224 = vpop.f32.mrf.mxu0
    %1225 = vmatprep.mubr.f32.mxu0 0.0
    %1226 = vmatmul.mubr.f32.gmra.mxu0 %v368
    %v1227 = vpop.f32.mrf.mxu0
    %v1228 = vadd.f32 %v332, %v1227
    %v1229 = vpop.f32.mrf.mxu0
    %1230 = vmatprep.mubr.f32.mxu0 0.0
    %1231 = vmatmul.mubr.f32.gmra.mxu0 %v371
    %v1232 = vpop.f32.mrf.mxu0
    %v1233 = vadd.f32 %v332, %v1232
    %v1234 = vpop.f32.mrf.mxu0
    %1235 = vmatprep.mubr.f32.mxu0 0.0
    %1236 = vmatmul.mubr.f32.gmra.mxu0 %v374
    %v1237 = vpop.f32.mrf.mxu0
    %v1238 = vadd.f32 %v332, %v1237
    %v1239 = vpop.f32.mrf.mxu0
    %1240 = vmatprep.mubr.f32.mxu0 0.0
    %1241 = vmatmul.mubr.f32.gmra.mxu0 %v377
    %v1242 = vpop.f32.mrf.mxu0
    %v1243 = vadd.f32 %v332, %v1242
    %v1244 = vpop.f32.mrf.mxu0
    %1245 = vmatprep.mubr.f32.mxu0 0.0
    %1246 = vmatmul.mubr.f32.gmra.mxu0 %v380
    %v1247 = vpop.f32.mrf.mxu0
    %v1248 = vadd.f32 %v332, %v1247
    %v1249 = vpop.f32.mrf.mxu0
    %1250 = vmatprep.mubr.f32.mxu0 0.0
    %1251 = vmatmul.mubr.f32.gmra.mxu0 %v383
    %v1252 = vpop.f32.mrf.mxu0
    %v1253 = vadd.f32 %v332, %v1252
    %v1254 = vpop.f32.mrf.mxu0
    %1255 = vmatprep.mubr.f32.mxu0 0.0
    %1256 = vmatmul.mubr.f32.gmra.mxu0 %v386
    %v1257 = vpop.f32.mrf.mxu0
    %v1258 = vadd.f32 %v332, %v1257
    %v1259 = vpop.f32.mrf.mxu0
    %1260 = vmatprep.mubr.f32.mxu0 0.0
    %1261 = vmatmul.mubr.f32.gmra.mxu0 %v389
    %v1262 = vpop.f32.mrf.mxu0
    %v1263 = vadd.f32 %v332, %v1262
    %v1264 = vpop.f32.mrf.mxu0
    %1265 = vmatprep.mubr.f32.mxu0 0.0
    %1266 = vmatmul.mubr.f32.gmra.mxu0 %v392
    %v1267 = vpop.f32.mrf.mxu0
    %v1268 = vadd.f32 %v332, %v1267
    %v1269 = vpop.f32.mrf.mxu0
    %1270 = vmatprep.mubr.f32.mxu0 0.0
    %1271 = vmatmul.mubr.f32.gmra.mxu0 %v395
    %v1272 = vpop.f32.mrf.mxu0
    %v1273 = vadd.f32 %v332, %v1272
    %v1274 = vpop.f32.mrf.mxu0
    %1275 = vmatprep.mubr.f32.mxu0 0.0
    %1276 = vmatmul.mubr.f32.gmra.mxu0 %v398
    %v1277 = vpop.f32.mrf.mxu0
    %v1278 = vadd.f32 %v332, %v1277
    %v1279 = vpop.f32.mrf.mxu0
    %1280 = vmatprep.mubr.f32.mxu0 0.0
    %1281 = vmatmul.mubr.f32.gmra.mxu0 %v401
    %v1282 = vpop.f32.mrf.mxu0
    %v1283 = vadd.f32 %v332, %v1282
    %v1284 = vpop.f32.mrf.mxu0
    %1285 = vmatprep.mubr.f32.mxu0 0.0
    %1286 = vmatmul.mubr.f32.gmra.mxu0 %v404
    %v1287 = vpop.f32.mrf.mxu0
    %v1288 = vadd.f32 %v332, %v1287
    %v1289 = vpop.f32.mrf.mxu0
    %1290 = vmatprep.mubr.f32.mxu0 0.0
    %1291 = vmatmul.mubr.f32.gmra.mxu0 %v407
    %v1292 = vpop.f32.mrf.mxu0
    %v1293 = vadd.f32 %v332, %v1292
    %v1294 = vpop.f32.mrf.mxu0
    %1295 = vmatprep.mubr.f32.mxu0 0.0
    %1296 = vmatmul.mubr.f32.gmra.mxu0 %v410
    %v1297 = vpop.f32.mrf.mxu0
    %v1298 = vadd.f32 %v332, %v1297
    %v1299 = vpop.f32.mrf.mxu0
    %1300 = vmatprep.mubr.f32.mxu0 0.0
    %1301 = vmatmul.mubr.f32.gmra.mxu0 %v413
    %v1302 = vpop.f32.mrf.mxu0
    %v1303 = vadd.f32 %v332, %v1302
    %v1304 = vpop.f32.mrf.mxu0
    %1305 = vmatprep.mubr.f32.mxu0 0.0
    %1306 = vmatmul.mubr.f32.gmra.mxu0 %v416
    %v1307 = vpop.f32.mrf.mxu0
    %v1308 = vadd.f32 %v332, %v1307
    %v1309 = vpop.f32.mrf.mxu0
    %1310 = vmatprep.mubr.f32.mxu0 0.0
    %1311 = vmatmul.mubr.f32.gmra.mxu0 %v419
    %v1312 = vpop.f32.mrf.mxu0
    %v1313 = vadd.f32 %v332, %v1312
    %v1314 = vpop.f32.mrf.mxu0
    %1315 = vmatprep.mubr.f32.mxu0 0.0
    %1316 = vmatmul.mubr.f32.gmra.mxu0 %v422
    %v1317 = vpop.f32.mrf.mxu0
    %v1318 = vadd.f32 %v332, %v1317
    %v1319 = vpop.f32.mrf.mxu0
    %1320 = vmatprep.mubr.f32.mxu0 0.0
    %1321 = vmatmul.mubr.f32.gmra.mxu0 %v425
    %v1322 = vpop.f32.mrf.mxu0
    %v1323 = vadd.f32 %v332, %v1322
    %v1324 = vpop.f32.mrf.mxu0
    %1325 = vmatprep.mubr.f32.mxu0 0.0
    %1326 = vmatmul.mubr.f32.gmra.mxu0 %v428
    %v1327 = vpop.f32.mrf.mxu0
    %v1328 = vadd.f32 %v332, %v1327
    %v1329 = vpop.f32.mrf.mxu0
    %1330 = vmatprep.mubr.f32.mxu0 0.0
    %1331 = vmatmul.mubr.f32.gmra.mxu0 %v431
    %v1332 = vpop.f32.mrf.mxu0
    %v1333 = vadd.f32 %v332, %v1332
    %v1334 = vpop.f32.mrf.mxu0
    %1335 = vmatprep.mubr.f32.mxu0 0.0
    %1336 = vmatmul.mubr.f32.gmra.mxu0 %v434
    %v1337 = vpop.f32.mrf.mxu0
    %v1338 = vadd.f32 %v332, %v1337
    %v1339 = vpop.f32.mrf.mxu0
    %1340 = vmatprep.mubr.f32.mxu0 0.0
    %1341 = vmatmul.mubr.f32.gmra.mxu0 %v437
    %v1342 = vpop.f32.mrf.mxu0
    %v1343 = vadd.f32 %v332, %v1342
    %v1344 = vpop.f32.mrf.mxu0
    %1345 = vmatprep.mubr.f32.mxu0 0.0
    %1346 = vmatmul.mubr.f32.gmra.mxu0 %v440
    %v1347 = vpop.f32.mrf.mxu0
    %v1348 = vadd.f32 %v332, %v1347
    %v1349 = vpop.f32.mrf.mxu0
    %1350 = vmatprep.mubr.f32.mxu0 0.0
    %1351 = vmatmul.mubr.f32.gmra.mxu0 %v443
    %v1352 = vpop.f32.mrf.mxu0
    %v1353 = vadd.f32 %v332, %v1352
    %v1354 = vpop.f32.mrf.mxu0
    %1355 = vmatprep.mubr.f32.mxu0 0.0
    %1356 = vmatmul.mubr.f32.gmra.mxu0 %v446
    %v1357 = vpop.f32.mrf.mxu0
    %v1358 = vadd.f32 %v332, %v1357
    %v1359 = vpop.f32.mrf.mxu0
    %1360 = vmatprep.mubr.f32.mxu0 0.0
    %1361 = vmatmul.mubr.f32.gmra.mxu0 %v449
    %v1362 = vpop.f32.mrf.mxu0
    %v1363 = vadd.f32 %v332, %v1362
    %v1364 = vpop.f32.mrf.mxu0
    %1365 = vmatprep.mubr.f32.mxu0 0.0
    %1366 = vmatmul.mubr.f32.gmra.mxu0 %v452
    %v1367 = vpop.f32.mrf.mxu0
    %v1368 = vadd.f32 %v332, %v1367
    %v1369 = vpop.f32.mrf.mxu0
    %1370 = vmatprep.mubr.f32.mxu0 0.0
    %1371 = vmatmul.mubr.f32.gmra.mxu0 %v455
    %v1372 = vpop.f32.mrf.mxu0
    %v1373 = vadd.f32 %v332, %v1372
    %v1374 = vpop.f32.mrf.mxu0
    %1375 = vmatprep.mubr.f32.mxu0 0.0
    %1376 = vmatmul.mubr.f32.gmra.mxu0 %v458
    %v1377 = vpop.f32.mrf.mxu0
    %v1378 = vadd.f32 %v332, %v1377
    %v1379 = vpop.f32.mrf.mxu0
    %1380 = vmatprep.mubr.f32.mxu0 0.0
    %1381 = vmatmul.mubr.f32.gmra.mxu0 %v461
    %v1382 = vpop.f32.mrf.mxu0
    %v1383 = vadd.f32 %v332, %v1382
    %v1384 = vpop.f32.mrf.mxu0
    %1385 = vmatprep.mubr.f32.mxu0 0.0
    %1386 = vmatmul.mubr.f32.gmra.mxu0 %v464
    %v1387 = vpop.f32.mrf.mxu0
    %v1388 = vadd.f32 %v332, %v1387
    %v1389 = vpop.f32.mrf.mxu0
    %1390 = vmatprep.mubr.f32.mxu0 0.0
    %1391 = vmatmul.mubr.f32.gmra.mxu0 %v467
    %v1392 = vpop.f32.mrf.mxu0
    %v1393 = vadd.f32 %v332, %v1392
    %v1394 = vpop.f32.mrf.mxu0
    %1395 = vmatprep.mubr.f32.mxu0 0.0
    %1396 = vmatmul.mubr.f32.gmra.mxu0 %v470
    %v1397 = vpop.f32.mrf.mxu0
    %v1398 = vadd.f32 %v332, %v1397
    %v1399 = vpop.f32.mrf.mxu0
    %1400 = vmatprep.mubr.f32.mxu0 0.0
    %1401 = vmatmul.mubr.f32.gmra.mxu0 %v473
    %v1402 = vpop.f32.mrf.mxu0
    %v1403 = vadd.f32 %v332, %v1402
    %v1404 = vpop.f32.mrf.mxu0
    %1405 = vmatprep.mubr.f32.mxu0 0.0
    %1406 = vmatmul.mubr.f32.gmra.mxu0 %v476
    %v1407 = vpop.f32.mrf.mxu0
    %v1408 = vadd.f32 %v332, %v1407
    %v1409 = vpop.f32.mrf.mxu0
    %1410 = vmatprep.mubr.f32.mxu0 0.0
    %1411 = vmatmul.mubr.f32.gmra.mxu0 %v479
    %v1412 = vpop.f32.mrf.mxu0
    %v1413 = vadd.f32 %v332, %v1412
    %v1414 = vpop.f32.mrf.mxu0
    %1415 = vmatprep.mubr.f32.mxu0 0.0
    %1416 = vmatmul.mubr.f32.gmra.mxu0 %v482
    %v1417 = vpop.f32.mrf.mxu0
    %v1418 = vadd.f32 %v332, %v1417
    %v1419 = vpop.f32.mrf.mxu0
    %1420 = vmatprep.mubr.f32.mxu0 0.0
    %1421 = vmatmul.mubr.f32.gmra.mxu0 %v485
    %v1422 = vpop.f32.mrf.mxu0
    %v1423 = vadd.f32 %v332, %v1422
    %v1424 = vpop.f32.mrf.mxu0
    %1425 = vmatprep.mubr.f32.mxu0 0.0
    %1426 = vmatmul.mubr.f32.gmra.mxu0 %v488
    %v1427 = vpop.f32.mrf.mxu0
    %v1428 = vadd.f32 %v332, %v1427
    %v1429 = vpop.f32.mrf.mxu0
    %1430 = vmatprep.mubr.f32.mxu0 0.0
    %1431 = vmatmul.mubr.f32.gmra.mxu0 %v491
    %v1432 = vpop.f32.mrf.mxu0
    %v1433 = vadd.f32 %v332, %v1432
    %v1434 = vpop.f32.mrf.mxu0
    %1435 = vmatprep.mubr.f32.mxu0 0.0
    %1436 = vmatmul.mubr.f32.gmra.mxu0 %v494
    %v1437 = vpop.f32.mrf.mxu0
    %v1438 = vadd.f32 %v332, %v1437
    %v1439 = vpop.f32.mrf.mxu0
    %1440 = vmatprep.mubr.f32.mxu0 0.0
    %1441 = vmatmul.mubr.f32.gmra.mxu0 %v497
    %v1442 = vpop.f32.mrf.mxu0
    %v1443 = vadd.f32 %v332, %v1442
    %v1444 = vpop.f32.mrf.mxu0
    %1445 = vmatprep.mubr.f32.mxu0 0.0
    %1446 = vmatmul.mubr.f32.gmra.mxu0 %v500
    %v1447 = vpop.f32.mrf.mxu0
    %v1448 = vadd.f32 %v332, %v1447
    %v1449 = vpop.f32.mrf.mxu0
    %1450 = vmatprep.mubr.f32.mxu0 0.0
    %1451 = vmatmul.mubr.f32.gmra.mxu0 %v503
    %v1452 = vpop.f32.mrf.mxu0
    %v1453 = vadd.f32 %v332, %v1452
    %v1454 = vpop.f32.mrf.mxu0
    %1455 = vmatprep.mubr.f32.mxu0 0.0
    %1456 = vmatmul.mubr.f32.gmra.mxu0 %v506
    %v1457 = vpop.f32.mrf.mxu0
    %v1458 = vadd.f32 %v332, %v1457
    %v1459 = vpop.f32.mrf.mxu0
    %1460 = vmatprep.mubr.f32.mxu0 0.0
    %1461 = vmatmul.mubr.f32.gmra.mxu0 %v509
    %v1462 = vpop.f32.mrf.mxu0
    %v1463 = vadd.f32 %v332, %v1462
    %v1464 = vpop.f32.mrf.mxu0
    %1465 = vmatprep.mubr.f32.mxu0 0.0
    %1466 = vmatmul.mubr.f32.gmra.mxu0 %v512
    %v1467 = vpop.f32.mrf.mxu0
    %v1468 = vadd.f32 %v332, %v1467
    %v1469 = vpop.f32.mrf.mxu0
    %1470 = vmatprep.mubr.f32.mxu0 0.0
    %1471 = vmatmul.mubr.f32.gmra.mxu0 %v515
    %v1472 = vpop.f32.mrf.mxu0
    %v1473 = vadd.f32 %v332, %v1472
    %v1474 = vpop.f32.mrf.mxu0
    %1475 = vmatprep.mubr.f32.mxu0 0.0
    %1476 = vmatmul.mubr.f32.gmra.mxu0 %v518
    %v1477 = vpop.f32.mrf.mxu0
    %v1478 = vadd.f32 %v332, %v1477
    %v1479 = vpop.f32.mrf.mxu0
    %1480 = vmatprep.mubr.f32.mxu0 0.0
    %1481 = vmatmul.mubr.f32.gmra.mxu0 %v521
    %v1482 = vpop.f32.mrf.mxu0
    %v1483 = vadd.f32 %v332, %v1482
    %v1484 = vpop.f32.mrf.mxu0
    %1485 = vmatprep.mubr.f32.mxu0 0.0
    %1486 = vmatmul.mubr.f32.gmra.mxu0 %v524
    %v1487 = vpop.f32.mrf.mxu0
    %v1488 = vadd.f32 %v332, %v1487
    %v1489 = vpop.f32.mrf.mxu0
    %1490 = vmatprep.mubr.f32.mxu0 0.0
    %1491 = vmatmul.mubr.f32.gmra.mxu0 %v527
    %v1492 = vpop.f32.mrf.mxu0
    %v1493 = vadd.f32 %v332, %v1492
    %v1494 = vpop.f32.mrf.mxu0
    %1495 = vmatprep.mubr.f32.mxu0 0.0
    %1496 = vmatmul.mubr.f32.gmra.mxu0 %v530
    %v1497 = vpop.f32.mrf.mxu0
    %v1498 = vadd.f32 %v332, %v1497
    %v1499 = vpop.f32.mrf.mxu0
    %1500 = vmatprep.mubr.f32.mxu0 0.0
    %1501 = vmatmul.mubr.f32.gmra.mxu0 %v533
    %v1502 = vpop.f32.mrf.mxu0
    %v1503 = vadd.f32 %v332, %v1502
    %v1504 = vpop.f32.mrf.mxu0
    %1505 = vmatprep.mubr.f32.mxu0 0.0
    %1506 = vmatmul.mubr.f32.gmra.mxu0 %v536
    %v1507 = vpop.f32.mrf.mxu0
    %v1508 = vadd.f32 %v332, %v1507
    %v1509 = vpop.f32.mrf.mxu0
    %1510 = vmatprep.mubr.f32.mxu0 0.0
    %1511 = vmatmul.mubr.f32.gmra.mxu0 %v539
    %v1512 = vpop.f32.mrf.mxu0
    %v1513 = vadd.f32 %v332, %v1512
    %v1514 = vpop.f32.mrf.mxu0
    %1515 = vmatprep.mubr.f32.mxu0 0.0
    %1516 = vmatmul.mubr.f32.gmra.mxu0 %v542
    %v1517 = vpop.f32.mrf.mxu0
    %v1518 = vadd.f32 %v332, %v1517
    %v1519 = vpop.f32.mrf.mxu0
    %1520 = vmatprep.mubr.f32.mxu0 0.0
    %1521 = vmatmul.mubr.f32.gmra.mxu0 %v545
    %v1522 = vpop.f32.mrf.mxu0
    %v1523 = vadd.f32 %v332, %v1522
    %v1524 = vpop.f32.mrf.mxu0
    %1525 = vmatprep.mubr.f32.mxu0 0.0
    %1526 = vmatmul.mubr.f32.gmra.mxu0 %v548
    %v1527 = vpop.f32.mrf.mxu0
    %v1528 = vadd.f32 %v332, %v1527
    %v1529 = vpop.f32.mrf.mxu0
    %1530 = vmatprep.mubr.f32.mxu0 0.0
    %1531 = vmatmul.mubr.f32.gmra.mxu0 %v551
    %v1532 = vpop.f32.mrf.mxu0
    %v1533 = vadd.f32 %v332, %v1532
    %v1534 = vpop.f32.mrf.mxu0
    %1535 = vmatprep.mubr.f32.mxu0 0.0
    %1536 = vmatmul.mubr.f32.gmra.mxu0 %v554
    %v1537 = vpop.f32.mrf.mxu0
    %v1538 = vadd.f32 %v332, %v1537
    %v1539 = vpop.f32.mrf.mxu0
    %1540 = vmatprep.mubr.f32.mxu0 0.0
    %1541 = vmatmul.mubr.f32.gmra.mxu0 %v557
    %v1542 = vpop.f32.mrf.mxu0
    %v1543 = vadd.f32 %v332, %v1542
    %v1544 = vpop.f32.mrf.mxu0
    %1545 = vmatprep.mubr.f32.mxu0 0.0
    %1546 = vmatmul.mubr.f32.gmra.mxu0 %v560
    %v1547 = vpop.f32.mrf.mxu0
    %v1548 = vadd.f32 %v332, %v1547
    %v1549 = vpop.f32.mrf.mxu0
    %1550 = vmatprep.mubr.f32.mxu0 0.0
    %1551 = vmatmul.mubr.f32.gmra.mxu0 %v563
    %v1552 = vpop.f32.mrf.mxu0
    %v1553 = vadd.f32 %v332, %v1552
    %v1554 = vpop.f32.mrf.mxu0
    %1555 = vmatprep.mubr.f32.mxu0 0.0
    %1556 = vmatmul.mubr.f32.gmra.mxu0 %v566
    %v1557 = vpop.f32.mrf.mxu0
    %v1558 = vadd.f32 %v332, %v1557
    %v1559 = vpop.f32.mrf.mxu0
    %1560 = vmatprep.mubr.f32.mxu0 0.0
    %1561 = vmatmul.mubr.f32.gmra.mxu0 %v569
    %v1562 = vpop.f32.mrf.mxu0
    %v1563 = vadd.f32 %v332, %v1562
    %v1564 = vpop.f32.mrf.mxu0
    %1565 = vmatprep.mubr.f32.mxu0 0.0
    %1566 = vmatmul.mubr.f32.gmra.mxu0 %v572
    %v1567 = vpop.f32.mrf.mxu0
    %v1568 = vadd.f32 %v332, %v1567
    %v1569 = vpop.f32.mrf.mxu0
    %1570 = vmatprep.mubr.f32.mxu0 0.0
    %1571 = vmatmul.mubr.f32.gmra.mxu0 %v575
    %v1572 = vpop.f32.mrf.mxu0
    %v1573 = vadd.f32 %v332, %v1572
    %v1574 = vpop.f32.mrf.mxu0
    %1575 = vmatprep.mubr.f32.mxu0 0.0
    %1576 = vmatmul.mubr.f32.gmra.mxu0 %v578
    %v1577 = vpop.f32.mrf.mxu0
    %v1578 = vadd.f32 %v332, %v1577
    %v1579 = vpop.f32.mrf.mxu0
    %1580 = vmatprep.mubr.f32.mxu0 0.0
    %1581 = vmatmul.mubr.f32.gmra.mxu0 %v581
    %v1582 = vpop.f32.mrf.mxu0
    %v1583 = vadd.f32 %v332, %v1582
    %v1584 = vpop.f32.mrf.mxu0
    %1585 = vmatprep.mubr.f32.mxu0 0.0
    %1586 = vmatmul.mubr.f32.gmra.mxu0 %v584
    %v1587 = vpop.f32.mrf.mxu0
    %v1588 = vadd.f32 %v332, %v1587
    %v1589 = vpop.f32.mrf.mxu0
    %1590 = vmatprep.mubr.f32.mxu0 0.0
    %1591 = vmatmul.mubr.f32.gmra.mxu0 %v587
    %v1592 = vpop.f32.mrf.mxu0
    %v1593 = vadd.f32 %v332, %v1592
    %v1594 = vpop.f32.mrf.mxu0
    %1595 = vmatprep.mubr.f32.mxu0 0.0
    %1596 = vmatmul.mubr.f32.gmra.mxu0 %v590
    %v1597 = vpop.f32.mrf.mxu0
    %v1598 = vadd.f32 %v332, %v1597
    %v1599 = vpop.f32.mrf.mxu0
    %1600 = vmatprep.mubr.f32.mxu0 0.0
    %1601 = vmatmul.mubr.f32.gmra.mxu0 %v593
    %v1602 = vpop.f32.mrf.mxu0
    %v1603 = vadd.f32 %v332, %v1602
    %v1604 = vpop.f32.mrf.mxu0
    %1605 = vmatprep.mubr.f32.mxu0 0.0
    %1606 = vmatmul.mubr.f32.gmra.mxu0 %v596
    %v1607 = vpop.f32.mrf.mxu0
    %v1608 = vadd.f32 %v332, %v1607
    %v1609 = vpop.f32.mrf.mxu0
    %1610 = vmatprep.mubr.f32.mxu0 0.0
    %1611 = vmatmul.mubr.f32.gmra.mxu0 %v599
    %v1612 = vpop.f32.mrf.mxu0
    %v1613 = vadd.f32 %v332, %v1612
    %v1614 = vpop.f32.mrf.mxu0
    %1615 = vmatprep.mubr.f32.mxu0 0.0
    %1616 = vmatmul.mubr.f32.gmra.mxu0 %v602
    %v1617 = vpop.f32.mrf.mxu0
    %v1618 = vadd.f32 %v332, %v1617
    %v1619 = vpop.f32.mrf.mxu0
    %1620 = vmatprep.mubr.f32.mxu0 0.0
    %1621 = vmatmul.mubr.f32.gmra.mxu0 %v605
    %v1622 = vpop.f32.mrf.mxu0
    %v1623 = vadd.f32 %v332, %v1622
    %v1624 = vpop.f32.mrf.mxu0
    %1625 = vmatprep.mubr.f32.mxu0 0.0
    %1626 = vmatmul.mubr.f32.gmra.mxu0 %v608
    %v1627 = vpop.f32.mrf.mxu0
    %v1628 = vadd.f32 %v332, %v1627
    %v1629 = vpop.f32.mrf.mxu0
    %1630 = vmatprep.mubr.f32.mxu0 0.0
    %1631 = vmatmul.mubr.f32.gmra.mxu0 %v611
    %v1632 = vpop.f32.mrf.mxu0
    %v1633 = vadd.f32 %v332, %v1632
    %v1634 = vpop.f32.mrf.mxu0
    %1635 = vmatprep.mubr.f32.mxu0 0.0
    %1636 = vmatmul.mubr.f32.gmra.mxu0 %v614
    %v1637 = vpop.f32.mrf.mxu0
    %v1638 = vadd.f32 %v332, %v1637
    %v1639 = vpop.f32.mrf.mxu0
    %1640 = vmatprep.mubr.f32.mxu0 0.0
    %1641 = vmatmul.mubr.f32.gmra.mxu0 %v617
    %v1642 = vpop.f32.mrf.mxu0
    %v1643 = vadd.f32 %v332, %v1642
    %v1644 = vpop.f32.mrf.mxu0
    %1645 = vmatprep.mubr.f32.mxu0 0.0
    %1646 = vmatmul.mubr.f32.gmra.mxu0 %v620
    %v1647 = vpop.f32.mrf.mxu0
    %v1648 = vadd.f32 %v332, %v1647
    %v1649 = vpop.f32.mrf.mxu0
    %1650 = vmatprep.mubr.f32.mxu0 0.0
    %1651 = vmatmul.mubr.f32.gmra.mxu0 %v623
    %v1652 = vpop.f32.mrf.mxu0
    %v1653 = vadd.f32 %v332, %v1652
    %v1654 = vpop.f32.mrf.mxu0
    %1655 = vmatprep.mubr.f32.mxu0 0.0
    %1656 = vmatmul.mubr.f32.gmra.mxu0 %v626
    %v1657 = vpop.f32.mrf.mxu0
    %v1658 = vadd.f32 %v332, %v1657
    %v1659 = vpop.f32.mrf.mxu0
    %1660 = vmatprep.mubr.f32.mxu0 0.0
    %1661 = vmatmul.mubr.f32.gmra.mxu0 %v629
    %v1662 = vpop.f32.mrf.mxu0
    %v1663 = vadd.f32 %v332, %v1662
    %v1664 = vpop.f32.mrf.mxu0
    %1665 = vmatprep.mubr.f32.mxu0 0.0
    %1666 = vmatmul.mubr.f32.gmra.mxu0 %v632
    %v1667 = vpop.f32.mrf.mxu0
    %v1668 = vadd.f32 %v332, %v1667
    %v1669 = vpop.f32.mrf.mxu0
    %1670 = vmatprep.mubr.f32.mxu0 0.0
    %1671 = vmatmul.mubr.f32.gmra.mxu0 %v635
    %v1672 = vpop.f32.mrf.mxu0
    %v1673 = vadd.f32 %v332, %v1672
    %v1674 = vpop.f32.mrf.mxu0
    %1675 = vmatprep.mubr.f32.mxu0 0.0
    %1676 = vmatmul.mubr.f32.gmra.mxu0 %v638
    %v1677 = vpop.f32.mrf.mxu0
    %v1678 = vadd.f32 %v332, %v1677
    %v1679 = vpop.f32.mrf.mxu0
    %1680 = vmatprep.mubr.f32.mxu0 0.0
    %1681 = vmatmul.mubr.f32.gmra.mxu0 %v641
    %v1682 = vpop.f32.mrf.mxu0
    %v1683 = vadd.f32 %v332, %v1682
    %v1684 = vpop.f32.mrf.mxu0
    %1685 = vmatprep.mubr.f32.mxu0 0.0
    %1686 = vmatmul.mubr.f32.gmra.mxu0 %v644
    %v1687 = vpop.f32.mrf.mxu0
    %v1688 = vadd.f32 %v332, %v1687
    %v1689 = vpop.f32.mrf.mxu0
    %1690 = vmatprep.mubr.f32.mxu0 0.0
    %1691 = vmatmul.mubr.f32.gmra.mxu0 %v647
    %v1692 = vpop.f32.mrf.mxu0
    %v1693 = vadd.f32 %v332, %v1692
    %v1694 = vpop.f32.mrf.mxu0
    %1695 = vmatprep.mubr.f32.mxu0 0.0
    %1696 = vmatmul.mubr.f32.gmra.mxu0 %v650
    %v1697 = vpop.f32.mrf.mxu0
    %v1698 = vadd.f32 %v332, %v1697
    %v1699 = vpop.f32.mrf.mxu0
    %1700 = vmatprep.mubr.f32.mxu0 0.0
    %1701 = vmatmul.mubr.f32.gmra.mxu0 %v653
    %v1702 = vpop.f32.mrf.mxu0
    %v1703 = vadd.f32 %v332, %v1702
    %v1704 = vpop.f32.mrf.mxu0
    %1705 = vmatprep.mubr.f32.mxu0 0.0
    %1706 = vmatmul.mubr.f32.gmra.mxu0 %v656
    %v1707 = vpop.f32.mrf.mxu0
    %v1708 = vadd.f32 %v332, %v1707
    %v1709 = vpop.f32.mrf.mxu0
    %1710 = vmatprep.mubr.f32.mxu0 0.0
    %1711 = vmatmul.mubr.f32.gmra.mxu0 %v659
    %v1712 = vpop.f32.mrf.mxu0
    %v1713 = vadd.f32 %v332, %v1712
    %v1714 = vpop.f32.mrf.mxu0
    %1715 = vmatprep.mubr.f32.mxu0 0.0
    %1716 = vmatmul.mubr.f32.gmra.mxu0 %v662
    %v1717 = vpop.f32.mrf.mxu0
    %v1718 = vadd.f32 %v332, %v1717
    %v1719 = vpop.f32.mrf.mxu0
    %1720 = vmatprep.mubr.f32.mxu0 0.0
    %1721 = vmatmul.mubr.f32.gmra.mxu0 %v665
    %v1722 = vpop.f32.mrf.mxu0
    %v1723 = vadd.f32 %v332, %v1722
    %v1724 = vpop.f32.mrf.mxu0
    %1725 = vmatprep.mubr.f32.mxu0 0.0
    %1726 = vmatmul.mubr.f32.gmra.mxu0 %v668
    %v1727 = vpop.f32.mrf.mxu0
    %v1728 = vadd.f32 %v332, %v1727
    %v1729 = vpop.f32.mrf.mxu0
    %1730 = vmatprep.mubr.f32.mxu0 0.0
    %1731 = vmatmul.mubr.f32.gmra.mxu0 %v671
    %v1732 = vpop.f32.mrf.mxu0
    %v1733 = vadd.f32 %v332, %v1732
    %v1734 = vpop.f32.mrf.mxu0
    %1735 = vmatprep.mubr.f32.mxu0 0.0
    %1736 = vmatmul.mubr.f32.gmra.mxu0 %v674
    %v1737 = vpop.f32.mrf.mxu0
    %v1738 = vadd.f32 %v332, %v1737
    %v1739 = vpop.f32.mrf.mxu0
    %1740 = vmatprep.mubr.f32.mxu0 0.0
    %1741 = vmatmul.mubr.f32.gmra.mxu0 %v677
    %v1742 = vpop.f32.mrf.mxu0
    %v1743 = vadd.f32 %v332, %v1742
    %v1744 = vpop.f32.mrf.mxu0
    %1745 = vmatprep.mubr.f32.mxu0 0.0
    %1746 = vmatmul.mubr.f32.gmra.mxu0 %v680
    %v1747 = vpop.f32.mrf.mxu0
    %v1748 = vadd.f32 %v332, %v1747
    %v1749 = vpop.f32.mrf.mxu0
    %1750 = vmatprep.mubr.f32.mxu0 0.0
    %1751 = vmatmul.mubr.f32.gmra.mxu0 %v683
    %v1752 = vpop.f32.mrf.mxu0
    %v1753 = vadd.f32 %v332, %v1752
    %v1754 = vpop.f32.mrf.mxu0
    %1755 = vmatprep.mubr.f32.mxu0 0.0
    %1756 = vmatmul.mubr.f32.gmra.mxu0 %v686
    %v1757 = vpop.f32.mrf.mxu0
    %v1758 = vadd.f32 %v332, %v1757
    %v1759 = vpop.f32.mrf.mxu0
    %1760 = vmatprep.mubr.f32.mxu0 0.0
    %1761 = vmatmul.mubr.f32.gmra.mxu0 %v689
    %v1762 = vpop.f32.mrf.mxu0
    %v1763 = vadd.f32 %v332, %v1762
    %v1764 = vpop.f32.mrf.mxu0
    %1765 = vmatprep.mubr.f32.mxu0 0.0
    %1766 = vmatmul.mubr.f32.gmra.mxu0 %v692
    %v1767 = vpop.f32.mrf.mxu0
    %v1768 = vadd.f32 %v332, %v1767
    %v1769 = vpop.f32.mrf.mxu0
    %1770 = vmatprep.mubr.f32.mxu0 0.0
    %1771 = vmatmul.mubr.f32.gmra.mxu0 %v695
    %v1772 = vpop.f32.mrf.mxu0
    %v1773 = vadd.f32 %v332, %v1772
    %v1774 = vpop.f32.mrf.mxu0
    %1775 = vmatprep.mubr.f32.mxu0 0.0
    %1776 = vmatmul.mubr.f32.gmra.mxu0 %v698
    %v1777 = vpop.f32.mrf.mxu0
    %v1778 = vadd.f32 %v332, %v1777
    %v1779 = vpop.f32.mrf.mxu0
    %1780 = vmatprep.mubr.f32.mxu0 0.0
    %1781 = vmatmul.mubr.f32.gmra.mxu0 %v701
    %v1782 = vpop.f32.mrf.mxu0
    %v1783 = vadd.f32 %v332, %v1782
    %v1784 = vpop.f32.mrf.mxu0
    %1785 = vmatprep.mubr.f32.mxu0 0.0
    %1786 = vmatmul.mubr.f32.gmra.mxu0 %v704
    %v1787 = vpop.f32.mrf.mxu0
    %v1788 = vadd.f32 %v332, %v1787
    %v1789 = vpop.f32.mrf.mxu0
    %1790 = vmatprep.mubr.f32.mxu0 0.0
    %1791 = vmatmul.mubr.f32.gmra.mxu0 %v707
    %v1792 = vpop.f32.mrf.mxu0
    %v1793 = vadd.f32 %v332, %v1792
    %v1794 = vpop.f32.mrf.mxu0
    %1795 = vmatprep.mubr.f32.mxu0 0.0
    %1796 = vmatmul.mubr.f32.gmra.mxu0 %v710
    %v1797 = vpop.f32.mrf.mxu0
    %v1798 = vadd.f32 %v332, %v1797
    %v1799 = vpop.f32.mrf.mxu0
    %1800 = vmatprep.mubr.f32.mxu0 0.0
    %1801 = vmatmul.mubr.f32.gmra.mxu0 %v713
    %v1802 = vpop.f32.mrf.mxu0
    %v1803 = vadd.f32 %v332, %v1802
    %v1804 = vpop.f32.mrf.mxu0
    %1805 = vmatprep.mubr.f32.mxu0 0.0
    %1806 = vmatmul.mubr.f32.gmra.mxu0 %v716
    %v1807 = vpop.f32.mrf.mxu0
    %v1808 = vadd.f32 %v332, %v1807
    %v1809 = vpop.f32.mrf.mxu0
    %1810 = vmatprep.mubr.f32.mxu0 0.0
    %1811 = vmatmul.mubr.f32.gmra.mxu0 %v719
    %v1812 = vpop.f32.mrf.mxu0
    %v1813 = vadd.f32 %v332, %v1812
    %v1814 = vpop.f32.mrf.mxu0
    %1815 = vmatprep.mubr.f32.mxu0 0.0
    %1816 = vmatmul.mubr.f32.gmra.mxu0 %v722
    %v1817 = vpop.f32.mrf.mxu0
    %v1818 = vadd.f32 %v332, %v1817
    %v1819 = vpop.f32.mrf.mxu0
    %1820 = vmatprep.mubr.f32.mxu0 0.0
    %1821 = vmatmul.mubr.f32.gmra.mxu0 %v725
    %v1822 = vpop.f32.mrf.mxu0
    %v1823 = vadd.f32 %v332, %v1822
    %v1824 = vpop.f32.mrf.mxu0
    %1825 = vmatprep.mubr.f32.mxu0 0.0
    %1826 = vmatmul.mubr.f32.gmra.mxu0 %v728
    %v1827 = vpop.f32.mrf.mxu0
    %v1828 = vadd.f32 %v332, %v1827
    %v1829 = vpop.f32.mrf.mxu0
    %1830 = vmatprep.mubr.f32.mxu0 0.0
    %1831 = vmatmul.mubr.f32.gmra.mxu0 %v731
    %v1832 = vpop.f32.mrf.mxu0
    %v1833 = vadd.f32 %v332, %v1832
    %v1834 = vpop.f32.mrf.mxu0
    %1835 = vmatprep.mubr.f32.mxu0 0.0
    %1836 = vmatmul.mubr.f32.gmra.mxu0 %v734
    %v1837 = vpop.f32.mrf.mxu0
    %v1838 = vadd.f32 %v332, %v1837
    %v1839 = vpop.f32.mrf.mxu0
    %1840 = vmatprep.mubr.f32.mxu0 0.0
    %1841 = vmatmul.mubr.f32.gmra.mxu0 %v737
    %v1842 = vpop.f32.mrf.mxu0
    %v1843 = vadd.f32 %v332, %v1842
    %v1844 = vpop.f32.mrf.mxu0
    %1845 = vmatprep.mubr.f32.mxu0 0.0
    %1846 = vmatmul.mubr.f32.gmra.mxu0 %v740
    %v1847 = vpop.f32.mrf.mxu0
    %v1848 = vadd.f32 %v332, %v1847
    %v1849 = vpop.f32.mrf.mxu0
    %1850 = vmatprep.mubr.f32.mxu0 0.0
    %1851 = vmatmul.mubr.f32.gmra.mxu0 %v743
    %v1852 = vpop.f32.mrf.mxu0
    %v1853 = vadd.f32 %v332, %v1852
    %v1854 = vpop.f32.mrf.mxu0
    %1855 = vmatprep.mubr.f32.mxu0 0.0
    %1856 = vmatmul.mubr.f32.gmra.mxu0 %v746
    %v1857 = vpop.f32.mrf.mxu0
    %v1858 = vadd.f32 %v332, %v1857
    %v1859 = vpop.f32.mrf.mxu0
    %1860 = vmatprep.mubr.f32.mxu0 0.0
    %1861 = vmatmul.mubr.f32.gmra.mxu0 %v749
    %v1862 = vpop.f32.mrf.mxu0
    %v1863 = vadd.f32 %v332, %v1862
    %v1864 = vpop.f32.mrf.mxu0
    %1865 = vmatprep.mubr.f32.mxu0 0.0
    %1866 = vmatmul.mubr.f32.gmra.mxu0 %v752
    %v1867 = vpop.f32.mrf.mxu0
    %v1868 = vadd.f32 %v332, %v1867
    %v1869 = vpop.f32.mrf.mxu0
    %1870 = vmatprep.mubr.f32.mxu0 0.0
    %1871 = vmatmul.mubr.f32.gmra.mxu0 %v755
    %v1872 = vpop.f32.mrf.mxu0
    %v1873 = vadd.f32 %v332, %v1872
    %v1874 = vpop.f32.mrf.mxu0
    %1875 = vmatprep.mubr.f32.mxu0 0.0
    %1876 = vmatmul.mubr.f32.gmra.mxu0 %v758
    %v1877 = vpop.f32.mrf.mxu0
    %v1878 = vadd.f32 %v332, %v1877
    %v1879 = vpop.f32.mrf.mxu0
    %1880 = vmatprep.mubr.f32.mxu0 0.0
    %1881 = vmatmul.mubr.f32.gmra.mxu0 %v761
    %v1882 = vpop.f32.mrf.mxu0
    %v1883 = vadd.f32 %v332, %v1882
    %v1884 = vpop.f32.mrf.mxu0
    %1885 = vmatprep.mubr.f32.mxu0 0.0
    %1886 = vmatmul.mubr.f32.gmra.mxu0 %v764
    %v1887 = vpop.f32.mrf.mxu0
    %v1888 = vadd.f32 %v332, %v1887
    %v1889 = vpop.f32.mrf.mxu0
    %1890 = vmatprep.mubr.f32.mxu0 0.0
    %1891 = vmatmul.mubr.f32.gmra.mxu0 %v767
    %v1892 = vpop.f32.mrf.mxu0
    %v1893 = vadd.f32 %v332, %v1892
    %v1894 = vpop.f32.mrf.mxu0
    %1895 = vmatprep.mubr.f32.mxu0 0.0
    %1896 = vmatmul.mubr.f32.gmra.mxu0 %v770
    %v1897 = vpop.f32.mrf.mxu0
    %v1898 = vadd.f32 %v332, %v1897
    %v1899 = vpop.f32.mrf.mxu0
    %1900 = vmatprep.mubr.f32.mxu0 0.0
    %1901 = vmatmul.mubr.f32.gmra.mxu0 %v773
    %v1902 = vpop.f32.mrf.mxu0
    %v1903 = vadd.f32 %v332, %v1902
    %v1904 = vpop.f32.mrf.mxu0
    %1905 = vmatprep.mubr.f32.mxu0 0.0
    %1906 = vmatmul.mubr.f32.gmra.mxu0 %v776
    %v1907 = vpop.f32.mrf.mxu0
    %v1908 = vadd.f32 %v332, %v1907
    %v1909 = vpop.f32.mrf.mxu0
    %1910 = vmatprep.mubr.f32.mxu0 0.0
    %1911 = vmatmul.mubr.f32.gmra.mxu0 %v779
    %v1912 = vpop.f32.mrf.mxu0
    %v1913 = vadd.f32 %v332, %v1912
    %v1914 = vpop.f32.mrf.mxu0
    %1915 = vmatprep.mubr.f32.mxu0 0.0
    %1916 = vmatmul.mubr.f32.gmra.mxu0 %v782
    %v1917 = vpop.f32.mrf.mxu0
    %v1918 = vadd.f32 %v332, %v1917
    %v1919 = vpop.f32.mrf.mxu0
    %1920 = vmatprep.mubr.f32.mxu0 0.0
    %1921 = vmatmul.mubr.f32.gmra.mxu0 %v785
    %v1922 = vpop.f32.mrf.mxu0
    %v1923 = vadd.f32 %v332, %v1922
    %v1924 = vpop.f32.mrf.mxu0
    %1925 = vmatprep.mubr.f32.mxu0 0.0
    %1926 = vmatmul.mubr.f32.gmra.mxu0 %v788
    %v1927 = vpop.f32.mrf.mxu0
    %v1928 = vadd.f32 %v332, %v1927
    %v1929 = vpop.f32.mrf.mxu0
    %1930 = vmatprep.mubr.f32.mxu0 0.0
    %1931 = vmatmul.mubr.f32.gmra.mxu0 %v791
    %v1932 = vpop.f32.mrf.mxu0
    %v1933 = vadd.f32 %v332, %v1932
    %v1934 = vpop.f32.mrf.mxu0
    %1935 = vmatprep.mubr.f32.mxu0 0.0
    %1936 = vmatmul.mubr.f32.gmra.mxu0 %v794
    %v1937 = vpop.f32.mrf.mxu0
    %v1938 = vadd.f32 %v332, %v1937
    %v1939 = vpop.f32.mrf.mxu0
    %1940 = vmatprep.mubr.f32.mxu0 0.0
    %1941 = vmatmul.mubr.f32.gmra.mxu0 %v797
    %v1942 = vpop.f32.mrf.mxu0
    %v1943 = vadd.f32 %v332, %v1942
    %v1944 = vpop.f32.mrf.mxu0
    %1945 = vmatprep.mubr.f32.mxu0 0.0
    %1946 = vmatmul.mubr.f32.gmra.mxu0 %v800
    %v1947 = vpop.f32.mrf.mxu0
    %v1948 = vadd.f32 %v332, %v1947
    %v1949 = vpop.f32.mrf.mxu0
    %1950 = vmatprep.mubr.f32.mxu0 0.0
    %1951 = vmatmul.mubr.f32.gmra.mxu0 %v803
    %v1952 = vpop.f32.mrf.mxu0
    %v1953 = vadd.f32 %v332, %v1952
    %v1954 = vpop.f32.mrf.mxu0
    %1955 = vmatprep.mubr.f32.mxu0 0.0
    %1956 = vmatmul.mubr.f32.gmra.mxu0 %v806
    %v1957 = vpop.f32.mrf.mxu0
    %v1958 = vadd.f32 %v332, %v1957
    %v1959 = vpop.f32.mrf.mxu0
    %1960 = vmatprep.mubr.f32.mxu0 0.0
    %1961 = vmatmul.mubr.f32.gmra.mxu0 %v809
    %v1962 = vpop.f32.mrf.mxu0
    %v1963 = vadd.f32 %v332, %v1962
    %v1964 = vpop.f32.mrf.mxu0
    %1965 = vmatprep.mubr.f32.mxu0 0.0
    %1966 = vmatmul.mubr.f32.gmra.mxu0 %v812
    %v1967 = vpop.f32.mrf.mxu0
    %v1968 = vadd.f32 %v332, %v1967
    %v1969 = vpop.f32.mrf.mxu0
    %1970 = vmatprep.mubr.f32.mxu0 0.0
    %1971 = vmatmul.mubr.f32.gmra.mxu0 %v815
    %v1972 = vpop.f32.mrf.mxu0
    %v1973 = vadd.f32 %v332, %v1972
    %v1974 = vpop.f32.mrf.mxu0
    %1975 = vmatprep.mubr.f32.mxu0 0.0
    %1976 = vmatmul.mubr.f32.gmra.mxu0 %v818
    %v1977 = vpop.f32.mrf.mxu0
    %v1978 = vadd.f32 %v332, %v1977
    %v1979 = vpop.f32.mrf.mxu0
    %1980 = vmatprep.mubr.f32.mxu0 0.0
    %1981 = vmatmul.mubr.f32.gmra.mxu0 %v821
    %v1982 = vpop.f32.mrf.mxu0
    %v1983 = vadd.f32 %v332, %v1982
    %v1984 = vpop.f32.mrf.mxu0
    %1985 = vmatprep.mubr.f32.mxu0 0.0
    %1986 = vmatmul.mubr.f32.gmra.mxu0 %v824
    %v1987 = vpop.f32.mrf.mxu0
    %v1988 = vadd.f32 %v332, %v1987
    %v1989 = vpop.f32.mrf.mxu0
    %1990 = vmatprep.mubr.f32.mxu0 0.0
    %1991 = vmatmul.mubr.f32.gmra.mxu0 %v827
    %v1992 = vpop.f32.mrf.mxu0
    %v1993 = vadd.f32 %v332, %v1992
    %v1994 = vpop.f32.mrf.mxu0
    %1995 = vmatprep.mubr.f32.mxu0 0.0
    %1996 = vmatmul.mubr.f32.gmra.mxu0 %v830
    %v1997 = vpop.f32.mrf.mxu0
    %v1998 = vadd.f32 %v332, %v1997
    %v1999 = vpop.f32.mrf.mxu0
    %2000 = vmatprep.mubr.f32.mxu0 0.0
    %2001 = vmatmul.mubr.f32.gmra.mxu0 %v833
    %v2002 = vpop.f32.mrf.mxu0
    %v2003 = vadd.f32 %v332, %v2002
    %v2004 = vpop.f32.mrf.mxu0
    %2005 = vmatprep.mubr.f32.mxu0 0.0
    %2006 = vmatmul.mubr.f32.gmra.mxu0 %v836
    %v2007 = vpop.f32.mrf.mxu0
    %v2008 = vadd.f32 %v332, %v2007
    %v2009 = vpop.f32.mrf.mxu0
    %2010 = vmatprep.mubr.f32.mxu0 0.0
    %2011 = vmatmul.mubr.f32.gmra.mxu0 %v839
    %v2012 = vpop.f32.mrf.mxu0
    %v2013 = vadd.f32 %v332, %v2012
    %v2014 = vpop.f32.mrf.mxu0
    %2015 = vmatprep.mubr.f32.mxu0 0.0
    %2016 = vmatmul.mubr.f32.gmra.mxu0 %v842
    %v2017 = vpop.f32.mrf.mxu0
    %v2018 = vadd.f32 %v332, %v2017
    %v2019 = vpop.f32.mrf.mxu0
    %2020 = vmatprep.mubr.f32.mxu0 0.0
    %2021 = vmatmul.mubr.f32.gmra.mxu0 %v845
    %v2022 = vpop.f32.mrf.mxu0
    %v2023 = vadd.f32 %v332, %v2022
    %v2024 = vpop.f32.mrf.mxu0
    %2025 = vmatprep.mubr.f32.mxu0 0.0
    %2026 = vmatmul.mubr.f32.gmra.mxu0 %v848
    %v2027 = vpop.f32.mrf.mxu0
    %v2028 = vadd.f32 %v332, %v2027
    %v2029 = vpop.f32.mrf.mxu0
    %2030 = vmatprep.mubr.f32.mxu0 0.0
    %2031 = vmatmul.mubr.f32.gmra.mxu0 %v851
    %v2032 = vpop.f32.mrf.mxu0
    %v2033 = vadd.f32 %v332, %v2032
    %v2034 = vpop.f32.mrf.mxu0
    %2035 = vmatprep.mubr.f32.mxu0 0.0
    %2036 = vmatmul.mubr.f32.gmra.mxu0 %v854
    %v2037 = vpop.f32.mrf.mxu0
    %v2038 = vadd.f32 %v332, %v2037
    %v2039 = vpop.f32.mrf.mxu0
    %2040 = vmatprep.mubr.f32.mxu0 0.0
    %2041 = vmatmul.mubr.f32.gmra.mxu0 %v857
    %v2042 = vpop.f32.mrf.mxu0
    %v2043 = vadd.f32 %v332, %v2042
    %v2044 = vpop.f32.mrf.mxu0
    %2045 = vmatprep.mubr.f32.mxu0 0.0
    %2046 = vmatmul.mubr.f32.gmra.mxu0 %v860
    %v2047 = vpop.f32.mrf.mxu0
    %v2048 = vadd.f32 %v332, %v2047
    %v2049 = vpop.f32.mrf.mxu0
    %2050 = vmatprep.mubr.f32.mxu0 0.0
    %2051 = vmatmul.mubr.f32.gmra.mxu0 %v863
    %v2052 = vpop.f32.mrf.mxu0
    %v2053 = vadd.f32 %v332, %v2052
    %v2054 = vpop.f32.mrf.mxu0
    %2055 = vmatprep.mubr.f32.mxu0 0.0
    %2056 = vmatmul.mubr.f32.gmra.mxu0 %v866
    %v2057 = vpop.f32.mrf.mxu0
    %v2058 = vadd.f32 %v332, %v2057
    %v2059 = vpop.f32.mrf.mxu0
    %2060 = vmatprep.mubr.f32.mxu0 0.0
    %2061 = vmatmul.mubr.f32.gmra.mxu0 %v869
    %v2062 = vpop.f32.mrf.mxu0
    %v2063 = vadd.f32 %v332, %v2062
    %v2064 = vpop.f32.mrf.mxu0
    %2065 = vmatprep.mubr.f32.mxu0 0.0
    %2066 = vmatmul.mubr.f32.gmra.mxu0 %v872
    %v2067 = vpop.f32.mrf.mxu0
    %v2068 = vadd.f32 %v332, %v2067
    %v2069 = vpop.f32.mrf.mxu0
    %2070 = vmatprep.mubr.f32.mxu0 0.0
    %2071 = vmatmul.mubr.f32.gmra.mxu0 %v875
    %v2072 = vpop.f32.mrf.mxu0
    %v2073 = vadd.f32 %v332, %v2072
    %v2074 = vpop.f32.mrf.mxu0
    %2075 = vmatprep.mubr.f32.mxu0 0.0
    %2076 = vmatmul.mubr.f32.gmra.mxu0 %v878
    %v2077 = vpop.f32.mrf.mxu0
    %v2078 = vadd.f32 %v332, %v2077
    %v2079 = vpop.f32.mrf.mxu0
    %2080 = vmatprep.mubr.f32.mxu0 0.0
    %2081 = vmatmul.mubr.f32.gmra.mxu0 %v881
    %v2082 = vpop.f32.mrf.mxu0
    %v2083 = vadd.f32 %v332, %v2082
    %v2084 = vpop.f32.mrf.mxu0
    %2085 = vmatprep.mubr.f32.mxu0 0.0
    %2086 = vmatmul.mubr.f32.gmra.mxu0 %v884
    %v2087 = vpop.f32.mrf.mxu0
    %v2088 = vadd.f32 %v332, %v2087
    %v2089 = vpop.f32.mrf.mxu0
    %2090 = vmatprep.mubr.f32.mxu0 0.0
    %2091 = vmatmul.mubr.f32.gmra.mxu0 %v887
    %v2092 = vpop.f32.mrf.mxu0
    %v2093 = vadd.f32 %v332, %v2092
    %v2094 = vpop.f32.mrf.mxu0
    %2095 = vmatprep.mubr.f32.mxu0 0.0
    %2096 = vmatmul.mubr.f32.gmra.mxu0 %v890
    %v2097 = vpop.f32.mrf.mxu0
    %v2098 = vadd.f32 %v332, %v2097
    %v2099 = vpop.f32.mrf.mxu0
    %2100 = vmatprep.mubr.f32.mxu0 0.0
    %2101 = vmatmul.mubr.f32.gmra.mxu0 %v893
    %v2102 = vpop.f32.mrf.mxu0
    %v2103 = vadd.f32 %v332, %v2102
    %v2104 = vpop.f32.mrf.mxu0
    %2105 = vmatprep.mubr.f32.mxu0 0.0
    %2106 = vmatmul.mubr.f32.gmra.mxu0 %v896
    %v2107 = vpop.f32.mrf.mxu0
    %v2108 = vadd.f32 %v332, %v2107
    %v2109 = vpop.f32.mrf.mxu0
    %2110 = vmatprep.mubr.f32.mxu0 0.0
    %2111 = vmatmul.mubr.f32.gmra.mxu0 %v899
    %v2112 = vpop.f32.mrf.mxu0
    %v2113 = vadd.f32 %v332, %v2112
    %v2114 = vpop.f32.mrf.mxu0
    %2115 = vmatprep.mubr.f32.mxu0 0.0
    %2116 = vmatmul.mubr.f32.gmra.mxu0 %v902
    %v2117 = vpop.f32.mrf.mxu0
    %v2118 = vadd.f32 %v332, %v2117
    %v2119 = vpop.f32.mrf.mxu0
    %2120 = vmatprep.mubr.f32.mxu0 0.0
    %2121 = vmatmul.mubr.f32.gmra.mxu0 %v905
    %v2122 = vpop.f32.mrf.mxu0
    %v2123 = vadd.f32 %v332, %v2122
    %v2124 = vpop.f32.mrf.mxu0
    %2125 = vmatprep.mubr.f32.mxu0 0.0
    %2126 = vmatmul.mubr.f32.gmra.mxu0 %v908
    %v2127 = vpop.f32.mrf.mxu0
    %v2128 = vadd.f32 %v332, %v2127
    %v2129 = vpop.f32.mrf.mxu0
    %2130 = vmatprep.mubr.f32.mxu0 0.0
    %2131 = vmatmul.mubr.f32.gmra.mxu0 %v911
    %v2132 = vpop.f32.mrf.mxu0
    %v2133 = vadd.f32 %v332, %v2132
    %v2134 = vpop.f32.mrf.mxu0
    %2135 = vmatprep.mubr.f32.mxu0 0.0
    %2136 = vmatmul.mubr.f32.gmra.mxu0 %v914
    %v2137 = vpop.f32.mrf.mxu0
    %v2138 = vadd.f32 %v332, %v2137
    %v2139 = vpop.f32.mrf.mxu0
    %2140 = vmatprep.mubr.f32.mxu0 0.0
    %2141 = vmatmul.mubr.f32.gmra.mxu0 %v917
    %v2142 = vpop.f32.mrf.mxu0
    %v2143 = vadd.f32 %v332, %v2142
    %v2144 = vpop.f32.mrf.mxu0
    %2145 = vmatprep.mubr.f32.mxu0 0.0
    %2146 = vmatmul.mubr.f32.gmra.mxu0 %v920
    %v2147 = vpop.f32.mrf.mxu0
    %v2148 = vadd.f32 %v332, %v2147
    %v2149 = vpop.f32.mrf.mxu0
    %2150 = vmatprep.mubr.f32.mxu0 0.0
    %2151 = vmatmul.mubr.f32.gmra.mxu0 %v923
    %v2152 = vpop.f32.mrf.mxu0
    %v2153 = vadd.f32 %v332, %v2152
    %v2154 = vpop.f32.mrf.mxu0
    %2155 = vmatprep.mubr.f32.mxu0 0.0
    %2156 = vmatmul.mubr.f32.gmra.mxu0 %v926
    %v2157 = vpop.f32.mrf.mxu0
    %v2158 = vadd.f32 %v332, %v2157
    %v2159 = vpop.f32.mrf.mxu0
    %2160 = vmatprep.mubr.f32.mxu0 0.0
    %2161 = vmatmul.mubr.f32.gmra.mxu0 %v929
    %v2162 = vpop.f32.mrf.mxu0
    %v2163 = vadd.f32 %v332, %v2162
    %v2164 = vpop.f32.mrf.mxu0
    %2165 = vmatprep.mubr.f32.mxu0 0.0
    %2166 = vmatmul.mubr.f32.gmra.mxu0 %v932
    %v2167 = vpop.f32.mrf.mxu0
    %v2168 = vadd.f32 %v332, %v2167
    %v2169 = vpop.f32.mrf.mxu0
    %2170 = vmatprep.mubr.f32.mxu0 0.0
    %2171 = vmatmul.mubr.f32.gmra.mxu0 %v935
    %v2172 = vpop.f32.mrf.mxu0
    %v2173 = vadd.f32 %v332, %v2172
    %v2174 = vpop.f32.mrf.mxu0
    %2175 = vmatprep.mubr.f32.mxu0 0.0
    %2176 = vmatmul.mubr.f32.gmra.mxu0 %v938
    %v2177 = vpop.f32.mrf.mxu0
    %v2178 = vadd.f32 %v332, %v2177
    %v2179 = vpop.f32.mrf.mxu0
    %2180 = vmatprep.mubr.f32.mxu0 0.0
    %2181 = vmatmul.mubr.f32.gmra.mxu0 %v941
    %v2182 = vpop.f32.mrf.mxu0
    %v2183 = vadd.f32 %v332, %v2182
    %v2184 = vpop.f32.mrf.mxu0
    %2185 = vmatprep.mubr.f32.mxu0 0.0
    %2186 = vmatmul.mubr.f32.gmra.mxu0 %v944
    %v2187 = vpop.f32.mrf.mxu0
    %v2188 = vadd.f32 %v332, %v2187
    %v2189 = vpop.f32.mrf.mxu0
    %2190 = vmatprep.mubr.f32.mxu0 0.0
    %2191 = vmatmul.mubr.f32.gmra.mxu0 %v947
    %v2192 = vpop.f32.mrf.mxu0
    %v2193 = vadd.f32 %v332, %v2192
    %v2194 = vpop.f32.mrf.mxu0
    %2195 = vmatprep.mubr.f32.mxu0 0.0
    %2196 = vmatmul.mubr.f32.gmra.mxu0 %v950
    %v2197 = vpop.f32.mrf.mxu0
    %v2198 = vadd.f32 %v332, %v2197
    %v2199 = vpop.f32.mrf.mxu0
    %2200 = vmatprep.mubr.f32.mxu0 0.0
    %2201 = vmatmul.mubr.f32.gmra.mxu0 %v953
    %v2202 = vpop.f32.mrf.mxu0
    %v2203 = vadd.f32 %v332, %v2202
    %v2204 = vpop.f32.mrf.mxu0
    %2205 = vmatprep.mubr.f32.mxu0 0.0
    %2206 = vmatmul.mubr.f32.gmra.mxu0 %v956
    %v2207 = vpop.f32.mrf.mxu0
    %v2208 = vadd.f32 %v332, %v2207
    %v2209 = vpop.f32.mrf.mxu0
    %2210 = vmatprep.mubr.f32.mxu0 0.0
    %2211 = vmatmul.mubr.f32.gmra.mxu0 %v959
    %v2212 = vpop.f32.mrf.mxu0
    %v2213 = vadd.f32 %v332, %v2212
    %v2214 = vpop.f32.mrf.mxu0
    %2215 = vmatprep.mubr.f32.mxu0 0.0
    %2216 = vmatmul.mubr.f32.gmra.mxu0 %v962
    %v2217 = vpop.f32.mrf.mxu0
    %v2218 = vadd.f32 %v332, %v2217
    %v2219 = vpop.f32.mrf.mxu0
    %2220 = vmatprep.mubr.f32.mxu0 0.0
    %2221 = vmatmul.mubr.f32.gmra.mxu0 %v965
    %v2222 = vpop.f32.mrf.mxu0
    %v2223 = vadd.f32 %v332, %v2222
    %v2224 = vpop.f32.mrf.mxu0
    %2225 = vmatprep.mubr.f32.mxu0 0.0
    %2226 = vmatmul.mubr.f32.gmra.mxu0 %v968
    %v2227 = vpop.f32.mrf.mxu0
    %v2228 = vadd.f32 %v332, %v2227
    %v2229 = vpop.f32.mrf.mxu0
    %2230 = vmatprep.mubr.f32.mxu0 0.0
    %2231 = vmatmul.mubr.f32.gmra.mxu0 %v971
    %v2232 = vpop.f32.mrf.mxu0
    %v2233 = vadd.f32 %v332, %v2232
    %v2234 = vpop.f32.mrf.mxu0
    %2235 = vmatprep.mubr.f32.mxu0 0.0
    %2236 = vmatmul.mubr.f32.gmra.mxu0 %v974
    %v2237 = vpop.f32.mrf.mxu0
    %v2238 = vadd.f32 %v332, %v2237
    %v2239 = vpop.f32.mrf.mxu0
    %2240 = vmatprep.mubr.f32.mxu0 0.0
    %2241 = vmatmul.mubr.f32.gmra.mxu0 %v977
    %v2242 = vpop.f32.mrf.mxu0
    %v2243 = vadd.f32 %v332, %v2242
    %v2244 = vpop.f32.mrf.mxu0
    %2245 = vmatprep.mubr.f32.mxu0 0.0
    %2246 = vmatmul.mubr.f32.gmra.mxu0 %v980
    %v2247 = vpop.f32.mrf.mxu0
    %v2248 = vadd.f32 %v332, %v2247
    %v2249 = vpop.f32.mrf.mxu0
    %2250 = vmatprep.mubr.f32.mxu0 0.0
    %2251 = vmatmul.mubr.f32.gmra.mxu0 %v983
    %v2252 = vpop.f32.mrf.mxu0
    %v2253 = vadd.f32 %v332, %v2252
    %v2254 = vpop.f32.mrf.mxu0
    %2255 = vmatprep.mubr.f32.mxu0 0.0
    %2256 = vmatmul.mubr.f32.gmra.mxu0 %v986
    %v2257 = vpop.f32.mrf.mxu0
    %v2258 = vadd.f32 %v332, %v2257
    %v2259 = vpop.f32.mrf.mxu0
    %2260 = vmatprep.mubr.f32.mxu0 0.0
    %2261 = vmatmul.mubr.f32.gmra.mxu0 %v989
    %v2262 = vpop.f32.mrf.mxu0
    %v2263 = vadd.f32 %v332, %v2262
    %v2264 = vpop.f32.mrf.mxu0
    %2265 = vmatprep.mubr.f32.mxu0 0.0
    %2266 = vmatmul.mubr.f32.gmra.mxu0 %v992
    %v2267 = vpop.f32.mrf.mxu0
    %v2268 = vadd.f32 %v332, %v2267
    %v2269 = vpop.f32.mrf.mxu0
    %2270 = vmatprep.mubr.f32.mxu0 0.0
    %2271 = vmatmul.mubr.f32.gmra.mxu0 %v995
    %v2272 = vpop.f32.mrf.mxu0
    %v2273 = vadd.f32 %v332, %v2272
    %v2274 = vpop.f32.mrf.mxu0
    %2275 = vmatprep.mubr.f32.mxu0 0.0
    %2276 = vmatmul.mubr.f32.gmra.mxu0 %v998
    %v2277 = vpop.f32.mrf.mxu0
    %v2278 = vadd.f32 %v332, %v2277
    %v2279 = vpop.f32.mrf.mxu0
    %2280 = vmatprep.mubr.f32.mxu0 0.0
    %2281 = vmatmul.mubr.f32.gmra.mxu0 %v1001
    %v2282 = vpop.f32.mrf.mxu0
    %v2283 = vadd.f32 %v332, %v2282
    %v2284 = vpop.f32.mrf.mxu0
    %2285 = vmatprep.mubr.f32.mxu0 0.0
    %2286 = vmatmul.mubr.f32.gmra.mxu0 %v1004
    %v2287 = vpop.f32.mrf.mxu0
    %v2288 = vadd.f32 %v332, %v2287
    %v2289 = vpop.f32.mrf.mxu0
    %2290 = vmatprep.mubr.f32.mxu0 0.0
    %2291 = vmatmul.mubr.f32.gmra.mxu0 %v1007
    %v2292 = vpop.f32.mrf.mxu0
    %v2293 = vadd.f32 %v332, %v2292
    %v2294 = vpop.f32.mrf.mxu0
    %2295 = vmatprep.mubr.f32.mxu0 0.0
    %2296 = vmatmul.mubr.f32.gmra.mxu0 %v1010
    %v2297 = vpop.f32.mrf.mxu0
    %v2298 = vadd.f32 %v332, %v2297
    %v2299 = vpop.f32.mrf.mxu0
    %2300 = vmatprep.mubr.f32.mxu0 0.0
    %2301 = vmatmul.mubr.f32.gmra.mxu0 %v1013
    %v2302 = vpop.f32.mrf.mxu0
    %v2303 = vadd.f32 %v332, %v2302
    %v2304 = vpop.f32.mrf.mxu0
    %2305 = vmatprep.mubr.f32.mxu0 0.0
    %2306 = vmatmul.mubr.f32.gmra.mxu0 %v1016
    %v2307 = vpop.f32.mrf.mxu0
    %v2308 = vadd.f32 %v332, %v2307
    %v2309 = vpop.f32.mrf.mxu0
    %2310 = vmatprep.mubr.f32.mxu0 0.0
    %2311 = vmatmul.mubr.f32.gmra.mxu0 %v1019
    %v2312 = vpop.f32.mrf.mxu0
    %v2313 = vadd.f32 %v332, %v2312
    %v2314 = vpop.f32.mrf.mxu0
    %2315 = vmatprep.mubr.f32.mxu0 0.0
    %2316 = vmatmul.mubr.f32.gmra.mxu0 %v1022
    %v2317 = vpop.f32.mrf.mxu0
    %v2318 = vadd.f32 %v332, %v2317
    %v2319 = vpop.f32.mrf.mxu0
    %2320 = vmatprep.mubr.f32.mxu0 0.0
    %2321 = vmatmul.mubr.f32.gmra.mxu0 %v1025
    %v2322 = vpop.f32.mrf.mxu0
    %v2323 = vadd.f32 %v332, %v2322
    %v2324 = vpop.f32.mrf.mxu0
    %2325 = vmatprep.mubr.f32.mxu0 0.0
    %2326 = vmatmul.mubr.f32.gmra.mxu0 %v1028
    %v2327 = vpop.f32.mrf.mxu0
    %v2328 = vadd.f32 %v332, %v2327
    %v2329 = vpop.f32.mrf.mxu0
    %2330 = vmatprep.mubr.f32.mxu0 0.0
    %2331 = vmatmul.mubr.f32.gmra.mxu0 %v1031
    %v2332 = vpop.f32.mrf.mxu0
    %v2333 = vadd.f32 %v332, %v2332
    %v2334 = vpop.f32.mrf.mxu0
    %2335 = vmatprep.mubr.f32.mxu0 0.0
    %2336 = vmatmul.mubr.f32.gmra.mxu0 %v1034
    %v2337 = vpop.f32.mrf.mxu0
    %v2338 = vadd.f32 %v332, %v2337
    %v2339 = vpop.f32.mrf.mxu0
    %2340 = vmatprep.mubr.f32.mxu0 0.0
    %2341 = vmatmul.mubr.f32.gmra.mxu0 %v1037
    %v2342 = vpop.f32.mrf.mxu0
    %v2343 = vadd.f32 %v332, %v2342
    %v2344 = vpop.f32.mrf.mxu0
    %2345 = vmatprep.mubr.f32.mxu0 0.0
    %2346 = vmatmul.mubr.f32.gmra.mxu0 %v1040
    %v2347 = vpop.f32.mrf.mxu0
    %v2348 = vadd.f32 %v332, %v2347
    %v2349 = vpop.f32.mrf.mxu0
    %2350 = vmatprep.mubr.f32.mxu0 0.0
    %2351 = vmatmul.mubr.f32.gmra.mxu0 %v1043
    %v2352 = vpop.f32.mrf.mxu0
    %v2353 = vadd.f32 %v332, %v2352
    %v2354 = vpop.f32.mrf.mxu0
    %2355 = vmatprep.mubr.f32.mxu0 0.0
    %2356 = vmatmul.mubr.f32.gmra.mxu0 %v1046
    %v2357 = vpop.f32.mrf.mxu0
    %v2358 = vadd.f32 %v332, %v2357
    %v2359 = vpop.f32.mrf.mxu0
    %2360 = vmatprep.mubr.f32.mxu0 0.0
    %2361 = vmatmul.mubr.f32.gmra.mxu0 %v1049
    %v2362 = vpop.f32.mrf.mxu0
    %v2363 = vadd.f32 %v332, %v2362
    %v2364 = vpop.f32.mrf.mxu0
    %2365 = vmatprep.mubr.f32.mxu0 0.0
    %2366 = vmatmul.mubr.f32.gmra.mxu0 %v1052
    %v2367 = vpop.f32.mrf.mxu0
    %v2368 = vadd.f32 %v332, %v2367
    %v2369 = vpop.f32.mrf.mxu0
    %2370 = vmatprep.mubr.f32.mxu0 0.0
    %2371 = vmatmul.mubr.f32.gmra.mxu0 %v1055
    %v2372 = vpop.f32.mrf.mxu0
    %v2373 = vadd.f32 %v332, %v2372
    %v2374 = vpop.f32.mrf.mxu0
    %2375 = vmatprep.mubr.f32.mxu0 0.0
    %2376 = vmatmul.mubr.f32.gmra.mxu0 %v1058
    %v2377 = vpop.f32.mrf.mxu0
    %v2378 = vadd.f32 %v332, %v2377
    %v2379 = vpop.f32.mrf.mxu0
    %2380 = vmatprep.mubr.f32.mxu0 0.0
    %2381 = vmatmul.mubr.f32.gmra.mxu0 %v1061
    %v2382 = vpop.f32.mrf.mxu0
    %v2383 = vadd.f32 %v332, %v2382
    %v2384 = vpop.f32.mrf.mxu0
    %2385 = vmatprep.mubr.f32.mxu0 0.0
    %2386 = vmatmul.mubr.f32.gmra.mxu0 %v1064
    %v2387 = vpop.f32.mrf.mxu0
    %v2388 = vadd.f32 %v332, %v2387
    %v2389 = vpop.f32.mrf.mxu0
    %2390 = vmatprep.mubr.f32.mxu0 0.0
    %2391 = vmatmul.mubr.f32.gmra.mxu0 %v1067
    %v2392 = vpop.f32.mrf.mxu0
    %v2393 = vadd.f32 %v332, %v2392
    %v2394 = vpop.f32.mrf.mxu0
    %2395 = vmatprep.mubr.f32.mxu0 0.0
    %2396 = vmatmul.mubr.f32.gmra.mxu0 %v1070
    %v2397 = vpop.f32.mrf.mxu0
    %v2398 = vadd.f32 %v332, %v2397
    %v2399 = vpop.f32.mrf.mxu0
    %2400 = vmatprep.mubr.f32.mxu0 0.0
    %2401 = vmatmul.mubr.f32.gmra.mxu0 %v1073
    %v2402 = vpop.f32.mrf.mxu0
    %v2403 = vadd.f32 %v332, %v2402
    %v2404 = vpop.f32.mrf.mxu0
    %2405 = vmatprep.mubr.f32.mxu0 0.0
    %2406 = vmatmul.mubr.f32.gmra.mxu0 %v1076
    %v2407 = vpop.f32.mrf.mxu0
    %v2408 = vadd.f32 %v332, %v2407
    %v2409 = vpop.f32.mrf.mxu0
    %2410 = vmatprep.mubr.f32.mxu0 0.0
    %2411 = vmatmul.mubr.f32.gmra.mxu0 %v1079
    %v2412 = vpop.f32.mrf.mxu0
    %v2413 = vadd.f32 %v332, %v2412
    %v2414 = vpop.f32.mrf.mxu0
    %2415 = vmatprep.mubr.f32.mxu0 0.0
    %2416 = vmatmul.mubr.f32.gmra.mxu0 %v1082
    %v2417 = vpop.f32.mrf.mxu0
    %v2418 = vadd.f32 %v332, %v2417
    %v2419 = vpop.f32.mrf.mxu0
    %2420 = vmatprep.mubr.f32.mxu0 0.0
    %2421 = vmatmul.mubr.f32.gmra.mxu0 %v1085
    %v2422 = vpop.f32.mrf.mxu0
    %v2423 = vadd.f32 %v332, %v2422
    %v2424 = vpop.f32.mrf.mxu0
    %2425 = vmatprep.mubr.f32.mxu0 0.0
    %2426 = vmatmul.mubr.f32.gmra.mxu0 %v1088
    %v2427 = vpop.f32.mrf.mxu0
    %v2428 = vadd.f32 %v332, %v2427
    %v2429 = vpop.f32.mrf.mxu0
    %2430 = vmatprep.mubr.f32.mxu0 0.0
    %2431 = vmatmul.mubr.f32.gmra.mxu0 %v1091
    %v2432 = vpop.f32.mrf.mxu0
    %v2433 = vadd.f32 %v332, %v2432
    %v2434 = vpop.f32.mrf.mxu0
    %2435 = vmatprep.mubr.f32.mxu0 0.0
    %2436 = vmatmul.mubr.f32.gmra.mxu0 %v1094
    %v2437 = vpop.f32.mrf.mxu0
    %v2438 = vadd.f32 %v332, %v2437
    %v2439 = vpop.f32.mrf.mxu0
    %2440 = vmatprep.mubr.f32.mxu0 0.0
    %2441 = vmatmul.mubr.f32.gmra.mxu0 %v1097
    %v2442 = vpop.f32.mrf.mxu0
    %v2443 = vadd.f32 %v332, %v2442
    %v2444 = vpop.f32.mrf.mxu0
    %2445 = vmatprep.mubr.f32.mxu0 0.0
    %2446 = vmatmul.mubr.f32.gmra.mxu0 %v1100
    %v2447 = vpop.f32.mrf.mxu0
    %v2448 = vadd.f32 %v332, %v2447
    %v2449 = vpop.f32.mrf.mxu0
    %2450 = vdwg.mxu0
    %v2451 = vmax.f32 %v1173, 0.0
    %v2452 = vmax.f32 %v1178, 0.0
    %v2453 = vmax.f32 %v1183, 0.0
    %v2454 = vmax.f32 %v1188, 0.0
    %v2455 = vmax.f32 %v1193, 0.0
    %v2456 = vmax.f32 %v1198, 0.0
    %v2457 = vmax.f32 %v1203, 0.0
    %v2458 = vmax.f32 %v1208, 0.0
    %v2459 = vmax.f32 %v1213, 0.0
    %v2460 = vmax.f32 %v1218, 0.0
    %v2461 = vmax.f32 %v1223, 0.0
    %v2462 = vmax.f32 %v1228, 0.0
    %v2463 = vmax.f32 %v1233, 0.0
    %v2464 = vmax.f32 %v1238, 0.0
    %v2465 = vmax.f32 %v1243, 0.0
    %v2466 = vmax.f32 %v1248, 0.0
    %v2467 = vmax.f32 %v1253, 0.0
    %v2468 = vmax.f32 %v1258, 0.0
    %v2469 = vmax.f32 %v1263, 0.0
    %v2470 = vmax.f32 %v1268, 0.0
    %v2471 = vmax.f32 %v1273, 0.0
    %v2472 = vmax.f32 %v1278, 0.0
    %v2473 = vmax.f32 %v1283, 0.0
    %v2474 = vmax.f32 %v1288, 0.0
    %v2475 = vmax.f32 %v1293, 0.0
    %v2476 = vmax.f32 %v1298, 0.0
    %v2477 = vmax.f32 %v1303, 0.0
    %v2478 = vmax.f32 %v1308, 0.0
    %v2479 = vmax.f32 %v1313, 0.0
    %v2480 = vmax.f32 %v1318, 0.0
    %v2481 = vmax.f32 %v1323, 0.0
    %v2482 = vmax.f32 %v1328, 0.0
    %v2483 = vmax.f32 %v1333, 0.0
    %v2484 = vmax.f32 %v1338, 0.0
    %v2485 = vmax.f32 %v1343, 0.0
    %v2486 = vmax.f32 %v1348, 0.0
    %v2487 = vmax.f32 %v1353, 0.0
    %v2488 = vmax.f32 %v1358, 0.0
    %v2489 = vmax.f32 %v1363, 0.0
    %v2490 = vmax.f32 %v1368, 0.0
    %v2491 = vmax.f32 %v1373, 0.0
    %v2492 = vmax.f32 %v1378, 0.0
    %v2493 = vmax.f32 %v1383, 0.0
    %v2494 = vmax.f32 %v1388, 0.0
    %v2495 = vmax.f32 %v1393, 0.0
    %v2496 = vmax.f32 %v1398, 0.0
    %v2497 = vmax.f32 %v1403, 0.0
    %v2498 = vmax.f32 %v1408, 0.0
    %v2499 = vmax.f32 %v1413, 0.0
    %v2500 = vmax.f32 %v1418, 0.0
    %v2501 = vmax.f32 %v1423, 0.0
    %v2502 = vmax.f32 %v1428, 0.0
    %v2503 = vmax.f32 %v1433, 0.0
    %v2504 = vmax.f32 %v1438, 0.0
    %v2505 = vmax.f32 %v1443, 0.0
    %v2506 = vmax.f32 %v1448, 0.0
    %v2507 = vmax.f32 %v1453, 0.0
    %v2508 = vmax.f32 %v1458, 0.0
    %v2509 = vmax.f32 %v1463, 0.0
    %v2510 = vmax.f32 %v1468, 0.0
    %v2511 = vmax.f32 %v1473, 0.0
    %v2512 = vmax.f32 %v1478, 0.0
    %v2513 = vmax.f32 %v1483, 0.0
    %v2514 = vmax.f32 %v1488, 0.0
    %v2515 = vmax.f32 %v1493, 0.0
    %v2516 = vmax.f32 %v1498, 0.0
    %v2517 = vmax.f32 %v1503, 0.0
    %v2518 = vmax.f32 %v1508, 0.0
    %v2519 = vmax.f32 %v1513, 0.0
    %v2520 = vmax.f32 %v1518, 0.0
    %v2521 = vmax.f32 %v1523, 0.0
    %v2522 = vmax.f32 %v1528, 0.0
    %v2523 = vmax.f32 %v1533, 0.0
    %v2524 = vmax.f32 %v1538, 0.0
    %v2525 = vmax.f32 %v1543, 0.0
    %v2526 = vmax.f32 %v1548, 0.0
    %v2527 = vmax.f32 %v1553, 0.0
    %v2528 = vmax.f32 %v1558, 0.0
    %v2529 = vmax.f32 %v1563, 0.0
    %v2530 = vmax.f32 %v1568, 0.0
    %v2531 = vmax.f32 %v1573, 0.0
    %v2532 = vmax.f32 %v1578, 0.0
    %v2533 = vmax.f32 %v1583, 0.0
    %v2534 = vmax.f32 %v1588, 0.0
    %v2535 = vmax.f32 %v1593, 0.0
    %v2536 = vmax.f32 %v1598, 0.0
    %v2537 = vmax.f32 %v1603, 0.0
    %v2538 = vmax.f32 %v1608, 0.0
    %v2539 = vmax.f32 %v1613, 0.0
    %v2540 = vmax.f32 %v1618, 0.0
    %v2541 = vmax.f32 %v1623, 0.0
    %v2542 = vmax.f32 %v1628, 0.0
    %v2543 = vmax.f32 %v1633, 0.0
    %v2544 = vmax.f32 %v1638, 0.0
    %v2545 = vmax.f32 %v1643, 0.0
    %v2546 = vmax.f32 %v1648, 0.0
    %v2547 = vmax.f32 %v1653, 0.0
    %v2548 = vmax.f32 %v1658, 0.0
    %v2549 = vmax.f32 %v1663, 0.0
    %v2550 = vmax.f32 %v1668, 0.0
    %v2551 = vmax.f32 %v1673, 0.0
    %v2552 = vmax.f32 %v1678, 0.0
    %v2553 = vmax.f32 %v1683, 0.0
    %v2554 = vmax.f32 %v1688, 0.0
    %v2555 = vmax.f32 %v1693, 0.0
    %v2556 = vmax.f32 %v1698, 0.0
    %v2557 = vmax.f32 %v1703, 0.0
    %v2558 = vmax.f32 %v1708, 0.0
    %v2559 = vmax.f32 %v1713, 0.0
    %v2560 = vmax.f32 %v1718, 0.0
    %v2561 = vmax.f32 %v1723, 0.0
    %v2562 = vmax.f32 %v1728, 0.0
    %v2563 = vmax.f32 %v1733, 0.0
    %v2564 = vmax.f32 %v1738, 0.0
    %v2565 = vmax.f32 %v1743, 0.0
    %v2566 = vmax.f32 %v1748, 0.0
    %v2567 = vmax.f32 %v1753, 0.0
    %v2568 = vmax.f32 %v1758, 0.0
    %v2569 = vmax.f32 %v1763, 0.0
    %v2570 = vmax.f32 %v1768, 0.0
    %v2571 = vmax.f32 %v1773, 0.0
    %v2572 = vmax.f32 %v1778, 0.0
    %v2573 = vmax.f32 %v1783, 0.0
    %v2574 = vmax.f32 %v1788, 0.0
    %v2575 = vmax.f32 %v1793, 0.0
    %v2576 = vmax.f32 %v1798, 0.0
    %v2577 = vmax.f32 %v1803, 0.0
    %v2578 = vmax.f32 %v1808, 0.0
    %v2579 = vmax.f32 %v1813, 0.0
    %v2580 = vmax.f32 %v1818, 0.0
    %v2581 = vmax.f32 %v1823, 0.0
    %v2582 = vmax.f32 %v1828, 0.0
    %v2583 = vmax.f32 %v1833, 0.0
    %v2584 = vmax.f32 %v1838, 0.0
    %v2585 = vmax.f32 %v1843, 0.0
    %v2586 = vmax.f32 %v1848, 0.0
    %v2587 = vmax.f32 %v1853, 0.0
    %v2588 = vmax.f32 %v1858, 0.0
    %v2589 = vmax.f32 %v1863, 0.0
    %v2590 = vmax.f32 %v1868, 0.0
    %v2591 = vmax.f32 %v1873, 0.0
    %v2592 = vmax.f32 %v1878, 0.0
    %v2593 = vmax.f32 %v1883, 0.0
    %v2594 = vmax.f32 %v1888, 0.0
    %v2595 = vmax.f32 %v1893, 0.0
    %v2596 = vmax.f32 %v1898, 0.0
    %v2597 = vmax.f32 %v1903, 0.0
    %v2598 = vmax.f32 %v1908, 0.0
    %v2599 = vmax.f32 %v1913, 0.0
    %v2600 = vmax.f32 %v1918, 0.0
    %v2601 = vmax.f32 %v1923, 0.0
    %v2602 = vmax.f32 %v1928, 0.0
    %v2603 = vmax.f32 %v1933, 0.0
    %v2604 = vmax.f32 %v1938, 0.0
    %v2605 = vmax.f32 %v1943, 0.0
    %v2606 = vmax.f32 %v1948, 0.0
    %v2607 = vmax.f32 %v1953, 0.0
    %v2608 = vmax.f32 %v1958, 0.0
    %v2609 = vmax.f32 %v1963, 0.0
    %v2610 = vmax.f32 %v1968, 0.0
    %v2611 = vmax.f32 %v1973, 0.0
    %v2612 = vmax.f32 %v1978, 0.0
    %v2613 = vmax.f32 %v1983, 0.0
    %v2614 = vmax.f32 %v1988, 0.0
    %v2615 = vmax.f32 %v1993, 0.0
    %v2616 = vmax.f32 %v1998, 0.0
    %v2617 = vmax.f32 %v2003, 0.0
    %v2618 = vmax.f32 %v2008, 0.0
    %v2619 = vmax.f32 %v2013, 0.0
    %v2620 = vmax.f32 %v2018, 0.0
    %v2621 = vmax.f32 %v2023, 0.0
    %v2622 = vmax.f32 %v2028, 0.0
    %v2623 = vmax.f32 %v2033, 0.0
    %v2624 = vmax.f32 %v2038, 0.0
    %v2625 = vmax.f32 %v2043, 0.0
    %v2626 = vmax.f32 %v2048, 0.0
    %v2627 = vmax.f32 %v2053, 0.0
    %v2628 = vmax.f32 %v2058, 0.0
    %v2629 = vmax.f32 %v2063, 0.0
    %v2630 = vmax.f32 %v2068, 0.0
    %v2631 = vmax.f32 %v2073, 0.0
    %v2632 = vmax.f32 %v2078, 0.0
    %v2633 = vmax.f32 %v2083, 0.0
    %v2634 = vmax.f32 %v2088, 0.0
    %v2635 = vmax.f32 %v2093, 0.0
    %v2636 = vmax.f32 %v2098, 0.0
    %v2637 = vmax.f32 %v2103, 0.0
    %v2638 = vmax.f32 %v2108, 0.0
    %v2639 = vmax.f32 %v2113, 0.0
    %v2640 = vmax.f32 %v2118, 0.0
    %v2641 = vmax.f32 %v2123, 0.0
    %v2642 = vmax.f32 %v2128, 0.0
    %v2643 = vmax.f32 %v2133, 0.0
    %v2644 = vmax.f32 %v2138, 0.0
    %v2645 = vmax.f32 %v2143, 0.0
    %v2646 = vmax.f32 %v2148, 0.0
    %v2647 = vmax.f32 %v2153, 0.0
    %v2648 = vmax.f32 %v2158, 0.0
    %v2649 = vmax.f32 %v2163, 0.0
    %v2650 = vmax.f32 %v2168, 0.0
    %v2651 = vmax.f32 %v2173, 0.0
    %v2652 = vmax.f32 %v2178, 0.0
    %v2653 = vmax.f32 %v2183, 0.0
    %v2654 = vmax.f32 %v2188, 0.0
    %v2655 = vmax.f32 %v2193, 0.0
    %v2656 = vmax.f32 %v2198, 0.0
    %v2657 = vmax.f32 %v2203, 0.0
    %v2658 = vmax.f32 %v2208, 0.0
    %v2659 = vmax.f32 %v2213, 0.0
    %v2660 = vmax.f32 %v2218, 0.0
    %v2661 = vmax.f32 %v2223, 0.0
    %v2662 = vmax.f32 %v2228, 0.0
    %v2663 = vmax.f32 %v2233, 0.0
    %v2664 = vmax.f32 %v2238, 0.0
    %v2665 = vmax.f32 %v2243, 0.0
    %v2666 = vmax.f32 %v2248, 0.0
    %v2667 = vmax.f32 %v2253, 0.0
    %v2668 = vmax.f32 %v2258, 0.0
    %v2669 = vmax.f32 %v2263, 0.0
    %v2670 = vmax.f32 %v2268, 0.0
    %v2671 = vmax.f32 %v2273, 0.0
    %v2672 = vmax.f32 %v2278, 0.0
    %v2673 = vmax.f32 %v2283, 0.0
    %v2674 = vmax.f32 %v2288, 0.0
    %v2675 = vmax.f32 %v2293, 0.0
    %v2676 = vmax.f32 %v2298, 0.0
    %v2677 = vmax.f32 %v2303, 0.0
    %v2678 = vmax.f32 %v2308, 0.0
    %v2679 = vmax.f32 %v2313, 0.0
    %v2680 = vmax.f32 %v2318, 0.0
    %v2681 = vmax.f32 %v2323, 0.0
    %v2682 = vmax.f32 %v2328, 0.0
    %v2683 = vmax.f32 %v2333, 0.0
    %v2684 = vmax.f32 %v2338, 0.0
    %v2685 = vmax.f32 %v2343, 0.0
    %v2686 = vmax.f32 %v2348, 0.0
    %v2687 = vmax.f32 %v2353, 0.0
    %v2688 = vmax.f32 %v2358, 0.0
    %v2689 = vmax.f32 %v2363, 0.0
    %v2690 = vmax.f32 %v2368, 0.0
    %v2691 = vmax.f32 %v2373, 0.0
    %v2692 = vmax.f32 %v2378, 0.0
    %v2693 = vmax.f32 %v2383, 0.0
    %v2694 = vmax.f32 %v2388, 0.0
    %v2695 = vmax.f32 %v2393, 0.0
    %v2696 = vmax.f32 %v2398, 0.0
    %v2697 = vmax.f32 %v2403, 0.0
    %v2698 = vmax.f32 %v2408, 0.0
    %v2699 = vmax.f32 %v2413, 0.0
    %v2700 = vmax.f32 %v2418, 0.0
    %v2701 = vmax.f32 %v2423, 0.0
    %v2702 = vmax.f32 %v2428, 0.0
    %v2703 = vmax.f32 %v2433, 0.0
    %v2704 = vmax.f32 %v2438, 0.0
    %v2705 = vmax.f32 %v2443, 0.0
    %v2706 = vmax.f32 %v2448, 0.0
    %vm2707 = vcmask 64512
    %v2708 = vsel %vm2707, %v2451, 0.0
    %v2709 = vsel %vm2707, %v2452, 0.0
    %v2710 = vadd.f32 %v2708, %v2709
    %v2711 = vsel %vm2707, %v2453, 0.0
    %v2712 = vadd.f32 %v2710, %v2711
    %v2713 = vsel %vm2707, %v2454, 0.0
    %v2714 = vadd.f32 %v2712, %v2713
    %v2715 = vsel %vm2707, %v2455, 0.0
    %v2716 = vadd.f32 %v2714, %v2715
    %v2717 = vsel %vm2707, %v2456, 0.0
    %v2718 = vadd.f32 %v2716, %v2717
    %v2719 = vsel %vm2707, %v2457, 0.0
    %v2720 = vadd.f32 %v2718, %v2719
    %v2721 = vsel %vm2707, %v2458, 0.0
    %v2722 = vadd.f32 %v2720, %v2721
    %v2723 = vsel %vm2707, %v2459, 0.0
    %v2724 = vadd.f32 %v2722, %v2723
    %v2725 = vsel %vm2707, %v2460, 0.0
    %v2726 = vadd.f32 %v2724, %v2725
    %v2727 = vsel %vm2707, %v2461, 0.0
    %v2728 = vadd.f32 %v2726, %v2727
    %v2729 = vsel %vm2707, %v2462, 0.0
    %v2730 = vadd.f32 %v2728, %v2729
    %v2731 = vsel %vm2707, %v2463, 0.0
    %v2732 = vadd.f32 %v2730, %v2731
    %v2733 = vsel %vm2707, %v2464, 0.0
    %v2734 = vadd.f32 %v2732, %v2733
    %v2735 = vsel %vm2707, %v2465, 0.0
    %v2736 = vadd.f32 %v2734, %v2735
    %v2737 = vsel %vm2707, %v2466, 0.0
    %v2738 = vadd.f32 %v2736, %v2737
    %v2739 = vsel %vm2707, %v2467, 0.0
    %v2740 = vadd.f32 %v2738, %v2739
    %v2741 = vsel %vm2707, %v2468, 0.0
    %v2742 = vadd.f32 %v2740, %v2741
    %v2743 = vsel %vm2707, %v2469, 0.0
    %v2744 = vadd.f32 %v2742, %v2743
    %v2745 = vsel %vm2707, %v2470, 0.0
    %v2746 = vadd.f32 %v2744, %v2745
    %v2747 = vsel %vm2707, %v2471, 0.0
    %v2748 = vadd.f32 %v2746, %v2747
    %v2749 = vsel %vm2707, %v2472, 0.0
    %v2750 = vadd.f32 %v2748, %v2749
    %v2751 = vsel %vm2707, %v2473, 0.0
    %v2752 = vadd.f32 %v2750, %v2751
    %v2753 = vsel %vm2707, %v2474, 0.0
    %v2754 = vadd.f32 %v2752, %v2753
    %v2755 = vsel %vm2707, %v2475, 0.0
    %v2756 = vadd.f32 %v2754, %v2755
    %v2757 = vsel %vm2707, %v2476, 0.0
    %v2758 = vadd.f32 %v2756, %v2757
    %v2759 = vsel %vm2707, %v2477, 0.0
    %v2760 = vadd.f32 %v2758, %v2759
    %v2761 = vsel %vm2707, %v2478, 0.0
    %v2762 = vadd.f32 %v2760, %v2761
    %v2763 = vsel %vm2707, %v2479, 0.0
    %v2764 = vadd.f32 %v2762, %v2763
    %v2765 = vsel %vm2707, %v2480, 0.0
    %v2766 = vadd.f32 %v2764, %v2765
    %v2767 = vsel %vm2707, %v2481, 0.0
    %v2768 = vadd.f32 %v2766, %v2767
    %v2769 = vsel %vm2707, %v2482, 0.0
    %v2770 = vadd.f32 %v2768, %v2769
    %v2771 = vsel %vm2707, %v2483, 0.0
    %v2772 = vadd.f32 %v2770, %v2771
    %v2773 = vsel %vm2707, %v2484, 0.0
    %v2774 = vadd.f32 %v2772, %v2773
    %v2775 = vsel %vm2707, %v2485, 0.0
    %v2776 = vadd.f32 %v2774, %v2775
    %v2777 = vsel %vm2707, %v2486, 0.0
    %v2778 = vadd.f32 %v2776, %v2777
    %v2779 = vsel %vm2707, %v2487, 0.0
    %v2780 = vadd.f32 %v2778, %v2779
    %v2781 = vsel %vm2707, %v2488, 0.0
    %v2782 = vadd.f32 %v2780, %v2781
    %v2783 = vsel %vm2707, %v2489, 0.0
    %v2784 = vadd.f32 %v2782, %v2783
    %v2785 = vsel %vm2707, %v2490, 0.0
    %v2786 = vadd.f32 %v2784, %v2785
    %v2787 = vsel %vm2707, %v2491, 0.0
    %v2788 = vadd.f32 %v2786, %v2787
    %v2789 = vsel %vm2707, %v2492, 0.0
    %v2790 = vadd.f32 %v2788, %v2789
    %v2791 = vsel %vm2707, %v2493, 0.0
    %v2792 = vadd.f32 %v2790, %v2791
    %v2793 = vsel %vm2707, %v2494, 0.0
    %v2794 = vadd.f32 %v2792, %v2793
    %v2795 = vsel %vm2707, %v2495, 0.0
    %v2796 = vadd.f32 %v2794, %v2795
    %v2797 = vsel %vm2707, %v2496, 0.0
    %v2798 = vadd.f32 %v2796, %v2797
    %v2799 = vsel %vm2707, %v2497, 0.0
    %v2800 = vadd.f32 %v2798, %v2799
    %v2801 = vsel %vm2707, %v2498, 0.0
    %v2802 = vadd.f32 %v2800, %v2801
    %v2803 = vsel %vm2707, %v2499, 0.0
    %v2804 = vadd.f32 %v2802, %v2803
    %v2805 = vsel %vm2707, %v2500, 0.0
    %v2806 = vadd.f32 %v2804, %v2805
    %v2807 = vsel %vm2707, %v2501, 0.0
    %v2808 = vadd.f32 %v2806, %v2807
    %v2809 = vsel %vm2707, %v2502, 0.0
    %v2810 = vadd.f32 %v2808, %v2809
    %v2811 = vsel %vm2707, %v2503, 0.0
    %v2812 = vadd.f32 %v2810, %v2811
    %v2813 = vsel %vm2707, %v2504, 0.0
    %v2814 = vadd.f32 %v2812, %v2813
    %v2815 = vsel %vm2707, %v2505, 0.0
    %v2816 = vadd.f32 %v2814, %v2815
    %v2817 = vsel %vm2707, %v2506, 0.0
    %v2818 = vadd.f32 %v2816, %v2817
    %v2819 = vsel %vm2707, %v2507, 0.0
    %v2820 = vadd.f32 %v2818, %v2819
    %v2821 = vsel %vm2707, %v2508, 0.0
    %v2822 = vadd.f32 %v2820, %v2821
    %v2823 = vsel %vm2707, %v2509, 0.0
    %v2824 = vadd.f32 %v2822, %v2823
    %v2825 = vsel %vm2707, %v2510, 0.0
    %v2826 = vadd.f32 %v2824, %v2825
    %v2827 = vsel %vm2707, %v2511, 0.0
    %v2828 = vadd.f32 %v2826, %v2827
    %v2829 = vsel %vm2707, %v2512, 0.0
    %v2830 = vadd.f32 %v2828, %v2829
    %v2831 = vsel %vm2707, %v2513, 0.0
    %v2832 = vadd.f32 %v2830, %v2831
    %v2833 = vsel %vm2707, %v2514, 0.0
    %v2834 = vadd.f32 %v2832, %v2833
    %v2835 = vsel %vm2707, %v2515, 0.0
    %v2836 = vadd.f32 %v2834, %v2835
    %v2837 = vsel %vm2707, %v2516, 0.0
    %v2838 = vadd.f32 %v2836, %v2837
    %v2839 = vsel %vm2707, %v2517, 0.0
    %v2840 = vadd.f32 %v2838, %v2839
    %v2841 = vsel %vm2707, %v2518, 0.0
    %v2842 = vadd.f32 %v2840, %v2841
    %v2843 = vsel %vm2707, %v2519, 0.0
    %v2844 = vadd.f32 %v2842, %v2843
    %v2845 = vsel %vm2707, %v2520, 0.0
    %v2846 = vadd.f32 %v2844, %v2845
    %v2847 = vsel %vm2707, %v2521, 0.0
    %v2848 = vadd.f32 %v2846, %v2847
    %v2849 = vsel %vm2707, %v2522, 0.0
    %v2850 = vadd.f32 %v2848, %v2849
    %v2851 = vsel %vm2707, %v2523, 0.0
    %v2852 = vadd.f32 %v2850, %v2851
    %v2853 = vsel %vm2707, %v2524, 0.0
    %v2854 = vadd.f32 %v2852, %v2853
    %v2855 = vsel %vm2707, %v2525, 0.0
    %v2856 = vadd.f32 %v2854, %v2855
    %v2857 = vsel %vm2707, %v2526, 0.0
    %v2858 = vadd.f32 %v2856, %v2857
    %v2859 = vsel %vm2707, %v2527, 0.0
    %v2860 = vadd.f32 %v2858, %v2859
    %v2861 = vsel %vm2707, %v2528, 0.0
    %v2862 = vadd.f32 %v2860, %v2861
    %v2863 = vsel %vm2707, %v2529, 0.0
    %v2864 = vadd.f32 %v2862, %v2863
    %v2865 = vsel %vm2707, %v2530, 0.0
    %v2866 = vadd.f32 %v2864, %v2865
    %v2867 = vsel %vm2707, %v2531, 0.0
    %v2868 = vadd.f32 %v2866, %v2867
    %v2869 = vsel %vm2707, %v2532, 0.0
    %v2870 = vadd.f32 %v2868, %v2869
    %v2871 = vsel %vm2707, %v2533, 0.0
    %v2872 = vadd.f32 %v2870, %v2871
    %v2873 = vsel %vm2707, %v2534, 0.0
    %v2874 = vadd.f32 %v2872, %v2873
    %v2875 = vsel %vm2707, %v2535, 0.0
    %v2876 = vadd.f32 %v2874, %v2875
    %v2877 = vsel %vm2707, %v2536, 0.0
    %v2878 = vadd.f32 %v2876, %v2877
    %v2879 = vsel %vm2707, %v2537, 0.0
    %v2880 = vadd.f32 %v2878, %v2879
    %v2881 = vsel %vm2707, %v2538, 0.0
    %v2882 = vadd.f32 %v2880, %v2881
    %v2883 = vsel %vm2707, %v2539, 0.0
    %v2884 = vadd.f32 %v2882, %v2883
    %v2885 = vsel %vm2707, %v2540, 0.0
    %v2886 = vadd.f32 %v2884, %v2885
    %v2887 = vsel %vm2707, %v2541, 0.0
    %v2888 = vadd.f32 %v2886, %v2887
    %v2889 = vsel %vm2707, %v2542, 0.0
    %v2890 = vadd.f32 %v2888, %v2889
    %v2891 = vsel %vm2707, %v2543, 0.0
    %v2892 = vadd.f32 %v2890, %v2891
    %v2893 = vsel %vm2707, %v2544, 0.0
    %v2894 = vadd.f32 %v2892, %v2893
    %v2895 = vsel %vm2707, %v2545, 0.0
    %v2896 = vadd.f32 %v2894, %v2895
    %v2897 = vsel %vm2707, %v2546, 0.0
    %v2898 = vadd.f32 %v2896, %v2897
    %v2899 = vsel %vm2707, %v2547, 0.0
    %v2900 = vadd.f32 %v2898, %v2899
    %v2901 = vsel %vm2707, %v2548, 0.0
    %v2902 = vadd.f32 %v2900, %v2901
    %v2903 = vsel %vm2707, %v2549, 0.0
    %v2904 = vadd.f32 %v2902, %v2903
    %v2905 = vsel %vm2707, %v2550, 0.0
    %v2906 = vadd.f32 %v2904, %v2905
    %v2907 = vsel %vm2707, %v2551, 0.0
    %v2908 = vadd.f32 %v2906, %v2907
    %v2909 = vsel %vm2707, %v2552, 0.0
    %v2910 = vadd.f32 %v2908, %v2909
    %v2911 = vsel %vm2707, %v2553, 0.0
    %v2912 = vadd.f32 %v2910, %v2911
    %v2913 = vsel %vm2707, %v2554, 0.0
    %v2914 = vadd.f32 %v2912, %v2913
    %v2915 = vsel %vm2707, %v2555, 0.0
    %v2916 = vadd.f32 %v2914, %v2915
    %v2917 = vsel %vm2707, %v2556, 0.0
    %v2918 = vadd.f32 %v2916, %v2917
    %v2919 = vsel %vm2707, %v2557, 0.0
    %v2920 = vadd.f32 %v2918, %v2919
    %v2921 = vsel %vm2707, %v2558, 0.0
    %v2922 = vadd.f32 %v2920, %v2921
    %v2923 = vsel %vm2707, %v2559, 0.0
    %v2924 = vadd.f32 %v2922, %v2923
    %v2925 = vsel %vm2707, %v2560, 0.0
    %v2926 = vadd.f32 %v2924, %v2925
    %v2927 = vsel %vm2707, %v2561, 0.0
    %v2928 = vadd.f32 %v2926, %v2927
    %v2929 = vsel %vm2707, %v2562, 0.0
    %v2930 = vadd.f32 %v2928, %v2929
    %v2931 = vsel %vm2707, %v2563, 0.0
    %v2932 = vadd.f32 %v2930, %v2931
    %v2933 = vsel %vm2707, %v2564, 0.0
    %v2934 = vadd.f32 %v2932, %v2933
    %v2935 = vsel %vm2707, %v2565, 0.0
    %v2936 = vadd.f32 %v2934, %v2935
    %v2937 = vsel %vm2707, %v2566, 0.0
    %v2938 = vadd.f32 %v2936, %v2937
    %v2939 = vsel %vm2707, %v2567, 0.0
    %v2940 = vadd.f32 %v2938, %v2939
    %v2941 = vsel %vm2707, %v2568, 0.0
    %v2942 = vadd.f32 %v2940, %v2941
    %v2943 = vsel %vm2707, %v2569, 0.0
    %v2944 = vadd.f32 %v2942, %v2943
    %v2945 = vsel %vm2707, %v2570, 0.0
    %v2946 = vadd.f32 %v2944, %v2945
    %v2947 = vsel %vm2707, %v2571, 0.0
    %v2948 = vadd.f32 %v2946, %v2947
    %v2949 = vsel %vm2707, %v2572, 0.0
    %v2950 = vadd.f32 %v2948, %v2949
    %v2951 = vsel %vm2707, %v2573, 0.0
    %v2952 = vadd.f32 %v2950, %v2951
    %v2953 = vsel %vm2707, %v2574, 0.0
    %v2954 = vadd.f32 %v2952, %v2953
    %v2955 = vsel %vm2707, %v2575, 0.0
    %v2956 = vadd.f32 %v2954, %v2955
    %v2957 = vsel %vm2707, %v2576, 0.0
    %v2958 = vadd.f32 %v2956, %v2957
    %v2959 = vsel %vm2707, %v2577, 0.0
    %v2960 = vadd.f32 %v2958, %v2959
    %v2961 = vsel %vm2707, %v2578, 0.0
    %v2962 = vadd.f32 %v2960, %v2961
    %v2963 = vsel %vm2707, %v2579, 0.0
    %v2964 = vadd.f32 %v2962, %v2963
    %v2965 = vsel %vm2707, %v2580, 0.0
    %v2966 = vadd.f32 %v2964, %v2965
    %v2967 = vsel %vm2707, %v2581, 0.0
    %v2968 = vadd.f32 %v2966, %v2967
    %v2969 = vsel %vm2707, %v2582, 0.0
    %v2970 = vadd.f32 %v2968, %v2969
    %v2971 = vsel %vm2707, %v2583, 0.0
    %v2972 = vadd.f32 %v2970, %v2971
    %v2973 = vsel %vm2707, %v2584, 0.0
    %v2974 = vadd.f32 %v2972, %v2973
    %v2975 = vsel %vm2707, %v2585, 0.0
    %v2976 = vadd.f32 %v2974, %v2975
    %v2977 = vsel %vm2707, %v2586, 0.0
    %v2978 = vadd.f32 %v2976, %v2977
    %v2979 = vsel %vm2707, %v2587, 0.0
    %v2980 = vadd.f32 %v2978, %v2979
    %v2981 = vsel %vm2707, %v2588, 0.0
    %v2982 = vadd.f32 %v2980, %v2981
    %v2983 = vsel %vm2707, %v2589, 0.0
    %v2984 = vadd.f32 %v2982, %v2983
    %v2985 = vsel %vm2707, %v2590, 0.0
    %v2986 = vadd.f32 %v2984, %v2985
    %v2987 = vsel %vm2707, %v2591, 0.0
    %v2988 = vadd.f32 %v2986, %v2987
    %v2989 = vsel %vm2707, %v2592, 0.0
    %v2990 = vadd.f32 %v2988, %v2989
    %v2991 = vsel %vm2707, %v2593, 0.0
    %v2992 = vadd.f32 %v2990, %v2991
    %v2993 = vsel %vm2707, %v2594, 0.0
    %v2994 = vadd.f32 %v2992, %v2993
    %v2995 = vsel %vm2707, %v2595, 0.0
    %v2996 = vadd.f32 %v2994, %v2995
    %v2997 = vsel %vm2707, %v2596, 0.0
    %v2998 = vadd.f32 %v2996, %v2997
    %v2999 = vsel %vm2707, %v2597, 0.0
    %v3000 = vadd.f32 %v2998, %v2999
    %v3001 = vsel %vm2707, %v2598, 0.0
    %v3002 = vadd.f32 %v3000, %v3001
    %v3003 = vsel %vm2707, %v2599, 0.0
    %v3004 = vadd.f32 %v3002, %v3003
    %v3005 = vsel %vm2707, %v2600, 0.0
    %v3006 = vadd.f32 %v3004, %v3005
    %v3007 = vsel %vm2707, %v2601, 0.0
    %v3008 = vadd.f32 %v3006, %v3007
    %v3009 = vsel %vm2707, %v2602, 0.0
    %v3010 = vadd.f32 %v3008, %v3009
    %v3011 = vsel %vm2707, %v2603, 0.0
    %v3012 = vadd.f32 %v3010, %v3011
    %v3013 = vsel %vm2707, %v2604, 0.0
    %v3014 = vadd.f32 %v3012, %v3013
    %v3015 = vsel %vm2707, %v2605, 0.0
    %v3016 = vadd.f32 %v3014, %v3015
    %v3017 = vsel %vm2707, %v2606, 0.0
    %v3018 = vadd.f32 %v3016, %v3017
    %v3019 = vsel %vm2707, %v2607, 0.0
    %v3020 = vadd.f32 %v3018, %v3019
    %v3021 = vsel %vm2707, %v2608, 0.0
    %v3022 = vadd.f32 %v3020, %v3021
    %v3023 = vsel %vm2707, %v2609, 0.0
    %v3024 = vadd.f32 %v3022, %v3023
    %v3025 = vsel %vm2707, %v2610, 0.0
    %v3026 = vadd.f32 %v3024, %v3025
    %v3027 = vsel %vm2707, %v2611, 0.0
    %v3028 = vadd.f32 %v3026, %v3027
    %v3029 = vsel %vm2707, %v2612, 0.0
    %v3030 = vadd.f32 %v3028, %v3029
    %v3031 = vsel %vm2707, %v2613, 0.0
    %v3032 = vadd.f32 %v3030, %v3031
    %v3033 = vsel %vm2707, %v2614, 0.0
    %v3034 = vadd.f32 %v3032, %v3033
    %v3035 = vsel %vm2707, %v2615, 0.0
    %v3036 = vadd.f32 %v3034, %v3035
    %v3037 = vsel %vm2707, %v2616, 0.0
    %v3038 = vadd.f32 %v3036, %v3037
    %v3039 = vsel %vm2707, %v2617, 0.0
    %v3040 = vadd.f32 %v3038, %v3039
    %v3041 = vsel %vm2707, %v2618, 0.0
    %v3042 = vadd.f32 %v3040, %v3041
    %v3043 = vsel %vm2707, %v2619, 0.0
    %v3044 = vadd.f32 %v3042, %v3043
    %v3045 = vsel %vm2707, %v2620, 0.0
    %v3046 = vadd.f32 %v3044, %v3045
    %v3047 = vsel %vm2707, %v2621, 0.0
    %v3048 = vadd.f32 %v3046, %v3047
    %v3049 = vsel %vm2707, %v2622, 0.0
    %v3050 = vadd.f32 %v3048, %v3049
    %v3051 = vsel %vm2707, %v2623, 0.0
    %v3052 = vadd.f32 %v3050, %v3051
    %v3053 = vsel %vm2707, %v2624, 0.0
    %v3054 = vadd.f32 %v3052, %v3053
    %v3055 = vsel %vm2707, %v2625, 0.0
    %v3056 = vadd.f32 %v3054, %v3055
    %v3057 = vsel %vm2707, %v2626, 0.0
    %v3058 = vadd.f32 %v3056, %v3057
    %v3059 = vsel %vm2707, %v2627, 0.0
    %v3060 = vadd.f32 %v3058, %v3059
    %v3061 = vsel %vm2707, %v2628, 0.0
    %v3062 = vadd.f32 %v3060, %v3061
    %v3063 = vsel %vm2707, %v2629, 0.0
    %v3064 = vadd.f32 %v3062, %v3063
    %v3065 = vsel %vm2707, %v2630, 0.0
    %v3066 = vadd.f32 %v3064, %v3065
    %v3067 = vsel %vm2707, %v2631, 0.0
    %v3068 = vadd.f32 %v3066, %v3067
    %v3069 = vsel %vm2707, %v2632, 0.0
    %v3070 = vadd.f32 %v3068, %v3069
    %v3071 = vsel %vm2707, %v2633, 0.0
    %v3072 = vadd.f32 %v3070, %v3071
    %v3073 = vsel %vm2707, %v2634, 0.0
    %v3074 = vadd.f32 %v3072, %v3073
    %v3075 = vsel %vm2707, %v2635, 0.0
    %v3076 = vadd.f32 %v3074, %v3075
    %v3077 = vsel %vm2707, %v2636, 0.0
    %v3078 = vadd.f32 %v3076, %v3077
    %v3079 = vsel %vm2707, %v2637, 0.0
    %v3080 = vadd.f32 %v3078, %v3079
    %v3081 = vsel %vm2707, %v2638, 0.0
    %v3082 = vadd.f32 %v3080, %v3081
    %v3083 = vsel %vm2707, %v2639, 0.0
    %v3084 = vadd.f32 %v3082, %v3083
    %v3085 = vsel %vm2707, %v2640, 0.0
    %v3086 = vadd.f32 %v3084, %v3085
    %v3087 = vsel %vm2707, %v2641, 0.0
    %v3088 = vadd.f32 %v3086, %v3087
    %v3089 = vsel %vm2707, %v2642, 0.0
    %v3090 = vadd.f32 %v3088, %v3089
    %v3091 = vsel %vm2707, %v2643, 0.0
    %v3092 = vadd.f32 %v3090, %v3091
    %v3093 = vsel %vm2707, %v2644, 0.0
    %v3094 = vadd.f32 %v3092, %v3093
    %v3095 = vsel %vm2707, %v2645, 0.0
    %v3096 = vadd.f32 %v3094, %v3095
    %v3097 = vsel %vm2707, %v2646, 0.0
    %v3098 = vadd.f32 %v3096, %v3097
    %v3099 = vsel %vm2707, %v2647, 0.0
    %v3100 = vadd.f32 %v3098, %v3099
    %v3101 = vsel %vm2707, %v2648, 0.0
    %v3102 = vadd.f32 %v3100, %v3101
    %v3103 = vsel %vm2707, %v2649, 0.0
    %v3104 = vadd.f32 %v3102, %v3103
    %v3105 = vsel %vm2707, %v2650, 0.0
    %v3106 = vadd.f32 %v3104, %v3105
    %v3107 = vsel %vm2707, %v2651, 0.0
    %v3108 = vadd.f32 %v3106, %v3107
    %v3109 = vsel %vm2707, %v2652, 0.0
    %v3110 = vadd.f32 %v3108, %v3109
    %v3111 = vsel %vm2707, %v2653, 0.0
    %v3112 = vadd.f32 %v3110, %v3111
    %v3113 = vsel %vm2707, %v2654, 0.0
    %v3114 = vadd.f32 %v3112, %v3113
    %v3115 = vsel %vm2707, %v2655, 0.0
    %v3116 = vadd.f32 %v3114, %v3115
    %v3117 = vsel %vm2707, %v2656, 0.0
    %v3118 = vadd.f32 %v3116, %v3117
    %v3119 = vsel %vm2707, %v2657, 0.0
    %v3120 = vadd.f32 %v3118, %v3119
    %v3121 = vsel %vm2707, %v2658, 0.0
    %v3122 = vadd.f32 %v3120, %v3121
    %v3123 = vsel %vm2707, %v2659, 0.0
    %v3124 = vadd.f32 %v3122, %v3123
    %v3125 = vsel %vm2707, %v2660, 0.0
    %v3126 = vadd.f32 %v3124, %v3125
    %v3127 = vsel %vm2707, %v2661, 0.0
    %v3128 = vadd.f32 %v3126, %v3127
    %v3129 = vsel %vm2707, %v2662, 0.0
    %v3130 = vadd.f32 %v3128, %v3129
    %v3131 = vsel %vm2707, %v2663, 0.0
    %v3132 = vadd.f32 %v3130, %v3131
    %v3133 = vsel %vm2707, %v2664, 0.0
    %v3134 = vadd.f32 %v3132, %v3133
    %v3135 = vsel %vm2707, %v2665, 0.0
    %v3136 = vadd.f32 %v3134, %v3135
    %v3137 = vsel %vm2707, %v2666, 0.0
    %v3138 = vadd.f32 %v3136, %v3137
    %v3139 = vsel %vm2707, %v2667, 0.0
    %v3140 = vadd.f32 %v3138, %v3139
    %v3141 = vsel %vm2707, %v2668, 0.0
    %v3142 = vadd.f32 %v3140, %v3141
    %v3143 = vsel %vm2707, %v2669, 0.0
    %v3144 = vadd.f32 %v3142, %v3143
    %v3145 = vsel %vm2707, %v2670, 0.0
    %v3146 = vadd.f32 %v3144, %v3145
    %v3147 = vsel %vm2707, %v2671, 0.0
    %v3148 = vadd.f32 %v3146, %v3147
    %v3149 = vsel %vm2707, %v2672, 0.0
    %v3150 = vadd.f32 %v3148, %v3149
    %v3151 = vsel %vm2707, %v2673, 0.0
    %v3152 = vadd.f32 %v3150, %v3151
    %v3153 = vsel %vm2707, %v2674, 0.0
    %v3154 = vadd.f32 %v3152, %v3153
    %v3155 = vsel %vm2707, %v2675, 0.0
    %v3156 = vadd.f32 %v3154, %v3155
    %v3157 = vsel %vm2707, %v2676, 0.0
    %v3158 = vadd.f32 %v3156, %v3157
    %v3159 = vsel %vm2707, %v2677, 0.0
    %v3160 = vadd.f32 %v3158, %v3159
    %v3161 = vsel %vm2707, %v2678, 0.0
    %v3162 = vadd.f32 %v3160, %v3161
    %v3163 = vsel %vm2707, %v2679, 0.0
    %v3164 = vadd.f32 %v3162, %v3163
    %v3165 = vsel %vm2707, %v2680, 0.0
    %v3166 = vadd.f32 %v3164, %v3165
    %v3167 = vsel %vm2707, %v2681, 0.0
    %v3168 = vadd.f32 %v3166, %v3167
    %v3169 = vsel %vm2707, %v2682, 0.0
    %v3170 = vadd.f32 %v3168, %v3169
    %v3171 = vsel %vm2707, %v2683, 0.0
    %v3172 = vadd.f32 %v3170, %v3171
    %v3173 = vsel %vm2707, %v2684, 0.0
    %v3174 = vadd.f32 %v3172, %v3173
    %v3175 = vsel %vm2707, %v2685, 0.0
    %v3176 = vadd.f32 %v3174, %v3175
    %v3177 = vsel %vm2707, %v2686, 0.0
    %v3178 = vadd.f32 %v3176, %v3177
    %v3179 = vsel %vm2707, %v2687, 0.0
    %v3180 = vadd.f32 %v3178, %v3179
    %v3181 = vsel %vm2707, %v2688, 0.0
    %v3182 = vadd.f32 %v3180, %v3181
    %v3183 = vsel %vm2707, %v2689, 0.0
    %v3184 = vadd.f32 %v3182, %v3183
    %v3185 = vsel %vm2707, %v2690, 0.0
    %v3186 = vadd.f32 %v3184, %v3185
    %v3187 = vsel %vm2707, %v2691, 0.0
    %v3188 = vadd.f32 %v3186, %v3187
    %v3189 = vsel %vm2707, %v2692, 0.0
    %v3190 = vadd.f32 %v3188, %v3189
    %v3191 = vsel %vm2707, %v2693, 0.0
    %v3192 = vadd.f32 %v3190, %v3191
    %v3193 = vsel %vm2707, %v2694, 0.0
    %v3194 = vadd.f32 %v3192, %v3193
    %v3195 = vsel %vm2707, %v2695, 0.0
    %v3196 = vadd.f32 %v3194, %v3195
    %v3197 = vsel %vm2707, %v2696, 0.0
    %v3198 = vadd.f32 %v3196, %v3197
    %v3199 = vsel %vm2707, %v2697, 0.0
    %v3200 = vadd.f32 %v3198, %v3199
    %v3201 = vsel %vm2707, %v2698, 0.0
    %v3202 = vadd.f32 %v3200, %v3201
    %v3203 = vsel %vm2707, %v2699, 0.0
    %v3204 = vadd.f32 %v3202, %v3203
    %v3205 = vsel %vm2707, %v2700, 0.0
    %v3206 = vadd.f32 %v3204, %v3205
    %v3207 = vsel %vm2707, %v2701, 0.0
    %v3208 = vadd.f32 %v3206, %v3207
    %v3209 = vsel %vm2707, %v2702, 0.0
    %v3210 = vadd.f32 %v3208, %v3209
    %v3211 = vsel %vm2707, %v2703, 0.0
    %v3212 = vadd.f32 %v3210, %v3211
    %v3213 = vsel %vm2707, %v2704, 0.0
    %v3214 = vadd.f32 %v3212, %v3213
    %v3215 = vsel %vm2707, %v2705, 0.0
    %v3216 = vadd.f32 %v3214, %v3215
    %v3217 = vsel %vm2707, %v2706, 0.0
    %v3218 = vadd.f32 %v3216, %v3217
    %v3219 = vrot.slane %v3218, 4
    %v3220 = vadd.f32 %v3218, %v3219
    %v3221 = vrot.slane %v3220, 2
    %v3222 = vadd.f32 %v3220, %v3221
    %v3223 = vrot.slane %v3222, 1
    %v3224 = vadd.f32 %v3222, %v3223
    %v3225 = vmul.f32 %v3224, 0.00048828125
    %v3226 = vsub.f32 %v2451, %v3225
    %v3227 = vsub.f32 %v2452, %v3225
    %v3228 = vsub.f32 %v2453, %v3225
    %v3229 = vsub.f32 %v2454, %v3225
    %v3230 = vsub.f32 %v2455, %v3225
    %v3231 = vsub.f32 %v2456, %v3225
    %v3232 = vsub.f32 %v2457, %v3225
    %v3233 = vsub.f32 %v2458, %v3225
    %v3234 = vsub.f32 %v2459, %v3225
    %v3235 = vsub.f32 %v2460, %v3225
    %v3236 = vsub.f32 %v2461, %v3225
    %v3237 = vsub.f32 %v2462, %v3225
    %v3238 = vsub.f32 %v2463, %v3225
    %v3239 = vsub.f32 %v2464, %v3225
    %v3240 = vsub.f32 %v2465, %v3225
    %v3241 = vsub.f32 %v2466, %v3225
    %v3242 = vsub.f32 %v2467, %v3225
    %v3243 = vsub.f32 %v2468, %v3225
    %v3244 = vsub.f32 %v2469, %v3225
    %v3245 = vsub.f32 %v2470, %v3225
    %v3246 = vsub.f32 %v2471, %v3225
    %v3247 = vsub.f32 %v2472, %v3225
    %v3248 = vsub.f32 %v2473, %v3225
    %v3249 = vsub.f32 %v2474, %v3225
    %v3250 = vsub.f32 %v2475, %v3225
    %v3251 = vsub.f32 %v2476, %v3225
    %v3252 = vsub.f32 %v2477, %v3225
    %v3253 = vsub.f32 %v2478, %v3225
    %v3254 = vsub.f32 %v2479, %v3225
    %v3255 = vsub.f32 %v2480, %v3225
    %v3256 = vsub.f32 %v2481, %v3225
    %v3257 = vsub.f32 %v2482, %v3225
    %v3258 = vsub.f32 %v2483, %v3225
    %v3259 = vsub.f32 %v2484, %v3225
    %v3260 = vsub.f32 %v2485, %v3225
    %v3261 = vsub.f32 %v2486, %v3225
    %v3262 = vsub.f32 %v2487, %v3225
    %v3263 = vsub.f32 %v2488, %v3225
    %v3264 = vsub.f32 %v2489, %v3225
    %v3265 = vsub.f32 %v2490, %v3225
    %v3266 = vsub.f32 %v2491, %v3225
    %v3267 = vsub.f32 %v2492, %v3225
    %v3268 = vsub.f32 %v2493, %v3225
    %v3269 = vsub.f32 %v2494, %v3225
    %v3270 = vsub.f32 %v2495, %v3225
    %v3271 = vsub.f32 %v2496, %v3225
    %v3272 = vsub.f32 %v2497, %v3225
    %v3273 = vsub.f32 %v2498, %v3225
    %v3274 = vsub.f32 %v2499, %v3225
    %v3275 = vsub.f32 %v2500, %v3225
    %v3276 = vsub.f32 %v2501, %v3225
    %v3277 = vsub.f32 %v2502, %v3225
    %v3278 = vsub.f32 %v2503, %v3225
    %v3279 = vsub.f32 %v2504, %v3225
    %v3280 = vsub.f32 %v2505, %v3225
    %v3281 = vsub.f32 %v2506, %v3225
    %v3282 = vsub.f32 %v2507, %v3225
    %v3283 = vsub.f32 %v2508, %v3225
    %v3284 = vsub.f32 %v2509, %v3225
    %v3285 = vsub.f32 %v2510, %v3225
    %v3286 = vsub.f32 %v2511, %v3225
    %v3287 = vsub.f32 %v2512, %v3225
    %v3288 = vsub.f32 %v2513, %v3225
    %v3289 = vsub.f32 %v2514, %v3225
    %v3290 = vsub.f32 %v2515, %v3225
    %v3291 = vsub.f32 %v2516, %v3225
    %v3292 = vsub.f32 %v2517, %v3225
    %v3293 = vsub.f32 %v2518, %v3225
    %v3294 = vsub.f32 %v2519, %v3225
    %v3295 = vsub.f32 %v2520, %v3225
    %v3296 = vsub.f32 %v2521, %v3225
    %v3297 = vsub.f32 %v2522, %v3225
    %v3298 = vsub.f32 %v2523, %v3225
    %v3299 = vsub.f32 %v2524, %v3225
    %v3300 = vsub.f32 %v2525, %v3225
    %v3301 = vsub.f32 %v2526, %v3225
    %v3302 = vsub.f32 %v2527, %v3225
    %v3303 = vsub.f32 %v2528, %v3225
    %v3304 = vsub.f32 %v2529, %v3225
    %v3305 = vsub.f32 %v2530, %v3225
    %v3306 = vsub.f32 %v2531, %v3225
    %v3307 = vsub.f32 %v2532, %v3225
    %v3308 = vsub.f32 %v2533, %v3225
    %v3309 = vsub.f32 %v2534, %v3225
    %v3310 = vsub.f32 %v2535, %v3225
    %v3311 = vsub.f32 %v2536, %v3225
    %v3312 = vsub.f32 %v2537, %v3225
    %v3313 = vsub.f32 %v2538, %v3225
    %v3314 = vsub.f32 %v2539, %v3225
    %v3315 = vsub.f32 %v2540, %v3225
    %v3316 = vsub.f32 %v2541, %v3225
    %v3317 = vsub.f32 %v2542, %v3225
    %v3318 = vsub.f32 %v2543, %v3225
    %v3319 = vsub.f32 %v2544, %v3225
    %v3320 = vsub.f32 %v2545, %v3225
    %v3321 = vsub.f32 %v2546, %v3225
    %v3322 = vsub.f32 %v2547, %v3225
    %v3323 = vsub.f32 %v2548, %v3225
    %v3324 = vsub.f32 %v2549, %v3225
    %v3325 = vsub.f32 %v2550, %v3225
    %v3326 = vsub.f32 %v2551, %v3225
    %v3327 = vsub.f32 %v2552, %v3225
    %v3328 = vsub.f32 %v2553, %v3225
    %v3329 = vsub.f32 %v2554, %v3225
    %v3330 = vsub.f32 %v2555, %v3225
    %v3331 = vsub.f32 %v2556, %v3225
    %v3332 = vsub.f32 %v2557, %v3225
    %v3333 = vsub.f32 %v2558, %v3225
    %v3334 = vsub.f32 %v2559, %v3225
    %v3335 = vsub.f32 %v2560, %v3225
    %v3336 = vsub.f32 %v2561, %v3225
    %v3337 = vsub.f32 %v2562, %v3225
    %v3338 = vsub.f32 %v2563, %v3225
    %v3339 = vsub.f32 %v2564, %v3225
    %v3340 = vsub.f32 %v2565, %v3225
    %v3341 = vsub.f32 %v2566, %v3225
    %v3342 = vsub.f32 %v2567, %v3225
    %v3343 = vsub.f32 %v2568, %v3225
    %v3344 = vsub.f32 %v2569, %v3225
    %v3345 = vsub.f32 %v2570, %v3225
    %v3346 = vsub.f32 %v2571, %v3225
    %v3347 = vsub.f32 %v2572, %v3225
    %v3348 = vsub.f32 %v2573, %v3225
    %v3349 = vsub.f32 %v2574, %v3225
    %v3350 = vsub.f32 %v2575, %v3225
    %v3351 = vsub.f32 %v2576, %v3225
    %v3352 = vsub.f32 %v2577, %v3225
    %v3353 = vsub.f32 %v2578, %v3225
    %v3354 = vsub.f32 %v2579, %v3225
    %v3355 = vsub.f32 %v2580, %v3225
    %v3356 = vsub.f32 %v2581, %v3225
    %v3357 = vsub.f32 %v2582, %v3225
    %v3358 = vsub.f32 %v2583, %v3225
    %v3359 = vsub.f32 %v2584, %v3225
    %v3360 = vsub.f32 %v2585, %v3225
    %v3361 = vsub.f32 %v2586, %v3225
    %v3362 = vsub.f32 %v2587, %v3225
    %v3363 = vsub.f32 %v2588, %v3225
    %v3364 = vsub.f32 %v2589, %v3225
    %v3365 = vsub.f32 %v2590, %v3225
    %v3366 = vsub.f32 %v2591, %v3225
    %v3367 = vsub.f32 %v2592, %v3225
    %v3368 = vsub.f32 %v2593, %v3225
    %v3369 = vsub.f32 %v2594, %v3225
    %v3370 = vsub.f32 %v2595, %v3225
    %v3371 = vsub.f32 %v2596, %v3225
    %v3372 = vsub.f32 %v2597, %v3225
    %v3373 = vsub.f32 %v2598, %v3225
    %v3374 = vsub.f32 %v2599, %v3225
    %v3375 = vsub.f32 %v2600, %v3225
    %v3376 = vsub.f32 %v2601, %v3225
    %v3377 = vsub.f32 %v2602, %v3225
    %v3378 = vsub.f32 %v2603, %v3225
    %v3379 = vsub.f32 %v2604, %v3225
    %v3380 = vsub.f32 %v2605, %v3225
    %v3381 = vsub.f32 %v2606, %v3225
    %v3382 = vsub.f32 %v2607, %v3225
    %v3383 = vsub.f32 %v2608, %v3225
    %v3384 = vsub.f32 %v2609, %v3225
    %v3385 = vsub.f32 %v2610, %v3225
    %v3386 = vsub.f32 %v2611, %v3225
    %v3387 = vsub.f32 %v2612, %v3225
    %v3388 = vsub.f32 %v2613, %v3225
    %v3389 = vsub.f32 %v2614, %v3225
    %v3390 = vsub.f32 %v2615, %v3225
    %v3391 = vsub.f32 %v2616, %v3225
    %v3392 = vsub.f32 %v2617, %v3225
    %v3393 = vsub.f32 %v2618, %v3225
    %v3394 = vsub.f32 %v2619, %v3225
    %v3395 = vsub.f32 %v2620, %v3225
    %v3396 = vsub.f32 %v2621, %v3225
    %v3397 = vsub.f32 %v2622, %v3225
    %v3398 = vsub.f32 %v2623, %v3225
    %v3399 = vsub.f32 %v2624, %v3225
    %v3400 = vsub.f32 %v2625, %v3225
    %v3401 = vsub.f32 %v2626, %v3225
    %v3402 = vsub.f32 %v2627, %v3225
    %v3403 = vsub.f32 %v2628, %v3225
    %v3404 = vsub.f32 %v2629, %v3225
    %v3405 = vsub.f32 %v2630, %v3225
    %v3406 = vsub.f32 %v2631, %v3225
    %v3407 = vsub.f32 %v2632, %v3225
    %v3408 = vsub.f32 %v2633, %v3225
    %v3409 = vsub.f32 %v2634, %v3225
    %v3410 = vsub.f32 %v2635, %v3225
    %v3411 = vsub.f32 %v2636, %v3225
    %v3412 = vsub.f32 %v2637, %v3225
    %v3413 = vsub.f32 %v2638, %v3225
    %v3414 = vsub.f32 %v2639, %v3225
    %v3415 = vsub.f32 %v2640, %v3225
    %v3416 = vsub.f32 %v2641, %v3225
    %v3417 = vsub.f32 %v2642, %v3225
    %v3418 = vsub.f32 %v2643, %v3225
    %v3419 = vsub.f32 %v2644, %v3225
    %v3420 = vsub.f32 %v2645, %v3225
    %v3421 = vsub.f32 %v2646, %v3225
    %v3422 = vsub.f32 %v2647, %v3225
    %v3423 = vsub.f32 %v2648, %v3225
    %v3424 = vsub.f32 %v2649, %v3225
    %v3425 = vsub.f32 %v2650, %v3225
    %v3426 = vsub.f32 %v2651, %v3225
    %v3427 = vsub.f32 %v2652, %v3225
    %v3428 = vsub.f32 %v2653, %v3225
    %v3429 = vsub.f32 %v2654, %v3225
    %v3430 = vsub.f32 %v2655, %v3225
    %v3431 = vsub.f32 %v2656, %v3225
    %v3432 = vsub.f32 %v2657, %v3225
    %v3433 = vsub.f32 %v2658, %v3225
    %v3434 = vsub.f32 %v2659, %v3225
    %v3435 = vsub.f32 %v2660, %v3225
    %v3436 = vsub.f32 %v2661, %v3225
    %v3437 = vsub.f32 %v2662, %v3225
    %v3438 = vsub.f32 %v2663, %v3225
    %v3439 = vsub.f32 %v2664, %v3225
    %v3440 = vsub.f32 %v2665, %v3225
    %v3441 = vsub.f32 %v2666, %v3225
    %v3442 = vsub.f32 %v2667, %v3225
    %v3443 = vsub.f32 %v2668, %v3225
    %v3444 = vsub.f32 %v2669, %v3225
    %v3445 = vsub.f32 %v2670, %v3225
    %v3446 = vsub.f32 %v2671, %v3225
    %v3447 = vsub.f32 %v2672, %v3225
    %v3448 = vsub.f32 %v2673, %v3225
    %v3449 = vsub.f32 %v2674, %v3225
    %v3450 = vsub.f32 %v2675, %v3225
    %v3451 = vsub.f32 %v2676, %v3225
    %v3452 = vsub.f32 %v2677, %v3225
    %v3453 = vsub.f32 %v2678, %v3225
    %v3454 = vsub.f32 %v2679, %v3225
    %v3455 = vsub.f32 %v2680, %v3225
    %v3456 = vsub.f32 %v2681, %v3225
    %v3457 = vsub.f32 %v2682, %v3225
    %v3458 = vsub.f32 %v2683, %v3225
    %v3459 = vsub.f32 %v2684, %v3225
    %v3460 = vsub.f32 %v2685, %v3225
    %v3461 = vsub.f32 %v2686, %v3225
    %v3462 = vsub.f32 %v2687, %v3225
    %v3463 = vsub.f32 %v2688, %v3225
    %v3464 = vsub.f32 %v2689, %v3225
    %v3465 = vsub.f32 %v2690, %v3225
    %v3466 = vsub.f32 %v2691, %v3225
    %v3467 = vsub.f32 %v2692, %v3225
    %v3468 = vsub.f32 %v2693, %v3225
    %v3469 = vsub.f32 %v2694, %v3225
    %v3470 = vsub.f32 %v2695, %v3225
    %v3471 = vsub.f32 %v2696, %v3225
    %v3472 = vsub.f32 %v2697, %v3225
    %v3473 = vsub.f32 %v2698, %v3225
    %v3474 = vsub.f32 %v2699, %v3225
    %v3475 = vsub.f32 %v2700, %v3225
    %v3476 = vsub.f32 %v2701, %v3225
    %v3477 = vsub.f32 %v2702, %v3225
    %v3478 = vsub.f32 %v2703, %v3225
    %v3479 = vsub.f32 %v2704, %v3225
    %v3480 = vsub.f32 %v2705, %v3225
    %v3481 = vsub.f32 %v2706, %v3225
    %v3482 = vmul.f32 %v3226, %v3226
    %v3483 = vmul.f32 %v3227, %v3227
    %v3484 = vmul.f32 %v3228, %v3228
    %v3485 = vmul.f32 %v3229, %v3229
    %v3486 = vmul.f32 %v3230, %v3230
    %v3487 = vmul.f32 %v3231, %v3231
    %v3488 = vmul.f32 %v3232, %v3232
    %v3489 = vmul.f32 %v3233, %v3233
    %v3490 = vmul.f32 %v3234, %v3234
    %v3491 = vmul.f32 %v3235, %v3235
    %v3492 = vmul.f32 %v3236, %v3236
    %v3493 = vmul.f32 %v3237, %v3237
    %v3494 = vmul.f32 %v3238, %v3238
    %v3495 = vmul.f32 %v3239, %v3239
    %v3496 = vmul.f32 %v3240, %v3240
    %v3497 = vmul.f32 %v3241, %v3241
    %v3498 = vmul.f32 %v3242, %v3242
    %v3499 = vmul.f32 %v3243, %v3243
    %v3500 = vmul.f32 %v3244, %v3244
    %v3501 = vmul.f32 %v3245, %v3245
    %v3502 = vmul.f32 %v3246, %v3246
    %v3503 = vmul.f32 %v3247, %v3247
    %v3504 = vmul.f32 %v3248, %v3248
    %v3505 = vmul.f32 %v3249, %v3249
    %v3506 = vmul.f32 %v3250, %v3250
    %v3507 = vmul.f32 %v3251, %v3251
    %v3508 = vmul.f32 %v3252, %v3252
    %v3509 = vmul.f32 %v3253, %v3253
    %v3510 = vmul.f32 %v3254, %v3254
    %v3511 = vmul.f32 %v3255, %v3255
    %v3512 = vmul.f32 %v3256, %v3256
    %v3513 = vmul.f32 %v3257, %v3257
    %v3514 = vmul.f32 %v3258, %v3258
    %v3515 = vmul.f32 %v3259, %v3259
    %v3516 = vmul.f32 %v3260, %v3260
    %v3517 = vmul.f32 %v3261, %v3261
    %v3518 = vmul.f32 %v3262, %v3262
    %v3519 = vmul.f32 %v3263, %v3263
    %v3520 = vmul.f32 %v3264, %v3264
    %v3521 = vmul.f32 %v3265, %v3265
    %v3522 = vmul.f32 %v3266, %v3266
    %v3523 = vmul.f32 %v3267, %v3267
    %v3524 = vmul.f32 %v3268, %v3268
    %v3525 = vmul.f32 %v3269, %v3269
    %v3526 = vmul.f32 %v3270, %v3270
    %v3527 = vmul.f32 %v3271, %v3271
    %v3528 = vmul.f32 %v3272, %v3272
    %v3529 = vmul.f32 %v3273, %v3273
    %v3530 = vmul.f32 %v3274, %v3274
    %v3531 = vmul.f32 %v3275, %v3275
    %v3532 = vmul.f32 %v3276, %v3276
    %v3533 = vmul.f32 %v3277, %v3277
    %v3534 = vmul.f32 %v3278, %v3278
    %v3535 = vmul.f32 %v3279, %v3279
    %v3536 = vmul.f32 %v3280, %v3280
    %v3537 = vmul.f32 %v3281, %v3281
    %v3538 = vmul.f32 %v3282, %v3282
    %v3539 = vmul.f32 %v3283, %v3283
    %v3540 = vmul.f32 %v3284, %v3284
    %v3541 = vmul.f32 %v3285, %v3285
    %v3542 = vmul.f32 %v3286, %v3286
    %v3543 = vmul.f32 %v3287, %v3287
    %v3544 = vmul.f32 %v3288, %v3288
    %v3545 = vmul.f32 %v3289, %v3289
    %v3546 = vmul.f32 %v3290, %v3290
    %v3547 = vmul.f32 %v3291, %v3291
    %v3548 = vmul.f32 %v3292, %v3292
    %v3549 = vmul.f32 %v3293, %v3293
    %v3550 = vmul.f32 %v3294, %v3294
    %v3551 = vmul.f32 %v3295, %v3295
    %v3552 = vmul.f32 %v3296, %v3296
    %v3553 = vmul.f32 %v3297, %v3297
    %v3554 = vmul.f32 %v3298, %v3298
    %v3555 = vmul.f32 %v3299, %v3299
    %v3556 = vmul.f32 %v3300, %v3300
    %v3557 = vmul.f32 %v3301, %v3301
    %v3558 = vmul.f32 %v3302, %v3302
    %v3559 = vmul.f32 %v3303, %v3303
    %v3560 = vmul.f32 %v3304, %v3304
    %v3561 = vmul.f32 %v3305, %v3305
    %v3562 = vmul.f32 %v3306, %v3306
    %v3563 = vmul.f32 %v3307, %v3307
    %v3564 = vmul.f32 %v3308, %v3308
    %v3565 = vmul.f32 %v3309, %v3309
    %v3566 = vmul.f32 %v3310, %v3310
    %v3567 = vmul.f32 %v3311, %v3311
    %v3568 = vmul.f32 %v3312, %v3312
    %v3569 = vmul.f32 %v3313, %v3313
    %v3570 = vmul.f32 %v3314, %v3314
    %v3571 = vmul.f32 %v3315, %v3315
    %v3572 = vmul.f32 %v3316, %v3316
    %v3573 = vmul.f32 %v3317, %v3317
    %v3574 = vmul.f32 %v3318, %v3318
    %v3575 = vmul.f32 %v3319, %v3319
    %v3576 = vmul.f32 %v3320, %v3320
    %v3577 = vmul.f32 %v3321, %v3321
    %v3578 = vmul.f32 %v3322, %v3322
    %v3579 = vmul.f32 %v3323, %v3323
    %v3580 = vmul.f32 %v3324, %v3324
    %v3581 = vmul.f32 %v3325, %v3325
    %v3582 = vmul.f32 %v3326, %v3326
    %v3583 = vmul.f32 %v3327, %v3327
    %v3584 = vmul.f32 %v3328, %v3328
    %v3585 = vmul.f32 %v3329, %v3329
    %v3586 = vmul.f32 %v3330, %v3330
    %v3587 = vmul.f32 %v3331, %v3331
    %v3588 = vmul.f32 %v3332, %v3332
    %v3589 = vmul.f32 %v3333, %v3333
    %v3590 = vmul.f32 %v3334, %v3334
    %v3591 = vmul.f32 %v3335, %v3335
    %v3592 = vmul.f32 %v3336, %v3336
    %v3593 = vmul.f32 %v3337, %v3337
    %v3594 = vmul.f32 %v3338, %v3338
    %v3595 = vmul.f32 %v3339, %v3339
    %v3596 = vmul.f32 %v3340, %v3340
    %v3597 = vmul.f32 %v3341, %v3341
    %v3598 = vmul.f32 %v3342, %v3342
    %v3599 = vmul.f32 %v3343, %v3343
    %v3600 = vmul.f32 %v3344, %v3344
    %v3601 = vmul.f32 %v3345, %v3345
    %v3602 = vmul.f32 %v3346, %v3346
    %v3603 = vmul.f32 %v3347, %v3347
    %v3604 = vmul.f32 %v3348, %v3348
    %v3605 = vmul.f32 %v3349, %v3349
    %v3606 = vmul.f32 %v3350, %v3350
    %v3607 = vmul.f32 %v3351, %v3351
    %v3608 = vmul.f32 %v3352, %v3352
    %v3609 = vmul.f32 %v3353, %v3353
    %v3610 = vmul.f32 %v3354, %v3354
    %v3611 = vmul.f32 %v3355, %v3355
    %v3612 = vmul.f32 %v3356, %v3356
    %v3613 = vmul.f32 %v3357, %v3357
    %v3614 = vmul.f32 %v3358, %v3358
    %v3615 = vmul.f32 %v3359, %v3359
    %v3616 = vmul.f32 %v3360, %v3360
    %v3617 = vmul.f32 %v3361, %v3361
    %v3618 = vmul.f32 %v3362, %v3362
    %v3619 = vmul.f32 %v3363, %v3363
    %v3620 = vmul.f32 %v3364, %v3364
    %v3621 = vmul.f32 %v3365, %v3365
    %v3622 = vmul.f32 %v3366, %v3366
    %v3623 = vmul.f32 %v3367, %v3367
    %v3624 = vmul.f32 %v3368, %v3368
    %v3625 = vmul.f32 %v3369, %v3369
    %v3626 = vmul.f32 %v3370, %v3370
    %v3627 = vmul.f32 %v3371, %v3371
    %v3628 = vmul.f32 %v3372, %v3372
    %v3629 = vmul.f32 %v3373, %v3373
    %v3630 = vmul.f32 %v3374, %v3374
    %v3631 = vmul.f32 %v3375, %v3375
    %v3632 = vmul.f32 %v3376, %v3376
    %v3633 = vmul.f32 %v3377, %v3377
    %v3634 = vmul.f32 %v3378, %v3378
    %v3635 = vmul.f32 %v3379, %v3379
    %v3636 = vmul.f32 %v3380, %v3380
    %v3637 = vmul.f32 %v3381, %v3381
    %v3638 = vmul.f32 %v3382, %v3382
    %v3639 = vmul.f32 %v3383, %v3383
    %v3640 = vmul.f32 %v3384, %v3384
    %v3641 = vmul.f32 %v3385, %v3385
    %v3642 = vmul.f32 %v3386, %v3386
    %v3643 = vmul.f32 %v3387, %v3387
    %v3644 = vmul.f32 %v3388, %v3388
    %v3645 = vmul.f32 %v3389, %v3389
    %v3646 = vmul.f32 %v3390, %v3390
    %v3647 = vmul.f32 %v3391, %v3391
    %v3648 = vmul.f32 %v3392, %v3392
    %v3649 = vmul.f32 %v3393, %v3393
    %v3650 = vmul.f32 %v3394, %v3394
    %v3651 = vmul.f32 %v3395, %v3395
    %v3652 = vmul.f32 %v3396, %v3396
    %v3653 = vmul.f32 %v3397, %v3397
    %v3654 = vmul.f32 %v3398, %v3398
    %v3655 = vmul.f32 %v3399, %v3399
    %v3656 = vmul.f32 %v3400, %v3400
    %v3657 = vmul.f32 %v3401, %v3401
    %v3658 = vmul.f32 %v3402, %v3402
    %v3659 = vmul.f32 %v3403, %v3403
    %v3660 = vmul.f32 %v3404, %v3404
    %v3661 = vmul.f32 %v3405, %v3405
    %v3662 = vmul.f32 %v3406, %v3406
    %v3663 = vmul.f32 %v3407, %v3407
    %v3664 = vmul.f32 %v3408, %v3408
    %v3665 = vmul.f32 %v3409, %v3409
    %v3666 = vmul.f32 %v3410, %v3410
    %v3667 = vmul.f32 %v3411, %v3411
    %v3668 = vmul.f32 %v3412, %v3412
    %v3669 = vmul.f32 %v3413, %v3413
    %v3670 = vmul.f32 %v3414, %v3414
    %v3671 = vmul.f32 %v3415, %v3415
    %v3672 = vmul.f32 %v3416, %v3416
    %v3673 = vmul.f32 %v3417, %v3417
    %v3674 = vmul.f32 %v3418, %v3418
    %v3675 = vmul.f32 %v3419, %v3419
    %v3676 = vmul.f32 %v3420, %v3420
    %v3677 = vmul.f32 %v3421, %v3421
    %v3678 = vmul.f32 %v3422, %v3422
    %v3679 = vmul.f32 %v3423, %v3423
    %v3680 = vmul.f32 %v3424, %v3424
    %v3681 = vmul.f32 %v3425, %v3425
    %v3682 = vmul.f32 %v3426, %v3426
    %v3683 = vmul.f32 %v3427, %v3427
    %v3684 = vmul.f32 %v3428, %v3428
    %v3685 = vmul.f32 %v3429, %v3429
    %v3686 = vmul.f32 %v3430, %v3430
    %v3687 = vmul.f32 %v3431, %v3431
    %v3688 = vmul.f32 %v3432, %v3432
    %v3689 = vmul.f32 %v3433, %v3433
    %v3690 = vmul.f32 %v3434, %v3434
    %v3691 = vmul.f32 %v3435, %v3435
    %v3692 = vmul.f32 %v3436, %v3436
    %v3693 = vmul.f32 %v3437, %v3437
    %v3694 = vmul.f32 %v3438, %v3438
    %v3695 = vmul.f32 %v3439, %v3439
    %v3696 = vmul.f32 %v3440, %v3440
    %v3697 = vmul.f32 %v3441, %v3441
    %v3698 = vmul.f32 %v3442, %v3442
    %v3699 = vmul.f32 %v3443, %v3443
    %v3700 = vmul.f32 %v3444, %v3444
    %v3701 = vmul.f32 %v3445, %v3445
    %v3702 = vmul.f32 %v3446, %v3446
    %v3703 = vmul.f32 %v3447, %v3447
    %v3704 = vmul.f32 %v3448, %v3448
    %v3705 = vmul.f32 %v3449, %v3449
    %v3706 = vmul.f32 %v3450, %v3450
    %v3707 = vmul.f32 %v3451, %v3451
    %v3708 = vmul.f32 %v3452, %v3452
    %v3709 = vmul.f32 %v3453, %v3453
    %v3710 = vmul.f32 %v3454, %v3454
    %v3711 = vmul.f32 %v3455, %v3455
    %v3712 = vmul.f32 %v3456, %v3456
    %v3713 = vmul.f32 %v3457, %v3457
    %v3714 = vmul.f32 %v3458, %v3458
    %v3715 = vmul.f32 %v3459, %v3459
    %v3716 = vmul.f32 %v3460, %v3460
    %v3717 = vmul.f32 %v3461, %v3461
    %v3718 = vmul.f32 %v3462, %v3462
    %v3719 = vmul.f32 %v3463, %v3463
    %v3720 = vmul.f32 %v3464, %v3464
    %v3721 = vmul.f32 %v3465, %v3465
    %v3722 = vmul.f32 %v3466, %v3466
    %v3723 = vmul.f32 %v3467, %v3467
    %v3724 = vmul.f32 %v3468, %v3468
    %v3725 = vmul.f32 %v3469, %v3469
    %v3726 = vmul.f32 %v3470, %v3470
    %v3727 = vmul.f32 %v3471, %v3471
    %v3728 = vmul.f32 %v3472, %v3472
    %v3729 = vmul.f32 %v3473, %v3473
    %v3730 = vmul.f32 %v3474, %v3474
    %v3731 = vmul.f32 %v3475, %v3475
    %v3732 = vmul.f32 %v3476, %v3476
    %v3733 = vmul.f32 %v3477, %v3477
    %v3734 = vmul.f32 %v3478, %v3478
    %v3735 = vmul.f32 %v3479, %v3479
    %v3736 = vmul.f32 %v3480, %v3480
    %v3737 = vmul.f32 %v3481, %v3481
    %v3738 = vsel %vm2707, %v3482, 0.0
    %v3739 = vsel %vm2707, %v3483, 0.0
    %v3740 = vadd.f32 %v3738, %v3739
    %v3741 = vsel %vm2707, %v3484, 0.0
    %v3742 = vadd.f32 %v3740, %v3741
    %v3743 = vsel %vm2707, %v3485, 0.0
    %v3744 = vadd.f32 %v3742, %v3743
    %v3745 = vsel %vm2707, %v3486, 0.0
    %v3746 = vadd.f32 %v3744, %v3745
    %v3747 = vsel %vm2707, %v3487, 0.0
    %v3748 = vadd.f32 %v3746, %v3747
    %v3749 = vsel %vm2707, %v3488, 0.0
    %v3750 = vadd.f32 %v3748, %v3749
    %v3751 = vsel %vm2707, %v3489, 0.0
    %v3752 = vadd.f32 %v3750, %v3751
    %v3753 = vsel %vm2707, %v3490, 0.0
    %v3754 = vadd.f32 %v3752, %v3753
    %v3755 = vsel %vm2707, %v3491, 0.0
    %v3756 = vadd.f32 %v3754, %v3755
    %v3757 = vsel %vm2707, %v3492, 0.0
    %v3758 = vadd.f32 %v3756, %v3757
    %v3759 = vsel %vm2707, %v3493, 0.0
    %v3760 = vadd.f32 %v3758, %v3759
    %v3761 = vsel %vm2707, %v3494, 0.0
    %v3762 = vadd.f32 %v3760, %v3761
    %v3763 = vsel %vm2707, %v3495, 0.0
    %v3764 = vadd.f32 %v3762, %v3763
    %v3765 = vsel %vm2707, %v3496, 0.0
    %v3766 = vadd.f32 %v3764, %v3765
    %v3767 = vsel %vm2707, %v3497, 0.0
    %v3768 = vadd.f32 %v3766, %v3767
    %v3769 = vsel %vm2707, %v3498, 0.0
    %v3770 = vadd.f32 %v3768, %v3769
    %v3771 = vsel %vm2707, %v3499, 0.0
    %v3772 = vadd.f32 %v3770, %v3771
    %v3773 = vsel %vm2707, %v3500, 0.0
    %v3774 = vadd.f32 %v3772, %v3773
    %v3775 = vsel %vm2707, %v3501, 0.0
    %v3776 = vadd.f32 %v3774, %v3775
    %v3777 = vsel %vm2707, %v3502, 0.0
    %v3778 = vadd.f32 %v3776, %v3777
    %v3779 = vsel %vm2707, %v3503, 0.0
    %v3780 = vadd.f32 %v3778, %v3779
    %v3781 = vsel %vm2707, %v3504, 0.0
    %v3782 = vadd.f32 %v3780, %v3781
    %v3783 = vsel %vm2707, %v3505, 0.0
    %v3784 = vadd.f32 %v3782, %v3783
    %v3785 = vsel %vm2707, %v3506, 0.0
    %v3786 = vadd.f32 %v3784, %v3785
    %v3787 = vsel %vm2707, %v3507, 0.0
    %v3788 = vadd.f32 %v3786, %v3787
    %v3789 = vsel %vm2707, %v3508, 0.0
    %v3790 = vadd.f32 %v3788, %v3789
    %v3791 = vsel %vm2707, %v3509, 0.0
    %v3792 = vadd.f32 %v3790, %v3791
    %v3793 = vsel %vm2707, %v3510, 0.0
    %v3794 = vadd.f32 %v3792, %v3793
    %v3795 = vsel %vm2707, %v3511, 0.0
    %v3796 = vadd.f32 %v3794, %v3795
    %v3797 = vsel %vm2707, %v3512, 0.0
    %v3798 = vadd.f32 %v3796, %v3797
    %v3799 = vsel %vm2707, %v3513, 0.0
    %v3800 = vadd.f32 %v3798, %v3799
    %v3801 = vsel %vm2707, %v3514, 0.0
    %v3802 = vadd.f32 %v3800, %v3801
    %v3803 = vsel %vm2707, %v3515, 0.0
    %v3804 = vadd.f32 %v3802, %v3803
    %v3805 = vsel %vm2707, %v3516, 0.0
    %v3806 = vadd.f32 %v3804, %v3805
    %v3807 = vsel %vm2707, %v3517, 0.0
    %v3808 = vadd.f32 %v3806, %v3807
    %v3809 = vsel %vm2707, %v3518, 0.0
    %v3810 = vadd.f32 %v3808, %v3809
    %v3811 = vsel %vm2707, %v3519, 0.0
    %v3812 = vadd.f32 %v3810, %v3811
    %v3813 = vsel %vm2707, %v3520, 0.0
    %v3814 = vadd.f32 %v3812, %v3813
    %v3815 = vsel %vm2707, %v3521, 0.0
    %v3816 = vadd.f32 %v3814, %v3815
    %v3817 = vsel %vm2707, %v3522, 0.0
    %v3818 = vadd.f32 %v3816, %v3817
    %v3819 = vsel %vm2707, %v3523, 0.0
    %v3820 = vadd.f32 %v3818, %v3819
    %v3821 = vsel %vm2707, %v3524, 0.0
    %v3822 = vadd.f32 %v3820, %v3821
    %v3823 = vsel %vm2707, %v3525, 0.0
    %v3824 = vadd.f32 %v3822, %v3823
    %v3825 = vsel %vm2707, %v3526, 0.0
    %v3826 = vadd.f32 %v3824, %v3825
    %v3827 = vsel %vm2707, %v3527, 0.0
    %v3828 = vadd.f32 %v3826, %v3827
    %v3829 = vsel %vm2707, %v3528, 0.0
    %v3830 = vadd.f32 %v3828, %v3829
    %v3831 = vsel %vm2707, %v3529, 0.0
    %v3832 = vadd.f32 %v3830, %v3831
    %v3833 = vsel %vm2707, %v3530, 0.0
    %v3834 = vadd.f32 %v3832, %v3833
    %v3835 = vsel %vm2707, %v3531, 0.0
    %v3836 = vadd.f32 %v3834, %v3835
    %v3837 = vsel %vm2707, %v3532, 0.0
    %v3838 = vadd.f32 %v3836, %v3837
    %v3839 = vsel %vm2707, %v3533, 0.0
    %v3840 = vadd.f32 %v3838, %v3839
    %v3841 = vsel %vm2707, %v3534, 0.0
    %v3842 = vadd.f32 %v3840, %v3841
    %v3843 = vsel %vm2707, %v3535, 0.0
    %v3844 = vadd.f32 %v3842, %v3843
    %v3845 = vsel %vm2707, %v3536, 0.0
    %v3846 = vadd.f32 %v3844, %v3845
    %v3847 = vsel %vm2707, %v3537, 0.0
    %v3848 = vadd.f32 %v3846, %v3847
    %v3849 = vsel %vm2707, %v3538, 0.0
    %v3850 = vadd.f32 %v3848, %v3849
    %v3851 = vsel %vm2707, %v3539, 0.0
    %v3852 = vadd.f32 %v3850, %v3851
    %v3853 = vsel %vm2707, %v3540, 0.0
    %v3854 = vadd.f32 %v3852, %v3853
    %v3855 = vsel %vm2707, %v3541, 0.0
    %v3856 = vadd.f32 %v3854, %v3855
    %v3857 = vsel %vm2707, %v3542, 0.0
    %v3858 = vadd.f32 %v3856, %v3857
    %v3859 = vsel %vm2707, %v3543, 0.0
    %v3860 = vadd.f32 %v3858, %v3859
    %v3861 = vsel %vm2707, %v3544, 0.0
    %v3862 = vadd.f32 %v3860, %v3861
    %v3863 = vsel %vm2707, %v3545, 0.0
    %v3864 = vadd.f32 %v3862, %v3863
    %v3865 = vsel %vm2707, %v3546, 0.0
    %v3866 = vadd.f32 %v3864, %v3865
    %v3867 = vsel %vm2707, %v3547, 0.0
    %v3868 = vadd.f32 %v3866, %v3867
    %v3869 = vsel %vm2707, %v3548, 0.0
    %v3870 = vadd.f32 %v3868, %v3869
    %v3871 = vsel %vm2707, %v3549, 0.0
    %v3872 = vadd.f32 %v3870, %v3871
    %v3873 = vsel %vm2707, %v3550, 0.0
    %v3874 = vadd.f32 %v3872, %v3873
    %v3875 = vsel %vm2707, %v3551, 0.0
    %v3876 = vadd.f32 %v3874, %v3875
    %v3877 = vsel %vm2707, %v3552, 0.0
    %v3878 = vadd.f32 %v3876, %v3877
    %v3879 = vsel %vm2707, %v3553, 0.0
    %v3880 = vadd.f32 %v3878, %v3879
    %v3881 = vsel %vm2707, %v3554, 0.0
    %v3882 = vadd.f32 %v3880, %v3881
    %v3883 = vsel %vm2707, %v3555, 0.0
    %v3884 = vadd.f32 %v3882, %v3883
    %v3885 = vsel %vm2707, %v3556, 0.0
    %v3886 = vadd.f32 %v3884, %v3885
    %v3887 = vsel %vm2707, %v3557, 0.0
    %v3888 = vadd.f32 %v3886, %v3887
    %v3889 = vsel %vm2707, %v3558, 0.0
    %v3890 = vadd.f32 %v3888, %v3889
    %v3891 = vsel %vm2707, %v3559, 0.0
    %v3892 = vadd.f32 %v3890, %v3891
    %v3893 = vsel %vm2707, %v3560, 0.0
    %v3894 = vadd.f32 %v3892, %v3893
    %v3895 = vsel %vm2707, %v3561, 0.0
    %v3896 = vadd.f32 %v3894, %v3895
    %v3897 = vsel %vm2707, %v3562, 0.0
    %v3898 = vadd.f32 %v3896, %v3897
    %v3899 = vsel %vm2707, %v3563, 0.0
    %v3900 = vadd.f32 %v3898, %v3899
    %v3901 = vsel %vm2707, %v3564, 0.0
    %v3902 = vadd.f32 %v3900, %v3901
    %v3903 = vsel %vm2707, %v3565, 0.0
    %v3904 = vadd.f32 %v3902, %v3903
    %v3905 = vsel %vm2707, %v3566, 0.0
    %v3906 = vadd.f32 %v3904, %v3905
    %v3907 = vsel %vm2707, %v3567, 0.0
    %v3908 = vadd.f32 %v3906, %v3907
    %v3909 = vsel %vm2707, %v3568, 0.0
    %v3910 = vadd.f32 %v3908, %v3909
    %v3911 = vsel %vm2707, %v3569, 0.0
    %v3912 = vadd.f32 %v3910, %v3911
    %v3913 = vsel %vm2707, %v3570, 0.0
    %v3914 = vadd.f32 %v3912, %v3913
    %v3915 = vsel %vm2707, %v3571, 0.0
    %v3916 = vadd.f32 %v3914, %v3915
    %v3917 = vsel %vm2707, %v3572, 0.0
    %v3918 = vadd.f32 %v3916, %v3917
    %v3919 = vsel %vm2707, %v3573, 0.0
    %v3920 = vadd.f32 %v3918, %v3919
    %v3921 = vsel %vm2707, %v3574, 0.0
    %v3922 = vadd.f32 %v3920, %v3921
    %v3923 = vsel %vm2707, %v3575, 0.0
    %v3924 = vadd.f32 %v3922, %v3923
    %v3925 = vsel %vm2707, %v3576, 0.0
    %v3926 = vadd.f32 %v3924, %v3925
    %v3927 = vsel %vm2707, %v3577, 0.0
    %v3928 = vadd.f32 %v3926, %v3927
    %v3929 = vsel %vm2707, %v3578, 0.0
    %v3930 = vadd.f32 %v3928, %v3929
    %v3931 = vsel %vm2707, %v3579, 0.0
    %v3932 = vadd.f32 %v3930, %v3931
    %v3933 = vsel %vm2707, %v3580, 0.0
    %v3934 = vadd.f32 %v3932, %v3933
    %v3935 = vsel %vm2707, %v3581, 0.0
    %v3936 = vadd.f32 %v3934, %v3935
    %v3937 = vsel %vm2707, %v3582, 0.0
    %v3938 = vadd.f32 %v3936, %v3937
    %v3939 = vsel %vm2707, %v3583, 0.0
    %v3940 = vadd.f32 %v3938, %v3939
    %v3941 = vsel %vm2707, %v3584, 0.0
    %v3942 = vadd.f32 %v3940, %v3941
    %v3943 = vsel %vm2707, %v3585, 0.0
    %v3944 = vadd.f32 %v3942, %v3943
    %v3945 = vsel %vm2707, %v3586, 0.0
    %v3946 = vadd.f32 %v3944, %v3945
    %v3947 = vsel %vm2707, %v3587, 0.0
    %v3948 = vadd.f32 %v3946, %v3947
    %v3949 = vsel %vm2707, %v3588, 0.0
    %v3950 = vadd.f32 %v3948, %v3949
    %v3951 = vsel %vm2707, %v3589, 0.0
    %v3952 = vadd.f32 %v3950, %v3951
    %v3953 = vsel %vm2707, %v3590, 0.0
    %v3954 = vadd.f32 %v3952, %v3953
    %v3955 = vsel %vm2707, %v3591, 0.0
    %v3956 = vadd.f32 %v3954, %v3955
    %v3957 = vsel %vm2707, %v3592, 0.0
    %v3958 = vadd.f32 %v3956, %v3957
    %v3959 = vsel %vm2707, %v3593, 0.0
    %v3960 = vadd.f32 %v3958, %v3959
    %v3961 = vsel %vm2707, %v3594, 0.0
    %v3962 = vadd.f32 %v3960, %v3961
    %v3963 = vsel %vm2707, %v3595, 0.0
    %v3964 = vadd.f32 %v3962, %v3963
    %v3965 = vsel %vm2707, %v3596, 0.0
    %v3966 = vadd.f32 %v3964, %v3965
    %v3967 = vsel %vm2707, %v3597, 0.0
    %v3968 = vadd.f32 %v3966, %v3967
    %v3969 = vsel %vm2707, %v3598, 0.0
    %v3970 = vadd.f32 %v3968, %v3969
    %v3971 = vsel %vm2707, %v3599, 0.0
    %v3972 = vadd.f32 %v3970, %v3971
    %v3973 = vsel %vm2707, %v3600, 0.0
    %v3974 = vadd.f32 %v3972, %v3973
    %v3975 = vsel %vm2707, %v3601, 0.0
    %v3976 = vadd.f32 %v3974, %v3975
    %v3977 = vsel %vm2707, %v3602, 0.0
    %v3978 = vadd.f32 %v3976, %v3977
    %v3979 = vsel %vm2707, %v3603, 0.0
    %v3980 = vadd.f32 %v3978, %v3979
    %v3981 = vsel %vm2707, %v3604, 0.0
    %v3982 = vadd.f32 %v3980, %v3981
    %v3983 = vsel %vm2707, %v3605, 0.0
    %v3984 = vadd.f32 %v3982, %v3983
    %v3985 = vsel %vm2707, %v3606, 0.0
    %v3986 = vadd.f32 %v3984, %v3985
    %v3987 = vsel %vm2707, %v3607, 0.0
    %v3988 = vadd.f32 %v3986, %v3987
    %v3989 = vsel %vm2707, %v3608, 0.0
    %v3990 = vadd.f32 %v3988, %v3989
    %v3991 = vsel %vm2707, %v3609, 0.0
    %v3992 = vadd.f32 %v3990, %v3991
    %v3993 = vsel %vm2707, %v3610, 0.0
    %v3994 = vadd.f32 %v3992, %v3993
    %v3995 = vsel %vm2707, %v3611, 0.0
    %v3996 = vadd.f32 %v3994, %v3995
    %v3997 = vsel %vm2707, %v3612, 0.0
    %v3998 = vadd.f32 %v3996, %v3997
    %v3999 = vsel %vm2707, %v3613, 0.0
    %v4000 = vadd.f32 %v3998, %v3999
    %v4001 = vsel %vm2707, %v3614, 0.0
    %v4002 = vadd.f32 %v4000, %v4001
    %v4003 = vsel %vm2707, %v3615, 0.0
    %v4004 = vadd.f32 %v4002, %v4003
    %v4005 = vsel %vm2707, %v3616, 0.0
    %v4006 = vadd.f32 %v4004, %v4005
    %v4007 = vsel %vm2707, %v3617, 0.0
    %v4008 = vadd.f32 %v4006, %v4007
    %v4009 = vsel %vm2707, %v3618, 0.0
    %v4010 = vadd.f32 %v4008, %v4009
    %v4011 = vsel %vm2707, %v3619, 0.0
    %v4012 = vadd.f32 %v4010, %v4011
    %v4013 = vsel %vm2707, %v3620, 0.0
    %v4014 = vadd.f32 %v4012, %v4013
    %v4015 = vsel %vm2707, %v3621, 0.0
    %v4016 = vadd.f32 %v4014, %v4015
    %v4017 = vsel %vm2707, %v3622, 0.0
    %v4018 = vadd.f32 %v4016, %v4017
    %v4019 = vsel %vm2707, %v3623, 0.0
    %v4020 = vadd.f32 %v4018, %v4019
    %v4021 = vsel %vm2707, %v3624, 0.0
    %v4022 = vadd.f32 %v4020, %v4021
    %v4023 = vsel %vm2707, %v3625, 0.0
    %v4024 = vadd.f32 %v4022, %v4023
    %v4025 = vsel %vm2707, %v3626, 0.0
    %v4026 = vadd.f32 %v4024, %v4025
    %v4027 = vsel %vm2707, %v3627, 0.0
    %v4028 = vadd.f32 %v4026, %v4027
    %v4029 = vsel %vm2707, %v3628, 0.0
    %v4030 = vadd.f32 %v4028, %v4029
    %v4031 = vsel %vm2707, %v3629, 0.0
    %v4032 = vadd.f32 %v4030, %v4031
    %v4033 = vsel %vm2707, %v3630, 0.0
    %v4034 = vadd.f32 %v4032, %v4033
    %v4035 = vsel %vm2707, %v3631, 0.0
    %v4036 = vadd.f32 %v4034, %v4035
    %v4037 = vsel %vm2707, %v3632, 0.0
    %v4038 = vadd.f32 %v4036, %v4037
    %v4039 = vsel %vm2707, %v3633, 0.0
    %v4040 = vadd.f32 %v4038, %v4039
    %v4041 = vsel %vm2707, %v3634, 0.0
    %v4042 = vadd.f32 %v4040, %v4041
    %v4043 = vsel %vm2707, %v3635, 0.0
    %v4044 = vadd.f32 %v4042, %v4043
    %v4045 = vsel %vm2707, %v3636, 0.0
    %v4046 = vadd.f32 %v4044, %v4045
    %v4047 = vsel %vm2707, %v3637, 0.0
    %v4048 = vadd.f32 %v4046, %v4047
    %v4049 = vsel %vm2707, %v3638, 0.0
    %v4050 = vadd.f32 %v4048, %v4049
    %v4051 = vsel %vm2707, %v3639, 0.0
    %v4052 = vadd.f32 %v4050, %v4051
    %v4053 = vsel %vm2707, %v3640, 0.0
    %v4054 = vadd.f32 %v4052, %v4053
    %v4055 = vsel %vm2707, %v3641, 0.0
    %v4056 = vadd.f32 %v4054, %v4055
    %v4057 = vsel %vm2707, %v3642, 0.0
    %v4058 = vadd.f32 %v4056, %v4057
    %v4059 = vsel %vm2707, %v3643, 0.0
    %v4060 = vadd.f32 %v4058, %v4059
    %v4061 = vsel %vm2707, %v3644, 0.0
    %v4062 = vadd.f32 %v4060, %v4061
    %v4063 = vsel %vm2707, %v3645, 0.0
    %v4064 = vadd.f32 %v4062, %v4063
    %v4065 = vsel %vm2707, %v3646, 0.0
    %v4066 = vadd.f32 %v4064, %v4065
    %v4067 = vsel %vm2707, %v3647, 0.0
    %v4068 = vadd.f32 %v4066, %v4067
    %v4069 = vsel %vm2707, %v3648, 0.0
    %v4070 = vadd.f32 %v4068, %v4069
    %v4071 = vsel %vm2707, %v3649, 0.0
    %v4072 = vadd.f32 %v4070, %v4071
    %v4073 = vsel %vm2707, %v3650, 0.0
    %v4074 = vadd.f32 %v4072, %v4073
    %v4075 = vsel %vm2707, %v3651, 0.0
    %v4076 = vadd.f32 %v4074, %v4075
    %v4077 = vsel %vm2707, %v3652, 0.0
    %v4078 = vadd.f32 %v4076, %v4077
    %v4079 = vsel %vm2707, %v3653, 0.0
    %v4080 = vadd.f32 %v4078, %v4079
    %v4081 = vsel %vm2707, %v3654, 0.0
    %v4082 = vadd.f32 %v4080, %v4081
    %v4083 = vsel %vm2707, %v3655, 0.0
    %v4084 = vadd.f32 %v4082, %v4083
    %v4085 = vsel %vm2707, %v3656, 0.0
    %v4086 = vadd.f32 %v4084, %v4085
    %v4087 = vsel %vm2707, %v3657, 0.0
    %v4088 = vadd.f32 %v4086, %v4087
    %v4089 = vsel %vm2707, %v3658, 0.0
    %v4090 = vadd.f32 %v4088, %v4089
    %v4091 = vsel %vm2707, %v3659, 0.0
    %v4092 = vadd.f32 %v4090, %v4091
    %v4093 = vsel %vm2707, %v3660, 0.0
    %v4094 = vadd.f32 %v4092, %v4093
    %v4095 = vsel %vm2707, %v3661, 0.0
    %v4096 = vadd.f32 %v4094, %v4095
    %v4097 = vsel %vm2707, %v3662, 0.0
    %v4098 = vadd.f32 %v4096, %v4097
    %v4099 = vsel %vm2707, %v3663, 0.0
    %v4100 = vadd.f32 %v4098, %v4099
    %v4101 = vsel %vm2707, %v3664, 0.0
    %v4102 = vadd.f32 %v4100, %v4101
    %v4103 = vsel %vm2707, %v3665, 0.0
    %v4104 = vadd.f32 %v4102, %v4103
    %v4105 = vsel %vm2707, %v3666, 0.0
    %v4106 = vadd.f32 %v4104, %v4105
    %v4107 = vsel %vm2707, %v3667, 0.0
    %v4108 = vadd.f32 %v4106, %v4107
    %v4109 = vsel %vm2707, %v3668, 0.0
    %v4110 = vadd.f32 %v4108, %v4109
    %v4111 = vsel %vm2707, %v3669, 0.0
    %v4112 = vadd.f32 %v4110, %v4111
    %v4113 = vsel %vm2707, %v3670, 0.0
    %v4114 = vadd.f32 %v4112, %v4113
    %v4115 = vsel %vm2707, %v3671, 0.0
    %v4116 = vadd.f32 %v4114, %v4115
    %v4117 = vsel %vm2707, %v3672, 0.0
    %v4118 = vadd.f32 %v4116, %v4117
    %v4119 = vsel %vm2707, %v3673, 0.0
    %v4120 = vadd.f32 %v4118, %v4119
    %v4121 = vsel %vm2707, %v3674, 0.0
    %v4122 = vadd.f32 %v4120, %v4121
    %v4123 = vsel %vm2707, %v3675, 0.0
    %v4124 = vadd.f32 %v4122, %v4123
    %v4125 = vsel %vm2707, %v3676, 0.0
    %v4126 = vadd.f32 %v4124, %v4125
    %v4127 = vsel %vm2707, %v3677, 0.0
    %v4128 = vadd.f32 %v4126, %v4127
    %v4129 = vsel %vm2707, %v3678, 0.0
    %v4130 = vadd.f32 %v4128, %v4129
    %v4131 = vsel %vm2707, %v3679, 0.0
    %v4132 = vadd.f32 %v4130, %v4131
    %v4133 = vsel %vm2707, %v3680, 0.0
    %v4134 = vadd.f32 %v4132, %v4133
    %v4135 = vsel %vm2707, %v3681, 0.0
    %v4136 = vadd.f32 %v4134, %v4135
    %v4137 = vsel %vm2707, %v3682, 0.0
    %v4138 = vadd.f32 %v4136, %v4137
    %v4139 = vsel %vm2707, %v3683, 0.0
    %v4140 = vadd.f32 %v4138, %v4139
    %v4141 = vsel %vm2707, %v3684, 0.0
    %v4142 = vadd.f32 %v4140, %v4141
    %v4143 = vsel %vm2707, %v3685, 0.0
    %v4144 = vadd.f32 %v4142, %v4143
    %v4145 = vsel %vm2707, %v3686, 0.0
    %v4146 = vadd.f32 %v4144, %v4145
    %v4147 = vsel %vm2707, %v3687, 0.0
    %v4148 = vadd.f32 %v4146, %v4147
    %v4149 = vsel %vm2707, %v3688, 0.0
    %v4150 = vadd.f32 %v4148, %v4149
    %v4151 = vsel %vm2707, %v3689, 0.0
    %v4152 = vadd.f32 %v4150, %v4151
    %v4153 = vsel %vm2707, %v3690, 0.0
    %v4154 = vadd.f32 %v4152, %v4153
    %v4155 = vsel %vm2707, %v3691, 0.0
    %v4156 = vadd.f32 %v4154, %v4155
    %v4157 = vsel %vm2707, %v3692, 0.0
    %v4158 = vadd.f32 %v4156, %v4157
    %v4159 = vsel %vm2707, %v3693, 0.0
    %v4160 = vadd.f32 %v4158, %v4159
    %v4161 = vsel %vm2707, %v3694, 0.0
    %v4162 = vadd.f32 %v4160, %v4161
    %v4163 = vsel %vm2707, %v3695, 0.0
    %v4164 = vadd.f32 %v4162, %v4163
    %v4165 = vsel %vm2707, %v3696, 0.0
    %v4166 = vadd.f32 %v4164, %v4165
    %v4167 = vsel %vm2707, %v3697, 0.0
    %v4168 = vadd.f32 %v4166, %v4167
    %v4169 = vsel %vm2707, %v3698, 0.0
    %v4170 = vadd.f32 %v4168, %v4169
    %v4171 = vsel %vm2707, %v3699, 0.0
    %v4172 = vadd.f32 %v4170, %v4171
    %v4173 = vsel %vm2707, %v3700, 0.0
    %v4174 = vadd.f32 %v4172, %v4173
    %v4175 = vsel %vm2707, %v3701, 0.0
    %v4176 = vadd.f32 %v4174, %v4175
    %v4177 = vsel %vm2707, %v3702, 0.0
    %v4178 = vadd.f32 %v4176, %v4177
    %v4179 = vsel %vm2707, %v3703, 0.0
    %v4180 = vadd.f32 %v4178, %v4179
    %v4181 = vsel %vm2707, %v3704, 0.0
    %v4182 = vadd.f32 %v4180, %v4181
    %v4183 = vsel %vm2707, %v3705, 0.0
    %v4184 = vadd.f32 %v4182, %v4183
    %v4185 = vsel %vm2707, %v3706, 0.0
    %v4186 = vadd.f32 %v4184, %v4185
    %v4187 = vsel %vm2707, %v3707, 0.0
    %v4188 = vadd.f32 %v4186, %v4187
    %v4189 = vsel %vm2707, %v3708, 0.0
    %v4190 = vadd.f32 %v4188, %v4189
    %v4191 = vsel %vm2707, %v3709, 0.0
    %v4192 = vadd.f32 %v4190, %v4191
    %v4193 = vsel %vm2707, %v3710, 0.0
    %v4194 = vadd.f32 %v4192, %v4193
    %v4195 = vsel %vm2707, %v3711, 0.0
    %v4196 = vadd.f32 %v4194, %v4195
    %v4197 = vsel %vm2707, %v3712, 0.0
    %v4198 = vadd.f32 %v4196, %v4197
    %v4199 = vsel %vm2707, %v3713, 0.0
    %v4200 = vadd.f32 %v4198, %v4199
    %v4201 = vsel %vm2707, %v3714, 0.0
    %v4202 = vadd.f32 %v4200, %v4201
    %v4203 = vsel %vm2707, %v3715, 0.0
    %v4204 = vadd.f32 %v4202, %v4203
    %v4205 = vsel %vm2707, %v3716, 0.0
    %v4206 = vadd.f32 %v4204, %v4205
    %v4207 = vsel %vm2707, %v3717, 0.0
    %v4208 = vadd.f32 %v4206, %v4207
    %v4209 = vsel %vm2707, %v3718, 0.0
    %v4210 = vadd.f32 %v4208, %v4209
    %v4211 = vsel %vm2707, %v3719, 0.0
    %v4212 = vadd.f32 %v4210, %v4211
    %v4213 = vsel %vm2707, %v3720, 0.0
    %v4214 = vadd.f32 %v4212, %v4213
    %v4215 = vsel %vm2707, %v3721, 0.0
    %v4216 = vadd.f32 %v4214, %v4215
    %v4217 = vsel %vm2707, %v3722, 0.0
    %v4218 = vadd.f32 %v4216, %v4217
    %v4219 = vsel %vm2707, %v3723, 0.0
    %v4220 = vadd.f32 %v4218, %v4219
    %v4221 = vsel %vm2707, %v3724, 0.0
    %v4222 = vadd.f32 %v4220, %v4221
    %v4223 = vsel %vm2707, %v3725, 0.0
    %v4224 = vadd.f32 %v4222, %v4223
    %v4225 = vsel %vm2707, %v3726, 0.0
    %v4226 = vadd.f32 %v4224, %v4225
    %v4227 = vsel %vm2707, %v3727, 0.0
    %v4228 = vadd.f32 %v4226, %v4227
    %v4229 = vsel %vm2707, %v3728, 0.0
    %v4230 = vadd.f32 %v4228, %v4229
    %v4231 = vsel %vm2707, %v3729, 0.0
    %v4232 = vadd.f32 %v4230, %v4231
    %v4233 = vsel %vm2707, %v3730, 0.0
    %v4234 = vadd.f32 %v4232, %v4233
    %v4235 = vsel %vm2707, %v3731, 0.0
    %v4236 = vadd.f32 %v4234, %v4235
    %v4237 = vsel %vm2707, %v3732, 0.0
    %v4238 = vadd.f32 %v4236, %v4237
    %v4239 = vsel %vm2707, %v3733, 0.0
    %v4240 = vadd.f32 %v4238, %v4239
    %v4241 = vsel %vm2707, %v3734, 0.0
    %v4242 = vadd.f32 %v4240, %v4241
    %v4243 = vsel %vm2707, %v3735, 0.0
    %v4244 = vadd.f32 %v4242, %v4243
    %v4245 = vsel %vm2707, %v3736, 0.0
    %v4246 = vadd.f32 %v4244, %v4245
    %v4247 = vsel %vm2707, %v3737, 0.0
    %v4248 = vadd.f32 %v4246, %v4247
    %v4249 = vrot.slane %v4248, 4
    %v4250 = vadd.f32 %v4248, %v4249
    %v4251 = vrot.slane %v4250, 2
    %v4252 = vadd.f32 %v4250, %v4251
    %v4253 = vrot.slane %v4252, 1
    %v4254 = vadd.f32 %v4252, %v4253
    %v4255 = vmul.f32 %v4254, 0.00048828125
    %v4256 = vadd.f32 %v4255, 1e-05
    %v4257 = vrsqrt.pop %v4256
    %v4258 = vmul.f32 %v4257, %v327
    %v4259 = vlaneseq
    %v4260 = vshrl.u32 %v4259, 7
    %v4261 = vsub.s32 0, %v4260
    %v4262 = vrot.slane %v4258, %v4261
    %v4263 = vmul.f32 %v3226, %v4262
    %v4264 = vmul.f32 %v3227, %v4262
    %v4265 = vmul.f32 %v3228, %v4262
    %v4266 = vmul.f32 %v3229, %v4262
    %v4267 = vmul.f32 %v3230, %v4262
    %v4268 = vmul.f32 %v3231, %v4262
    %v4269 = vmul.f32 %v3232, %v4262
    %v4270 = vmul.f32 %v3233, %v4262
    %v4271 = vmul.f32 %v3234, %v4262
    %v4272 = vmul.f32 %v3235, %v4262
    %v4273 = vmul.f32 %v3236, %v4262
    %v4274 = vmul.f32 %v3237, %v4262
    %v4275 = vmul.f32 %v3238, %v4262
    %v4276 = vmul.f32 %v3239, %v4262
    %v4277 = vmul.f32 %v3240, %v4262
    %v4278 = vmul.f32 %v3241, %v4262
    %v4279 = vmul.f32 %v3242, %v4262
    %v4280 = vmul.f32 %v3243, %v4262
    %v4281 = vmul.f32 %v3244, %v4262
    %v4282 = vmul.f32 %v3245, %v4262
    %v4283 = vmul.f32 %v3246, %v4262
    %v4284 = vmul.f32 %v3247, %v4262
    %v4285 = vmul.f32 %v3248, %v4262
    %v4286 = vmul.f32 %v3249, %v4262
    %v4287 = vmul.f32 %v3250, %v4262
    %v4288 = vmul.f32 %v3251, %v4262
    %v4289 = vmul.f32 %v3252, %v4262
    %v4290 = vmul.f32 %v3253, %v4262
    %v4291 = vmul.f32 %v3254, %v4262
    %v4292 = vmul.f32 %v3255, %v4262
    %v4293 = vmul.f32 %v3256, %v4262
    %v4294 = vmul.f32 %v3257, %v4262
    %v4295 = vmul.f32 %v3258, %v4262
    %v4296 = vmul.f32 %v3259, %v4262
    %v4297 = vmul.f32 %v3260, %v4262
    %v4298 = vmul.f32 %v3261, %v4262
    %v4299 = vmul.f32 %v3262, %v4262
    %v4300 = vmul.f32 %v3263, %v4262
    %v4301 = vmul.f32 %v3264, %v4262
    %v4302 = vmul.f32 %v3265, %v4262
    %v4303 = vmul.f32 %v3266, %v4262
    %v4304 = vmul.f32 %v3267, %v4262
    %v4305 = vmul.f32 %v3268, %v4262
    %v4306 = vmul.f32 %v3269, %v4262
    %v4307 = vmul.f32 %v3270, %v4262
    %v4308 = vmul.f32 %v3271, %v4262
    %v4309 = vmul.f32 %v3272, %v4262
    %v4310 = vmul.f32 %v3273, %v4262
    %v4311 = vmul.f32 %v3274, %v4262
    %v4312 = vmul.f32 %v3275, %v4262
    %v4313 = vmul.f32 %v3276, %v4262
    %v4314 = vmul.f32 %v3277, %v4262
    %v4315 = vmul.f32 %v3278, %v4262
    %v4316 = vmul.f32 %v3279, %v4262
    %v4317 = vmul.f32 %v3280, %v4262
    %v4318 = vmul.f32 %v3281, %v4262
    %v4319 = vmul.f32 %v3282, %v4262
    %v4320 = vmul.f32 %v3283, %v4262
    %v4321 = vmul.f32 %v3284, %v4262
    %v4322 = vmul.f32 %v3285, %v4262
    %v4323 = vmul.f32 %v3286, %v4262
    %v4324 = vmul.f32 %v3287, %v4262
    %v4325 = vmul.f32 %v3288, %v4262
    %v4326 = vmul.f32 %v3289, %v4262
    %v4327 = vmul.f32 %v3290, %v4262
    %v4328 = vmul.f32 %v3291, %v4262
    %v4329 = vmul.f32 %v3292, %v4262
    %v4330 = vmul.f32 %v3293, %v4262
    %v4331 = vmul.f32 %v3294, %v4262
    %v4332 = vmul.f32 %v3295, %v4262
    %v4333 = vmul.f32 %v3296, %v4262
    %v4334 = vmul.f32 %v3297, %v4262
    %v4335 = vmul.f32 %v3298, %v4262
    %v4336 = vmul.f32 %v3299, %v4262
    %v4337 = vmul.f32 %v3300, %v4262
    %v4338 = vmul.f32 %v3301, %v4262
    %v4339 = vmul.f32 %v3302, %v4262
    %v4340 = vmul.f32 %v3303, %v4262
    %v4341 = vmul.f32 %v3304, %v4262
    %v4342 = vmul.f32 %v3305, %v4262
    %v4343 = vmul.f32 %v3306, %v4262
    %v4344 = vmul.f32 %v3307, %v4262
    %v4345 = vmul.f32 %v3308, %v4262
    %v4346 = vmul.f32 %v3309, %v4262
    %v4347 = vmul.f32 %v3310, %v4262
    %v4348 = vmul.f32 %v3311, %v4262
    %v4349 = vmul.f32 %v3312, %v4262
    %v4350 = vmul.f32 %v3313, %v4262
    %v4351 = vmul.f32 %v3314, %v4262
    %v4352 = vmul.f32 %v3315, %v4262
    %v4353 = vmul.f32 %v3316, %v4262
    %v4354 = vmul.f32 %v3317, %v4262
    %v4355 = vmul.f32 %v3318, %v4262
    %v4356 = vmul.f32 %v3319, %v4262
    %v4357 = vmul.f32 %v3320, %v4262
    %v4358 = vmul.f32 %v3321, %v4262
    %v4359 = vmul.f32 %v3322, %v4262
    %v4360 = vmul.f32 %v3323, %v4262
    %v4361 = vmul.f32 %v3324, %v4262
    %v4362 = vmul.f32 %v3325, %v4262
    %v4363 = vmul.f32 %v3326, %v4262
    %v4364 = vmul.f32 %v3327, %v4262
    %v4365 = vmul.f32 %v3328, %v4262
    %v4366 = vmul.f32 %v3329, %v4262
    %v4367 = vmul.f32 %v3330, %v4262
    %v4368 = vmul.f32 %v3331, %v4262
    %v4369 = vmul.f32 %v3332, %v4262
    %v4370 = vmul.f32 %v3333, %v4262
    %v4371 = vmul.f32 %v3334, %v4262
    %v4372 = vmul.f32 %v3335, %v4262
    %v4373 = vmul.f32 %v3336, %v4262
    %v4374 = vmul.f32 %v3337, %v4262
    %v4375 = vmul.f32 %v3338, %v4262
    %v4376 = vmul.f32 %v3339, %v4262
    %v4377 = vmul.f32 %v3340, %v4262
    %v4378 = vmul.f32 %v3341, %v4262
    %v4379 = vmul.f32 %v3342, %v4262
    %v4380 = vmul.f32 %v3343, %v4262
    %v4381 = vmul.f32 %v3344, %v4262
    %v4382 = vmul.f32 %v3345, %v4262
    %v4383 = vmul.f32 %v3346, %v4262
    %v4384 = vmul.f32 %v3347, %v4262
    %v4385 = vmul.f32 %v3348, %v4262
    %v4386 = vmul.f32 %v3349, %v4262
    %v4387 = vmul.f32 %v3350, %v4262
    %v4388 = vmul.f32 %v3351, %v4262
    %v4389 = vmul.f32 %v3352, %v4262
    %v4390 = vmul.f32 %v3353, %v4262
    %v4391 = vmul.f32 %v3354, %v4262
    %v4392 = vmul.f32 %v3355, %v4262
    %v4393 = vmul.f32 %v3356, %v4262
    %v4394 = vmul.f32 %v3357, %v4262
    %v4395 = vmul.f32 %v3358, %v4262
    %v4396 = vmul.f32 %v3359, %v4262
    %v4397 = vmul.f32 %v3360, %v4262
    %v4398 = vmul.f32 %v3361, %v4262
    %v4399 = vmul.f32 %v3362, %v4262
    %v4400 = vmul.f32 %v3363, %v4262
    %v4401 = vmul.f32 %v3364, %v4262
    %v4402 = vmul.f32 %v3365, %v4262
    %v4403 = vmul.f32 %v3366, %v4262
    %v4404 = vmul.f32 %v3367, %v4262
    %v4405 = vmul.f32 %v3368, %v4262
    %v4406 = vmul.f32 %v3369, %v4262
    %v4407 = vmul.f32 %v3370, %v4262
    %v4408 = vmul.f32 %v3371, %v4262
    %v4409 = vmul.f32 %v3372, %v4262
    %v4410 = vmul.f32 %v3373, %v4262
    %v4411 = vmul.f32 %v3374, %v4262
    %v4412 = vmul.f32 %v3375, %v4262
    %v4413 = vmul.f32 %v3376, %v4262
    %v4414 = vmul.f32 %v3377, %v4262
    %v4415 = vmul.f32 %v3378, %v4262
    %v4416 = vmul.f32 %v3379, %v4262
    %v4417 = vmul.f32 %v3380, %v4262
    %v4418 = vmul.f32 %v3381, %v4262
    %v4419 = vmul.f32 %v3382, %v4262
    %v4420 = vmul.f32 %v3383, %v4262
    %v4421 = vmul.f32 %v3384, %v4262
    %v4422 = vmul.f32 %v3385, %v4262
    %v4423 = vmul.f32 %v3386, %v4262
    %v4424 = vmul.f32 %v3387, %v4262
    %v4425 = vmul.f32 %v3388, %v4262
    %v4426 = vmul.f32 %v3389, %v4262
    %v4427 = vmul.f32 %v3390, %v4262
    %v4428 = vmul.f32 %v3391, %v4262
    %v4429 = vmul.f32 %v3392, %v4262
    %v4430 = vmul.f32 %v3393, %v4262
    %v4431 = vmul.f32 %v3394, %v4262
    %v4432 = vmul.f32 %v3395, %v4262
    %v4433 = vmul.f32 %v3396, %v4262
    %v4434 = vmul.f32 %v3397, %v4262
    %v4435 = vmul.f32 %v3398, %v4262
    %v4436 = vmul.f32 %v3399, %v4262
    %v4437 = vmul.f32 %v3400, %v4262
    %v4438 = vmul.f32 %v3401, %v4262
    %v4439 = vmul.f32 %v3402, %v4262
    %v4440 = vmul.f32 %v3403, %v4262
    %v4441 = vmul.f32 %v3404, %v4262
    %v4442 = vmul.f32 %v3405, %v4262
    %v4443 = vmul.f32 %v3406, %v4262
    %v4444 = vmul.f32 %v3407, %v4262
    %v4445 = vmul.f32 %v3408, %v4262
    %v4446 = vmul.f32 %v3409, %v4262
    %v4447 = vmul.f32 %v3410, %v4262
    %v4448 = vmul.f32 %v3411, %v4262
    %v4449 = vmul.f32 %v3412, %v4262
    %v4450 = vmul.f32 %v3413, %v4262
    %v4451 = vmul.f32 %v3414, %v4262
    %v4452 = vmul.f32 %v3415, %v4262
    %v4453 = vmul.f32 %v3416, %v4262
    %v4454 = vmul.f32 %v3417, %v4262
    %v4455 = vmul.f32 %v3418, %v4262
    %v4456 = vmul.f32 %v3419, %v4262
    %v4457 = vmul.f32 %v3420, %v4262
    %v4458 = vmul.f32 %v3421, %v4262
    %v4459 = vmul.f32 %v3422, %v4262
    %v4460 = vmul.f32 %v3423, %v4262
    %v4461 = vmul.f32 %v3424, %v4262
    %v4462 = vmul.f32 %v3425, %v4262
    %v4463 = vmul.f32 %v3426, %v4262
    %v4464 = vmul.f32 %v3427, %v4262
    %v4465 = vmul.f32 %v3428, %v4262
    %v4466 = vmul.f32 %v3429, %v4262
    %v4467 = vmul.f32 %v3430, %v4262
    %v4468 = vmul.f32 %v3431, %v4262
    %v4469 = vmul.f32 %v3432, %v4262
    %v4470 = vmul.f32 %v3433, %v4262
    %v4471 = vmul.f32 %v3434, %v4262
    %v4472 = vmul.f32 %v3435, %v4262
    %v4473 = vmul.f32 %v3436, %v4262
    %v4474 = vmul.f32 %v3437, %v4262
    %v4475 = vmul.f32 %v3438, %v4262
    %v4476 = vmul.f32 %v3439, %v4262
    %v4477 = vmul.f32 %v3440, %v4262
    %v4478 = vmul.f32 %v3441, %v4262
    %v4479 = vmul.f32 %v3442, %v4262
    %v4480 = vmul.f32 %v3443, %v4262
    %v4481 = vmul.f32 %v3444, %v4262
    %v4482 = vmul.f32 %v3445, %v4262
    %v4483 = vmul.f32 %v3446, %v4262
    %v4484 = vmul.f32 %v3447, %v4262
    %v4485 = vmul.f32 %v3448, %v4262
    %v4486 = vmul.f32 %v3449, %v4262
    %v4487 = vmul.f32 %v3450, %v4262
    %v4488 = vmul.f32 %v3451, %v4262
    %v4489 = vmul.f32 %v3452, %v4262
    %v4490 = vmul.f32 %v3453, %v4262
    %v4491 = vmul.f32 %v3454, %v4262
    %v4492 = vmul.f32 %v3455, %v4262
    %v4493 = vmul.f32 %v3456, %v4262
    %v4494 = vmul.f32 %v3457, %v4262
    %v4495 = vmul.f32 %v3458, %v4262
    %v4496 = vmul.f32 %v3459, %v4262
    %v4497 = vmul.f32 %v3460, %v4262
    %v4498 = vmul.f32 %v3461, %v4262
    %v4499 = vmul.f32 %v3462, %v4262
    %v4500 = vmul.f32 %v3463, %v4262
    %v4501 = vmul.f32 %v3464, %v4262
    %v4502 = vmul.f32 %v3465, %v4262
    %v4503 = vmul.f32 %v3466, %v4262
    %v4504 = vmul.f32 %v3467, %v4262
    %v4505 = vmul.f32 %v3468, %v4262
    %v4506 = vmul.f32 %v3469, %v4262
    %v4507 = vmul.f32 %v3470, %v4262
    %v4508 = vmul.f32 %v3471, %v4262
    %v4509 = vmul.f32 %v3472, %v4262
    %v4510 = vmul.f32 %v3473, %v4262
    %v4511 = vmul.f32 %v3474, %v4262
    %v4512 = vmul.f32 %v3475, %v4262
    %v4513 = vmul.f32 %v3476, %v4262
    %v4514 = vmul.f32 %v3477, %v4262
    %v4515 = vmul.f32 %v3478, %v4262
    %v4516 = vmul.f32 %v3479, %v4262
    %v4517 = vmul.f32 %v3480, %v4262
    %v4518 = vmul.f32 %v3481, %v4262
    %v4519 = vlaneseq
    %v4520 = vshrl.u32 %v4519, 7
    %v4521 = vsub.s32 0, %v4520
    %v4522 = vrot.slane %v328, %v4521
    %v4523 = vadd.f32 %v4263, %v4522
    %v4524 = vadd.f32 %v4264, %v4522
    %v4525 = vadd.f32 %v4265, %v4522
    %v4526 = vadd.f32 %v4266, %v4522
    %v4527 = vadd.f32 %v4267, %v4522
    %v4528 = vadd.f32 %v4268, %v4522
    %v4529 = vadd.f32 %v4269, %v4522
    %v4530 = vadd.f32 %v4270, %v4522
    %v4531 = vadd.f32 %v4271, %v4522
    %v4532 = vadd.f32 %v4272, %v4522
    %v4533 = vadd.f32 %v4273, %v4522
    %v4534 = vadd.f32 %v4274, %v4522
    %v4535 = vadd.f32 %v4275, %v4522
    %v4536 = vadd.f32 %v4276, %v4522
    %v4537 = vadd.f32 %v4277, %v4522
    %v4538 = vadd.f32 %v4278, %v4522
    %v4539 = vadd.f32 %v4279, %v4522
    %v4540 = vadd.f32 %v4280, %v4522
    %v4541 = vadd.f32 %v4281, %v4522
    %v4542 = vadd.f32 %v4282, %v4522
    %v4543 = vadd.f32 %v4283, %v4522
    %v4544 = vadd.f32 %v4284, %v4522
    %v4545 = vadd.f32 %v4285, %v4522
    %v4546 = vadd.f32 %v4286, %v4522
    %v4547 = vadd.f32 %v4287, %v4522
    %v4548 = vadd.f32 %v4288, %v4522
    %v4549 = vadd.f32 %v4289, %v4522
    %v4550 = vadd.f32 %v4290, %v4522
    %v4551 = vadd.f32 %v4291, %v4522
    %v4552 = vadd.f32 %v4292, %v4522
    %v4553 = vadd.f32 %v4293, %v4522
    %v4554 = vadd.f32 %v4294, %v4522
    %v4555 = vadd.f32 %v4295, %v4522
    %v4556 = vadd.f32 %v4296, %v4522
    %v4557 = vadd.f32 %v4297, %v4522
    %v4558 = vadd.f32 %v4298, %v4522
    %v4559 = vadd.f32 %v4299, %v4522
    %v4560 = vadd.f32 %v4300, %v4522
    %v4561 = vadd.f32 %v4301, %v4522
    %v4562 = vadd.f32 %v4302, %v4522
    %v4563 = vadd.f32 %v4303, %v4522
    %v4564 = vadd.f32 %v4304, %v4522
    %v4565 = vadd.f32 %v4305, %v4522
    %v4566 = vadd.f32 %v4306, %v4522
    %v4567 = vadd.f32 %v4307, %v4522
    %v4568 = vadd.f32 %v4308, %v4522
    %v4569 = vadd.f32 %v4309, %v4522
    %v4570 = vadd.f32 %v4310, %v4522
    %v4571 = vadd.f32 %v4311, %v4522
    %v4572 = vadd.f32 %v4312, %v4522
    %v4573 = vadd.f32 %v4313, %v4522
    %v4574 = vadd.f32 %v4314, %v4522
    %v4575 = vadd.f32 %v4315, %v4522
    %v4576 = vadd.f32 %v4316, %v4522
    %v4577 = vadd.f32 %v4317, %v4522
    %v4578 = vadd.f32 %v4318, %v4522
    %v4579 = vadd.f32 %v4319, %v4522
    %v4580 = vadd.f32 %v4320, %v4522
    %v4581 = vadd.f32 %v4321, %v4522
    %v4582 = vadd.f32 %v4322, %v4522
    %v4583 = vadd.f32 %v4323, %v4522
    %v4584 = vadd.f32 %v4324, %v4522
    %v4585 = vadd.f32 %v4325, %v4522
    %v4586 = vadd.f32 %v4326, %v4522
    %v4587 = vadd.f32 %v4327, %v4522
    %v4588 = vadd.f32 %v4328, %v4522
    %v4589 = vadd.f32 %v4329, %v4522
    %v4590 = vadd.f32 %v4330, %v4522
    %v4591 = vadd.f32 %v4331, %v4522
    %v4592 = vadd.f32 %v4332, %v4522
    %v4593 = vadd.f32 %v4333, %v4522
    %v4594 = vadd.f32 %v4334, %v4522
    %v4595 = vadd.f32 %v4335, %v4522
    %v4596 = vadd.f32 %v4336, %v4522
    %v4597 = vadd.f32 %v4337, %v4522
    %v4598 = vadd.f32 %v4338, %v4522
    %v4599 = vadd.f32 %v4339, %v4522
    %v4600 = vadd.f32 %v4340, %v4522
    %v4601 = vadd.f32 %v4341, %v4522
    %v4602 = vadd.f32 %v4342, %v4522
    %v4603 = vadd.f32 %v4343, %v4522
    %v4604 = vadd.f32 %v4344, %v4522
    %v4605 = vadd.f32 %v4345, %v4522
    %v4606 = vadd.f32 %v4346, %v4522
    %v4607 = vadd.f32 %v4347, %v4522
    %v4608 = vadd.f32 %v4348, %v4522
    %v4609 = vadd.f32 %v4349, %v4522
    %v4610 = vadd.f32 %v4350, %v4522
    %v4611 = vadd.f32 %v4351, %v4522
    %v4612 = vadd.f32 %v4352, %v4522
    %v4613 = vadd.f32 %v4353, %v4522
    %v4614 = vadd.f32 %v4354, %v4522
    %v4615 = vadd.f32 %v4355, %v4522
    %v4616 = vadd.f32 %v4356, %v4522
    %v4617 = vadd.f32 %v4357, %v4522
    %v4618 = vadd.f32 %v4358, %v4522
    %v4619 = vadd.f32 %v4359, %v4522
    %v4620 = vadd.f32 %v4360, %v4522
    %v4621 = vadd.f32 %v4361, %v4522
    %v4622 = vadd.f32 %v4362, %v4522
    %v4623 = vadd.f32 %v4363, %v4522
    %v4624 = vadd.f32 %v4364, %v4522
    %v4625 = vadd.f32 %v4365, %v4522
    %v4626 = vadd.f32 %v4366, %v4522
    %v4627 = vadd.f32 %v4367, %v4522
    %v4628 = vadd.f32 %v4368, %v4522
    %v4629 = vadd.f32 %v4369, %v4522
    %v4630 = vadd.f32 %v4370, %v4522
    %v4631 = vadd.f32 %v4371, %v4522
    %v4632 = vadd.f32 %v4372, %v4522
    %v4633 = vadd.f32 %v4373, %v4522
    %v4634 = vadd.f32 %v4374, %v4522
    %v4635 = vadd.f32 %v4375, %v4522
    %v4636 = vadd.f32 %v4376, %v4522
    %v4637 = vadd.f32 %v4377, %v4522
    %v4638 = vadd.f32 %v4378, %v4522
    %v4639 = vadd.f32 %v4379, %v4522
    %v4640 = vadd.f32 %v4380, %v4522
    %v4641 = vadd.f32 %v4381, %v4522
    %v4642 = vadd.f32 %v4382, %v4522
    %v4643 = vadd.f32 %v4383, %v4522
    %v4644 = vadd.f32 %v4384, %v4522
    %v4645 = vadd.f32 %v4385, %v4522
    %v4646 = vadd.f32 %v4386, %v4522
    %v4647 = vadd.f32 %v4387, %v4522
    %v4648 = vadd.f32 %v4388, %v4522
    %v4649 = vadd.f32 %v4389, %v4522
    %v4650 = vadd.f32 %v4390, %v4522
    %v4651 = vadd.f32 %v4391, %v4522
    %v4652 = vadd.f32 %v4392, %v4522
    %v4653 = vadd.f32 %v4393, %v4522
    %v4654 = vadd.f32 %v4394, %v4522
    %v4655 = vadd.f32 %v4395, %v4522
    %v4656 = vadd.f32 %v4396, %v4522
    %v4657 = vadd.f32 %v4397, %v4522
    %v4658 = vadd.f32 %v4398, %v4522
    %v4659 = vadd.f32 %v4399, %v4522
    %v4660 = vadd.f32 %v4400, %v4522
    %v4661 = vadd.f32 %v4401, %v4522
    %v4662 = vadd.f32 %v4402, %v4522
    %v4663 = vadd.f32 %v4403, %v4522
    %v4664 = vadd.f32 %v4404, %v4522
    %v4665 = vadd.f32 %v4405, %v4522
    %v4666 = vadd.f32 %v4406, %v4522
    %v4667 = vadd.f32 %v4407, %v4522
    %v4668 = vadd.f32 %v4408, %v4522
    %v4669 = vadd.f32 %v4409, %v4522
    %v4670 = vadd.f32 %v4410, %v4522
    %v4671 = vadd.f32 %v4411, %v4522
    %v4672 = vadd.f32 %v4412, %v4522
    %v4673 = vadd.f32 %v4413, %v4522
    %v4674 = vadd.f32 %v4414, %v4522
    %v4675 = vadd.f32 %v4415, %v4522
    %v4676 = vadd.f32 %v4416, %v4522
    %v4677 = vadd.f32 %v4417, %v4522
    %v4678 = vadd.f32 %v4418, %v4522
    %v4679 = vadd.f32 %v4419, %v4522
    %v4680 = vadd.f32 %v4420, %v4522
    %v4681 = vadd.f32 %v4421, %v4522
    %v4682 = vadd.f32 %v4422, %v4522
    %v4683 = vadd.f32 %v4423, %v4522
    %v4684 = vadd.f32 %v4424, %v4522
    %v4685 = vadd.f32 %v4425, %v4522
    %v4686 = vadd.f32 %v4426, %v4522
    %v4687 = vadd.f32 %v4427, %v4522
    %v4688 = vadd.f32 %v4428, %v4522
    %v4689 = vadd.f32 %v4429, %v4522
    %v4690 = vadd.f32 %v4430, %v4522
    %v4691 = vadd.f32 %v4431, %v4522
    %v4692 = vadd.f32 %v4432, %v4522
    %v4693 = vadd.f32 %v4433, %v4522
    %v4694 = vadd.f32 %v4434, %v4522
    %v4695 = vadd.f32 %v4435, %v4522
    %v4696 = vadd.f32 %v4436, %v4522
    %v4697 = vadd.f32 %v4437, %v4522
    %v4698 = vadd.f32 %v4438, %v4522
    %v4699 = vadd.f32 %v4439, %v4522
    %v4700 = vadd.f32 %v4440, %v4522
    %v4701 = vadd.f32 %v4441, %v4522
    %v4702 = vadd.f32 %v4442, %v4522
    %v4703 = vadd.f32 %v4443, %v4522
    %v4704 = vadd.f32 %v4444, %v4522
    %v4705 = vadd.f32 %v4445, %v4522
    %v4706 = vadd.f32 %v4446, %v4522
    %v4707 = vadd.f32 %v4447, %v4522
    %v4708 = vadd.f32 %v4448, %v4522
    %v4709 = vadd.f32 %v4449, %v4522
    %v4710 = vadd.f32 %v4450, %v4522
    %v4711 = vadd.f32 %v4451, %v4522
    %v4712 = vadd.f32 %v4452, %v4522
    %v4713 = vadd.f32 %v4453, %v4522
    %v4714 = vadd.f32 %v4454, %v4522
    %v4715 = vadd.f32 %v4455, %v4522
    %v4716 = vadd.f32 %v4456, %v4522
    %v4717 = vadd.f32 %v4457, %v4522
    %v4718 = vadd.f32 %v4458, %v4522
    %v4719 = vadd.f32 %v4459, %v4522
    %v4720 = vadd.f32 %v4460, %v4522
    %v4721 = vadd.f32 %v4461, %v4522
    %v4722 = vadd.f32 %v4462, %v4522
    %v4723 = vadd.f32 %v4463, %v4522
    %v4724 = vadd.f32 %v4464, %v4522
    %v4725 = vadd.f32 %v4465, %v4522
    %v4726 = vadd.f32 %v4466, %v4522
    %v4727 = vadd.f32 %v4467, %v4522
    %v4728 = vadd.f32 %v4468, %v4522
    %v4729 = vadd.f32 %v4469, %v4522
    %v4730 = vadd.f32 %v4470, %v4522
    %v4731 = vadd.f32 %v4471, %v4522
    %v4732 = vadd.f32 %v4472, %v4522
    %v4733 = vadd.f32 %v4473, %v4522
    %v4734 = vadd.f32 %v4474, %v4522
    %v4735 = vadd.f32 %v4475, %v4522
    %v4736 = vadd.f32 %v4476, %v4522
    %v4737 = vadd.f32 %v4477, %v4522
    %v4738 = vadd.f32 %v4478, %v4522
    %v4739 = vadd.f32 %v4479, %v4522
    %v4740 = vadd.f32 %v4480, %v4522
    %v4741 = vadd.f32 %v4481, %v4522
    %v4742 = vadd.f32 %v4482, %v4522
    %v4743 = vadd.f32 %v4483, %v4522
    %v4744 = vadd.f32 %v4484, %v4522
    %v4745 = vadd.f32 %v4485, %v4522
    %v4746 = vadd.f32 %v4486, %v4522
    %v4747 = vadd.f32 %v4487, %v4522
    %v4748 = vadd.f32 %v4488, %v4522
    %v4749 = vadd.f32 %v4489, %v4522
    %v4750 = vadd.f32 %v4490, %v4522
    %v4751 = vadd.f32 %v4491, %v4522
    %v4752 = vadd.f32 %v4492, %v4522
    %v4753 = vadd.f32 %v4493, %v4522
    %v4754 = vadd.f32 %v4494, %v4522
    %v4755 = vadd.f32 %v4495, %v4522
    %v4756 = vadd.f32 %v4496, %v4522
    %v4757 = vadd.f32 %v4497, %v4522
    %v4758 = vadd.f32 %v4498, %v4522
    %v4759 = vadd.f32 %v4499, %v4522
    %v4760 = vadd.f32 %v4500, %v4522
    %v4761 = vadd.f32 %v4501, %v4522
    %v4762 = vadd.f32 %v4502, %v4522
    %v4763 = vadd.f32 %v4503, %v4522
    %v4764 = vadd.f32 %v4504, %v4522
    %v4765 = vadd.f32 %v4505, %v4522
    %v4766 = vadd.f32 %v4506, %v4522
    %v4767 = vadd.f32 %v4507, %v4522
    %v4768 = vadd.f32 %v4508, %v4522
    %v4769 = vadd.f32 %v4509, %v4522
    %v4770 = vadd.f32 %v4510, %v4522
    %v4771 = vadd.f32 %v4511, %v4522
    %v4772 = vadd.f32 %v4512, %v4522
    %v4773 = vadd.f32 %v4513, %v4522
    %v4774 = vadd.f32 %v4514, %v4522
    %v4775 = vadd.f32 %v4515, %v4522
    %v4776 = vadd.f32 %v4516, %v4522
    %v4777 = vadd.f32 %v4517, %v4522
    %v4778 = vadd.f32 %v4518, %v4522
    %vm4840 = vcmask 1040384
    %v4841 = vrot.slane 0.0, 7
    %v4842 = vsel %vm4840, %v4841, %v4841
    %v4843 = vrot.slane %v4715, 7
    %v4844 = vrot.slane %v4716, 7
    %v4845 = vsel %vm4840, %v4843, %v4844
    %v4846 = vrot.slane %v4717, 7
    %v4847 = vrot.slane %v4718, 7
    %v4848 = vsel %vm4840, %v4846, %v4847
    %v4849 = vrot.slane %v4719, 7
    %v4850 = vrot.slane %v4720, 7
    %v4851 = vsel %vm4840, %v4849, %v4850
    %v4852 = vrot.slane %v4721, 7
    %v4853 = vrot.slane %v4722, 7
    %v4854 = vsel %vm4840, %v4852, %v4853
    %v4855 = vrot.slane %v4723, 7
    %v4856 = vrot.slane %v4724, 7
    %v4857 = vsel %vm4840, %v4855, %v4856
    %v4858 = vrot.slane %v4725, 7
    %v4859 = vrot.slane %v4726, 7
    %v4860 = vsel %vm4840, %v4858, %v4859
    %v4861 = vrot.slane %v4727, 7
    %v4862 = vrot.slane %v4728, 7
    %v4863 = vsel %vm4840, %v4861, %v4862
    %v4864 = vrot.slane %v4729, 7
    %v4865 = vrot.slane %v4730, 7
    %v4866 = vsel %vm4840, %v4864, %v4865
    %v4867 = vrot.slane %v4731, 7
    %v4868 = vrot.slane %v4732, 7
    %v4869 = vsel %vm4840, %v4867, %v4868
    %v4870 = vrot.slane %v4733, 7
    %v4871 = vrot.slane %v4734, 7
    %v4872 = vsel %vm4840, %v4870, %v4871
    %v4873 = vrot.slane %v4735, 7
    %v4874 = vrot.slane %v4736, 7
    %v4875 = vsel %vm4840, %v4873, %v4874
    %v4876 = vrot.slane %v4737, 7
    %v4877 = vrot.slane %v4738, 7
    %v4878 = vsel %vm4840, %v4876, %v4877
    %v4879 = vrot.slane %v4739, 7
    %v4880 = vrot.slane %v4740, 7
    %v4881 = vsel %vm4840, %v4879, %v4880
    %v4882 = vrot.slane %v4741, 7
    %v4883 = vrot.slane %v4742, 7
    %v4884 = vsel %vm4840, %v4882, %v4883
    %v4885 = vrot.slane %v4743, 7
    %v4886 = vrot.slane %v4744, 7
    %v4887 = vsel %vm4840, %v4885, %v4886
    %v4888 = vrot.slane %v4747, 7
    %v4889 = vrot.slane %v4748, 7
    %v4890 = vsel %vm4840, %v4888, %v4889
    %v4891 = vrot.slane %v4749, 7
    %v4892 = vrot.slane %v4750, 7
    %v4893 = vsel %vm4840, %v4891, %v4892
    %v4894 = vrot.slane %v4751, 7
    %v4895 = vrot.slane %v4752, 7
    %v4896 = vsel %vm4840, %v4894, %v4895
    %v4897 = vrot.slane %v4753, 7
    %v4898 = vrot.slane %v4754, 7
    %v4899 = vsel %vm4840, %v4897, %v4898
    %v4900 = vrot.slane %v4755, 7
    %v4901 = vrot.slane %v4756, 7
    %v4902 = vsel %vm4840, %v4900, %v4901
    %v4903 = vrot.slane %v4757, 7
    %v4904 = vrot.slane %v4758, 7
    %v4905 = vsel %vm4840, %v4903, %v4904
    %v4906 = vrot.slane %v4759, 7
    %v4907 = vrot.slane %v4760, 7
    %v4908 = vsel %vm4840, %v4906, %v4907
    %v4909 = vrot.slane %v4761, 7
    %v4910 = vrot.slane %v4762, 7
    %v4911 = vsel %vm4840, %v4909, %v4910
    %v4912 = vrot.slane %v4763, 7
    %v4913 = vrot.slane %v4764, 7
    %v4914 = vsel %vm4840, %v4912, %v4913
    %v4915 = vrot.slane %v4765, 7
    %v4916 = vrot.slane %v4766, 7
    %v4917 = vsel %vm4840, %v4915, %v4916
    %v4918 = vrot.slane %v4767, 7
    %v4919 = vrot.slane %v4768, 7
    %v4920 = vsel %vm4840, %v4918, %v4919
    %v4921 = vrot.slane %v4769, 7
    %v4922 = vrot.slane %v4770, 7
    %v4923 = vsel %vm4840, %v4921, %v4922
    %v4924 = vrot.slane %v4771, 7
    %v4925 = vrot.slane %v4772, 7
    %v4926 = vsel %vm4840, %v4924, %v4925
    %v4927 = vrot.slane %v4773, 7
    %v4928 = vrot.slane %v4774, 7
    %v4929 = vsel %vm4840, %v4927, %v4928
    %v4930 = vrot.slane %v4775, 7
    %v4931 = vrot.slane %v4776, 7
    %v4932 = vsel %vm4840, %v4930, %v4931
    %v4995 = vsel %vm4840, 0.0, %v4841
    %v4996 = vsel %vm4840, 0.0, %v4843
    %v4997 = vsel %vm4840, 0.0, %v4846
    %v4998 = vsel %vm4840, 0.0, %v4849
    %v4999 = vsel %vm4840, 0.0, %v4852
    %v5000 = vsel %vm4840, 0.0, %v4855
    %v5001 = vsel %vm4840, 0.0, %v4858
    %v5002 = vsel %vm4840, 0.0, %v4861
    %v5003 = vsel %vm4840, 0.0, %v4864
    %v5004 = vsel %vm4840, 0.0, %v4867
    %v5005 = vsel %vm4840, 0.0, %v4870
    %v5006 = vsel %vm4840, 0.0, %v4873
    %v5007 = vsel %vm4840, 0.0, %v4876
    %v5008 = vsel %vm4840, 0.0, %v4879
    %v5009 = vsel %vm4840, 0.0, %v4882
    %v5010 = vsel %vm4840, 0.0, %v4885
    %v5011 = vsel %vm4840, 0.0, %v4888
    %v5012 = vsel %vm4840, 0.0, %v4891
    %v5013 = vsel %vm4840, 0.0, %v4894
    %v5014 = vsel %vm4840, 0.0, %v4897
    %v5015 = vsel %vm4840, 0.0, %v4900
    %v5016 = vsel %vm4840, 0.0, %v4903
    %v5017 = vsel %vm4840, 0.0, %v4906
    %v5018 = vsel %vm4840, 0.0, %v4909
    %v5019 = vsel %vm4840, 0.0, %v4912
    %v5020 = vsel %vm4840, 0.0, %v4915
    %v5021 = vsel %vm4840, 0.0, %v4918
    %v5022 = vsel %vm4840, 0.0, %v4921
    %v5023 = vsel %vm4840, 0.0, %v4924
    %v5024 = vsel %vm4840, 0.0, %v4927
    %v5025 = vsel %vm4840, 0.0, %v4930
    %v5090 = vrot.slane %v4587, 7
    %v5091 = vrot.slane %v4588, 7
    %v5092 = vsel %vm4840, %v5090, %v5091
    %v5093 = vrot.slane %v4589, 7
    %v5094 = vrot.slane %v4590, 7
    %v5095 = vsel %vm4840, %v5093, %v5094
    %v5096 = vrot.slane %v4591, 7
    %v5097 = vrot.slane %v4592, 7
    %v5098 = vsel %vm4840, %v5096, %v5097
    %v5099 = vrot.slane %v4593, 7
    %v5100 = vrot.slane %v4594, 7
    %v5101 = vsel %vm4840, %v5099, %v5100
    %v5102 = vrot.slane %v4595, 7
    %v5103 = vrot.slane %v4596, 7
    %v5104 = vsel %vm4840, %v5102, %v5103
    %v5105 = vrot.slane %v4597, 7
    %v5106 = vrot.slane %v4598, 7
    %v5107 = vsel %vm4840, %v5105, %v5106
    %v5108 = vrot.slane %v4599, 7
    %v5109 = vrot.slane %v4600, 7
    %v5110 = vsel %vm4840, %v5108, %v5109
    %v5111 = vrot.slane %v4601, 7
    %v5112 = vrot.slane %v4602, 7
    %v5113 = vsel %vm4840, %v5111, %v5112
    %v5114 = vrot.slane %v4603, 7
    %v5115 = vrot.slane %v4604, 7
    %v5116 = vsel %vm4840, %v5114, %v5115
    %v5117 = vrot.slane %v4605, 7
    %v5118 = vrot.slane %v4606, 7
    %v5119 = vsel %vm4840, %v5117, %v5118
    %v5120 = vrot.slane %v4607, 7
    %v5121 = vrot.slane %v4608, 7
    %v5122 = vsel %vm4840, %v5120, %v5121
    %v5123 = vrot.slane %v4609, 7
    %v5124 = vrot.slane %v4610, 7
    %v5125 = vsel %vm4840, %v5123, %v5124
    %v5126 = vrot.slane %v4611, 7
    %v5127 = vrot.slane %v4612, 7
    %v5128 = vsel %vm4840, %v5126, %v5127
    %v5129 = vrot.slane %v4613, 7
    %v5130 = vrot.slane %v4614, 7
    %v5131 = vsel %vm4840, %v5129, %v5130
    %v5132 = vrot.slane %v4615, 7
    %v5133 = vrot.slane %v4616, 7
    %v5134 = vsel %vm4840, %v5132, %v5133
    %v5135 = vrot.slane %v4617, 7
    %v5136 = vrot.slane %v4618, 7
    %v5137 = vsel %vm4840, %v5135, %v5136
    %v5138 = vrot.slane %v4619, 7
    %v5139 = vrot.slane %v4620, 7
    %v5140 = vsel %vm4840, %v5138, %v5139
    %v5141 = vrot.slane %v4621, 7
    %v5142 = vrot.slane %v4622, 7
    %v5143 = vsel %vm4840, %v5141, %v5142
    %v5144 = vrot.slane %v4623, 7
    %v5145 = vrot.slane %v4624, 7
    %v5146 = vsel %vm4840, %v5144, %v5145
    %v5147 = vrot.slane %v4625, 7
    %v5148 = vrot.slane %v4626, 7
    %v5149 = vsel %vm4840, %v5147, %v5148
    %v5150 = vrot.slane %v4627, 7
    %v5151 = vrot.slane %v4628, 7
    %v5152 = vsel %vm4840, %v5150, %v5151
    %v5153 = vrot.slane %v4629, 7
    %v5154 = vrot.slane %v4630, 7
    %v5155 = vsel %vm4840, %v5153, %v5154
    %v5156 = vrot.slane %v4631, 7
    %v5157 = vrot.slane %v4632, 7
    %v5158 = vsel %vm4840, %v5156, %v5157
    %v5159 = vrot.slane %v4633, 7
    %v5160 = vrot.slane %v4634, 7
    %v5161 = vsel %vm4840, %v5159, %v5160
    %v5162 = vrot.slane %v4635, 7
    %v5163 = vrot.slane %v4636, 7
    %v5164 = vsel %vm4840, %v5162, %v5163
    %v5165 = vrot.slane %v4637, 7
    %v5166 = vrot.slane %v4638, 7
    %v5167 = vsel %vm4840, %v5165, %v5166
    %v5168 = vrot.slane %v4639, 7
    %v5169 = vrot.slane %v4640, 7
    %v5170 = vsel %vm4840, %v5168, %v5169
    %v5171 = vrot.slane %v4641, 7
    %v5172 = vrot.slane %v4642, 7
    %v5173 = vsel %vm4840, %v5171, %v5172
    %v5174 = vrot.slane %v4643, 7
    %v5175 = vrot.slane %v4644, 7
    %v5176 = vsel %vm4840, %v5174, %v5175
    %v5177 = vrot.slane %v4645, 7
    %v5178 = vrot.slane %v4646, 7
    %v5179 = vsel %vm4840, %v5177, %v5178
    %v5180 = vrot.slane %v4647, 7
    %v5181 = vrot.slane %v4648, 7
    %v5182 = vsel %vm4840, %v5180, %v5181
    %v5183 = vrot.slane %v4649, 7
    %v5184 = vrot.slane %v4650, 7
    %v5185 = vsel %vm4840, %v5183, %v5184
    %v5218 = vsel %vm4840, 0.0, %v5090
    %v5219 = vsel %vm4840, 0.0, %v5093
    %v5220 = vsel %vm4840, 0.0, %v5096
    %v5221 = vsel %vm4840, 0.0, %v5099
    %v5222 = vsel %vm4840, 0.0, %v5102
    %v5223 = vsel %vm4840, 0.0, %v5105
    %v5224 = vsel %vm4840, 0.0, %v5108
    %v5225 = vsel %vm4840, 0.0, %v5111
    %v5226 = vsel %vm4840, 0.0, %v5114
    %v5227 = vsel %vm4840, 0.0, %v5117
    %v5228 = vsel %vm4840, 0.0, %v5120
    %v5229 = vsel %vm4840, 0.0, %v5123
    %v5230 = vsel %vm4840, 0.0, %v5126
    %v5231 = vsel %vm4840, 0.0, %v5129
    %v5232 = vsel %vm4840, 0.0, %v5132
    %v5233 = vsel %vm4840, 0.0, %v5135
    %v5234 = vsel %vm4840, 0.0, %v5138
    %v5235 = vsel %vm4840, 0.0, %v5141
    %v5236 = vsel %vm4840, 0.0, %v5144
    %v5237 = vsel %vm4840, 0.0, %v5147
    %v5238 = vsel %vm4840, 0.0, %v5150
    %v5239 = vsel %vm4840, 0.0, %v5153
    %v5240 = vsel %vm4840, 0.0, %v5156
    %v5241 = vsel %vm4840, 0.0, %v5159
    %v5242 = vsel %vm4840, 0.0, %v5162
    %v5243 = vsel %vm4840, 0.0, %v5165
    %v5244 = vsel %vm4840, 0.0, %v5168
    %v5245 = vsel %vm4840, 0.0, %v5171
    %v5246 = vsel %vm4840, 0.0, %v5174
    %v5247 = vsel %vm4840, 0.0, %v5177
    %v5248 = vsel %vm4840, 0.0, %v5180
    %v5249 = vsel %vm4840, 0.0, %v5183
    %v5254 = vrot.slane %v4745, 7
    %v5255 = vrot.slane %v4746, 7
    %v5256 = vsel %vm4840, %v5254, %v5255
    %v5257 = vrot.slane %v4777, 7
    %v5258 = vrot.slane %v4778, 7
    %v5259 = vsel %vm4840, %v5257, %v5258
    %v5262 = vsel %vm4840, 0.0, %v5254
    %v5263 = vsel %vm4840, 0.0, %v5257
    %5324 = vrot.lane.b32.xlu0 0.0, 8
    %v5325 = vpop.permute.xlu0 %5324
    %5326 = vrot.lane.b32.xlu0 %v4651, 8
    %v5327 = vpop.permute.xlu0 %5326
    %5328 = vrot.lane.b32.xlu0 %v4652, 8
    %v5329 = vpop.permute.xlu0 %5328
    %5330 = vrot.lane.b32.xlu0 %v4653, 8
    %v5331 = vpop.permute.xlu0 %5330
    %5332 = vrot.lane.b32.xlu0 %v4654, 8
    %v5333 = vpop.permute.xlu0 %5332
    %5334 = vrot.lane.b32.xlu0 %v4655, 8
    %v5335 = vpop.permute.xlu0 %5334
    %5336 = vrot.lane.b32.xlu0 %v4656, 8
    %v5337 = vpop.permute.xlu0 %5336
    %5338 = vrot.lane.b32.xlu0 %v4657, 8
    %v5339 = vpop.permute.xlu0 %5338
    %5340 = vrot.lane.b32.xlu0 %v4658, 8
    %v5341 = vpop.permute.xlu0 %5340
    %5342 = vrot.lane.b32.xlu0 %v4659, 8
    %v5343 = vpop.permute.xlu0 %5342
    %5344 = vrot.lane.b32.xlu0 %v4660, 8
    %v5345 = vpop.permute.xlu0 %5344
    %5346 = vrot.lane.b32.xlu0 %v4661, 8
    %v5347 = vpop.permute.xlu0 %5346
    %5348 = vrot.lane.b32.xlu0 %v4662, 8
    %v5349 = vpop.permute.xlu0 %5348
    %5350 = vrot.lane.b32.xlu0 %v4663, 8
    %v5351 = vpop.permute.xlu0 %5350
    %5352 = vrot.lane.b32.xlu0 %v4664, 8
    %v5353 = vpop.permute.xlu0 %5352
    %5354 = vrot.lane.b32.xlu0 %v4665, 8
    %v5355 = vpop.permute.xlu0 %5354
    %5356 = vrot.lane.b32.xlu0 %v4666, 8
    %v5357 = vpop.permute.xlu0 %5356
    %5358 = vrot.lane.b32.xlu0 %v4667, 8
    %v5359 = vpop.permute.xlu0 %5358
    %5360 = vrot.lane.b32.xlu0 %v4668, 8
    %v5361 = vpop.permute.xlu0 %5360
    %5362 = vrot.lane.b32.xlu0 %v4669, 8
    %v5363 = vpop.permute.xlu0 %5362
    %5364 = vrot.lane.b32.xlu0 %v4670, 8
    %v5365 = vpop.permute.xlu0 %5364
    %5366 = vrot.lane.b32.xlu0 %v4671, 8
    %v5367 = vpop.permute.xlu0 %5366
    %5368 = vrot.lane.b32.xlu0 %v4672, 8
    %v5369 = vpop.permute.xlu0 %5368
    %5370 = vrot.lane.b32.xlu0 %v4673, 8
    %v5371 = vpop.permute.xlu0 %5370
    %5372 = vrot.lane.b32.xlu0 %v4674, 8
    %v5373 = vpop.permute.xlu0 %5372
    %5374 = vrot.lane.b32.xlu0 %v4675, 8
    %v5375 = vpop.permute.xlu0 %5374
    %5376 = vrot.lane.b32.xlu0 %v4676, 8
    %v5377 = vpop.permute.xlu0 %5376
    %5378 = vrot.lane.b32.xlu0 %v4677, 8
    %v5379 = vpop.permute.xlu0 %5378
    %5380 = vrot.lane.b32.xlu0 %v4678, 8
    %v5381 = vpop.permute.xlu0 %5380
    %5382 = vrot.lane.b32.xlu0 %v4679, 8
    %v5383 = vpop.permute.xlu0 %5382
    %5384 = vrot.lane.b32.xlu0 %v4680, 8
    %v5385 = vpop.permute.xlu0 %5384
    %5386 = vrot.lane.b32.xlu0 %v4683, 8
    %v5387 = vpop.permute.xlu0 %5386
    %5388 = vrot.lane.b32.xlu0 %v4684, 8
    %v5389 = vpop.permute.xlu0 %5388
    %5390 = vrot.lane.b32.xlu0 %v4685, 8
    %v5391 = vpop.permute.xlu0 %5390
    %5392 = vrot.lane.b32.xlu0 %v4686, 8
    %v5393 = vpop.permute.xlu0 %5392
    %5394 = vrot.lane.b32.xlu0 %v4687, 8
    %v5395 = vpop.permute.xlu0 %5394
    %5396 = vrot.lane.b32.xlu0 %v4688, 8
    %v5397 = vpop.permute.xlu0 %5396
    %5398 = vrot.lane.b32.xlu0 %v4689, 8
    %v5399 = vpop.permute.xlu0 %5398
    %5400 = vrot.lane.b32.xlu0 %v4690, 8
    %v5401 = vpop.permute.xlu0 %5400
    %5402 = vrot.lane.b32.xlu0 %v4691, 8
    %v5403 = vpop.permute.xlu0 %5402
    %5404 = vrot.lane.b32.xlu0 %v4692, 8
    %v5405 = vpop.permute.xlu0 %5404
    %5406 = vrot.lane.b32.xlu0 %v4693, 8
    %v5407 = vpop.permute.xlu0 %5406
    %5408 = vrot.lane.b32.xlu0 %v4694, 8
    %v5409 = vpop.permute.xlu0 %5408
    %5410 = vrot.lane.b32.xlu0 %v4695, 8
    %v5411 = vpop.permute.xlu0 %5410
    %5412 = vrot.lane.b32.xlu0 %v4696, 8
    %v5413 = vpop.permute.xlu0 %5412
    %5414 = vrot.lane.b32.xlu0 %v4697, 8
    %v5415 = vpop.permute.xlu0 %5414
    %5416 = vrot.lane.b32.xlu0 %v4698, 8
    %v5417 = vpop.permute.xlu0 %5416
    %5418 = vrot.lane.b32.xlu0 %v4699, 8
    %v5419 = vpop.permute.xlu0 %5418
    %5420 = vrot.lane.b32.xlu0 %v4700, 8
    %v5421 = vpop.permute.xlu0 %5420
    %5422 = vrot.lane.b32.xlu0 %v4701, 8
    %v5423 = vpop.permute.xlu0 %5422
    %5424 = vrot.lane.b32.xlu0 %v4702, 8
    %v5425 = vpop.permute.xlu0 %5424
    %5426 = vrot.lane.b32.xlu0 %v4703, 8
    %v5427 = vpop.permute.xlu0 %5426
    %5428 = vrot.lane.b32.xlu0 %v4704, 8
    %v5429 = vpop.permute.xlu0 %5428
    %5430 = vrot.lane.b32.xlu0 %v4705, 8
    %v5431 = vpop.permute.xlu0 %5430
    %5432 = vrot.lane.b32.xlu0 %v4706, 8
    %v5433 = vpop.permute.xlu0 %5432
    %5434 = vrot.lane.b32.xlu0 %v4707, 8
    %v5435 = vpop.permute.xlu0 %5434
    %5436 = vrot.lane.b32.xlu0 %v4708, 8
    %v5437 = vpop.permute.xlu0 %5436
    %5438 = vrot.lane.b32.xlu0 %v4709, 8
    %v5439 = vpop.permute.xlu0 %5438
    %5440 = vrot.lane.b32.xlu0 %v4710, 8
    %v5441 = vpop.permute.xlu0 %5440
    %5442 = vrot.lane.b32.xlu0 %v4711, 8
    %v5443 = vpop.permute.xlu0 %5442
    %5444 = vrot.lane.b32.xlu0 %v4712, 8
    %v5445 = vpop.permute.xlu0 %5444
    %5507 = vrot.lane.b32.xlu0 0.0, 16
    %v5508 = vpop.permute.xlu0 %5507
    %5509 = vrot.lane.b32.xlu0 %v4715, 16
    %v5510 = vpop.permute.xlu0 %5509
    %5511 = vrot.lane.b32.xlu0 %v4716, 16
    %v5512 = vpop.permute.xlu0 %5511
    %5513 = vrot.lane.b32.xlu0 %v4717, 16
    %v5514 = vpop.permute.xlu0 %5513
    %5515 = vrot.lane.b32.xlu0 %v4718, 16
    %v5516 = vpop.permute.xlu0 %5515
    %5517 = vrot.lane.b32.xlu0 %v4719, 16
    %v5518 = vpop.permute.xlu0 %5517
    %5519 = vrot.lane.b32.xlu0 %v4720, 16
    %v5520 = vpop.permute.xlu0 %5519
    %5521 = vrot.lane.b32.xlu0 %v4721, 16
    %v5522 = vpop.permute.xlu0 %5521
    %5523 = vrot.lane.b32.xlu0 %v4722, 16
    %v5524 = vpop.permute.xlu0 %5523
    %5525 = vrot.lane.b32.xlu0 %v4723, 16
    %v5526 = vpop.permute.xlu0 %5525
    %5527 = vrot.lane.b32.xlu0 %v4724, 16
    %v5528 = vpop.permute.xlu0 %5527
    %5529 = vrot.lane.b32.xlu0 %v4725, 16
    %v5530 = vpop.permute.xlu0 %5529
    %5531 = vrot.lane.b32.xlu0 %v4726, 16
    %v5532 = vpop.permute.xlu0 %5531
    %5533 = vrot.lane.b32.xlu0 %v4727, 16
    %v5534 = vpop.permute.xlu0 %5533
    %5535 = vrot.lane.b32.xlu0 %v4728, 16
    %v5536 = vpop.permute.xlu0 %5535
    %5537 = vrot.lane.b32.xlu0 %v4729, 16
    %v5538 = vpop.permute.xlu0 %5537
    %5539 = vrot.lane.b32.xlu0 %v4730, 16
    %v5540 = vpop.permute.xlu0 %5539
    %5541 = vrot.lane.b32.xlu0 %v4731, 16
    %v5542 = vpop.permute.xlu0 %5541
    %5543 = vrot.lane.b32.xlu0 %v4732, 16
    %v5544 = vpop.permute.xlu0 %5543
    %5545 = vrot.lane.b32.xlu0 %v4733, 16
    %v5546 = vpop.permute.xlu0 %5545
    %5547 = vrot.lane.b32.xlu0 %v4734, 16
    %v5548 = vpop.permute.xlu0 %5547
    %5549 = vrot.lane.b32.xlu0 %v4735, 16
    %v5550 = vpop.permute.xlu0 %5549
    %5551 = vrot.lane.b32.xlu0 %v4736, 16
    %v5552 = vpop.permute.xlu0 %5551
    %5553 = vrot.lane.b32.xlu0 %v4737, 16
    %v5554 = vpop.permute.xlu0 %5553
    %5555 = vrot.lane.b32.xlu0 %v4738, 16
    %v5556 = vpop.permute.xlu0 %5555
    %5557 = vrot.lane.b32.xlu0 %v4739, 16
    %v5558 = vpop.permute.xlu0 %5557
    %5559 = vrot.lane.b32.xlu0 %v4740, 16
    %v5560 = vpop.permute.xlu0 %5559
    %5561 = vrot.lane.b32.xlu0 %v4741, 16
    %v5562 = vpop.permute.xlu0 %5561
    %5563 = vrot.lane.b32.xlu0 %v4742, 16
    %v5564 = vpop.permute.xlu0 %5563
    %5565 = vrot.lane.b32.xlu0 %v4743, 16
    %v5566 = vpop.permute.xlu0 %5565
    %5567 = vrot.lane.b32.xlu0 %v4744, 16
    %v5568 = vpop.permute.xlu0 %5567
    %5569 = vrot.lane.b32.xlu0 %v4747, 16
    %v5570 = vpop.permute.xlu0 %5569
    %5571 = vrot.lane.b32.xlu0 %v4748, 16
    %v5572 = vpop.permute.xlu0 %5571
    %5573 = vrot.lane.b32.xlu0 %v4749, 16
    %v5574 = vpop.permute.xlu0 %5573
    %5575 = vrot.lane.b32.xlu0 %v4750, 16
    %v5576 = vpop.permute.xlu0 %5575
    %5577 = vrot.lane.b32.xlu0 %v4751, 16
    %v5578 = vpop.permute.xlu0 %5577
    %5579 = vrot.lane.b32.xlu0 %v4752, 16
    %v5580 = vpop.permute.xlu0 %5579
    %5581 = vrot.lane.b32.xlu0 %v4753, 16
    %v5582 = vpop.permute.xlu0 %5581
    %5583 = vrot.lane.b32.xlu0 %v4754, 16
    %v5584 = vpop.permute.xlu0 %5583
    %5585 = vrot.lane.b32.xlu0 %v4755, 16
    %v5586 = vpop.permute.xlu0 %5585
    %5587 = vrot.lane.b32.xlu0 %v4756, 16
    %v5588 = vpop.permute.xlu0 %5587
    %5589 = vrot.lane.b32.xlu0 %v4757, 16
    %v5590 = vpop.permute.xlu0 %5589
    %5591 = vrot.lane.b32.xlu0 %v4758, 16
    %v5592 = vpop.permute.xlu0 %5591
    %5593 = vrot.lane.b32.xlu0 %v4759, 16
    %v5594 = vpop.permute.xlu0 %5593
    %5595 = vrot.lane.b32.xlu0 %v4760, 16
    %v5596 = vpop.permute.xlu0 %5595
    %5597 = vrot.lane.b32.xlu0 %v4761, 16
    %v5598 = vpop.permute.xlu0 %5597
    %5599 = vrot.lane.b32.xlu0 %v4762, 16
    %v5600 = vpop.permute.xlu0 %5599
    %5601 = vrot.lane.b32.xlu0 %v4763, 16
    %v5602 = vpop.permute.xlu0 %5601
    %5603 = vrot.lane.b32.xlu0 %v4764, 16
    %v5604 = vpop.permute.xlu0 %5603
    %5605 = vrot.lane.b32.xlu0 %v4765, 16
    %v5606 = vpop.permute.xlu0 %5605
    %5607 = vrot.lane.b32.xlu0 %v4766, 16
    %v5608 = vpop.permute.xlu0 %5607
    %5609 = vrot.lane.b32.xlu0 %v4767, 16
    %v5610 = vpop.permute.xlu0 %5609
    %5611 = vrot.lane.b32.xlu0 %v4768, 16
    %v5612 = vpop.permute.xlu0 %5611
    %5613 = vrot.lane.b32.xlu0 %v4769, 16
    %v5614 = vpop.permute.xlu0 %5613
    %5615 = vrot.lane.b32.xlu0 %v4770, 16
    %v5616 = vpop.permute.xlu0 %5615
    %5617 = vrot.lane.b32.xlu0 %v4771, 16
    %v5618 = vpop.permute.xlu0 %5617
    %5619 = vrot.lane.b32.xlu0 %v4772, 16
    %v5620 = vpop.permute.xlu0 %5619
    %5621 = vrot.lane.b32.xlu0 %v4773, 16
    %v5622 = vpop.permute.xlu0 %5621
    %5623 = vrot.lane.b32.xlu0 %v4774, 16
    %v5624 = vpop.permute.xlu0 %5623
    %5625 = vrot.lane.b32.xlu0 %v4775, 16
    %v5626 = vpop.permute.xlu0 %5625
    %5627 = vrot.lane.b32.xlu0 %v4776, 16
    %v5628 = vpop.permute.xlu0 %5627
    %5722 = vrot.lane.b32.xlu0 %v5218, 24
    %v5723 = vpop.permute.xlu0 %5722
    %5724 = vrot.lane.b32.xlu0 %v5092, 24
    %v5725 = vpop.permute.xlu0 %5724
    %5726 = vrot.lane.b32.xlu0 %v5219, 24
    %v5727 = vpop.permute.xlu0 %5726
    %5728 = vrot.lane.b32.xlu0 %v5095, 24
    %v5729 = vpop.permute.xlu0 %5728
    %5730 = vrot.lane.b32.xlu0 %v5220, 24
    %v5731 = vpop.permute.xlu0 %5730
    %5732 = vrot.lane.b32.xlu0 %v5098, 24
    %v5733 = vpop.permute.xlu0 %5732
    %5734 = vrot.lane.b32.xlu0 %v5221, 24
    %v5735 = vpop.permute.xlu0 %5734
    %5736 = vrot.lane.b32.xlu0 %v5101, 24
    %v5737 = vpop.permute.xlu0 %5736
    %5738 = vrot.lane.b32.xlu0 %v5222, 24
    %v5739 = vpop.permute.xlu0 %5738
    %5740 = vrot.lane.b32.xlu0 %v5104, 24
    %v5741 = vpop.permute.xlu0 %5740
    %5742 = vrot.lane.b32.xlu0 %v5223, 24
    %v5743 = vpop.permute.xlu0 %5742
    %5744 = vrot.lane.b32.xlu0 %v5107, 24
    %v5745 = vpop.permute.xlu0 %5744
    %5746 = vrot.lane.b32.xlu0 %v5224, 24
    %v5747 = vpop.permute.xlu0 %5746
    %5748 = vrot.lane.b32.xlu0 %v5110, 24
    %v5749 = vpop.permute.xlu0 %5748
    %5750 = vrot.lane.b32.xlu0 %v5225, 24
    %v5751 = vpop.permute.xlu0 %5750
    %5752 = vrot.lane.b32.xlu0 %v5113, 24
    %v5753 = vpop.permute.xlu0 %5752
    %5754 = vrot.lane.b32.xlu0 %v5226, 24
    %v5755 = vpop.permute.xlu0 %5754
    %5756 = vrot.lane.b32.xlu0 %v5116, 24
    %v5757 = vpop.permute.xlu0 %5756
    %5758 = vrot.lane.b32.xlu0 %v5227, 24
    %v5759 = vpop.permute.xlu0 %5758
    %5760 = vrot.lane.b32.xlu0 %v5119, 24
    %v5761 = vpop.permute.xlu0 %5760
    %5762 = vrot.lane.b32.xlu0 %v5228, 24
    %v5763 = vpop.permute.xlu0 %5762
    %5764 = vrot.lane.b32.xlu0 %v5122, 24
    %v5765 = vpop.permute.xlu0 %5764
    %5766 = vrot.lane.b32.xlu0 %v5229, 24
    %v5767 = vpop.permute.xlu0 %5766
    %5768 = vrot.lane.b32.xlu0 %v5125, 24
    %v5769 = vpop.permute.xlu0 %5768
    %5770 = vrot.lane.b32.xlu0 %v5230, 24
    %v5771 = vpop.permute.xlu0 %5770
    %5772 = vrot.lane.b32.xlu0 %v5128, 24
    %v5773 = vpop.permute.xlu0 %5772
    %5774 = vrot.lane.b32.xlu0 %v5231, 24
    %v5775 = vpop.permute.xlu0 %5774
    %5776 = vrot.lane.b32.xlu0 %v5131, 24
    %v5777 = vpop.permute.xlu0 %5776
    %5778 = vrot.lane.b32.xlu0 %v5232, 24
    %v5779 = vpop.permute.xlu0 %5778
    %5780 = vrot.lane.b32.xlu0 %v5134, 24
    %v5781 = vpop.permute.xlu0 %5780
    %5782 = vrot.lane.b32.xlu0 %v5233, 24
    %v5783 = vpop.permute.xlu0 %5782
    %5784 = vrot.lane.b32.xlu0 %v5137, 24
    %v5785 = vpop.permute.xlu0 %5784
    %5786 = vrot.lane.b32.xlu0 %v5234, 24
    %v5787 = vpop.permute.xlu0 %5786
    %5788 = vrot.lane.b32.xlu0 %v5140, 24
    %v5789 = vpop.permute.xlu0 %5788
    %5790 = vrot.lane.b32.xlu0 %v5235, 24
    %v5791 = vpop.permute.xlu0 %5790
    %5792 = vrot.lane.b32.xlu0 %v5143, 24
    %v5793 = vpop.permute.xlu0 %5792
    %5794 = vrot.lane.b32.xlu0 %v5236, 24
    %v5795 = vpop.permute.xlu0 %5794
    %5796 = vrot.lane.b32.xlu0 %v5146, 24
    %v5797 = vpop.permute.xlu0 %5796
    %5798 = vrot.lane.b32.xlu0 %v5237, 24
    %v5799 = vpop.permute.xlu0 %5798
    %5800 = vrot.lane.b32.xlu0 %v5149, 24
    %v5801 = vpop.permute.xlu0 %5800
    %5802 = vrot.lane.b32.xlu0 %v5238, 24
    %v5803 = vpop.permute.xlu0 %5802
    %5804 = vrot.lane.b32.xlu0 %v5152, 24
    %v5805 = vpop.permute.xlu0 %5804
    %5806 = vrot.lane.b32.xlu0 %v5239, 24
    %v5807 = vpop.permute.xlu0 %5806
    %5808 = vrot.lane.b32.xlu0 %v5155, 24
    %v5809 = vpop.permute.xlu0 %5808
    %5810 = vrot.lane.b32.xlu0 %v5240, 24
    %v5811 = vpop.permute.xlu0 %5810
    %5812 = vrot.lane.b32.xlu0 %v5158, 24
    %v5813 = vpop.permute.xlu0 %5812
    %5814 = vrot.lane.b32.xlu0 %v5241, 24
    %v5815 = vpop.permute.xlu0 %5814
    %5816 = vrot.lane.b32.xlu0 %v5161, 24
    %v5817 = vpop.permute.xlu0 %5816
    %5818 = vrot.lane.b32.xlu0 %v5242, 24
    %v5819 = vpop.permute.xlu0 %5818
    %5820 = vrot.lane.b32.xlu0 %v5164, 24
    %v5821 = vpop.permute.xlu0 %5820
    %5822 = vrot.lane.b32.xlu0 %v5243, 24
    %v5823 = vpop.permute.xlu0 %5822
    %5824 = vrot.lane.b32.xlu0 %v5167, 24
    %v5825 = vpop.permute.xlu0 %5824
    %5826 = vrot.lane.b32.xlu0 %v5244, 24
    %v5827 = vpop.permute.xlu0 %5826
    %5828 = vrot.lane.b32.xlu0 %v5170, 24
    %v5829 = vpop.permute.xlu0 %5828
    %5830 = vrot.lane.b32.xlu0 %v5245, 24
    %v5831 = vpop.permute.xlu0 %5830
    %5832 = vrot.lane.b32.xlu0 %v5173, 24
    %v5833 = vpop.permute.xlu0 %5832
    %5834 = vrot.lane.b32.xlu0 %v5246, 24
    %v5835 = vpop.permute.xlu0 %5834
    %5836 = vrot.lane.b32.xlu0 %v5176, 24
    %v5837 = vpop.permute.xlu0 %5836
    %5838 = vrot.lane.b32.xlu0 %v5247, 24
    %v5839 = vpop.permute.xlu0 %5838
    %5840 = vrot.lane.b32.xlu0 %v5179, 24
    %v5841 = vpop.permute.xlu0 %5840
    %5842 = vrot.lane.b32.xlu0 %v5248, 24
    %v5843 = vpop.permute.xlu0 %5842
    %5844 = vrot.lane.b32.xlu0 %v5182, 24
    %v5845 = vpop.permute.xlu0 %5844
    %5846 = vrot.lane.b32.xlu0 %v5249, 24
    %v5847 = vpop.permute.xlu0 %5846
    %5848 = vrot.lane.b32.xlu0 %v5185, 24
    %v5849 = vpop.permute.xlu0 %5848
    %5978 = vrot.lane.b32.xlu0 %v4523, 32
    %v5979 = vpop.permute.xlu0 %5978
    %5980 = vrot.lane.b32.xlu0 %v4524, 32
    %v5981 = vpop.permute.xlu0 %5980
    %5982 = vrot.lane.b32.xlu0 %v4525, 32
    %v5983 = vpop.permute.xlu0 %5982
    %5984 = vrot.lane.b32.xlu0 %v4526, 32
    %v5985 = vpop.permute.xlu0 %5984
    %5986 = vrot.lane.b32.xlu0 %v4527, 32
    %v5987 = vpop.permute.xlu0 %5986
    %5988 = vrot.lane.b32.xlu0 %v4528, 32
    %v5989 = vpop.permute.xlu0 %5988
    %5990 = vrot.lane.b32.xlu0 %v4529, 32
    %v5991 = vpop.permute.xlu0 %5990
    %5992 = vrot.lane.b32.xlu0 %v4530, 32
    %v5993 = vpop.permute.xlu0 %5992
    %5994 = vrot.lane.b32.xlu0 %v4531, 32
    %v5995 = vpop.permute.xlu0 %5994
    %5996 = vrot.lane.b32.xlu0 %v4532, 32
    %v5997 = vpop.permute.xlu0 %5996
    %5998 = vrot.lane.b32.xlu0 %v4533, 32
    %v5999 = vpop.permute.xlu0 %5998
    %6000 = vrot.lane.b32.xlu0 %v4534, 32
    %v6001 = vpop.permute.xlu0 %6000
    %6002 = vrot.lane.b32.xlu0 %v4535, 32
    %v6003 = vpop.permute.xlu0 %6002
    %6004 = vrot.lane.b32.xlu0 %v4536, 32
    %v6005 = vpop.permute.xlu0 %6004
    %6006 = vrot.lane.b32.xlu0 %v4537, 32
    %v6007 = vpop.permute.xlu0 %6006
    %6008 = vrot.lane.b32.xlu0 %v4538, 32
    %v6009 = vpop.permute.xlu0 %6008
    %6010 = vrot.lane.b32.xlu0 %v4539, 32
    %v6011 = vpop.permute.xlu0 %6010
    %6012 = vrot.lane.b32.xlu0 %v4540, 32
    %v6013 = vpop.permute.xlu0 %6012
    %6014 = vrot.lane.b32.xlu0 %v4541, 32
    %v6015 = vpop.permute.xlu0 %6014
    %6016 = vrot.lane.b32.xlu0 %v4542, 32
    %v6017 = vpop.permute.xlu0 %6016
    %6018 = vrot.lane.b32.xlu0 %v4543, 32
    %v6019 = vpop.permute.xlu0 %6018
    %6020 = vrot.lane.b32.xlu0 %v4544, 32
    %v6021 = vpop.permute.xlu0 %6020
    %6022 = vrot.lane.b32.xlu0 %v4545, 32
    %v6023 = vpop.permute.xlu0 %6022
    %6024 = vrot.lane.b32.xlu0 %v4546, 32
    %v6025 = vpop.permute.xlu0 %6024
    %6026 = vrot.lane.b32.xlu0 %v4547, 32
    %v6027 = vpop.permute.xlu0 %6026
    %6028 = vrot.lane.b32.xlu0 %v4548, 32
    %v6029 = vpop.permute.xlu0 %6028
    %6030 = vrot.lane.b32.xlu0 %v4549, 32
    %v6031 = vpop.permute.xlu0 %6030
    %6032 = vrot.lane.b32.xlu0 %v4550, 32
    %v6033 = vpop.permute.xlu0 %6032
    %6034 = vrot.lane.b32.xlu0 %v4551, 32
    %v6035 = vpop.permute.xlu0 %6034
    %6036 = vrot.lane.b32.xlu0 %v4552, 32
    %v6037 = vpop.permute.xlu0 %6036
    %6038 = vrot.lane.b32.xlu0 %v4553, 32
    %v6039 = vpop.permute.xlu0 %6038
    %6040 = vrot.lane.b32.xlu0 %v4554, 32
    %v6041 = vpop.permute.xlu0 %6040
    %6042 = vrot.lane.b32.xlu0 %v4555, 32
    %v6043 = vpop.permute.xlu0 %6042
    %6044 = vrot.lane.b32.xlu0 %v4556, 32
    %v6045 = vpop.permute.xlu0 %6044
    %6046 = vrot.lane.b32.xlu0 %v4557, 32
    %v6047 = vpop.permute.xlu0 %6046
    %6048 = vrot.lane.b32.xlu0 %v4558, 32
    %v6049 = vpop.permute.xlu0 %6048
    %6050 = vrot.lane.b32.xlu0 %v4559, 32
    %v6051 = vpop.permute.xlu0 %6050
    %6052 = vrot.lane.b32.xlu0 %v4560, 32
    %v6053 = vpop.permute.xlu0 %6052
    %6054 = vrot.lane.b32.xlu0 %v4561, 32
    %v6055 = vpop.permute.xlu0 %6054
    %6056 = vrot.lane.b32.xlu0 %v4562, 32
    %v6057 = vpop.permute.xlu0 %6056
    %6058 = vrot.lane.b32.xlu0 %v4563, 32
    %v6059 = vpop.permute.xlu0 %6058
    %6060 = vrot.lane.b32.xlu0 %v4564, 32
    %v6061 = vpop.permute.xlu0 %6060
    %6062 = vrot.lane.b32.xlu0 %v4565, 32
    %v6063 = vpop.permute.xlu0 %6062
    %6064 = vrot.lane.b32.xlu0 %v4566, 32
    %v6065 = vpop.permute.xlu0 %6064
    %6066 = vrot.lane.b32.xlu0 %v4567, 32
    %v6067 = vpop.permute.xlu0 %6066
    %6068 = vrot.lane.b32.xlu0 %v4568, 32
    %v6069 = vpop.permute.xlu0 %6068
    %6070 = vrot.lane.b32.xlu0 %v4569, 32
    %v6071 = vpop.permute.xlu0 %6070
    %6072 = vrot.lane.b32.xlu0 %v4570, 32
    %v6073 = vpop.permute.xlu0 %6072
    %6074 = vrot.lane.b32.xlu0 %v4571, 32
    %v6075 = vpop.permute.xlu0 %6074
    %6076 = vrot.lane.b32.xlu0 %v4572, 32
    %v6077 = vpop.permute.xlu0 %6076
    %6078 = vrot.lane.b32.xlu0 %v4573, 32
    %v6079 = vpop.permute.xlu0 %6078
    %6080 = vrot.lane.b32.xlu0 %v4574, 32
    %v6081 = vpop.permute.xlu0 %6080
    %6082 = vrot.lane.b32.xlu0 %v4575, 32
    %v6083 = vpop.permute.xlu0 %6082
    %6084 = vrot.lane.b32.xlu0 %v4576, 32
    %v6085 = vpop.permute.xlu0 %6084
    %6086 = vrot.lane.b32.xlu0 %v4577, 32
    %v6087 = vpop.permute.xlu0 %6086
    %6088 = vrot.lane.b32.xlu0 %v4578, 32
    %v6089 = vpop.permute.xlu0 %6088
    %6090 = vrot.lane.b32.xlu0 %v4579, 32
    %v6091 = vpop.permute.xlu0 %6090
    %6092 = vrot.lane.b32.xlu0 %v4580, 32
    %v6093 = vpop.permute.xlu0 %6092
    %6094 = vrot.lane.b32.xlu0 %v4581, 32
    %v6095 = vpop.permute.xlu0 %6094
    %6096 = vrot.lane.b32.xlu0 %v4582, 32
    %v6097 = vpop.permute.xlu0 %6096
    %6098 = vrot.lane.b32.xlu0 %v4583, 32
    %v6099 = vpop.permute.xlu0 %6098
    %6100 = vrot.lane.b32.xlu0 %v4584, 32
    %v6101 = vpop.permute.xlu0 %6100
    %6102 = vrot.lane.b32.xlu0 %v4585, 32
    %v6103 = vpop.permute.xlu0 %6102
    %6104 = vrot.lane.b32.xlu0 %v4586, 32
    %v6105 = vpop.permute.xlu0 %6104
    %6170 = vrot.lane.b32.xlu0 %v4587, 40
    %v6171 = vpop.permute.xlu0 %6170
    %6172 = vrot.lane.b32.xlu0 %v4588, 40
    %v6173 = vpop.permute.xlu0 %6172
    %6174 = vrot.lane.b32.xlu0 %v4589, 40
    %v6175 = vpop.permute.xlu0 %6174
    %6176 = vrot.lane.b32.xlu0 %v4590, 40
    %v6177 = vpop.permute.xlu0 %6176
    %6178 = vrot.lane.b32.xlu0 %v4591, 40
    %v6179 = vpop.permute.xlu0 %6178
    %6180 = vrot.lane.b32.xlu0 %v4592, 40
    %v6181 = vpop.permute.xlu0 %6180
    %6182 = vrot.lane.b32.xlu0 %v4593, 40
    %v6183 = vpop.permute.xlu0 %6182
    %6184 = vrot.lane.b32.xlu0 %v4594, 40
    %v6185 = vpop.permute.xlu0 %6184
    %6186 = vrot.lane.b32.xlu0 %v4595, 40
    %v6187 = vpop.permute.xlu0 %6186
    %6188 = vrot.lane.b32.xlu0 %v4596, 40
    %v6189 = vpop.permute.xlu0 %6188
    %6190 = vrot.lane.b32.xlu0 %v4597, 40
    %v6191 = vpop.permute.xlu0 %6190
    %6192 = vrot.lane.b32.xlu0 %v4598, 40
    %v6193 = vpop.permute.xlu0 %6192
    %6194 = vrot.lane.b32.xlu0 %v4599, 40
    %v6195 = vpop.permute.xlu0 %6194
    %6196 = vrot.lane.b32.xlu0 %v4600, 40
    %v6197 = vpop.permute.xlu0 %6196
    %6198 = vrot.lane.b32.xlu0 %v4601, 40
    %v6199 = vpop.permute.xlu0 %6198
    %6200 = vrot.lane.b32.xlu0 %v4602, 40
    %v6201 = vpop.permute.xlu0 %6200
    %6202 = vrot.lane.b32.xlu0 %v4603, 40
    %v6203 = vpop.permute.xlu0 %6202
    %6204 = vrot.lane.b32.xlu0 %v4604, 40
    %v6205 = vpop.permute.xlu0 %6204
    %6206 = vrot.lane.b32.xlu0 %v4605, 40
    %v6207 = vpop.permute.xlu0 %6206
    %6208 = vrot.lane.b32.xlu0 %v4606, 40
    %v6209 = vpop.permute.xlu0 %6208
    %6210 = vrot.lane.b32.xlu0 %v4607, 40
    %v6211 = vpop.permute.xlu0 %6210
    %6212 = vrot.lane.b32.xlu0 %v4608, 40
    %v6213 = vpop.permute.xlu0 %6212
    %6214 = vrot.lane.b32.xlu0 %v4609, 40
    %v6215 = vpop.permute.xlu0 %6214
    %6216 = vrot.lane.b32.xlu0 %v4610, 40
    %v6217 = vpop.permute.xlu0 %6216
    %6218 = vrot.lane.b32.xlu0 %v4611, 40
    %v6219 = vpop.permute.xlu0 %6218
    %6220 = vrot.lane.b32.xlu0 %v4612, 40
    %v6221 = vpop.permute.xlu0 %6220
    %6222 = vrot.lane.b32.xlu0 %v4613, 40
    %v6223 = vpop.permute.xlu0 %6222
    %6224 = vrot.lane.b32.xlu0 %v4614, 40
    %v6225 = vpop.permute.xlu0 %6224
    %6226 = vrot.lane.b32.xlu0 %v4615, 40
    %v6227 = vpop.permute.xlu0 %6226
    %6228 = vrot.lane.b32.xlu0 %v4616, 40
    %v6229 = vpop.permute.xlu0 %6228
    %6230 = vrot.lane.b32.xlu0 %v4617, 40
    %v6231 = vpop.permute.xlu0 %6230
    %6232 = vrot.lane.b32.xlu0 %v4618, 40
    %v6233 = vpop.permute.xlu0 %6232
    %6234 = vrot.lane.b32.xlu0 %v4619, 40
    %v6235 = vpop.permute.xlu0 %6234
    %6236 = vrot.lane.b32.xlu0 %v4620, 40
    %v6237 = vpop.permute.xlu0 %6236
    %6238 = vrot.lane.b32.xlu0 %v4621, 40
    %v6239 = vpop.permute.xlu0 %6238
    %6240 = vrot.lane.b32.xlu0 %v4622, 40
    %v6241 = vpop.permute.xlu0 %6240
    %6242 = vrot.lane.b32.xlu0 %v4623, 40
    %v6243 = vpop.permute.xlu0 %6242
    %6244 = vrot.lane.b32.xlu0 %v4624, 40
    %v6245 = vpop.permute.xlu0 %6244
    %6246 = vrot.lane.b32.xlu0 %v4625, 40
    %v6247 = vpop.permute.xlu0 %6246
    %6248 = vrot.lane.b32.xlu0 %v4626, 40
    %v6249 = vpop.permute.xlu0 %6248
    %6250 = vrot.lane.b32.xlu0 %v4627, 40
    %v6251 = vpop.permute.xlu0 %6250
    %6252 = vrot.lane.b32.xlu0 %v4628, 40
    %v6253 = vpop.permute.xlu0 %6252
    %6254 = vrot.lane.b32.xlu0 %v4629, 40
    %v6255 = vpop.permute.xlu0 %6254
    %6256 = vrot.lane.b32.xlu0 %v4630, 40
    %v6257 = vpop.permute.xlu0 %6256
    %6258 = vrot.lane.b32.xlu0 %v4631, 40
    %v6259 = vpop.permute.xlu0 %6258
    %6260 = vrot.lane.b32.xlu0 %v4632, 40
    %v6261 = vpop.permute.xlu0 %6260
    %6262 = vrot.lane.b32.xlu0 %v4633, 40
    %v6263 = vpop.permute.xlu0 %6262
    %6264 = vrot.lane.b32.xlu0 %v4634, 40
    %v6265 = vpop.permute.xlu0 %6264
    %6266 = vrot.lane.b32.xlu0 %v4635, 40
    %v6267 = vpop.permute.xlu0 %6266
    %6268 = vrot.lane.b32.xlu0 %v4636, 40
    %v6269 = vpop.permute.xlu0 %6268
    %6270 = vrot.lane.b32.xlu0 %v4637, 40
    %v6271 = vpop.permute.xlu0 %6270
    %6272 = vrot.lane.b32.xlu0 %v4638, 40
    %v6273 = vpop.permute.xlu0 %6272
    %6274 = vrot.lane.b32.xlu0 %v4639, 40
    %v6275 = vpop.permute.xlu0 %6274
    %6276 = vrot.lane.b32.xlu0 %v4640, 40
    %v6277 = vpop.permute.xlu0 %6276
    %6278 = vrot.lane.b32.xlu0 %v4641, 40
    %v6279 = vpop.permute.xlu0 %6278
    %6280 = vrot.lane.b32.xlu0 %v4642, 40
    %v6281 = vpop.permute.xlu0 %6280
    %6282 = vrot.lane.b32.xlu0 %v4643, 40
    %v6283 = vpop.permute.xlu0 %6282
    %6284 = vrot.lane.b32.xlu0 %v4644, 40
    %v6285 = vpop.permute.xlu0 %6284
    %6286 = vrot.lane.b32.xlu0 %v4645, 40
    %v6287 = vpop.permute.xlu0 %6286
    %6288 = vrot.lane.b32.xlu0 %v4646, 40
    %v6289 = vpop.permute.xlu0 %6288
    %6290 = vrot.lane.b32.xlu0 %v4647, 40
    %v6291 = vpop.permute.xlu0 %6290
    %6292 = vrot.lane.b32.xlu0 %v4648, 40
    %v6293 = vpop.permute.xlu0 %6292
    %6294 = vrot.lane.b32.xlu0 %v4649, 40
    %v6295 = vpop.permute.xlu0 %6294
    %6296 = vrot.lane.b32.xlu0 %v4650, 40
    %v6297 = vpop.permute.xlu0 %6296
    %6394 = vrot.lane.b32.xlu0 %v4996, 48
    %v6395 = vpop.permute.xlu0 %6394
    %6396 = vrot.lane.b32.xlu0 %v4845, 48
    %v6397 = vpop.permute.xlu0 %6396
    %6398 = vrot.lane.b32.xlu0 %v4997, 48
    %v6399 = vpop.permute.xlu0 %6398
    %6400 = vrot.lane.b32.xlu0 %v4848, 48
    %v6401 = vpop.permute.xlu0 %6400
    %6402 = vrot.lane.b32.xlu0 %v4998, 48
    %v6403 = vpop.permute.xlu0 %6402
    %6404 = vrot.lane.b32.xlu0 %v4851, 48
    %v6405 = vpop.permute.xlu0 %6404
    %6406 = vrot.lane.b32.xlu0 %v4999, 48
    %v6407 = vpop.permute.xlu0 %6406
    %6408 = vrot.lane.b32.xlu0 %v4854, 48
    %v6409 = vpop.permute.xlu0 %6408
    %6410 = vrot.lane.b32.xlu0 %v5000, 48
    %v6411 = vpop.permute.xlu0 %6410
    %6412 = vrot.lane.b32.xlu0 %v4857, 48
    %v6413 = vpop.permute.xlu0 %6412
    %6414 = vrot.lane.b32.xlu0 %v5001, 48
    %v6415 = vpop.permute.xlu0 %6414
    %6416 = vrot.lane.b32.xlu0 %v4860, 48
    %v6417 = vpop.permute.xlu0 %6416
    %6418 = vrot.lane.b32.xlu0 %v5002, 48
    %v6419 = vpop.permute.xlu0 %6418
    %6420 = vrot.lane.b32.xlu0 %v4863, 48
    %v6421 = vpop.permute.xlu0 %6420
    %6422 = vrot.lane.b32.xlu0 %v5003, 48
    %v6423 = vpop.permute.xlu0 %6422
    %6424 = vrot.lane.b32.xlu0 %v4866, 48
    %v6425 = vpop.permute.xlu0 %6424
    %6426 = vrot.lane.b32.xlu0 %v5004, 48
    %v6427 = vpop.permute.xlu0 %6426
    %6428 = vrot.lane.b32.xlu0 %v4869, 48
    %v6429 = vpop.permute.xlu0 %6428
    %6430 = vrot.lane.b32.xlu0 %v5005, 48
    %v6431 = vpop.permute.xlu0 %6430
    %6432 = vrot.lane.b32.xlu0 %v4872, 48
    %v6433 = vpop.permute.xlu0 %6432
    %6434 = vrot.lane.b32.xlu0 %v5006, 48
    %v6435 = vpop.permute.xlu0 %6434
    %6436 = vrot.lane.b32.xlu0 %v4875, 48
    %v6437 = vpop.permute.xlu0 %6436
    %6438 = vrot.lane.b32.xlu0 %v5007, 48
    %v6439 = vpop.permute.xlu0 %6438
    %6440 = vrot.lane.b32.xlu0 %v4878, 48
    %v6441 = vpop.permute.xlu0 %6440
    %6442 = vrot.lane.b32.xlu0 %v5008, 48
    %v6443 = vpop.permute.xlu0 %6442
    %6444 = vrot.lane.b32.xlu0 %v4881, 48
    %v6445 = vpop.permute.xlu0 %6444
    %6446 = vrot.lane.b32.xlu0 %v5009, 48
    %v6447 = vpop.permute.xlu0 %6446
    %6448 = vrot.lane.b32.xlu0 %v4884, 48
    %v6449 = vpop.permute.xlu0 %6448
    %6450 = vrot.lane.b32.xlu0 %v5010, 48
    %v6451 = vpop.permute.xlu0 %6450
    %6452 = vrot.lane.b32.xlu0 %v4887, 48
    %v6453 = vpop.permute.xlu0 %6452
    %6454 = vrot.lane.b32.xlu0 %v5262, 48
    %v6455 = vpop.permute.xlu0 %6454
    %6456 = vrot.lane.b32.xlu0 %v5256, 48
    %v6457 = vpop.permute.xlu0 %6456
    %6458 = vrot.lane.b32.xlu0 %v5011, 48
    %v6459 = vpop.permute.xlu0 %6458
    %6460 = vrot.lane.b32.xlu0 %v4890, 48
    %v6461 = vpop.permute.xlu0 %6460
    %6462 = vrot.lane.b32.xlu0 %v5012, 48
    %v6463 = vpop.permute.xlu0 %6462
    %6464 = vrot.lane.b32.xlu0 %v4893, 48
    %v6465 = vpop.permute.xlu0 %6464
    %6466 = vrot.lane.b32.xlu0 %v5013, 48
    %v6467 = vpop.permute.xlu0 %6466
    %6468 = vrot.lane.b32.xlu0 %v4896, 48
    %v6469 = vpop.permute.xlu0 %6468
    %6470 = vrot.lane.b32.xlu0 %v5014, 48
    %v6471 = vpop.permute.xlu0 %6470
    %6472 = vrot.lane.b32.xlu0 %v4899, 48
    %v6473 = vpop.permute.xlu0 %6472
    %6474 = vrot.lane.b32.xlu0 %v5015, 48
    %v6475 = vpop.permute.xlu0 %6474
    %6476 = vrot.lane.b32.xlu0 %v4902, 48
    %v6477 = vpop.permute.xlu0 %6476
    %6478 = vrot.lane.b32.xlu0 %v5016, 48
    %v6479 = vpop.permute.xlu0 %6478
    %6480 = vrot.lane.b32.xlu0 %v4905, 48
    %v6481 = vpop.permute.xlu0 %6480
    %6482 = vrot.lane.b32.xlu0 %v5017, 48
    %v6483 = vpop.permute.xlu0 %6482
    %6484 = vrot.lane.b32.xlu0 %v4908, 48
    %v6485 = vpop.permute.xlu0 %6484
    %6486 = vrot.lane.b32.xlu0 %v5018, 48
    %v6487 = vpop.permute.xlu0 %6486
    %6488 = vrot.lane.b32.xlu0 %v4911, 48
    %v6489 = vpop.permute.xlu0 %6488
    %6490 = vrot.lane.b32.xlu0 %v5019, 48
    %v6491 = vpop.permute.xlu0 %6490
    %6492 = vrot.lane.b32.xlu0 %v4914, 48
    %v6493 = vpop.permute.xlu0 %6492
    %6494 = vrot.lane.b32.xlu0 %v5020, 48
    %v6495 = vpop.permute.xlu0 %6494
    %6496 = vrot.lane.b32.xlu0 %v4917, 48
    %v6497 = vpop.permute.xlu0 %6496
    %6498 = vrot.lane.b32.xlu0 %v5021, 48
    %v6499 = vpop.permute.xlu0 %6498
    %6500 = vrot.lane.b32.xlu0 %v4920, 48
    %v6501 = vpop.permute.xlu0 %6500
    %6502 = vrot.lane.b32.xlu0 %v5022, 48
    %v6503 = vpop.permute.xlu0 %6502
    %6504 = vrot.lane.b32.xlu0 %v4923, 48
    %v6505 = vpop.permute.xlu0 %6504
    %6506 = vrot.lane.b32.xlu0 %v5023, 48
    %v6507 = vpop.permute.xlu0 %6506
    %6508 = vrot.lane.b32.xlu0 %v4926, 48
    %v6509 = vpop.permute.xlu0 %6508
    %6510 = vrot.lane.b32.xlu0 %v5024, 48
    %v6511 = vpop.permute.xlu0 %6510
    %6512 = vrot.lane.b32.xlu0 %v4929, 48
    %v6513 = vpop.permute.xlu0 %6512
    %6514 = vrot.lane.b32.xlu0 %v5025, 48
    %v6515 = vpop.permute.xlu0 %6514
    %6516 = vrot.lane.b32.xlu0 %v4932, 48
    %v6517 = vpop.permute.xlu0 %6516
    %6518 = vrot.lane.b32.xlu0 %v5263, 48
    %v6519 = vpop.permute.xlu0 %6518
    %6520 = vrot.lane.b32.xlu0 %v5259, 48
    %v6521 = vpop.permute.xlu0 %6520
    %6590 = vrot.lane.b32.xlu0 %v4651, 56
    %v6591 = vpop.permute.xlu0 %6590
    %6592 = vrot.lane.b32.xlu0 %v4652, 56
    %v6593 = vpop.permute.xlu0 %6592
    %6594 = vrot.lane.b32.xlu0 %v4653, 56
    %v6595 = vpop.permute.xlu0 %6594
    %6596 = vrot.lane.b32.xlu0 %v4654, 56
    %v6597 = vpop.permute.xlu0 %6596
    %6598 = vrot.lane.b32.xlu0 %v4655, 56
    %v6599 = vpop.permute.xlu0 %6598
    %6600 = vrot.lane.b32.xlu0 %v4656, 56
    %v6601 = vpop.permute.xlu0 %6600
    %6602 = vrot.lane.b32.xlu0 %v4657, 56
    %v6603 = vpop.permute.xlu0 %6602
    %6604 = vrot.lane.b32.xlu0 %v4658, 56
    %v6605 = vpop.permute.xlu0 %6604
    %6606 = vrot.lane.b32.xlu0 %v4659, 56
    %v6607 = vpop.permute.xlu0 %6606
    %6608 = vrot.lane.b32.xlu0 %v4660, 56
    %v6609 = vpop.permute.xlu0 %6608
    %6610 = vrot.lane.b32.xlu0 %v4661, 56
    %v6611 = vpop.permute.xlu0 %6610
    %6612 = vrot.lane.b32.xlu0 %v4662, 56
    %v6613 = vpop.permute.xlu0 %6612
    %6614 = vrot.lane.b32.xlu0 %v4663, 56
    %v6615 = vpop.permute.xlu0 %6614
    %6616 = vrot.lane.b32.xlu0 %v4664, 56
    %v6617 = vpop.permute.xlu0 %6616
    %6618 = vrot.lane.b32.xlu0 %v4665, 56
    %v6619 = vpop.permute.xlu0 %6618
    %6620 = vrot.lane.b32.xlu0 %v4666, 56
    %v6621 = vpop.permute.xlu0 %6620
    %6622 = vrot.lane.b32.xlu0 %v4667, 56
    %v6623 = vpop.permute.xlu0 %6622
    %6624 = vrot.lane.b32.xlu0 %v4668, 56
    %v6625 = vpop.permute.xlu0 %6624
    %6626 = vrot.lane.b32.xlu0 %v4669, 56
    %v6627 = vpop.permute.xlu0 %6626
    %6628 = vrot.lane.b32.xlu0 %v4670, 56
    %v6629 = vpop.permute.xlu0 %6628
    %6630 = vrot.lane.b32.xlu0 %v4671, 56
    %v6631 = vpop.permute.xlu0 %6630
    %6632 = vrot.lane.b32.xlu0 %v4672, 56
    %v6633 = vpop.permute.xlu0 %6632
    %6634 = vrot.lane.b32.xlu0 %v4673, 56
    %v6635 = vpop.permute.xlu0 %6634
    %6636 = vrot.lane.b32.xlu0 %v4674, 56
    %v6637 = vpop.permute.xlu0 %6636
    %6638 = vrot.lane.b32.xlu0 %v4675, 56
    %v6639 = vpop.permute.xlu0 %6638
    %6640 = vrot.lane.b32.xlu0 %v4676, 56
    %v6641 = vpop.permute.xlu0 %6640
    %6642 = vrot.lane.b32.xlu0 %v4677, 56
    %v6643 = vpop.permute.xlu0 %6642
    %6644 = vrot.lane.b32.xlu0 %v4678, 56
    %v6645 = vpop.permute.xlu0 %6644
    %6646 = vrot.lane.b32.xlu0 %v4679, 56
    %v6647 = vpop.permute.xlu0 %6646
    %6648 = vrot.lane.b32.xlu0 %v4680, 56
    %v6649 = vpop.permute.xlu0 %6648
    %6650 = vrot.lane.b32.xlu0 %v4681, 56
    %v6651 = vpop.permute.xlu0 %6650
    %6652 = vrot.lane.b32.xlu0 %v4682, 56
    %v6653 = vpop.permute.xlu0 %6652
    %6654 = vrot.lane.b32.xlu0 %v4683, 56
    %v6655 = vpop.permute.xlu0 %6654
    %6656 = vrot.lane.b32.xlu0 %v4684, 56
    %v6657 = vpop.permute.xlu0 %6656
    %6658 = vrot.lane.b32.xlu0 %v4685, 56
    %v6659 = vpop.permute.xlu0 %6658
    %6660 = vrot.lane.b32.xlu0 %v4686, 56
    %v6661 = vpop.permute.xlu0 %6660
    %6662 = vrot.lane.b32.xlu0 %v4687, 56
    %v6663 = vpop.permute.xlu0 %6662
    %6664 = vrot.lane.b32.xlu0 %v4688, 56
    %v6665 = vpop.permute.xlu0 %6664
    %6666 = vrot.lane.b32.xlu0 %v4689, 56
    %v6667 = vpop.permute.xlu0 %6666
    %6668 = vrot.lane.b32.xlu0 %v4690, 56
    %v6669 = vpop.permute.xlu0 %6668
    %6670 = vrot.lane.b32.xlu0 %v4691, 56
    %v6671 = vpop.permute.xlu0 %6670
    %6672 = vrot.lane.b32.xlu0 %v4692, 56
    %v6673 = vpop.permute.xlu0 %6672
    %6674 = vrot.lane.b32.xlu0 %v4693, 56
    %v6675 = vpop.permute.xlu0 %6674
    %6676 = vrot.lane.b32.xlu0 %v4694, 56
    %v6677 = vpop.permute.xlu0 %6676
    %6678 = vrot.lane.b32.xlu0 %v4695, 56
    %v6679 = vpop.permute.xlu0 %6678
    %6680 = vrot.lane.b32.xlu0 %v4696, 56
    %v6681 = vpop.permute.xlu0 %6680
    %6682 = vrot.lane.b32.xlu0 %v4697, 56
    %v6683 = vpop.permute.xlu0 %6682
    %6684 = vrot.lane.b32.xlu0 %v4698, 56
    %v6685 = vpop.permute.xlu0 %6684
    %6686 = vrot.lane.b32.xlu0 %v4699, 56
    %v6687 = vpop.permute.xlu0 %6686
    %6688 = vrot.lane.b32.xlu0 %v4700, 56
    %v6689 = vpop.permute.xlu0 %6688
    %6690 = vrot.lane.b32.xlu0 %v4701, 56
    %v6691 = vpop.permute.xlu0 %6690
    %6692 = vrot.lane.b32.xlu0 %v4702, 56
    %v6693 = vpop.permute.xlu0 %6692
    %6694 = vrot.lane.b32.xlu0 %v4703, 56
    %v6695 = vpop.permute.xlu0 %6694
    %6696 = vrot.lane.b32.xlu0 %v4704, 56
    %v6697 = vpop.permute.xlu0 %6696
    %6698 = vrot.lane.b32.xlu0 %v4705, 56
    %v6699 = vpop.permute.xlu0 %6698
    %6700 = vrot.lane.b32.xlu0 %v4706, 56
    %v6701 = vpop.permute.xlu0 %6700
    %6702 = vrot.lane.b32.xlu0 %v4707, 56
    %v6703 = vpop.permute.xlu0 %6702
    %6704 = vrot.lane.b32.xlu0 %v4708, 56
    %v6705 = vpop.permute.xlu0 %6704
    %6706 = vrot.lane.b32.xlu0 %v4709, 56
    %v6707 = vpop.permute.xlu0 %6706
    %6708 = vrot.lane.b32.xlu0 %v4710, 56
    %v6709 = vpop.permute.xlu0 %6708
    %6710 = vrot.lane.b32.xlu0 %v4711, 56
    %v6711 = vpop.permute.xlu0 %6710
    %6712 = vrot.lane.b32.xlu0 %v4712, 56
    %v6713 = vpop.permute.xlu0 %6712
    %6714 = vrot.lane.b32.xlu0 %v4713, 56
    %v6715 = vpop.permute.xlu0 %6714
    %6716 = vrot.lane.b32.xlu0 %v4714, 56
    %v6717 = vpop.permute.xlu0 %6716
    %6782 = vrot.lane.b32.xlu0 %v4715, 64
    %v6783 = vpop.permute.xlu0 %6782
    %6784 = vrot.lane.b32.xlu0 %v4716, 64
    %v6785 = vpop.permute.xlu0 %6784
    %6786 = vrot.lane.b32.xlu0 %v4717, 64
    %v6787 = vpop.permute.xlu0 %6786
    %6788 = vrot.lane.b32.xlu0 %v4718, 64
    %v6789 = vpop.permute.xlu0 %6788
    %6790 = vrot.lane.b32.xlu0 %v4719, 64
    %v6791 = vpop.permute.xlu0 %6790
    %6792 = vrot.lane.b32.xlu0 %v4720, 64
    %v6793 = vpop.permute.xlu0 %6792
    %6794 = vrot.lane.b32.xlu0 %v4721, 64
    %v6795 = vpop.permute.xlu0 %6794
    %6796 = vrot.lane.b32.xlu0 %v4722, 64
    %v6797 = vpop.permute.xlu0 %6796
    %6798 = vrot.lane.b32.xlu0 %v4723, 64
    %v6799 = vpop.permute.xlu0 %6798
    %6800 = vrot.lane.b32.xlu0 %v4724, 64
    %v6801 = vpop.permute.xlu0 %6800
    %6802 = vrot.lane.b32.xlu0 %v4725, 64
    %v6803 = vpop.permute.xlu0 %6802
    %6804 = vrot.lane.b32.xlu0 %v4726, 64
    %v6805 = vpop.permute.xlu0 %6804
    %6806 = vrot.lane.b32.xlu0 %v4727, 64
    %v6807 = vpop.permute.xlu0 %6806
    %6808 = vrot.lane.b32.xlu0 %v4728, 64
    %v6809 = vpop.permute.xlu0 %6808
    %6810 = vrot.lane.b32.xlu0 %v4729, 64
    %v6811 = vpop.permute.xlu0 %6810
    %6812 = vrot.lane.b32.xlu0 %v4730, 64
    %v6813 = vpop.permute.xlu0 %6812
    %6814 = vrot.lane.b32.xlu0 %v4731, 64
    %v6815 = vpop.permute.xlu0 %6814
    %6816 = vrot.lane.b32.xlu0 %v4732, 64
    %v6817 = vpop.permute.xlu0 %6816
    %6818 = vrot.lane.b32.xlu0 %v4733, 64
    %v6819 = vpop.permute.xlu0 %6818
    %6820 = vrot.lane.b32.xlu0 %v4734, 64
    %v6821 = vpop.permute.xlu0 %6820
    %6822 = vrot.lane.b32.xlu0 %v4735, 64
    %v6823 = vpop.permute.xlu0 %6822
    %6824 = vrot.lane.b32.xlu0 %v4736, 64
    %v6825 = vpop.permute.xlu0 %6824
    %6826 = vrot.lane.b32.xlu0 %v4737, 64
    %v6827 = vpop.permute.xlu0 %6826
    %6828 = vrot.lane.b32.xlu0 %v4738, 64
    %v6829 = vpop.permute.xlu0 %6828
    %6830 = vrot.lane.b32.xlu0 %v4739, 64
    %v6831 = vpop.permute.xlu0 %6830
    %6832 = vrot.lane.b32.xlu0 %v4740, 64
    %v6833 = vpop.permute.xlu0 %6832
    %6834 = vrot.lane.b32.xlu0 %v4741, 64
    %v6835 = vpop.permute.xlu0 %6834
    %6836 = vrot.lane.b32.xlu0 %v4742, 64
    %v6837 = vpop.permute.xlu0 %6836
    %6838 = vrot.lane.b32.xlu0 %v4743, 64
    %v6839 = vpop.permute.xlu0 %6838
    %6840 = vrot.lane.b32.xlu0 %v4744, 64
    %v6841 = vpop.permute.xlu0 %6840
    %6842 = vrot.lane.b32.xlu0 %v4745, 64
    %v6843 = vpop.permute.xlu0 %6842
    %6844 = vrot.lane.b32.xlu0 %v4746, 64
    %v6845 = vpop.permute.xlu0 %6844
    %6846 = vrot.lane.b32.xlu0 %v4747, 64
    %v6847 = vpop.permute.xlu0 %6846
    %6848 = vrot.lane.b32.xlu0 %v4748, 64
    %v6849 = vpop.permute.xlu0 %6848
    %6850 = vrot.lane.b32.xlu0 %v4749, 64
    %v6851 = vpop.permute.xlu0 %6850
    %6852 = vrot.lane.b32.xlu0 %v4750, 64
    %v6853 = vpop.permute.xlu0 %6852
    %6854 = vrot.lane.b32.xlu0 %v4751, 64
    %v6855 = vpop.permute.xlu0 %6854
    %6856 = vrot.lane.b32.xlu0 %v4752, 64
    %v6857 = vpop.permute.xlu0 %6856
    %6858 = vrot.lane.b32.xlu0 %v4753, 64
    %v6859 = vpop.permute.xlu0 %6858
    %6860 = vrot.lane.b32.xlu0 %v4754, 64
    %v6861 = vpop.permute.xlu0 %6860
    %6862 = vrot.lane.b32.xlu0 %v4755, 64
    %v6863 = vpop.permute.xlu0 %6862
    %6864 = vrot.lane.b32.xlu0 %v4756, 64
    %v6865 = vpop.permute.xlu0 %6864
    %6866 = vrot.lane.b32.xlu0 %v4757, 64
    %v6867 = vpop.permute.xlu0 %6866
    %6868 = vrot.lane.b32.xlu0 %v4758, 64
    %v6869 = vpop.permute.xlu0 %6868
    %6870 = vrot.lane.b32.xlu0 %v4759, 64
    %v6871 = vpop.permute.xlu0 %6870
    %6872 = vrot.lane.b32.xlu0 %v4760, 64
    %v6873 = vpop.permute.xlu0 %6872
    %6874 = vrot.lane.b32.xlu0 %v4761, 64
    %v6875 = vpop.permute.xlu0 %6874
    %6876 = vrot.lane.b32.xlu0 %v4762, 64
    %v6877 = vpop.permute.xlu0 %6876
    %6878 = vrot.lane.b32.xlu0 %v4763, 64
    %v6879 = vpop.permute.xlu0 %6878
    %6880 = vrot.lane.b32.xlu0 %v4764, 64
    %v6881 = vpop.permute.xlu0 %6880
    %6882 = vrot.lane.b32.xlu0 %v4765, 64
    %v6883 = vpop.permute.xlu0 %6882
    %6884 = vrot.lane.b32.xlu0 %v4766, 64
    %v6885 = vpop.permute.xlu0 %6884
    %6886 = vrot.lane.b32.xlu0 %v4767, 64
    %v6887 = vpop.permute.xlu0 %6886
    %6888 = vrot.lane.b32.xlu0 %v4768, 64
    %v6889 = vpop.permute.xlu0 %6888
    %6890 = vrot.lane.b32.xlu0 %v4769, 64
    %v6891 = vpop.permute.xlu0 %6890
    %6892 = vrot.lane.b32.xlu0 %v4770, 64
    %v6893 = vpop.permute.xlu0 %6892
    %6894 = vrot.lane.b32.xlu0 %v4771, 64
    %v6895 = vpop.permute.xlu0 %6894
    %6896 = vrot.lane.b32.xlu0 %v4772, 64
    %v6897 = vpop.permute.xlu0 %6896
    %6898 = vrot.lane.b32.xlu0 %v4773, 64
    %v6899 = vpop.permute.xlu0 %6898
    %6900 = vrot.lane.b32.xlu0 %v4774, 64
    %v6901 = vpop.permute.xlu0 %6900
    %6902 = vrot.lane.b32.xlu0 %v4775, 64
    %v6903 = vpop.permute.xlu0 %6902
    %6904 = vrot.lane.b32.xlu0 %v4776, 64
    %v6905 = vpop.permute.xlu0 %6904
    %6906 = vrot.lane.b32.xlu0 %v4777, 64
    %v6907 = vpop.permute.xlu0 %6906
    %6908 = vrot.lane.b32.xlu0 %v4778, 64
    %v6909 = vpop.permute.xlu0 %6908
    %v6974 = vsel %vm2707, %v4995, %v5325
    %v6975 = vsel %vm2707, %v4842, %v5325
    %v6976 = vsel %vm2707, %v4996, %v5327
    %v6977 = vsel %vm2707, %v4845, %v5329
    %v6978 = vsel %vm2707, %v4997, %v5331
    %v6979 = vsel %vm2707, %v4848, %v5333
    %v6980 = vsel %vm2707, %v4998, %v5335
    %v6981 = vsel %vm2707, %v4851, %v5337
    %v6982 = vsel %vm2707, %v4999, %v5339
    %v6983 = vsel %vm2707, %v4854, %v5341
    %v6984 = vsel %vm2707, %v5000, %v5343
    %v6985 = vsel %vm2707, %v4857, %v5345
    %v6986 = vsel %vm2707, %v5001, %v5347
    %v6987 = vsel %vm2707, %v4860, %v5349
    %v6988 = vsel %vm2707, %v5002, %v5351
    %v6989 = vsel %vm2707, %v4863, %v5353
    %v6990 = vsel %vm2707, %v5003, %v5355
    %v6991 = vsel %vm2707, %v4866, %v5357
    %v6992 = vsel %vm2707, %v5004, %v5359
    %v6993 = vsel %vm2707, %v4869, %v5361
    %v6994 = vsel %vm2707, %v5005, %v5363
    %v6995 = vsel %vm2707, %v4872, %v5365
    %v6996 = vsel %vm2707, %v5006, %v5367
    %v6997 = vsel %vm2707, %v4875, %v5369
    %v6998 = vsel %vm2707, %v5007, %v5371
    %v6999 = vsel %vm2707, %v4878, %v5373
    %v7000 = vsel %vm2707, %v5008, %v5375
    %v7001 = vsel %vm2707, %v4881, %v5377
    %v7002 = vsel %vm2707, %v5009, %v5379
    %v7003 = vsel %vm2707, %v4884, %v5381
    %v7004 = vsel %vm2707, %v5010, %v5383
    %v7005 = vsel %vm2707, %v4887, %v5385
    %v7006 = vsel %vm2707, %v5011, %v5387
    %v7007 = vsel %vm2707, %v4890, %v5389
    %v7008 = vsel %vm2707, %v5012, %v5391
    %v7009 = vsel %vm2707, %v4893, %v5393
    %v7010 = vsel %vm2707, %v5013, %v5395
    %v7011 = vsel %vm2707, %v4896, %v5397
    %v7012 = vsel %vm2707, %v5014, %v5399
    %v7013 = vsel %vm2707, %v4899, %v5401
    %v7014 = vsel %vm2707, %v5015, %v5403
    %v7015 = vsel %vm2707, %v4902, %v5405
    %v7016 = vsel %vm2707, %v5016, %v5407
    %v7017 = vsel %vm2707, %v4905, %v5409
    %v7018 = vsel %vm2707, %v5017, %v5411
    %v7019 = vsel %vm2707, %v4908, %v5413
    %v7020 = vsel %vm2707, %v5018, %v5415
    %v7021 = vsel %vm2707, %v4911, %v5417
    %v7022 = vsel %vm2707, %v5019, %v5419
    %v7023 = vsel %vm2707, %v4914, %v5421
    %v7024 = vsel %vm2707, %v5020, %v5423
    %v7025 = vsel %vm2707, %v4917, %v5425
    %v7026 = vsel %vm2707, %v5021, %v5427
    %v7027 = vsel %vm2707, %v4920, %v5429
    %v7028 = vsel %vm2707, %v5022, %v5431
    %v7029 = vsel %vm2707, %v4923, %v5433
    %v7030 = vsel %vm2707, %v5023, %v5435
    %v7031 = vsel %vm2707, %v4926, %v5437
    %v7032 = vsel %vm2707, %v5024, %v5439
    %v7033 = vsel %vm2707, %v4929, %v5441
    %v7034 = vsel %vm2707, %v5025, %v5443
    %v7035 = vsel %vm2707, %v4932, %v5445
    %vm7036 = vcmask 130048
    %v7037 = vsel %vm7036, %v6974, %v5508
    %v7038 = vsel %vm7036, %v6975, %v5508
    %v7039 = vsel %vm7036, %v6976, %v5510
    %v7040 = vsel %vm7036, %v6977, %v5512
    %v7041 = vsel %vm7036, %v6978, %v5514
    %v7042 = vsel %vm7036, %v6979, %v5516
    %v7043 = vsel %vm7036, %v6980, %v5518
    %v7044 = vsel %vm7036, %v6981, %v5520
    %v7045 = vsel %vm7036, %v6982, %v5522
    %v7046 = vsel %vm7036, %v6983, %v5524
    %v7047 = vsel %vm7036, %v6984, %v5526
    %v7048 = vsel %vm7036, %v6985, %v5528
    %v7049 = vsel %vm7036, %v6986, %v5530
    %v7050 = vsel %vm7036, %v6987, %v5532
    %v7051 = vsel %vm7036, %v6988, %v5534
    %v7052 = vsel %vm7036, %v6989, %v5536
    %v7053 = vsel %vm7036, %v6990, %v5538
    %v7054 = vsel %vm7036, %v6991, %v5540
    %v7055 = vsel %vm7036, %v6992, %v5542
    %v7056 = vsel %vm7036, %v6993, %v5544
    %v7057 = vsel %vm7036, %v6994, %v5546
    %v7058 = vsel %vm7036, %v6995, %v5548
    %v7059 = vsel %vm7036, %v6996, %v5550
    %v7060 = vsel %vm7036, %v6997, %v5552
    %v7061 = vsel %vm7036, %v6998, %v5554
    %v7062 = vsel %vm7036, %v6999, %v5556
    %v7063 = vsel %vm7036, %v7000, %v5558
    %v7064 = vsel %vm7036, %v7001, %v5560
    %v7065 = vsel %vm7036, %v7002, %v5562
    %v7066 = vsel %vm7036, %v7003, %v5564
    %v7067 = vsel %vm7036, %v7004, %v5566
    %v7068 = vsel %vm7036, %v7005, %v5568
    %v7069 = vsel %vm7036, %v7006, %v5570
    %v7070 = vsel %vm7036, %v7007, %v5572
    %v7071 = vsel %vm7036, %v7008, %v5574
    %v7072 = vsel %vm7036, %v7009, %v5576
    %v7073 = vsel %vm7036, %v7010, %v5578
    %v7074 = vsel %vm7036, %v7011, %v5580
    %v7075 = vsel %vm7036, %v7012, %v5582
    %v7076 = vsel %vm7036, %v7013, %v5584
    %v7077 = vsel %vm7036, %v7014, %v5586
    %v7078 = vsel %vm7036, %v7015, %v5588
    %v7079 = vsel %vm7036, %v7016, %v5590
    %v7080 = vsel %vm7036, %v7017, %v5592
    %v7081 = vsel %vm7036, %v7018, %v5594
    %v7082 = vsel %vm7036, %v7019, %v5596
    %v7083 = vsel %vm7036, %v7020, %v5598
    %v7084 = vsel %vm7036, %v7021, %v5600
    %v7085 = vsel %vm7036, %v7022, %v5602
    %v7086 = vsel %vm7036, %v7023, %v5604
    %v7087 = vsel %vm7036, %v7024, %v5606
    %v7088 = vsel %vm7036, %v7025, %v5608
    %v7089 = vsel %vm7036, %v7026, %v5610
    %v7090 = vsel %vm7036, %v7027, %v5612
    %v7091 = vsel %vm7036, %v7028, %v5614
    %v7092 = vsel %vm7036, %v7029, %v5616
    %v7093 = vsel %vm7036, %v7030, %v5618
    %v7094 = vsel %vm7036, %v7031, %v5620
    %v7095 = vsel %vm7036, %v7032, %v5622
    %v7096 = vsel %vm7036, %v7033, %v5624
    %v7097 = vsel %vm7036, %v7034, %v5626
    %v7098 = vsel %vm7036, %v7035, %v5628
    %vm7099 = vcmask 195584
    %v7100 = vsel %vm7099, %v7037, %v5723
    %v7101 = vsel %vm7099, %v7038, %v5725
    %v7102 = vsel %vm7099, %v7039, %v5727
    %v7103 = vsel %vm7099, %v7040, %v5729
    %v7104 = vsel %vm7099, %v7041, %v5731
    %v7105 = vsel %vm7099, %v7042, %v5733
    %v7106 = vsel %vm7099, %v7043, %v5735
    %v7107 = vsel %vm7099, %v7044, %v5737
    %v7108 = vsel %vm7099, %v7045, %v5739
    %v7109 = vsel %vm7099, %v7046, %v5741
    %v7110 = vsel %vm7099, %v7047, %v5743
    %v7111 = vsel %vm7099, %v7048, %v5745
    %v7112 = vsel %vm7099, %v7049, %v5747
    %v7113 = vsel %vm7099, %v7050, %v5749
    %v7114 = vsel %vm7099, %v7051, %v5751
    %v7115 = vsel %vm7099, %v7052, %v5753
    %v7116 = vsel %vm7099, %v7053, %v5755
    %v7117 = vsel %vm7099, %v7054, %v5757
    %v7118 = vsel %vm7099, %v7055, %v5759
    %v7119 = vsel %vm7099, %v7056, %v5761
    %v7120 = vsel %vm7099, %v7057, %v5763
    %v7121 = vsel %vm7099, %v7058, %v5765
    %v7122 = vsel %vm7099, %v7059, %v5767
    %v7123 = vsel %vm7099, %v7060, %v5769
    %v7124 = vsel %vm7099, %v7061, %v5771
    %v7125 = vsel %vm7099, %v7062, %v5773
    %v7126 = vsel %vm7099, %v7063, %v5775
    %v7127 = vsel %vm7099, %v7064, %v5777
    %v7128 = vsel %vm7099, %v7065, %v5779
    %v7129 = vsel %vm7099, %v7066, %v5781
    %v7130 = vsel %vm7099, %v7067, %v5783
    %v7131 = vsel %vm7099, %v7068, %v5785
    %v7132 = vsel %vm7099, %v7037, %v5787
    %v7133 = vsel %vm7099, %v7038, %v5789
    %v7134 = vsel %vm7099, %v7069, %v5791
    %v7135 = vsel %vm7099, %v7070, %v5793
    %v7136 = vsel %vm7099, %v7071, %v5795
    %v7137 = vsel %vm7099, %v7072, %v5797
    %v7138 = vsel %vm7099, %v7073, %v5799
    %v7139 = vsel %vm7099, %v7074, %v5801
    %v7140 = vsel %vm7099, %v7075, %v5803
    %v7141 = vsel %vm7099, %v7076, %v5805
    %v7142 = vsel %vm7099, %v7077, %v5807
    %v7143 = vsel %vm7099, %v7078, %v5809
    %v7144 = vsel %vm7099, %v7079, %v5811
    %v7145 = vsel %vm7099, %v7080, %v5813
    %v7146 = vsel %vm7099, %v7081, %v5815
    %v7147 = vsel %vm7099, %v7082, %v5817
    %v7148 = vsel %vm7099, %v7083, %v5819
    %v7149 = vsel %vm7099, %v7084, %v5821
    %v7150 = vsel %vm7099, %v7085, %v5823
    %v7151 = vsel %vm7099, %v7086, %v5825
    %v7152 = vsel %vm7099, %v7087, %v5827
    %v7153 = vsel %vm7099, %v7088, %v5829
    %v7154 = vsel %vm7099, %v7089, %v5831
    %v7155 = vsel %vm7099, %v7090, %v5833
    %v7156 = vsel %vm7099, %v7091, %v5835
    %v7157 = vsel %vm7099, %v7092, %v5837
    %v7158 = vsel %vm7099, %v7093, %v5839
    %v7159 = vsel %vm7099, %v7094, %v5841
    %v7160 = vsel %vm7099, %v7095, %v5843
    %v7161 = vsel %vm7099, %v7096, %v5845
    %v7162 = vsel %vm7099, %v7097, %v5847
    %v7163 = vsel %vm7099, %v7098, %v5849
    %vm7164 = vcmask 261120
    %v7165 = vsel %vm7164, %v7100, %v5979
    %v7166 = vsel %vm7164, %v7101, %v5981
    %v7167 = vsel %vm7164, %v7102, %v5983
    %v7168 = vsel %vm7164, %v7103, %v5985
    %v7169 = vsel %vm7164, %v7104, %v5987
    %v7170 = vsel %vm7164, %v7105, %v5989
    %v7171 = vsel %vm7164, %v7106, %v5991
    %v7172 = vsel %vm7164, %v7107, %v5993
    %v7173 = vsel %vm7164, %v7108, %v5995
    %v7174 = vsel %vm7164, %v7109, %v5997
    %v7175 = vsel %vm7164, %v7110, %v5999
    %v7176 = vsel %vm7164, %v7111, %v6001
    %v7177 = vsel %vm7164, %v7112, %v6003
    %v7178 = vsel %vm7164, %v7113, %v6005
    %v7179 = vsel %vm7164, %v7114, %v6007
    %v7180 = vsel %vm7164, %v7115, %v6009
    %v7181 = vsel %vm7164, %v7116, %v6011
    %v7182 = vsel %vm7164, %v7117, %v6013
    %v7183 = vsel %vm7164, %v7118, %v6015
    %v7184 = vsel %vm7164, %v7119, %v6017
    %v7185 = vsel %vm7164, %v7120, %v6019
    %v7186 = vsel %vm7164, %v7121, %v6021
    %v7187 = vsel %vm7164, %v7122, %v6023
    %v7188 = vsel %vm7164, %v7123, %v6025
    %v7189 = vsel %vm7164, %v7124, %v6027
    %v7190 = vsel %vm7164, %v7125, %v6029
    %v7191 = vsel %vm7164, %v7126, %v6031
    %v7192 = vsel %vm7164, %v7127, %v6033
    %v7193 = vsel %vm7164, %v7128, %v6035
    %v7194 = vsel %vm7164, %v7129, %v6037
    %v7195 = vsel %vm7164, %v7130, %v6039
    %v7196 = vsel %vm7164, %v7131, %v6041
    %v7197 = vsel %vm7164, %v7132, %v6043
    %v7198 = vsel %vm7164, %v7133, %v6045
    %v7199 = vsel %vm7164, %v7134, %v6047
    %v7200 = vsel %vm7164, %v7135, %v6049
    %v7201 = vsel %vm7164, %v7136, %v6051
    %v7202 = vsel %vm7164, %v7137, %v6053
    %v7203 = vsel %vm7164, %v7138, %v6055
    %v7204 = vsel %vm7164, %v7139, %v6057
    %v7205 = vsel %vm7164, %v7140, %v6059
    %v7206 = vsel %vm7164, %v7141, %v6061
    %v7207 = vsel %vm7164, %v7142, %v6063
    %v7208 = vsel %vm7164, %v7143, %v6065
    %v7209 = vsel %vm7164, %v7144, %v6067
    %v7210 = vsel %vm7164, %v7145, %v6069
    %v7211 = vsel %vm7164, %v7146, %v6071
    %v7212 = vsel %vm7164, %v7147, %v6073
    %v7213 = vsel %vm7164, %v7148, %v6075
    %v7214 = vsel %vm7164, %v7149, %v6077
    %v7215 = vsel %vm7164, %v7150, %v6079
    %v7216 = vsel %vm7164, %v7151, %v6081
    %v7217 = vsel %vm7164, %v7152, %v6083
    %v7218 = vsel %vm7164, %v7153, %v6085
    %v7219 = vsel %vm7164, %v7154, %v6087
    %v7220 = vsel %vm7164, %v7155, %v6089
    %v7221 = vsel %vm7164, %v7156, %v6091
    %v7222 = vsel %vm7164, %v7157, %v6093
    %v7223 = vsel %vm7164, %v7158, %v6095
    %v7224 = vsel %vm7164, %v7159, %v6097
    %v7225 = vsel %vm7164, %v7160, %v6099
    %v7226 = vsel %vm7164, %v7161, %v6101
    %v7227 = vsel %vm7164, %v7162, %v6103
    %v7228 = vsel %vm7164, %v7163, %v6105
    %vm7229 = vcmask 326656
    %v7230 = vsel %vm7229, %v7165, %v6171
    %v7231 = vsel %vm7229, %v7166, %v6173
    %v7232 = vsel %vm7229, %v7167, %v6175
    %v7233 = vsel %vm7229, %v7168, %v6177
    %v7234 = vsel %vm7229, %v7169, %v6179
    %v7235 = vsel %vm7229, %v7170, %v6181
    %v7236 = vsel %vm7229, %v7171, %v6183
    %v7237 = vsel %vm7229, %v7172, %v6185
    %v7238 = vsel %vm7229, %v7173, %v6187
    %v7239 = vsel %vm7229, %v7174, %v6189
    %v7240 = vsel %vm7229, %v7175, %v6191
    %v7241 = vsel %vm7229, %v7176, %v6193
    %v7242 = vsel %vm7229, %v7177, %v6195
    %v7243 = vsel %vm7229, %v7178, %v6197
    %v7244 = vsel %vm7229, %v7179, %v6199
    %v7245 = vsel %vm7229, %v7180, %v6201
    %v7246 = vsel %vm7229, %v7181, %v6203
    %v7247 = vsel %vm7229, %v7182, %v6205
    %v7248 = vsel %vm7229, %v7183, %v6207
    %v7249 = vsel %vm7229, %v7184, %v6209
    %v7250 = vsel %vm7229, %v7185, %v6211
    %v7251 = vsel %vm7229, %v7186, %v6213
    %v7252 = vsel %vm7229, %v7187, %v6215
    %v7253 = vsel %vm7229, %v7188, %v6217
    %v7254 = vsel %vm7229, %v7189, %v6219
    %v7255 = vsel %vm7229, %v7190, %v6221
    %v7256 = vsel %vm7229, %v7191, %v6223
    %v7257 = vsel %vm7229, %v7192, %v6225
    %v7258 = vsel %vm7229, %v7193, %v6227
    %v7259 = vsel %vm7229, %v7194, %v6229
    %v7260 = vsel %vm7229, %v7195, %v6231
    %v7261 = vsel %vm7229, %v7196, %v6233
    %v7262 = vsel %vm7229, %v7197, %v6235
    %v7263 = vsel %vm7229, %v7198, %v6237
    %v7264 = vsel %vm7229, %v7199, %v6239
    %v7265 = vsel %vm7229, %v7200, %v6241
    %v7266 = vsel %vm7229, %v7201, %v6243
    %v7267 = vsel %vm7229, %v7202, %v6245
    %v7268 = vsel %vm7229, %v7203, %v6247
    %v7269 = vsel %vm7229, %v7204, %v6249
    %v7270 = vsel %vm7229, %v7205, %v6251
    %v7271 = vsel %vm7229, %v7206, %v6253
    %v7272 = vsel %vm7229, %v7207, %v6255
    %v7273 = vsel %vm7229, %v7208, %v6257
    %v7274 = vsel %vm7229, %v7209, %v6259
    %v7275 = vsel %vm7229, %v7210, %v6261
    %v7276 = vsel %vm7229, %v7211, %v6263
    %v7277 = vsel %vm7229, %v7212, %v6265
    %v7278 = vsel %vm7229, %v7213, %v6267
    %v7279 = vsel %vm7229, %v7214, %v6269
    %v7280 = vsel %vm7229, %v7215, %v6271
    %v7281 = vsel %vm7229, %v7216, %v6273
    %v7282 = vsel %vm7229, %v7217, %v6275
    %v7283 = vsel %vm7229, %v7218, %v6277
    %v7284 = vsel %vm7229, %v7219, %v6279
    %v7285 = vsel %vm7229, %v7220, %v6281
    %v7286 = vsel %vm7229, %v7221, %v6283
    %v7287 = vsel %vm7229, %v7222, %v6285
    %v7288 = vsel %vm7229, %v7223, %v6287
    %v7289 = vsel %vm7229, %v7224, %v6289
    %v7290 = vsel %vm7229, %v7225, %v6291
    %v7291 = vsel %vm7229, %v7226, %v6293
    %v7292 = vsel %vm7229, %v7227, %v6295
    %v7293 = vsel %vm7229, %v7228, %v6297
    %vm7294 = vcmask 392192
    %v7295 = vsel %vm7294, %v7230, %v6395
    %v7296 = vsel %vm7294, %v7231, %v6397
    %v7297 = vsel %vm7294, %v7232, %v6399
    %v7298 = vsel %vm7294, %v7233, %v6401
    %v7299 = vsel %vm7294, %v7234, %v6403
    %v7300 = vsel %vm7294, %v7235, %v6405
    %v7301 = vsel %vm7294, %v7236, %v6407
    %v7302 = vsel %vm7294, %v7237, %v6409
    %v7303 = vsel %vm7294, %v7238, %v6411
    %v7304 = vsel %vm7294, %v7239, %v6413
    %v7305 = vsel %vm7294, %v7240, %v6415
    %v7306 = vsel %vm7294, %v7241, %v6417
    %v7307 = vsel %vm7294, %v7242, %v6419
    %v7308 = vsel %vm7294, %v7243, %v6421
    %v7309 = vsel %vm7294, %v7244, %v6423
    %v7310 = vsel %vm7294, %v7245, %v6425
    %v7311 = vsel %vm7294, %v7246, %v6427
    %v7312 = vsel %vm7294, %v7247, %v6429
    %v7313 = vsel %vm7294, %v7248, %v6431
    %v7314 = vsel %vm7294, %v7249, %v6433
    %v7315 = vsel %vm7294, %v7250, %v6435
    %v7316 = vsel %vm7294, %v7251, %v6437
    %v7317 = vsel %vm7294, %v7252, %v6439
    %v7318 = vsel %vm7294, %v7253, %v6441
    %v7319 = vsel %vm7294, %v7254, %v6443
    %v7320 = vsel %vm7294, %v7255, %v6445
    %v7321 = vsel %vm7294, %v7256, %v6447
    %v7322 = vsel %vm7294, %v7257, %v6449
    %v7323 = vsel %vm7294, %v7258, %v6451
    %v7324 = vsel %vm7294, %v7259, %v6453
    %v7325 = vsel %vm7294, %v7260, %v6455
    %v7326 = vsel %vm7294, %v7261, %v6457
    %v7327 = vsel %vm7294, %v7262, %v6459
    %v7328 = vsel %vm7294, %v7263, %v6461
    %v7329 = vsel %vm7294, %v7264, %v6463
    %v7330 = vsel %vm7294, %v7265, %v6465
    %v7331 = vsel %vm7294, %v7266, %v6467
    %v7332 = vsel %vm7294, %v7267, %v6469
    %v7333 = vsel %vm7294, %v7268, %v6471
    %v7334 = vsel %vm7294, %v7269, %v6473
    %v7335 = vsel %vm7294, %v7270, %v6475
    %v7336 = vsel %vm7294, %v7271, %v6477
    %v7337 = vsel %vm7294, %v7272, %v6479
    %v7338 = vsel %vm7294, %v7273, %v6481
    %v7339 = vsel %vm7294, %v7274, %v6483
    %v7340 = vsel %vm7294, %v7275, %v6485
    %v7341 = vsel %vm7294, %v7276, %v6487
    %v7342 = vsel %vm7294, %v7277, %v6489
    %v7343 = vsel %vm7294, %v7278, %v6491
    %v7344 = vsel %vm7294, %v7279, %v6493
    %v7345 = vsel %vm7294, %v7280, %v6495
    %v7346 = vsel %vm7294, %v7281, %v6497
    %v7347 = vsel %vm7294, %v7282, %v6499
    %v7348 = vsel %vm7294, %v7283, %v6501
    %v7349 = vsel %vm7294, %v7284, %v6503
    %v7350 = vsel %vm7294, %v7285, %v6505
    %v7351 = vsel %vm7294, %v7286, %v6507
    %v7352 = vsel %vm7294, %v7287, %v6509
    %v7353 = vsel %vm7294, %v7288, %v6511
    %v7354 = vsel %vm7294, %v7289, %v6513
    %v7355 = vsel %vm7294, %v7290, %v6515
    %v7356 = vsel %vm7294, %v7291, %v6517
    %v7357 = vsel %vm7294, %v7292, %v6519
    %v7358 = vsel %vm7294, %v7293, %v6521
    %vm7359 = vcmask 457728
    %v7360 = vsel %vm7359, %v7295, %v6591
    %v7361 = vsel %vm7359, %v7296, %v6593
    %v7362 = vsel %vm7359, %v7297, %v6595
    %v7363 = vsel %vm7359, %v7298, %v6597
    %v7364 = vsel %vm7359, %v7299, %v6599
    %v7365 = vsel %vm7359, %v7300, %v6601
    %v7366 = vsel %vm7359, %v7301, %v6603
    %v7367 = vsel %vm7359, %v7302, %v6605
    %v7368 = vsel %vm7359, %v7303, %v6607
    %v7369 = vsel %vm7359, %v7304, %v6609
    %v7370 = vsel %vm7359, %v7305, %v6611
    %v7371 = vsel %vm7359, %v7306, %v6613
    %v7372 = vsel %vm7359, %v7307, %v6615
    %v7373 = vsel %vm7359, %v7308, %v6617
    %v7374 = vsel %vm7359, %v7309, %v6619
    %v7375 = vsel %vm7359, %v7310, %v6621
    %v7376 = vsel %vm7359, %v7311, %v6623
    %v7377 = vsel %vm7359, %v7312, %v6625
    %v7378 = vsel %vm7359, %v7313, %v6627
    %v7379 = vsel %vm7359, %v7314, %v6629
    %v7380 = vsel %vm7359, %v7315, %v6631
    %v7381 = vsel %vm7359, %v7316, %v6633
    %v7382 = vsel %vm7359, %v7317, %v6635
    %v7383 = vsel %vm7359, %v7318, %v6637
    %v7384 = vsel %vm7359, %v7319, %v6639
    %v7385 = vsel %vm7359, %v7320, %v6641
    %v7386 = vsel %vm7359, %v7321, %v6643
    %v7387 = vsel %vm7359, %v7322, %v6645
    %v7388 = vsel %vm7359, %v7323, %v6647
    %v7389 = vsel %vm7359, %v7324, %v6649
    %v7390 = vsel %vm7359, %v7325, %v6651
    %v7391 = vsel %vm7359, %v7326, %v6653
    %v7392 = vsel %vm7359, %v7327, %v6655
    %v7393 = vsel %vm7359, %v7328, %v6657
    %v7394 = vsel %vm7359, %v7329, %v6659
    %v7395 = vsel %vm7359, %v7330, %v6661
    %v7396 = vsel %vm7359, %v7331, %v6663
    %v7397 = vsel %vm7359, %v7332, %v6665
    %v7398 = vsel %vm7359, %v7333, %v6667
    %v7399 = vsel %vm7359, %v7334, %v6669
    %v7400 = vsel %vm7359, %v7335, %v6671
    %v7401 = vsel %vm7359, %v7336, %v6673
    %v7402 = vsel %vm7359, %v7337, %v6675
    %v7403 = vsel %vm7359, %v7338, %v6677
    %v7404 = vsel %vm7359, %v7339, %v6679
    %v7405 = vsel %vm7359, %v7340, %v6681
    %v7406 = vsel %vm7359, %v7341, %v6683
    %v7407 = vsel %vm7359, %v7342, %v6685
    %v7408 = vsel %vm7359, %v7343, %v6687
    %v7409 = vsel %vm7359, %v7344, %v6689
    %v7410 = vsel %vm7359, %v7345, %v6691
    %v7411 = vsel %vm7359, %v7346, %v6693
    %v7412 = vsel %vm7359, %v7347, %v6695
    %v7413 = vsel %vm7359, %v7348, %v6697
    %v7414 = vsel %vm7359, %v7349, %v6699
    %v7415 = vsel %vm7359, %v7350, %v6701
    %v7416 = vsel %vm7359, %v7351, %v6703
    %v7417 = vsel %vm7359, %v7352, %v6705
    %v7418 = vsel %vm7359, %v7353, %v6707
    %v7419 = vsel %vm7359, %v7354, %v6709
    %v7420 = vsel %vm7359, %v7355, %v6711
    %v7421 = vsel %vm7359, %v7356, %v6713
    %v7422 = vsel %vm7359, %v7357, %v6715
    %v7423 = vsel %vm7359, %v7358, %v6717
    %vm7424 = vcmask 523264
    %v7425 = vsel %vm7424, %v7360, %v6783
    %v7426 = vsel %vm7424, %v7361, %v6785
    %v7427 = vsel %vm7424, %v7362, %v6787
    %v7428 = vsel %vm7424, %v7363, %v6789
    %v7429 = vsel %vm7424, %v7364, %v6791
    %v7430 = vsel %vm7424, %v7365, %v6793
    %v7431 = vsel %vm7424, %v7366, %v6795
    %v7432 = vsel %vm7424, %v7367, %v6797
    %v7433 = vsel %vm7424, %v7368, %v6799
    %v7434 = vsel %vm7424, %v7369, %v6801
    %v7435 = vsel %vm7424, %v7370, %v6803
    %v7436 = vsel %vm7424, %v7371, %v6805
    %v7437 = vsel %vm7424, %v7372, %v6807
    %v7438 = vsel %vm7424, %v7373, %v6809
    %v7439 = vsel %vm7424, %v7374, %v6811
    %v7440 = vsel %vm7424, %v7375, %v6813
    %v7441 = vsel %vm7424, %v7376, %v6815
    %v7442 = vsel %vm7424, %v7377, %v6817
    %v7443 = vsel %vm7424, %v7378, %v6819
    %v7444 = vsel %vm7424, %v7379, %v6821
    %v7445 = vsel %vm7424, %v7380, %v6823
    %v7446 = vsel %vm7424, %v7381, %v6825
    %v7447 = vsel %vm7424, %v7382, %v6827
    %v7448 = vsel %vm7424, %v7383, %v6829
    %v7449 = vsel %vm7424, %v7384, %v6831
    %v7450 = vsel %vm7424, %v7385, %v6833
    %v7451 = vsel %vm7424, %v7386, %v6835
    %v7452 = vsel %vm7424, %v7387, %v6837
    %v7453 = vsel %vm7424, %v7388, %v6839
    %v7454 = vsel %vm7424, %v7389, %v6841
    %v7455 = vsel %vm7424, %v7390, %v6843
    %v7456 = vsel %vm7424, %v7391, %v6845
    %v7457 = vsel %vm7424, %v7392, %v6847
    %v7458 = vsel %vm7424, %v7393, %v6849
    %v7459 = vsel %vm7424, %v7394, %v6851
    %v7460 = vsel %vm7424, %v7395, %v6853
    %v7461 = vsel %vm7424, %v7396, %v6855
    %v7462 = vsel %vm7424, %v7397, %v6857
    %v7463 = vsel %vm7424, %v7398, %v6859
    %v7464 = vsel %vm7424, %v7399, %v6861
    %v7465 = vsel %vm7424, %v7400, %v6863
    %v7466 = vsel %vm7424, %v7401, %v6865
    %v7467 = vsel %vm7424, %v7402, %v6867
    %v7468 = vsel %vm7424, %v7403, %v6869
    %v7469 = vsel %vm7424, %v7404, %v6871
    %v7470 = vsel %vm7424, %v7405, %v6873
    %v7471 = vsel %vm7424, %v7406, %v6875
    %v7472 = vsel %vm7424, %v7407, %v6877
    %v7473 = vsel %vm7424, %v7408, %v6879
    %v7474 = vsel %vm7424, %v7409, %v6881
    %v7475 = vsel %vm7424, %v7410, %v6883
    %v7476 = vsel %vm7424, %v7411, %v6885
    %v7477 = vsel %vm7424, %v7412, %v6887
    %v7478 = vsel %vm7424, %v7413, %v6889
    %v7479 = vsel %vm7424, %v7414, %v6891
    %v7480 = vsel %vm7424, %v7415, %v6893
    %v7481 = vsel %vm7424, %v7416, %v6895
    %v7482 = vsel %vm7424, %v7417, %v6897
    %v7483 = vsel %vm7424, %v7418, %v6899
    %v7484 = vsel %vm7424, %v7419, %v6901
    %v7485 = vsel %vm7424, %v7420, %v6903
    %v7486 = vsel %vm7424, %v7421, %v6905
    %v7487 = vsel %vm7424, %v7422, %v6907
    %v7488 = vsel %vm7424, %v7423, %v6909
    %v7489 = vld [vmem:[%s3] sm:$0xff]
    %v7490 = vld [vmem:[%s3 + $0x8] sm:$0xff]
    %v7491 = vld [vmem:[%s3 + $0x10] sm:$0xff]
    %v7492 = vld [vmem:[%s3 + $0x18] sm:$0xff]
    %v7493 = vld [vmem:[%s3 + $0x20] sm:$0xff]
    %v7494 = vld [vmem:[%s3 + $0x28] sm:$0xff]
    %v7495 = vld [vmem:[%s3 + $0x30] sm:$0xff]
    %v7496 = vld [vmem:[%s3 + $0x38] sm:$0xff]
    %v7497 = vld [vmem:[%s3 + $0x40] sm:$0xff]
    %v7498 = vld [vmem:[%s4] sm:$0x1]
    %v7499 = vld [vmem:[%s4 + $0x1] sm:$0x1]
    %v7500 = vld [vmem:[%s4 + $0x2] sm:$0x1]
    %v7501 = vlaneseq
    %v7502 = vshrl.u32 %v7501, 7
    %v7503 = vsub.s32 0, %v7502
    %v7504 = vrot.slane %v7498, %v7503
    %vm7505 = vcmask 588800
    %v7507 = vsel %vm7505, %v7425, 0
    %v7510 = vsel %vm7505, %v7426, 0
    %v7513 = vsel %vm7505, %v7427, 0
    %v7516 = vsel %vm7505, %v7428, 0
    %v7519 = vsel %vm7505, %v7429, 0
    %v7522 = vsel %vm7505, %v7430, 0
    %v7525 = vsel %vm7505, %v7431, 0
    %v7528 = vsel %vm7505, %v7432, 0
    %v7531 = vsel %vm7505, %v7433, 0
    %v7534 = vsel %vm7505, %v7434, 0
    %v7537 = vsel %vm7505, %v7435, 0
    %v7540 = vsel %vm7505, %v7436, 0
    %v7543 = vsel %vm7505, %v7437, 0
    %v7546 = vsel %vm7505, %v7438, 0
    %v7549 = vsel %vm7505, %v7439, 0
    %v7552 = vsel %vm7505, %v7440, 0
    %v7555 = vsel %vm7505, %v7441, 0
    %v7558 = vsel %vm7505, %v7442, 0
    %v7561 = vsel %vm7505, %v7443, 0
    %v7564 = vsel %vm7505, %v7444, 0
    %v7567 = vsel %vm7505, %v7445, 0
    %v7570 = vsel %vm7505, %v7446, 0
    %v7573 = vsel %vm7505, %v7447, 0
    %v7576 = vsel %vm7505, %v7448, 0
    %v7579 = vsel %vm7505, %v7449, 0
    %v7582 = vsel %vm7505, %v7450, 0
    %v7585 = vsel %vm7505, %v7451, 0
    %v7588 = vsel %vm7505, %v7452, 0
    %v7591 = vsel %vm7505, %v7453, 0
    %v7594 = vsel %vm7505, %v7454, 0
    %v7597 = vsel %vm7505, %v7455, 0
    %v7600 = vsel %vm7505, %v7456, 0
    %v7603 = vsel %vm7505, %v7457, 0
    %v7606 = vsel %vm7505, %v7458, 0
    %v7609 = vsel %vm7505, %v7459, 0
    %v7612 = vsel %vm7505, %v7460, 0
    %v7615 = vsel %vm7505, %v7461, 0
    %v7618 = vsel %vm7505, %v7462, 0
    %v7621 = vsel %vm7505, %v7463, 0
    %v7624 = vsel %vm7505, %v7464, 0
    %v7627 = vsel %vm7505, %v7465, 0
    %v7630 = vsel %vm7505, %v7466, 0
    %v7633 = vsel %vm7505, %v7467, 0
    %v7636 = vsel %vm7505, %v7468, 0
    %v7639 = vsel %vm7505, %v7469, 0
    %v7642 = vsel %vm7505, %v7470, 0
    %v7645 = vsel %vm7505, %v7471, 0
    %v7648 = vsel %vm7505, %v7472, 0
    %v7651 = vsel %vm7505, %v7473, 0
    %v7654 = vsel %vm7505, %v7474, 0
    %v7657 = vsel %vm7505, %v7475, 0
    %v7660 = vsel %vm7505, %v7476, 0
    %v7663 = vsel %vm7505, %v7477, 0
    %v7666 = vsel %vm7505, %v7478, 0
    %v7669 = vsel %vm7505, %v7479, 0
    %v7672 = vsel %vm7505, %v7480, 0
    %v7675 = vsel %vm7505, %v7481, 0
    %v7678 = vsel %vm7505, %v7482, 0
    %v7681 = vsel %vm7505, %v7483, 0
    %v7684 = vsel %vm7505, %v7484, 0
    %v7687 = vsel %vm7505, %v7485, 0
    %v7690 = vsel %vm7505, %v7486, 0
    %v7693 = vsel %vm7505, %v7487, 0
    %v7696 = vsel %vm7505, %v7488, 0
    %7698 = vmatprep.subr.mxu0 0.0
    %7699 = vmatpush1.msra.mxu0 0.0
    %7700 = vmatprep.subr.mxu0 0.0
    %7701 = vmatpush1.msra.mxu0 0.0
    %7702 = vmatprep.subr.mxu0 0.0
    %7703 = vmatpush1.msra.mxu0 0.0
    %7704 = vmatprep.subr.mxu0 0.0
    %7705 = vmatpush1.msra.mxu0 0.0
    %7706 = vmatprep.subr.mxu0 0.0
    %7707 = vmatpush1.msra.mxu0 0.0
    %7708 = vmatprep.subr.mxu0 0.0
    %7709 = vmatpush1.msra.mxu0 0.0
    %7710 = vmatprep.subr.mxu0 0.0
    %7711 = vmatpush1.msra.mxu0 0.0
    %7712 = vmatprep.subr.mxu0 0.0
    %7713 = vmatpush1.msra.mxu0 %v7497
    %7714 = vmatprep.subr.mxu0 0.0
    %7715 = vmatpush1.msra.mxu0 %v7496
    %7716 = vmatprep.subr.mxu0 0.0
    %7717 = vmatpush1.msra.mxu0 %v7495
    %7718 = vmatprep.subr.mxu0 0.0
    %7719 = vmatpush1.msra.mxu0 %v7494
    %7720 = vmatprep.subr.mxu0 0.0
    %7721 = vmatpush1.msra.mxu0 %v7493
    %7722 = vmatprep.subr.mxu0 0.0
    %7723 = vmatpush1.msra.mxu0 %v7492
    %7724 = vmatprep.subr.mxu0 0.0
    %7725 = vmatpush1.msra.mxu0 %v7491
    %7726 = vmatprep.subr.mxu0 0.0
    %7727 = vmatpush1.msra.mxu0 %v7490
    %7728 = vmatprep.subr.mxu0 0.0
    %7729 = vmatpush1.msra.mxu0 %v7489
    %7730 = vmatprep.subr.mxu0 0.0
    %7731 = vmatpush2.msra.mxu0 0.0
    %7732 = vmatprep.subr.mxu0 0.0
    %7733 = vmatpush2.msra.mxu0 0.0
    %7734 = vmatprep.subr.mxu0 0.0
    %7735 = vmatpush2.msra.mxu0 0.0
    %7736 = vmatprep.subr.mxu0 0.0
    %7737 = vmatpush2.msra.mxu0 0.0
    %7738 = vmatprep.subr.mxu0 0.0
    %7739 = vmatpush2.msra.mxu0 0.0
    %7740 = vmatprep.subr.mxu0 0.0
    %7741 = vmatpush2.msra.mxu0 0.0
    %7742 = vmatprep.subr.mxu0 0.0
    %7743 = vmatpush2.msra.mxu0 0.0
    %7744 = vmatprep.subr.mxu0 0.0
    %7745 = vmatpush2.msra.mxu0 0.0
    %7746 = vmatprep.subr.mxu0 0.0
    %7747 = vmatpush2.msra.mxu0 0.0
    %7748 = vmatprep.subr.mxu0 0.0
    %7749 = vmatpush2.msra.mxu0 0.0
    %7750 = vmatprep.subr.mxu0 0.0
    %7751 = vmatpush2.msra.mxu0 0.0
    %7752 = vmatprep.subr.mxu0 0.0
    %7753 = vmatpush2.msra.mxu0 0.0
    %7754 = vmatprep.subr.mxu0 0.0
    %7755 = vmatpush2.msra.mxu0 0.0
    %7756 = vmatprep.subr.mxu0 0.0
    %7757 = vmatpush2.msra.mxu0 0.0
    %7758 = vmatprep.subr.mxu0 0.0
    %7759 = vmatpush2.msra.mxu0 0.0
    %7760 = vmatprep.subr.mxu0 0.0
    %7761 = vmatpush2.msra.mxu0 0.0
    %7762 = vmatprep.mubr.f32.mxu0 0.0
    %7763 = vmatmul.mubr.f32.gmra.mxu0 %v7507
    %v7764 = vpop.f32.mrf.mxu0
    %v7765 = vadd.f32 %v7504, %v7764
    %v7766 = vpop.f32.mrf.mxu0
    %7767 = vmatprep.mubr.f32.mxu0 0.0
    %7768 = vmatmul.mubr.f32.gmra.mxu0 %v7510
    %v7769 = vpop.f32.mrf.mxu0
    %v7770 = vadd.f32 %v7504, %v7769
    %v7771 = vpop.f32.mrf.mxu0
    %7772 = vmatprep.mubr.f32.mxu0 0.0
    %7773 = vmatmul.mubr.f32.gmra.mxu0 %v7513
    %v7774 = vpop.f32.mrf.mxu0
    %v7775 = vadd.f32 %v7504, %v7774
    %v7776 = vpop.f32.mrf.mxu0
    %7777 = vmatprep.mubr.f32.mxu0 0.0
    %7778 = vmatmul.mubr.f32.gmra.mxu0 %v7516
    %v7779 = vpop.f32.mrf.mxu0
    %v7780 = vadd.f32 %v7504, %v7779
    %v7781 = vpop.f32.mrf.mxu0
    %7782 = vmatprep.mubr.f32.mxu0 0.0
    %7783 = vmatmul.mubr.f32.gmra.mxu0 %v7519
    %v7784 = vpop.f32.mrf.mxu0
    %v7785 = vadd.f32 %v7504, %v7784
    %v7786 = vpop.f32.mrf.mxu0
    %7787 = vmatprep.mubr.f32.mxu0 0.0
    %7788 = vmatmul.mubr.f32.gmra.mxu0 %v7522
    %v7789 = vpop.f32.mrf.mxu0
    %v7790 = vadd.f32 %v7504, %v7789
    %v7791 = vpop.f32.mrf.mxu0
    %7792 = vmatprep.mubr.f32.mxu0 0.0
    %7793 = vmatmul.mubr.f32.gmra.mxu0 %v7525
    %v7794 = vpop.f32.mrf.mxu0
    %v7795 = vadd.f32 %v7504, %v7794
    %v7796 = vpop.f32.mrf.mxu0
    %7797 = vmatprep.mubr.f32.mxu0 0.0
    %7798 = vmatmul.mubr.f32.gmra.mxu0 %v7528
    %v7799 = vpop.f32.mrf.mxu0
    %v7800 = vadd.f32 %v7504, %v7799
    %v7801 = vpop.f32.mrf.mxu0
    %7802 = vmatprep.mubr.f32.mxu0 0.0
    %7803 = vmatmul.mubr.f32.gmra.mxu0 %v7531
    %v7804 = vpop.f32.mrf.mxu0
    %v7805 = vadd.f32 %v7504, %v7804
    %v7806 = vpop.f32.mrf.mxu0
    %7807 = vmatprep.mubr.f32.mxu0 0.0
    %7808 = vmatmul.mubr.f32.gmra.mxu0 %v7534
    %v7809 = vpop.f32.mrf.mxu0
    %v7810 = vadd.f32 %v7504, %v7809
    %v7811 = vpop.f32.mrf.mxu0
    %7812 = vmatprep.mubr.f32.mxu0 0.0
    %7813 = vmatmul.mubr.f32.gmra.mxu0 %v7537
    %v7814 = vpop.f32.mrf.mxu0
    %v7815 = vadd.f32 %v7504, %v7814
    %v7816 = vpop.f32.mrf.mxu0
    %7817 = vmatprep.mubr.f32.mxu0 0.0
    %7818 = vmatmul.mubr.f32.gmra.mxu0 %v7540
    %v7819 = vpop.f32.mrf.mxu0
    %v7820 = vadd.f32 %v7504, %v7819
    %v7821 = vpop.f32.mrf.mxu0
    %7822 = vmatprep.mubr.f32.mxu0 0.0
    %7823 = vmatmul.mubr.f32.gmra.mxu0 %v7543
    %v7824 = vpop.f32.mrf.mxu0
    %v7825 = vadd.f32 %v7504, %v7824
    %v7826 = vpop.f32.mrf.mxu0
    %7827 = vmatprep.mubr.f32.mxu0 0.0
    %7828 = vmatmul.mubr.f32.gmra.mxu0 %v7546
    %v7829 = vpop.f32.mrf.mxu0
    %v7830 = vadd.f32 %v7504, %v7829
    %v7831 = vpop.f32.mrf.mxu0
    %7832 = vmatprep.mubr.f32.mxu0 0.0
    %7833 = vmatmul.mubr.f32.gmra.mxu0 %v7549
    %v7834 = vpop.f32.mrf.mxu0
    %v7835 = vadd.f32 %v7504, %v7834
    %v7836 = vpop.f32.mrf.mxu0
    %7837 = vmatprep.mubr.f32.mxu0 0.0
    %7838 = vmatmul.mubr.f32.gmra.mxu0 %v7552
    %v7839 = vpop.f32.mrf.mxu0
    %v7840 = vadd.f32 %v7504, %v7839
    %v7841 = vpop.f32.mrf.mxu0
    %7842 = vmatprep.mubr.f32.mxu0 0.0
    %7843 = vmatmul.mubr.f32.gmra.mxu0 %v7555
    %v7844 = vpop.f32.mrf.mxu0
    %v7845 = vadd.f32 %v7504, %v7844
    %v7846 = vpop.f32.mrf.mxu0
    %7847 = vmatprep.mubr.f32.mxu0 0.0
    %7848 = vmatmul.mubr.f32.gmra.mxu0 %v7558
    %v7849 = vpop.f32.mrf.mxu0
    %v7850 = vadd.f32 %v7504, %v7849
    %v7851 = vpop.f32.mrf.mxu0
    %7852 = vmatprep.mubr.f32.mxu0 0.0
    %7853 = vmatmul.mubr.f32.gmra.mxu0 %v7561
    %v7854 = vpop.f32.mrf.mxu0
    %v7855 = vadd.f32 %v7504, %v7854
    %v7856 = vpop.f32.mrf.mxu0
    %7857 = vmatprep.mubr.f32.mxu0 0.0
    %7858 = vmatmul.mubr.f32.gmra.mxu0 %v7564
    %v7859 = vpop.f32.mrf.mxu0
    %v7860 = vadd.f32 %v7504, %v7859
    %v7861 = vpop.f32.mrf.mxu0
    %7862 = vmatprep.mubr.f32.mxu0 0.0
    %7863 = vmatmul.mubr.f32.gmra.mxu0 %v7567
    %v7864 = vpop.f32.mrf.mxu0
    %v7865 = vadd.f32 %v7504, %v7864
    %v7866 = vpop.f32.mrf.mxu0
    %7867 = vmatprep.mubr.f32.mxu0 0.0
    %7868 = vmatmul.mubr.f32.gmra.mxu0 %v7570
    %v7869 = vpop.f32.mrf.mxu0
    %v7870 = vadd.f32 %v7504, %v7869
    %v7871 = vpop.f32.mrf.mxu0
    %7872 = vmatprep.mubr.f32.mxu0 0.0
    %7873 = vmatmul.mubr.f32.gmra.mxu0 %v7573
    %v7874 = vpop.f32.mrf.mxu0
    %v7875 = vadd.f32 %v7504, %v7874
    %v7876 = vpop.f32.mrf.mxu0
    %7877 = vmatprep.mubr.f32.mxu0 0.0
    %7878 = vmatmul.mubr.f32.gmra.mxu0 %v7576
    %v7879 = vpop.f32.mrf.mxu0
    %v7880 = vadd.f32 %v7504, %v7879
    %v7881 = vpop.f32.mrf.mxu0
    %7882 = vmatprep.mubr.f32.mxu0 0.0
    %7883 = vmatmul.mubr.f32.gmra.mxu0 %v7579
    %v7884 = vpop.f32.mrf.mxu0
    %v7885 = vadd.f32 %v7504, %v7884
    %v7886 = vpop.f32.mrf.mxu0
    %7887 = vmatprep.mubr.f32.mxu0 0.0
    %7888 = vmatmul.mubr.f32.gmra.mxu0 %v7582
    %v7889 = vpop.f32.mrf.mxu0
    %v7890 = vadd.f32 %v7504, %v7889
    %v7891 = vpop.f32.mrf.mxu0
    %7892 = vmatprep.mubr.f32.mxu0 0.0
    %7893 = vmatmul.mubr.f32.gmra.mxu0 %v7585
    %v7894 = vpop.f32.mrf.mxu0
    %v7895 = vadd.f32 %v7504, %v7894
    %v7896 = vpop.f32.mrf.mxu0
    %7897 = vmatprep.mubr.f32.mxu0 0.0
    %7898 = vmatmul.mubr.f32.gmra.mxu0 %v7588
    %v7899 = vpop.f32.mrf.mxu0
    %v7900 = vadd.f32 %v7504, %v7899
    %v7901 = vpop.f32.mrf.mxu0
    %7902 = vmatprep.mubr.f32.mxu0 0.0
    %7903 = vmatmul.mubr.f32.gmra.mxu0 %v7591
    %v7904 = vpop.f32.mrf.mxu0
    %v7905 = vadd.f32 %v7504, %v7904
    %v7906 = vpop.f32.mrf.mxu0
    %7907 = vmatprep.mubr.f32.mxu0 0.0
    %7908 = vmatmul.mubr.f32.gmra.mxu0 %v7594
    %v7909 = vpop.f32.mrf.mxu0
    %v7910 = vadd.f32 %v7504, %v7909
    %v7911 = vpop.f32.mrf.mxu0
    %7912 = vmatprep.mubr.f32.mxu0 0.0
    %7913 = vmatmul.mubr.f32.gmra.mxu0 %v7597
    %v7914 = vpop.f32.mrf.mxu0
    %v7915 = vadd.f32 %v7504, %v7914
    %v7916 = vpop.f32.mrf.mxu0
    %7917 = vmatprep.mubr.f32.mxu0 0.0
    %7918 = vmatmul.mubr.f32.gmra.mxu0 %v7600
    %v7919 = vpop.f32.mrf.mxu0
    %v7920 = vadd.f32 %v7504, %v7919
    %v7921 = vpop.f32.mrf.mxu0
    %7922 = vmatprep.mubr.f32.mxu0 0.0
    %7923 = vmatmul.mubr.f32.gmra.mxu0 %v7603
    %v7924 = vpop.f32.mrf.mxu0
    %v7925 = vadd.f32 %v7504, %v7924
    %v7926 = vpop.f32.mrf.mxu0
    %7927 = vmatprep.mubr.f32.mxu0 0.0
    %7928 = vmatmul.mubr.f32.gmra.mxu0 %v7606
    %v7929 = vpop.f32.mrf.mxu0
    %v7930 = vadd.f32 %v7504, %v7929
    %v7931 = vpop.f32.mrf.mxu0
    %7932 = vmatprep.mubr.f32.mxu0 0.0
    %7933 = vmatmul.mubr.f32.gmra.mxu0 %v7609
    %v7934 = vpop.f32.mrf.mxu0
    %v7935 = vadd.f32 %v7504, %v7934
    %v7936 = vpop.f32.mrf.mxu0
    %7937 = vmatprep.mubr.f32.mxu0 0.0
    %7938 = vmatmul.mubr.f32.gmra.mxu0 %v7612
    %v7939 = vpop.f32.mrf.mxu0
    %v7940 = vadd.f32 %v7504, %v7939
    %v7941 = vpop.f32.mrf.mxu0
    %7942 = vmatprep.mubr.f32.mxu0 0.0
    %7943 = vmatmul.mubr.f32.gmra.mxu0 %v7615
    %v7944 = vpop.f32.mrf.mxu0
    %v7945 = vadd.f32 %v7504, %v7944
    %v7946 = vpop.f32.mrf.mxu0
    %7947 = vmatprep.mubr.f32.mxu0 0.0
    %7948 = vmatmul.mubr.f32.gmra.mxu0 %v7618
    %v7949 = vpop.f32.mrf.mxu0
    %v7950 = vadd.f32 %v7504, %v7949
    %v7951 = vpop.f32.mrf.mxu0
    %7952 = vmatprep.mubr.f32.mxu0 0.0
    %7953 = vmatmul.mubr.f32.gmra.mxu0 %v7621
    %v7954 = vpop.f32.mrf.mxu0
    %v7955 = vadd.f32 %v7504, %v7954
    %v7956 = vpop.f32.mrf.mxu0
    %7957 = vmatprep.mubr.f32.mxu0 0.0
    %7958 = vmatmul.mubr.f32.gmra.mxu0 %v7624
    %v7959 = vpop.f32.mrf.mxu0
    %v7960 = vadd.f32 %v7504, %v7959
    %v7961 = vpop.f32.mrf.mxu0
    %7962 = vmatprep.mubr.f32.mxu0 0.0
    %7963 = vmatmul.mubr.f32.gmra.mxu0 %v7627
    %v7964 = vpop.f32.mrf.mxu0
    %v7965 = vadd.f32 %v7504, %v7964
    %v7966 = vpop.f32.mrf.mxu0
    %7967 = vmatprep.mubr.f32.mxu0 0.0
    %7968 = vmatmul.mubr.f32.gmra.mxu0 %v7630
    %v7969 = vpop.f32.mrf.mxu0
    %v7970 = vadd.f32 %v7504, %v7969
    %v7971 = vpop.f32.mrf.mxu0
    %7972 = vmatprep.mubr.f32.mxu0 0.0
    %7973 = vmatmul.mubr.f32.gmra.mxu0 %v7633
    %v7974 = vpop.f32.mrf.mxu0
    %v7975 = vadd.f32 %v7504, %v7974
    %v7976 = vpop.f32.mrf.mxu0
    %7977 = vmatprep.mubr.f32.mxu0 0.0
    %7978 = vmatmul.mubr.f32.gmra.mxu0 %v7636
    %v7979 = vpop.f32.mrf.mxu0
    %v7980 = vadd.f32 %v7504, %v7979
    %v7981 = vpop.f32.mrf.mxu0
    %7982 = vmatprep.mubr.f32.mxu0 0.0
    %7983 = vmatmul.mubr.f32.gmra.mxu0 %v7639
    %v7984 = vpop.f32.mrf.mxu0
    %v7985 = vadd.f32 %v7504, %v7984
    %v7986 = vpop.f32.mrf.mxu0
    %7987 = vmatprep.mubr.f32.mxu0 0.0
    %7988 = vmatmul.mubr.f32.gmra.mxu0 %v7642
    %v7989 = vpop.f32.mrf.mxu0
    %v7990 = vadd.f32 %v7504, %v7989
    %v7991 = vpop.f32.mrf.mxu0
    %7992 = vmatprep.mubr.f32.mxu0 0.0
    %7993 = vmatmul.mubr.f32.gmra.mxu0 %v7645
    %v7994 = vpop.f32.mrf.mxu0
    %v7995 = vadd.f32 %v7504, %v7994
    %v7996 = vpop.f32.mrf.mxu0
    %7997 = vmatprep.mubr.f32.mxu0 0.0
    %7998 = vmatmul.mubr.f32.gmra.mxu0 %v7648
    %v7999 = vpop.f32.mrf.mxu0
    %v8000 = vadd.f32 %v7504, %v7999
    %v8001 = vpop.f32.mrf.mxu0
    %8002 = vmatprep.mubr.f32.mxu0 0.0
    %8003 = vmatmul.mubr.f32.gmra.mxu0 %v7651
    %v8004 = vpop.f32.mrf.mxu0
    %v8005 = vadd.f32 %v7504, %v8004
    %v8006 = vpop.f32.mrf.mxu0
    %8007 = vmatprep.mubr.f32.mxu0 0.0
    %8008 = vmatmul.mubr.f32.gmra.mxu0 %v7654
    %v8009 = vpop.f32.mrf.mxu0
    %v8010 = vadd.f32 %v7504, %v8009
    %v8011 = vpop.f32.mrf.mxu0
    %8012 = vmatprep.mubr.f32.mxu0 0.0
    %8013 = vmatmul.mubr.f32.gmra.mxu0 %v7657
    %v8014 = vpop.f32.mrf.mxu0
    %v8015 = vadd.f32 %v7504, %v8014
    %v8016 = vpop.f32.mrf.mxu0
    %8017 = vmatprep.mubr.f32.mxu0 0.0
    %8018 = vmatmul.mubr.f32.gmra.mxu0 %v7660
    %v8019 = vpop.f32.mrf.mxu0
    %v8020 = vadd.f32 %v7504, %v8019
    %v8021 = vpop.f32.mrf.mxu0
    %8022 = vmatprep.mubr.f32.mxu0 0.0
    %8023 = vmatmul.mubr.f32.gmra.mxu0 %v7663
    %v8024 = vpop.f32.mrf.mxu0
    %v8025 = vadd.f32 %v7504, %v8024
    %v8026 = vpop.f32.mrf.mxu0
    %8027 = vmatprep.mubr.f32.mxu0 0.0
    %8028 = vmatmul.mubr.f32.gmra.mxu0 %v7666
    %v8029 = vpop.f32.mrf.mxu0
    %v8030 = vadd.f32 %v7504, %v8029
    %v8031 = vpop.f32.mrf.mxu0
    %8032 = vmatprep.mubr.f32.mxu0 0.0
    %8033 = vmatmul.mubr.f32.gmra.mxu0 %v7669
    %v8034 = vpop.f32.mrf.mxu0
    %v8035 = vadd.f32 %v7504, %v8034
    %v8036 = vpop.f32.mrf.mxu0
    %8037 = vmatprep.mubr.f32.mxu0 0.0
    %8038 = vmatmul.mubr.f32.gmra.mxu0 %v7672
    %v8039 = vpop.f32.mrf.mxu0
    %v8040 = vadd.f32 %v7504, %v8039
    %v8041 = vpop.f32.mrf.mxu0
    %8042 = vmatprep.mubr.f32.mxu0 0.0
    %8043 = vmatmul.mubr.f32.gmra.mxu0 %v7675
    %v8044 = vpop.f32.mrf.mxu0
    %v8045 = vadd.f32 %v7504, %v8044
    %v8046 = vpop.f32.mrf.mxu0
    %8047 = vmatprep.mubr.f32.mxu0 0.0
    %8048 = vmatmul.mubr.f32.gmra.mxu0 %v7678
    %v8049 = vpop.f32.mrf.mxu0
    %v8050 = vadd.f32 %v7504, %v8049
    %v8051 = vpop.f32.mrf.mxu0
    %8052 = vmatprep.mubr.f32.mxu0 0.0
    %8053 = vmatmul.mubr.f32.gmra.mxu0 %v7681
    %v8054 = vpop.f32.mrf.mxu0
    %v8055 = vadd.f32 %v7504, %v8054
    %v8056 = vpop.f32.mrf.mxu0
    %8057 = vmatprep.mubr.f32.mxu0 0.0
    %8058 = vmatmul.mubr.f32.gmra.mxu0 %v7684
    %v8059 = vpop.f32.mrf.mxu0
    %v8060 = vadd.f32 %v7504, %v8059
    %v8061 = vpop.f32.mrf.mxu0
    %8062 = vmatprep.mubr.f32.mxu0 0.0
    %8063 = vmatmul.mubr.f32.gmra.mxu0 %v7687
    %v8064 = vpop.f32.mrf.mxu0
    %v8065 = vadd.f32 %v7504, %v8064
    %v8066 = vpop.f32.mrf.mxu0
    %8067 = vmatprep.mubr.f32.mxu0 0.0
    %8068 = vmatmul.mubr.f32.gmra.mxu0 %v7690
    %v8069 = vpop.f32.mrf.mxu0
    %v8070 = vadd.f32 %v7504, %v8069
    %v8071 = vpop.f32.mrf.mxu0
    %8072 = vmatprep.mubr.f32.mxu0 0.0
    %8073 = vmatmul.mubr.f32.gmra.mxu0 %v7693
    %v8074 = vpop.f32.mrf.mxu0
    %v8075 = vadd.f32 %v7504, %v8074
    %v8076 = vpop.f32.mrf.mxu0
    %8077 = vmatprep.mubr.f32.mxu0 0.0
    %8078 = vmatmul.mubr.f32.gmra.mxu0 %v7696
    %v8079 = vpop.f32.mrf.mxu0
    %v8080 = vadd.f32 %v7504, %v8079
    %v8081 = vpop.f32.mrf.mxu0
    %8082 = vdwg.mxu0
    %v8083 = vmax.f32 %v7765, 0.0
    %v8084 = vmax.f32 %v7770, 0.0
    %v8085 = vmax.f32 %v7775, 0.0
    %v8086 = vmax.f32 %v7780, 0.0
    %v8087 = vmax.f32 %v7785, 0.0
    %v8088 = vmax.f32 %v7790, 0.0
    %v8089 = vmax.f32 %v7795, 0.0
    %v8090 = vmax.f32 %v7800, 0.0
    %v8091 = vmax.f32 %v7805, 0.0
    %v8092 = vmax.f32 %v7810, 0.0
    %v8093 = vmax.f32 %v7815, 0.0
    %v8094 = vmax.f32 %v7820, 0.0
    %v8095 = vmax.f32 %v7825, 0.0
    %v8096 = vmax.f32 %v7830, 0.0
    %v8097 = vmax.f32 %v7835, 0.0
    %v8098 = vmax.f32 %v7840, 0.0
    %v8099 = vmax.f32 %v7845, 0.0
    %v8100 = vmax.f32 %v7850, 0.0
    %v8101 = vmax.f32 %v7855, 0.0
    %v8102 = vmax.f32 %v7860, 0.0
    %v8103 = vmax.f32 %v7865, 0.0
    %v8104 = vmax.f32 %v7870, 0.0
    %v8105 = vmax.f32 %v7875, 0.0
    %v8106 = vmax.f32 %v7880, 0.0
    %v8107 = vmax.f32 %v7885, 0.0
    %v8108 = vmax.f32 %v7890, 0.0
    %v8109 = vmax.f32 %v7895, 0.0
    %v8110 = vmax.f32 %v7900, 0.0
    %v8111 = vmax.f32 %v7905, 0.0
    %v8112 = vmax.f32 %v7910, 0.0
    %v8113 = vmax.f32 %v7915, 0.0
    %v8114 = vmax.f32 %v7920, 0.0
    %v8115 = vmax.f32 %v7925, 0.0
    %v8116 = vmax.f32 %v7930, 0.0
    %v8117 = vmax.f32 %v7935, 0.0
    %v8118 = vmax.f32 %v7940, 0.0
    %v8119 = vmax.f32 %v7945, 0.0
    %v8120 = vmax.f32 %v7950, 0.0
    %v8121 = vmax.f32 %v7955, 0.0
    %v8122 = vmax.f32 %v7960, 0.0
    %v8123 = vmax.f32 %v7965, 0.0
    %v8124 = vmax.f32 %v7970, 0.0
    %v8125 = vmax.f32 %v7975, 0.0
    %v8126 = vmax.f32 %v7980, 0.0
    %v8127 = vmax.f32 %v7985, 0.0
    %v8128 = vmax.f32 %v7990, 0.0
    %v8129 = vmax.f32 %v7995, 0.0
    %v8130 = vmax.f32 %v8000, 0.0
    %v8131 = vmax.f32 %v8005, 0.0
    %v8132 = vmax.f32 %v8010, 0.0
    %v8133 = vmax.f32 %v8015, 0.0
    %v8134 = vmax.f32 %v8020, 0.0
    %v8135 = vmax.f32 %v8025, 0.0
    %v8136 = vmax.f32 %v8030, 0.0
    %v8137 = vmax.f32 %v8035, 0.0
    %v8138 = vmax.f32 %v8040, 0.0
    %v8139 = vmax.f32 %v8045, 0.0
    %v8140 = vmax.f32 %v8050, 0.0
    %v8141 = vmax.f32 %v8055, 0.0
    %v8142 = vmax.f32 %v8060, 0.0
    %v8143 = vmax.f32 %v8065, 0.0
    %v8144 = vmax.f32 %v8070, 0.0
    %v8145 = vmax.f32 %v8075, 0.0
    %v8146 = vmax.f32 %v8080, 0.0
    %v8147 = vsel %vm7036, %v8083, 0.0
    %v8148 = vsel %vm7036, %v8084, 0.0
    %v8149 = vadd.f32 %v8147, %v8148
    %v8150 = vsel %vm7036, %v8085, 0.0
    %v8151 = vadd.f32 %v8149, %v8150
    %v8152 = vsel %vm7036, %v8086, 0.0
    %v8153 = vadd.f32 %v8151, %v8152
    %v8154 = vsel %vm7036, %v8087, 0.0
    %v8155 = vadd.f32 %v8153, %v8154
    %v8156 = vsel %vm7036, %v8088, 0.0
    %v8157 = vadd.f32 %v8155, %v8156
    %v8158 = vsel %vm7036, %v8089, 0.0
    %v8159 = vadd.f32 %v8157, %v8158
    %v8160 = vsel %vm7036, %v8090, 0.0
    %v8161 = vadd.f32 %v8159, %v8160
    %v8162 = vsel %vm7036, %v8091, 0.0
    %v8163 = vadd.f32 %v8161, %v8162
    %v8164 = vsel %vm7036, %v8092, 0.0
    %v8165 = vadd.f32 %v8163, %v8164
    %v8166 = vsel %vm7036, %v8093, 0.0
    %v8167 = vadd.f32 %v8165, %v8166
    %v8168 = vsel %vm7036, %v8094, 0.0
    %v8169 = vadd.f32 %v8167, %v8168
    %v8170 = vsel %vm7036, %v8095, 0.0
    %v8171 = vadd.f32 %v8169, %v8170
    %v8172 = vsel %vm7036, %v8096, 0.0
    %v8173 = vadd.f32 %v8171, %v8172
    %v8174 = vsel %vm7036, %v8097, 0.0
    %v8175 = vadd.f32 %v8173, %v8174
    %v8176 = vsel %vm7036, %v8098, 0.0
    %v8177 = vadd.f32 %v8175, %v8176
    %v8178 = vsel %vm7036, %v8099, 0.0
    %v8179 = vadd.f32 %v8177, %v8178
    %v8180 = vsel %vm7036, %v8100, 0.0
    %v8181 = vadd.f32 %v8179, %v8180
    %v8182 = vsel %vm7036, %v8101, 0.0
    %v8183 = vadd.f32 %v8181, %v8182
    %v8184 = vsel %vm7036, %v8102, 0.0
    %v8185 = vadd.f32 %v8183, %v8184
    %v8186 = vsel %vm7036, %v8103, 0.0
    %v8187 = vadd.f32 %v8185, %v8186
    %v8188 = vsel %vm7036, %v8104, 0.0
    %v8189 = vadd.f32 %v8187, %v8188
    %v8190 = vsel %vm7036, %v8105, 0.0
    %v8191 = vadd.f32 %v8189, %v8190
    %v8192 = vsel %vm7036, %v8106, 0.0
    %v8193 = vadd.f32 %v8191, %v8192
    %v8194 = vsel %vm7036, %v8107, 0.0
    %v8195 = vadd.f32 %v8193, %v8194
    %v8196 = vsel %vm7036, %v8108, 0.0
    %v8197 = vadd.f32 %v8195, %v8196
    %v8198 = vsel %vm7036, %v8109, 0.0
    %v8199 = vadd.f32 %v8197, %v8198
    %v8200 = vsel %vm7036, %v8110, 0.0
    %v8201 = vadd.f32 %v8199, %v8200
    %v8202 = vsel %vm7036, %v8111, 0.0
    %v8203 = vadd.f32 %v8201, %v8202
    %v8204 = vsel %vm7036, %v8112, 0.0
    %v8205 = vadd.f32 %v8203, %v8204
    %v8206 = vsel %vm7036, %v8113, 0.0
    %v8207 = vadd.f32 %v8205, %v8206
    %v8208 = vsel %vm7036, %v8114, 0.0
    %v8209 = vadd.f32 %v8207, %v8208
    %v8210 = vsel %vm7036, %v8115, 0.0
    %v8211 = vadd.f32 %v8209, %v8210
    %v8212 = vsel %vm7036, %v8116, 0.0
    %v8213 = vadd.f32 %v8211, %v8212
    %v8214 = vsel %vm7036, %v8117, 0.0
    %v8215 = vadd.f32 %v8213, %v8214
    %v8216 = vsel %vm7036, %v8118, 0.0
    %v8217 = vadd.f32 %v8215, %v8216
    %v8218 = vsel %vm7036, %v8119, 0.0
    %v8219 = vadd.f32 %v8217, %v8218
    %v8220 = vsel %vm7036, %v8120, 0.0
    %v8221 = vadd.f32 %v8219, %v8220
    %v8222 = vsel %vm7036, %v8121, 0.0
    %v8223 = vadd.f32 %v8221, %v8222
    %v8224 = vsel %vm7036, %v8122, 0.0
    %v8225 = vadd.f32 %v8223, %v8224
    %v8226 = vsel %vm7036, %v8123, 0.0
    %v8227 = vadd.f32 %v8225, %v8226
    %v8228 = vsel %vm7036, %v8124, 0.0
    %v8229 = vadd.f32 %v8227, %v8228
    %v8230 = vsel %vm7036, %v8125, 0.0
    %v8231 = vadd.f32 %v8229, %v8230
    %v8232 = vsel %vm7036, %v8126, 0.0
    %v8233 = vadd.f32 %v8231, %v8232
    %v8234 = vsel %vm7036, %v8127, 0.0
    %v8235 = vadd.f32 %v8233, %v8234
    %v8236 = vsel %vm7036, %v8128, 0.0
    %v8237 = vadd.f32 %v8235, %v8236
    %v8238 = vsel %vm7036, %v8129, 0.0
    %v8239 = vadd.f32 %v8237, %v8238
    %v8240 = vsel %vm7036, %v8130, 0.0
    %v8241 = vadd.f32 %v8239, %v8240
    %v8242 = vsel %vm7036, %v8131, 0.0
    %v8243 = vadd.f32 %v8241, %v8242
    %v8244 = vsel %vm7036, %v8132, 0.0
    %v8245 = vadd.f32 %v8243, %v8244
    %v8246 = vsel %vm7036, %v8133, 0.0
    %v8247 = vadd.f32 %v8245, %v8246
    %v8248 = vsel %vm7036, %v8134, 0.0
    %v8249 = vadd.f32 %v8247, %v8248
    %v8250 = vsel %vm7036, %v8135, 0.0
    %v8251 = vadd.f32 %v8249, %v8250
    %v8252 = vsel %vm7036, %v8136, 0.0
    %v8253 = vadd.f32 %v8251, %v8252
    %v8254 = vsel %vm7036, %v8137, 0.0
    %v8255 = vadd.f32 %v8253, %v8254
    %v8256 = vsel %vm7036, %v8138, 0.0
    %v8257 = vadd.f32 %v8255, %v8256
    %v8258 = vsel %vm7036, %v8139, 0.0
    %v8259 = vadd.f32 %v8257, %v8258
    %v8260 = vsel %vm7036, %v8140, 0.0
    %v8261 = vadd.f32 %v8259, %v8260
    %v8262 = vsel %vm7036, %v8141, 0.0
    %v8263 = vadd.f32 %v8261, %v8262
    %v8264 = vsel %vm7036, %v8142, 0.0
    %v8265 = vadd.f32 %v8263, %v8264
    %v8266 = vsel %vm7036, %v8143, 0.0
    %v8267 = vadd.f32 %v8265, %v8266
    %v8268 = vsel %vm7036, %v8144, 0.0
    %v8269 = vadd.f32 %v8267, %v8268
    %v8270 = vsel %vm7036, %v8145, 0.0
    %v8271 = vadd.f32 %v8269, %v8270
    %v8272 = vsel %vm7036, %v8146, 0.0
    %v8273 = vadd.f32 %v8271, %v8272
    %v8274 = vrot.slane %v8273, 4
    %v8275 = vadd.f32 %v8273, %v8274
    %v8276 = vrot.slane %v8275, 2
    %v8277 = vadd.f32 %v8275, %v8276
    %v8278 = vrot.slane %v8277, 1
    %v8279 = vadd.f32 %v8277, %v8278
    %v8280 = vmul.f32 %v8279, 0.001953125
    %v8281 = vsub.f32 %v8083, %v8280
    %v8282 = vsub.f32 %v8084, %v8280
    %v8283 = vsub.f32 %v8085, %v8280
    %v8284 = vsub.f32 %v8086, %v8280
    %v8285 = vsub.f32 %v8087, %v8280
    %v8286 = vsub.f32 %v8088, %v8280
    %v8287 = vsub.f32 %v8089, %v8280
    %v8288 = vsub.f32 %v8090, %v8280
    %v8289 = vsub.f32 %v8091, %v8280
    %v8290 = vsub.f32 %v8092, %v8280
    %v8291 = vsub.f32 %v8093, %v8280
    %v8292 = vsub.f32 %v8094, %v8280
    %v8293 = vsub.f32 %v8095, %v8280
    %v8294 = vsub.f32 %v8096, %v8280
    %v8295 = vsub.f32 %v8097, %v8280
    %v8296 = vsub.f32 %v8098, %v8280
    %v8297 = vsub.f32 %v8099, %v8280
    %v8298 = vsub.f32 %v8100, %v8280
    %v8299 = vsub.f32 %v8101, %v8280
    %v8300 = vsub.f32 %v8102, %v8280
    %v8301 = vsub.f32 %v8103, %v8280
    %v8302 = vsub.f32 %v8104, %v8280
    %v8303 = vsub.f32 %v8105, %v8280
    %v8304 = vsub.f32 %v8106, %v8280
    %v8305 = vsub.f32 %v8107, %v8280
    %v8306 = vsub.f32 %v8108, %v8280
    %v8307 = vsub.f32 %v8109, %v8280
    %v8308 = vsub.f32 %v8110, %v8280
    %v8309 = vsub.f32 %v8111, %v8280
    %v8310 = vsub.f32 %v8112, %v8280
    %v8311 = vsub.f32 %v8113, %v8280
    %v8312 = vsub.f32 %v8114, %v8280
    %v8313 = vsub.f32 %v8115, %v8280
    %v8314 = vsub.f32 %v8116, %v8280
    %v8315 = vsub.f32 %v8117, %v8280
    %v8316 = vsub.f32 %v8118, %v8280
    %v8317 = vsub.f32 %v8119, %v8280
    %v8318 = vsub.f32 %v8120, %v8280
    %v8319 = vsub.f32 %v8121, %v8280
    %v8320 = vsub.f32 %v8122, %v8280
    %v8321 = vsub.f32 %v8123, %v8280
    %v8322 = vsub.f32 %v8124, %v8280
    %v8323 = vsub.f32 %v8125, %v8280
    %v8324 = vsub.f32 %v8126, %v8280
    %v8325 = vsub.f32 %v8127, %v8280
    %v8326 = vsub.f32 %v8128, %v8280
    %v8327 = vsub.f32 %v8129, %v8280
    %v8328 = vsub.f32 %v8130, %v8280
    %v8329 = vsub.f32 %v8131, %v8280
    %v8330 = vsub.f32 %v8132, %v8280
    %v8331 = vsub.f32 %v8133, %v8280
    %v8332 = vsub.f32 %v8134, %v8280
    %v8333 = vsub.f32 %v8135, %v8280
    %v8334 = vsub.f32 %v8136, %v8280
    %v8335 = vsub.f32 %v8137, %v8280
    %v8336 = vsub.f32 %v8138, %v8280
    %v8337 = vsub.f32 %v8139, %v8280
    %v8338 = vsub.f32 %v8140, %v8280
    %v8339 = vsub.f32 %v8141, %v8280
    %v8340 = vsub.f32 %v8142, %v8280
    %v8341 = vsub.f32 %v8143, %v8280
    %v8342 = vsub.f32 %v8144, %v8280
    %v8343 = vsub.f32 %v8145, %v8280
    %v8344 = vsub.f32 %v8146, %v8280
    %v8345 = vmul.f32 %v8281, %v8281
    %v8346 = vmul.f32 %v8282, %v8282
    %v8347 = vmul.f32 %v8283, %v8283
    %v8348 = vmul.f32 %v8284, %v8284
    %v8349 = vmul.f32 %v8285, %v8285
    %v8350 = vmul.f32 %v8286, %v8286
    %v8351 = vmul.f32 %v8287, %v8287
    %v8352 = vmul.f32 %v8288, %v8288
    %v8353 = vmul.f32 %v8289, %v8289
    %v8354 = vmul.f32 %v8290, %v8290
    %v8355 = vmul.f32 %v8291, %v8291
    %v8356 = vmul.f32 %v8292, %v8292
    %v8357 = vmul.f32 %v8293, %v8293
    %v8358 = vmul.f32 %v8294, %v8294
    %v8359 = vmul.f32 %v8295, %v8295
    %v8360 = vmul.f32 %v8296, %v8296
    %v8361 = vmul.f32 %v8297, %v8297
    %v8362 = vmul.f32 %v8298, %v8298
    %v8363 = vmul.f32 %v8299, %v8299
    %v8364 = vmul.f32 %v8300, %v8300
    %v8365 = vmul.f32 %v8301, %v8301
    %v8366 = vmul.f32 %v8302, %v8302
    %v8367 = vmul.f32 %v8303, %v8303
    %v8368 = vmul.f32 %v8304, %v8304
    %v8369 = vmul.f32 %v8305, %v8305
    %v8370 = vmul.f32 %v8306, %v8306
    %v8371 = vmul.f32 %v8307, %v8307
    %v8372 = vmul.f32 %v8308, %v8308
    %v8373 = vmul.f32 %v8309, %v8309
    %v8374 = vmul.f32 %v8310, %v8310
    %v8375 = vmul.f32 %v8311, %v8311
    %v8376 = vmul.f32 %v8312, %v8312
    %v8377 = vmul.f32 %v8313, %v8313
    %v8378 = vmul.f32 %v8314, %v8314
    %v8379 = vmul.f32 %v8315, %v8315
    %v8380 = vmul.f32 %v8316, %v8316
    %v8381 = vmul.f32 %v8317, %v8317
    %v8382 = vmul.f32 %v8318, %v8318
    %v8383 = vmul.f32 %v8319, %v8319
    %v8384 = vmul.f32 %v8320, %v8320
    %v8385 = vmul.f32 %v8321, %v8321
    %v8386 = vmul.f32 %v8322, %v8322
    %v8387 = vmul.f32 %v8323, %v8323
    %v8388 = vmul.f32 %v8324, %v8324
    %v8389 = vmul.f32 %v8325, %v8325
    %v8390 = vmul.f32 %v8326, %v8326
    %v8391 = vmul.f32 %v8327, %v8327
    %v8392 = vmul.f32 %v8328, %v8328
    %v8393 = vmul.f32 %v8329, %v8329
    %v8394 = vmul.f32 %v8330, %v8330
    %v8395 = vmul.f32 %v8331, %v8331
    %v8396 = vmul.f32 %v8332, %v8332
    %v8397 = vmul.f32 %v8333, %v8333
    %v8398 = vmul.f32 %v8334, %v8334
    %v8399 = vmul.f32 %v8335, %v8335
    %v8400 = vmul.f32 %v8336, %v8336
    %v8401 = vmul.f32 %v8337, %v8337
    %v8402 = vmul.f32 %v8338, %v8338
    %v8403 = vmul.f32 %v8339, %v8339
    %v8404 = vmul.f32 %v8340, %v8340
    %v8405 = vmul.f32 %v8341, %v8341
    %v8406 = vmul.f32 %v8342, %v8342
    %v8407 = vmul.f32 %v8343, %v8343
    %v8408 = vmul.f32 %v8344, %v8344
    %v8409 = vsel %vm7036, %v8345, 0.0
    %v8410 = vsel %vm7036, %v8346, 0.0
    %v8411 = vadd.f32 %v8409, %v8410
    %v8412 = vsel %vm7036, %v8347, 0.0
    %v8413 = vadd.f32 %v8411, %v8412
    %v8414 = vsel %vm7036, %v8348, 0.0
    %v8415 = vadd.f32 %v8413, %v8414
    %v8416 = vsel %vm7036, %v8349, 0.0
    %v8417 = vadd.f32 %v8415, %v8416
    %v8418 = vsel %vm7036, %v8350, 0.0
    %v8419 = vadd.f32 %v8417, %v8418
    %v8420 = vsel %vm7036, %v8351, 0.0
    %v8421 = vadd.f32 %v8419, %v8420
    %v8422 = vsel %vm7036, %v8352, 0.0
    %v8423 = vadd.f32 %v8421, %v8422
    %v8424 = vsel %vm7036, %v8353, 0.0
    %v8425 = vadd.f32 %v8423, %v8424
    %v8426 = vsel %vm7036, %v8354, 0.0
    %v8427 = vadd.f32 %v8425, %v8426
    %v8428 = vsel %vm7036, %v8355, 0.0
    %v8429 = vadd.f32 %v8427, %v8428
    %v8430 = vsel %vm7036, %v8356, 0.0
    %v8431 = vadd.f32 %v8429, %v8430
    %v8432 = vsel %vm7036, %v8357, 0.0
    %v8433 = vadd.f32 %v8431, %v8432
    %v8434 = vsel %vm7036, %v8358, 0.0
    %v8435 = vadd.f32 %v8433, %v8434
    %v8436 = vsel %vm7036, %v8359, 0.0
    %v8437 = vadd.f32 %v8435, %v8436
    %v8438 = vsel %vm7036, %v8360, 0.0
    %v8439 = vadd.f32 %v8437, %v8438
    %v8440 = vsel %vm7036, %v8361, 0.0
    %v8441 = vadd.f32 %v8439, %v8440
    %v8442 = vsel %vm7036, %v8362, 0.0
    %v8443 = vadd.f32 %v8441, %v8442
    %v8444 = vsel %vm7036, %v8363, 0.0
    %v8445 = vadd.f32 %v8443, %v8444
    %v8446 = vsel %vm7036, %v8364, 0.0
    %v8447 = vadd.f32 %v8445, %v8446
    %v8448 = vsel %vm7036, %v8365, 0.0
    %v8449 = vadd.f32 %v8447, %v8448
    %v8450 = vsel %vm7036, %v8366, 0.0
    %v8451 = vadd.f32 %v8449, %v8450
    %v8452 = vsel %vm7036, %v8367, 0.0
    %v8453 = vadd.f32 %v8451, %v8452
    %v8454 = vsel %vm7036, %v8368, 0.0
    %v8455 = vadd.f32 %v8453, %v8454
    %v8456 = vsel %vm7036, %v8369, 0.0
    %v8457 = vadd.f32 %v8455, %v8456
    %v8458 = vsel %vm7036, %v8370, 0.0
    %v8459 = vadd.f32 %v8457, %v8458
    %v8460 = vsel %vm7036, %v8371, 0.0
    %v8461 = vadd.f32 %v8459, %v8460
    %v8462 = vsel %vm7036, %v8372, 0.0
    %v8463 = vadd.f32 %v8461, %v8462
    %v8464 = vsel %vm7036, %v8373, 0.0
    %v8465 = vadd.f32 %v8463, %v8464
    %v8466 = vsel %vm7036, %v8374, 0.0
    %v8467 = vadd.f32 %v8465, %v8466
    %v8468 = vsel %vm7036, %v8375, 0.0
    %v8469 = vadd.f32 %v8467, %v8468
    %v8470 = vsel %vm7036, %v8376, 0.0
    %v8471 = vadd.f32 %v8469, %v8470
    %v8472 = vsel %vm7036, %v8377, 0.0
    %v8473 = vadd.f32 %v8471, %v8472
    %v8474 = vsel %vm7036, %v8378, 0.0
    %v8475 = vadd.f32 %v8473, %v8474
    %v8476 = vsel %vm7036, %v8379, 0.0
    %v8477 = vadd.f32 %v8475, %v8476
    %v8478 = vsel %vm7036, %v8380, 0.0
    %v8479 = vadd.f32 %v8477, %v8478
    %v8480 = vsel %vm7036, %v8381, 0.0
    %v8481 = vadd.f32 %v8479, %v8480
    %v8482 = vsel %vm7036, %v8382, 0.0
    %v8483 = vadd.f32 %v8481, %v8482
    %v8484 = vsel %vm7036, %v8383, 0.0
    %v8485 = vadd.f32 %v8483, %v8484
    %v8486 = vsel %vm7036, %v8384, 0.0
    %v8487 = vadd.f32 %v8485, %v8486
    %v8488 = vsel %vm7036, %v8385, 0.0
    %v8489 = vadd.f32 %v8487, %v8488
    %v8490 = vsel %vm7036, %v8386, 0.0
    %v8491 = vadd.f32 %v8489, %v8490
    %v8492 = vsel %vm7036, %v8387, 0.0
    %v8493 = vadd.f32 %v8491, %v8492
    %v8494 = vsel %vm7036, %v8388, 0.0
    %v8495 = vadd.f32 %v8493, %v8494
    %v8496 = vsel %vm7036, %v8389, 0.0
    %v8497 = vadd.f32 %v8495, %v8496
    %v8498 = vsel %vm7036, %v8390, 0.0
    %v8499 = vadd.f32 %v8497, %v8498
    %v8500 = vsel %vm7036, %v8391, 0.0
    %v8501 = vadd.f32 %v8499, %v8500
    %v8502 = vsel %vm7036, %v8392, 0.0
    %v8503 = vadd.f32 %v8501, %v8502
    %v8504 = vsel %vm7036, %v8393, 0.0
    %v8505 = vadd.f32 %v8503, %v8504
    %v8506 = vsel %vm7036, %v8394, 0.0
    %v8507 = vadd.f32 %v8505, %v8506
    %v8508 = vsel %vm7036, %v8395, 0.0
    %v8509 = vadd.f32 %v8507, %v8508
    %v8510 = vsel %vm7036, %v8396, 0.0
    %v8511 = vadd.f32 %v8509, %v8510
    %v8512 = vsel %vm7036, %v8397, 0.0
    %v8513 = vadd.f32 %v8511, %v8512
    %v8514 = vsel %vm7036, %v8398, 0.0
    %v8515 = vadd.f32 %v8513, %v8514
    %v8516 = vsel %vm7036, %v8399, 0.0
    %v8517 = vadd.f32 %v8515, %v8516
    %v8518 = vsel %vm7036, %v8400, 0.0
    %v8519 = vadd.f32 %v8517, %v8518
    %v8520 = vsel %vm7036, %v8401, 0.0
    %v8521 = vadd.f32 %v8519, %v8520
    %v8522 = vsel %vm7036, %v8402, 0.0
    %v8523 = vadd.f32 %v8521, %v8522
    %v8524 = vsel %vm7036, %v8403, 0.0
    %v8525 = vadd.f32 %v8523, %v8524
    %v8526 = vsel %vm7036, %v8404, 0.0
    %v8527 = vadd.f32 %v8525, %v8526
    %v8528 = vsel %vm7036, %v8405, 0.0
    %v8529 = vadd.f32 %v8527, %v8528
    %v8530 = vsel %vm7036, %v8406, 0.0
    %v8531 = vadd.f32 %v8529, %v8530
    %v8532 = vsel %vm7036, %v8407, 0.0
    %v8533 = vadd.f32 %v8531, %v8532
    %v8534 = vsel %vm7036, %v8408, 0.0
    %v8535 = vadd.f32 %v8533, %v8534
    %v8536 = vrot.slane %v8535, 4
    %v8537 = vadd.f32 %v8535, %v8536
    %v8538 = vrot.slane %v8537, 2
    %v8539 = vadd.f32 %v8537, %v8538
    %v8540 = vrot.slane %v8539, 1
    %v8541 = vadd.f32 %v8539, %v8540
    %v8542 = vmul.f32 %v8541, 0.001953125
    %v8543 = vadd.f32 %v8542, 1e-05
    %v8544 = vrsqrt.pop %v8543
    %v8545 = vmul.f32 %v8544, %v7499
    %v8546 = vlaneseq
    %v8547 = vshrl.u32 %v8546, 7
    %v8548 = vsub.s32 0, %v8547
    %v8549 = vrot.slane %v8545, %v8548
    %v8550 = vmul.f32 %v8281, %v8549
    %v8551 = vmul.f32 %v8282, %v8549
    %v8552 = vmul.f32 %v8283, %v8549
    %v8553 = vmul.f32 %v8284, %v8549
    %v8554 = vmul.f32 %v8285, %v8549
    %v8555 = vmul.f32 %v8286, %v8549
    %v8556 = vmul.f32 %v8287, %v8549
    %v8557 = vmul.f32 %v8288, %v8549
    %v8558 = vmul.f32 %v8289, %v8549
    %v8559 = vmul.f32 %v8290, %v8549
    %v8560 = vmul.f32 %v8291, %v8549
    %v8561 = vmul.f32 %v8292, %v8549
    %v8562 = vmul.f32 %v8293, %v8549
    %v8563 = vmul.f32 %v8294, %v8549
    %v8564 = vmul.f32 %v8295, %v8549
    %v8565 = vmul.f32 %v8296, %v8549
    %v8566 = vmul.f32 %v8297, %v8549
    %v8567 = vmul.f32 %v8298, %v8549
    %v8568 = vmul.f32 %v8299, %v8549
    %v8569 = vmul.f32 %v8300, %v8549
    %v8570 = vmul.f32 %v8301, %v8549
    %v8571 = vmul.f32 %v8302, %v8549
    %v8572 = vmul.f32 %v8303, %v8549
    %v8573 = vmul.f32 %v8304, %v8549
    %v8574 = vmul.f32 %v8305, %v8549
    %v8575 = vmul.f32 %v8306, %v8549
    %v8576 = vmul.f32 %v8307, %v8549
    %v8577 = vmul.f32 %v8308, %v8549
    %v8578 = vmul.f32 %v8309, %v8549
    %v8579 = vmul.f32 %v8310, %v8549
    %v8580 = vmul.f32 %v8311, %v8549
    %v8581 = vmul.f32 %v8312, %v8549
    %v8582 = vmul.f32 %v8313, %v8549
    %v8583 = vmul.f32 %v8314, %v8549
    %v8584 = vmul.f32 %v8315, %v8549
    %v8585 = vmul.f32 %v8316, %v8549
    %v8586 = vmul.f32 %v8317, %v8549
    %v8587 = vmul.f32 %v8318, %v8549
    %v8588 = vmul.f32 %v8319, %v8549
    %v8589 = vmul.f32 %v8320, %v8549
    %v8590 = vmul.f32 %v8321, %v8549
    %v8591 = vmul.f32 %v8322, %v8549
    %v8592 = vmul.f32 %v8323, %v8549
    %v8593 = vmul.f32 %v8324, %v8549
    %v8594 = vmul.f32 %v8325, %v8549
    %v8595 = vmul.f32 %v8326, %v8549
    %v8596 = vmul.f32 %v8327, %v8549
    %v8597 = vmul.f32 %v8328, %v8549
    %v8598 = vmul.f32 %v8329, %v8549
    %v8599 = vmul.f32 %v8330, %v8549
    %v8600 = vmul.f32 %v8331, %v8549
    %v8601 = vmul.f32 %v8332, %v8549
    %v8602 = vmul.f32 %v8333, %v8549
    %v8603 = vmul.f32 %v8334, %v8549
    %v8604 = vmul.f32 %v8335, %v8549
    %v8605 = vmul.f32 %v8336, %v8549
    %v8606 = vmul.f32 %v8337, %v8549
    %v8607 = vmul.f32 %v8338, %v8549
    %v8608 = vmul.f32 %v8339, %v8549
    %v8609 = vmul.f32 %v8340, %v8549
    %v8610 = vmul.f32 %v8341, %v8549
    %v8611 = vmul.f32 %v8342, %v8549
    %v8612 = vmul.f32 %v8343, %v8549
    %v8613 = vmul.f32 %v8344, %v8549
    %v8614 = vlaneseq
    %v8615 = vshrl.u32 %v8614, 7
    %v8616 = vsub.s32 0, %v8615
    %v8617 = vrot.slane %v7500, %v8616
    %v8618 = vadd.f32 %v8550, %v8617
    %v8619 = vadd.f32 %v8551, %v8617
    %v8620 = vadd.f32 %v8552, %v8617
    %v8621 = vadd.f32 %v8553, %v8617
    %v8622 = vadd.f32 %v8554, %v8617
    %v8623 = vadd.f32 %v8555, %v8617
    %v8624 = vadd.f32 %v8556, %v8617
    %v8625 = vadd.f32 %v8557, %v8617
    %v8626 = vadd.f32 %v8558, %v8617
    %v8627 = vadd.f32 %v8559, %v8617
    %v8628 = vadd.f32 %v8560, %v8617
    %v8629 = vadd.f32 %v8561, %v8617
    %v8630 = vadd.f32 %v8562, %v8617
    %v8631 = vadd.f32 %v8563, %v8617
    %v8632 = vadd.f32 %v8564, %v8617
    %v8633 = vadd.f32 %v8565, %v8617
    %v8634 = vadd.f32 %v8566, %v8617
    %v8635 = vadd.f32 %v8567, %v8617
    %v8636 = vadd.f32 %v8568, %v8617
    %v8637 = vadd.f32 %v8569, %v8617
    %v8638 = vadd.f32 %v8570, %v8617
    %v8639 = vadd.f32 %v8571, %v8617
    %v8640 = vadd.f32 %v8572, %v8617
    %v8641 = vadd.f32 %v8573, %v8617
    %v8642 = vadd.f32 %v8574, %v8617
    %v8643 = vadd.f32 %v8575, %v8617
    %v8644 = vadd.f32 %v8576, %v8617
    %v8645 = vadd.f32 %v8577, %v8617
    %v8646 = vadd.f32 %v8578, %v8617
    %v8647 = vadd.f32 %v8579, %v8617
    %v8648 = vadd.f32 %v8580, %v8617
    %v8649 = vadd.f32 %v8581, %v8617
    %v8650 = vadd.f32 %v8582, %v8617
    %v8651 = vadd.f32 %v8583, %v8617
    %v8652 = vadd.f32 %v8584, %v8617
    %v8653 = vadd.f32 %v8585, %v8617
    %v8654 = vadd.f32 %v8586, %v8617
    %v8655 = vadd.f32 %v8587, %v8617
    %v8656 = vadd.f32 %v8588, %v8617
    %v8657 = vadd.f32 %v8589, %v8617
    %v8658 = vadd.f32 %v8590, %v8617
    %v8659 = vadd.f32 %v8591, %v8617
    %v8660 = vadd.f32 %v8592, %v8617
    %v8661 = vadd.f32 %v8593, %v8617
    %v8662 = vadd.f32 %v8594, %v8617
    %v8663 = vadd.f32 %v8595, %v8617
    %v8664 = vadd.f32 %v8596, %v8617
    %v8665 = vadd.f32 %v8597, %v8617
    %v8666 = vadd.f32 %v8598, %v8617
    %v8667 = vadd.f32 %v8599, %v8617
    %v8668 = vadd.f32 %v8600, %v8617
    %v8669 = vadd.f32 %v8601, %v8617
    %v8670 = vadd.f32 %v8602, %v8617
    %v8671 = vadd.f32 %v8603, %v8617
    %v8672 = vadd.f32 %v8604, %v8617
    %v8673 = vadd.f32 %v8605, %v8617
    %v8674 = vadd.f32 %v8606, %v8617
    %v8675 = vadd.f32 %v8607, %v8617
    %v8676 = vadd.f32 %v8608, %v8617
    %v8677 = vadd.f32 %v8609, %v8617
    %v8678 = vadd.f32 %v8610, %v8617
    %v8679 = vadd.f32 %v8611, %v8617
    %v8680 = vadd.f32 %v8612, %v8617
    %v8681 = vadd.f32 %v8613, %v8617
    %v8682 = vld [vmem:[%s5] sm:$0xff]
    %v8683 = vld [vmem:[%s5 + $0x8] sm:$0xff]
    %v8684 = vld [vmem:[%s5 + $0x10] sm:$0xff]
    %v8685 = vld [vmem:[%s5 + $0x18] sm:$0xff]
    %v8686 = vld [vmem:[%s5 + $0x20] sm:$0xff]
    %v8687 = vld [vmem:[%s5 + $0x28] sm:$0xff]
    %v8688 = vld [vmem:[%s5 + $0x30] sm:$0xff]
    %v8689 = vld [vmem:[%s5 + $0x38] sm:$0xff]
    %v8690 = vld [vmem:[%s5 + $0x40] sm:$0xff]
    %v8691 = vld [vmem:[%s5 + $0x48] sm:$0xff]
    %v8692 = vld [vmem:[%s5 + $0x50] sm:$0xff]
    %v8693 = vld [vmem:[%s5 + $0x58] sm:$0xff]
    %v8694 = vld [vmem:[%s5 + $0x60] sm:$0xff]
    %v8695 = vld [vmem:[%s5 + $0x68] sm:$0xff]
    %v8696 = vld [vmem:[%s5 + $0x70] sm:$0xff]
    %v8697 = vld [vmem:[%s5 + $0x78] sm:$0xff]
    %v8698 = vld [vmem:[%s5 + $0x80] sm:$0xff]
    %v8699 = vld [vmem:[%s5 + $0x88] sm:$0xff]
    %v8700 = vld [vmem:[%s5 + $0x90] sm:$0xff]
    %v8701 = vld [vmem:[%s5 + $0x98] sm:$0xff]
    %v8702 = vld [vmem:[%s5 + $0xa0] sm:$0xff]
    %v8703 = vld [vmem:[%s5 + $0xa8] sm:$0xff]
    %v8704 = vld [vmem:[%s5 + $0xb0] sm:$0xff]
    %v8705 = vld [vmem:[%s5 + $0xb8] sm:$0xff]
    %v8706 = vld [vmem:[%s5 + $0xc0] sm:$0xff]
    %v8707 = vld [vmem:[%s5 + $0xc8] sm:$0xff]
    %v8708 = vld [vmem:[%s5 + $0xd0] sm:$0xff]
    %v8709 = vld [vmem:[%s5 + $0xd8] sm:$0xff]
    %v8710 = vld [vmem:[%s5 + $0xe0] sm:$0xff]
    %v8711 = vld [vmem:[%s5 + $0xe8] sm:$0xff]
    %v8712 = vld [vmem:[%s5 + $0xf0] sm:$0xff]
    %v8713 = vld [vmem:[%s5 + $0xf8] sm:$0xff]
    %v8714 = vld [vmem:[%s5 + $0x100] sm:$0xff]
    %v8715 = vld [vmem:[%s5 + $0x108] sm:$0xff]
    %v8716 = vld [vmem:[%s5 + $0x110] sm:$0xff]
    %v8717 = vld [vmem:[%s5 + $0x118] sm:$0xff]
    %v8718 = vld [vmem:[%s5 + $0x120] sm:$0xff]
    %v8719 = vld [vmem:[%s5 + $0x128] sm:$0xff]
    %v8720 = vld [vmem:[%s5 + $0x130] sm:$0xff]
    %v8721 = vld [vmem:[%s5 + $0x138] sm:$0xff]
    %v8722 = vld [vmem:[%s5 + $0x140] sm:$0xff]
    %v8723 = vld [vmem:[%s5 + $0x148] sm:$0xff]
    %v8724 = vld [vmem:[%s5 + $0x150] sm:$0xff]
    %v8725 = vld [vmem:[%s5 + $0x158] sm:$0xff]
    %v8726 = vld [vmem:[%s5 + $0x160] sm:$0xff]
    %v8727 = vld [vmem:[%s5 + $0x168] sm:$0xff]
    %v8728 = vld [vmem:[%s5 + $0x170] sm:$0xff]
    %v8729 = vld [vmem:[%s5 + $0x178] sm:$0xff]
    %v8730 = vld [vmem:[%s5 + $0x180] sm:$0xff]
    %v8731 = vld [vmem:[%s5 + $0x188] sm:$0xff]
    %v8732 = vld [vmem:[%s5 + $0x190] sm:$0xff]
    %v8733 = vld [vmem:[%s5 + $0x198] sm:$0xff]
    %v8734 = vld [vmem:[%s5 + $0x1a0] sm:$0xff]
    %v8735 = vld [vmem:[%s5 + $0x1a8] sm:$0xff]
    %v8736 = vld [vmem:[%s5 + $0x1b0] sm:$0xff]
    %v8737 = vld [vmem:[%s5 + $0x1b8] sm:$0xff]
    %v8738 = vld [vmem:[%s5 + $0x1c0] sm:$0xff]
    %v8739 = vld [vmem:[%s5 + $0x1c8] sm:$0xff]
    %v8740 = vld [vmem:[%s5 + $0x1d0] sm:$0xff]
    %v8741 = vld [vmem:[%s5 + $0x1d8] sm:$0xff]
    %v8742 = vld [vmem:[%s5 + $0x1e0] sm:$0xff]
    %v8743 = vld [vmem:[%s5 + $0x1e8] sm:$0xff]
    %v8744 = vld [vmem:[%s5 + $0x1f0] sm:$0xff]
    %v8745 = vld [vmem:[%s5 + $0x1f8] sm:$0xff]
    %v8746 = vld [vmem:[%s5 + $0x200] sm:$0xff]
    %v8747 = vld [vmem:[%s5 + $0x208] sm:$0xff]
    %v8748 = vld [vmem:[%s5 + $0x210] sm:$0xff]
    %v8749 = vld [vmem:[%s5 + $0x218] sm:$0xff]
    %v8750 = vld [vmem:[%s5 + $0x220] sm:$0xff]
    %v8751 = vld [vmem:[%s5 + $0x228] sm:$0xff]
    %v8752 = vld [vmem:[%s5 + $0x230] sm:$0xff]
    %v8753 = vld [vmem:[%s5 + $0x238] sm:$0xff]
    %v8754 = vld [vmem:[%s5 + $0x240] sm:$0xff]
    %v8755 = vld [vmem:[%s5 + $0x248] sm:$0xff]
    %v8756 = vld [vmem:[%s5 + $0x250] sm:$0xff]
    %v8757 = vld [vmem:[%s5 + $0x258] sm:$0xff]
    %v8758 = vld [vmem:[%s5 + $0x260] sm:$0xff]
    %v8759 = vld [vmem:[%s5 + $0x268] sm:$0xff]
    %v8760 = vld [vmem:[%s5 + $0x270] sm:$0xff]
    %v8761 = vld [vmem:[%s5 + $0x278] sm:$0xff]
    %v8762 = vld [vmem:[%s5 + $0x280] sm:$0xff]
    %v8763 = vld [vmem:[%s5 + $0x288] sm:$0xff]
    %v8764 = vld [vmem:[%s5 + $0x290] sm:$0xff]
    %v8765 = vld [vmem:[%s5 + $0x298] sm:$0xff]
    %v8766 = vld [vmem:[%s5 + $0x2a0] sm:$0xff]
    %v8767 = vld [vmem:[%s5 + $0x2a8] sm:$0xff]
    %v8768 = vld [vmem:[%s5 + $0x2b0] sm:$0xff]
    %v8769 = vld [vmem:[%s5 + $0x2b8] sm:$0xff]
    %v8770 = vld [vmem:[%s5 + $0x2c0] sm:$0xff]
    %v8771 = vld [vmem:[%s5 + $0x2c8] sm:$0xff]
    %v8772 = vld [vmem:[%s5 + $0x2d0] sm:$0xff]
    %v8773 = vld [vmem:[%s5 + $0x2d8] sm:$0xff]
    %v8774 = vld [vmem:[%s5 + $0x2e0] sm:$0xff]
    %v8775 = vld [vmem:[%s5 + $0x2e8] sm:$0xff]
    %v8776 = vld [vmem:[%s5 + $0x2f0] sm:$0xff]
    %v8777 = vld [vmem:[%s5 + $0x2f8] sm:$0xff]
    %v8778 = vld [vmem:[%s5 + $0x300] sm:$0xff]
    %v8779 = vld [vmem:[%s5 + $0x308] sm:$0xff]
    %v8780 = vld [vmem:[%s5 + $0x310] sm:$0xff]
    %v8781 = vld [vmem:[%s5 + $0x318] sm:$0xff]
    %v8782 = vld [vmem:[%s5 + $0x320] sm:$0xff]
    %v8783 = vld [vmem:[%s5 + $0x328] sm:$0xff]
    %v8784 = vld [vmem:[%s5 + $0x330] sm:$0xff]
    %v8785 = vld [vmem:[%s5 + $0x338] sm:$0xff]
    %v8786 = vld [vmem:[%s5 + $0x340] sm:$0xff]
    %v8787 = vld [vmem:[%s5 + $0x348] sm:$0xff]
    %v8788 = vld [vmem:[%s5 + $0x350] sm:$0xff]
    %v8789 = vld [vmem:[%s5 + $0x358] sm:$0xff]
    %v8790 = vld [vmem:[%s5 + $0x360] sm:$0xff]
    %v8791 = vld [vmem:[%s5 + $0x368] sm:$0xff]
    %v8792 = vld [vmem:[%s5 + $0x370] sm:$0xff]
    %v8793 = vld [vmem:[%s5 + $0x378] sm:$0xff]
    %v8794 = vld [vmem:[%s5 + $0x380] sm:$0xff]
    %v8795 = vld [vmem:[%s5 + $0x388] sm:$0xff]
    %v8796 = vld [vmem:[%s5 + $0x390] sm:$0xff]
    %v8797 = vld [vmem:[%s5 + $0x398] sm:$0xff]
    %v8798 = vld [vmem:[%s5 + $0x3a0] sm:$0xff]
    %v8799 = vld [vmem:[%s5 + $0x3a8] sm:$0xff]
    %v8800 = vld [vmem:[%s5 + $0x3b0] sm:$0xff]
    %v8801 = vld [vmem:[%s5 + $0x3b8] sm:$0xff]
    %v8802 = vld [vmem:[%s5 + $0x3c0] sm:$0xff]
    %v8803 = vld [vmem:[%s5 + $0x3c8] sm:$0xff]
    %v8804 = vld [vmem:[%s5 + $0x3d0] sm:$0xff]
    %v8805 = vld [vmem:[%s5 + $0x3d8] sm:$0xff]
    %v8806 = vld [vmem:[%s5 + $0x3e0] sm:$0xff]
    %v8807 = vld [vmem:[%s5 + $0x3e8] sm:$0xff]
    %v8808 = vld [vmem:[%s5 + $0x3f0] sm:$0xff]
    %v8809 = vld [vmem:[%s5 + $0x3f8] sm:$0xff]
    %v8810 = vld [vmem:[%s5 + $0x400] sm:$0xff]
    %v8811 = vld [vmem:[%s5 + $0x408] sm:$0xff]
    %v8812 = vld [vmem:[%s5 + $0x410] sm:$0xff]
    %v8813 = vld [vmem:[%s5 + $0x418] sm:$0xff]
    %v8814 = vld [vmem:[%s5 + $0x420] sm:$0xff]
    %v8815 = vld [vmem:[%s5 + $0x428] sm:$0xff]
    %v8816 = vld [vmem:[%s5 + $0x430] sm:$0xff]
    %v8817 = vld [vmem:[%s5 + $0x438] sm:$0xff]
    %v8818 = vld [vmem:[%s5 + $0x440] sm:$0xff]
    %v8819 = vld [vmem:[%s5 + $0x448] sm:$0xff]
    %v8820 = vld [vmem:[%s5 + $0x450] sm:$0xff]
    %v8821 = vld [vmem:[%s5 + $0x458] sm:$0xff]
    %v8822 = vld [vmem:[%s5 + $0x460] sm:$0xff]
    %v8823 = vld [vmem:[%s5 + $0x468] sm:$0xff]
    %v8824 = vld [vmem:[%s5 + $0x470] sm:$0xff]
    %v8825 = vld [vmem:[%s5 + $0x478] sm:$0xff]
    %v8826 = vld [vmem:[%s6] sm:$0xff]
    %v8827 = vld [vmem:[%s6 + $0x8] sm:$0xff]
    %v8828 = vld [vmem:[%s6 + $0x10] sm:$0xff]
    %v8829 = vld [vmem:[%s6 + $0x18] sm:$0xff]
    %v8830 = vld [vmem:[%s6 + $0x20] sm:$0xff]
    %v8831 = vld [vmem:[%s6 + $0x28] sm:$0xff]
    %v8832 = vld [vmem:[%s6 + $0x30] sm:$0xff]
    %v8833 = vld [vmem:[%s6 + $0x38] sm:$0xff]
    %v8834 = vld [vmem:[%s6 + $0x40] sm:$0xff]
    %v8835 = vld [vmem:[%s6 + $0x48] sm:$0xff]
    %v8836 = vld [vmem:[%s6 + $0x50] sm:$0xff]
    %v8837 = vld [vmem:[%s6 + $0x58] sm:$0xff]
    %v8838 = vld [vmem:[%s6 + $0x60] sm:$0xff]
    %v8839 = vld [vmem:[%s6 + $0x68] sm:$0xff]
    %v8840 = vld [vmem:[%s6 + $0x70] sm:$0xff]
    %v8841 = vld [vmem:[%s6 + $0x78] sm:$0xff]
    %v8842 = vld [vmem:[%s6 + $0x80] sm:$0xff]
    %v8843 = vld [vmem:[%s6 + $0x88] sm:$0xff]
    %8844 = vmatprep.subr.mxu0 0.0
    %8845 = vmatpush1.msra.mxu0 %v8633
    %8846 = vmatprep.subr.mxu0 0.0
    %8847 = vmatpush1.msra.mxu0 %v8632
    %8848 = vmatprep.subr.mxu0 0.0
    %8849 = vmatpush1.msra.mxu0 %v8631
    %8850 = vmatprep.subr.mxu0 0.0
    %8851 = vmatpush1.msra.mxu0 %v8630
    %8852 = vmatprep.subr.mxu0 0.0
    %8853 = vmatpush1.msra.mxu0 %v8629
    %8854 = vmatprep.subr.mxu0 0.0
    %8855 = vmatpush1.msra.mxu0 %v8628
    %8856 = vmatprep.subr.mxu0 0.0
    %8857 = vmatpush1.msra.mxu0 %v8627
    %8858 = vmatprep.subr.mxu0 0.0
    %8859 = vmatpush1.msra.mxu0 %v8626
    %8860 = vmatprep.subr.mxu0 0.0
    %8861 = vmatpush1.msra.mxu0 %v8625
    %8862 = vmatprep.subr.mxu0 0.0
    %8863 = vmatpush1.msra.mxu0 %v8624
    %8864 = vmatprep.subr.mxu0 0.0
    %8865 = vmatpush1.msra.mxu0 %v8623
    %8866 = vmatprep.subr.mxu0 0.0
    %8867 = vmatpush1.msra.mxu0 %v8622
    %8868 = vmatprep.subr.mxu0 0.0
    %8869 = vmatpush1.msra.mxu0 %v8621
    %8870 = vmatprep.subr.mxu0 0.0
    %8871 = vmatpush1.msra.mxu0 %v8620
    %8872 = vmatprep.subr.mxu0 0.0
    %8873 = vmatpush1.msra.mxu0 %v8619
    %8874 = vmatprep.subr.mxu0 0.0
    %8875 = vmatpush1.msra.mxu0 %v8618
    %8876 = vmatprep.subr.mxu0 0.0
    %8877 = vmatpush2.msra.mxu0 %v8649
    %8878 = vmatprep.subr.mxu0 0.0
    %8879 = vmatpush2.msra.mxu0 %v8648
    %8880 = vmatprep.subr.mxu0 0.0
    %8881 = vmatpush2.msra.mxu0 %v8647
    %8882 = vmatprep.subr.mxu0 0.0
    %8883 = vmatpush2.msra.mxu0 %v8646
    %8884 = vmatprep.subr.mxu0 0.0
    %8885 = vmatpush2.msra.mxu0 %v8645
    %8886 = vmatprep.subr.mxu0 0.0
    %8887 = vmatpush2.msra.mxu0 %v8644
    %8888 = vmatprep.subr.mxu0 0.0
    %8889 = vmatpush2.msra.mxu0 %v8643
    %8890 = vmatprep.subr.mxu0 0.0
    %8891 = vmatpush2.msra.mxu0 %v8642
    %8892 = vmatprep.subr.mxu0 0.0
    %8893 = vmatpush2.msra.mxu0 %v8641
    %8894 = vmatprep.subr.mxu0 0.0
    %8895 = vmatpush2.msra.mxu0 %v8640
    %8896 = vmatprep.subr.mxu0 0.0
    %8897 = vmatpush2.msra.mxu0 %v8639
    %8898 = vmatprep.subr.mxu0 0.0
    %8899 = vmatpush2.msra.mxu0 %v8638
    %8900 = vmatprep.subr.mxu0 0.0
    %8901 = vmatpush2.msra.mxu0 %v8637
    %8902 = vmatprep.subr.mxu0 0.0
    %8903 = vmatpush2.msra.mxu0 %v8636
    %8904 = vmatprep.subr.mxu0 0.0
    %8905 = vmatpush2.msra.mxu0 %v8635
    %8906 = vmatprep.subr.mxu0 0.0
    %8907 = vmatpush2.msra.mxu0 %v8634
    %8908 = vmatprep.mubr.f32.mxu0 %v8683
    %8909 = vmatmul.mubr.f32.gmra.mxu0 %v8682
    %v8910 = vpop.f32.mrf.mxu0
    %v8911 = vadd.f32 0.0, %v8910
    %v8912 = vpop.f32.mrf.mxu0
    %8913 = vmatprep.mubr.f32.mxu0 %v8685
    %8914 = vmatmul.mubr.f32.gmra.mxu0 %v8684
    %v8915 = vpop.f32.mrf.mxu0
    %v8916 = vadd.f32 0.0, %v8915
    %v8917 = vpop.f32.mrf.mxu0
    %8918 = vmatprep.mubr.f32.mxu0 %v8687
    %8919 = vmatmul.mubr.f32.gmra.mxu0 %v8686
    %v8920 = vpop.f32.mrf.mxu0
    %v8921 = vadd.f32 0.0, %v8920
    %v8922 = vpop.f32.mrf.mxu0
    %8923 = vmatprep.mubr.f32.mxu0 %v8689
    %8924 = vmatmul.mubr.f32.gmra.mxu0 %v8688
    %v8925 = vpop.f32.mrf.mxu0
    %v8926 = vadd.f32 0.0, %v8925
    %v8927 = vpop.f32.mrf.mxu0
    %8928 = vmatprep.mubr.f32.mxu0 %v8691
    %8929 = vmatmul.mubr.f32.gmra.mxu0 %v8690
    %v8930 = vpop.f32.mrf.mxu0
    %v8931 = vadd.f32 0.0, %v8930
    %v8932 = vpop.f32.mrf.mxu0
    %8933 = vmatprep.mubr.f32.mxu0 %v8693
    %8934 = vmatmul.mubr.f32.gmra.mxu0 %v8692
    %v8935 = vpop.f32.mrf.mxu0
    %v8936 = vadd.f32 0.0, %v8935
    %v8937 = vpop.f32.mrf.mxu0
    %8938 = vmatprep.mubr.f32.mxu0 %v8695
    %8939 = vmatmul.mubr.f32.gmra.mxu0 %v8694
    %v8940 = vpop.f32.mrf.mxu0
    %v8941 = vadd.f32 0.0, %v8940
    %v8942 = vpop.f32.mrf.mxu0
    %8943 = vmatprep.mubr.f32.mxu0 %v8697
    %8944 = vmatmul.mubr.f32.gmra.mxu0 %v8696
    %v8945 = vpop.f32.mrf.mxu0
    %v8946 = vadd.f32 0.0, %v8945
    %v8947 = vpop.f32.mrf.mxu0
    %8948 = vmatprep.mubr.f32.mxu0 %v8699
    %8949 = vmatmul.mubr.f32.gmra.mxu0 %v8698
    %v8950 = vpop.f32.mrf.mxu0
    %v8951 = vadd.f32 0.0, %v8950
    %v8952 = vpop.f32.mrf.mxu0
    %8953 = vmatprep.mubr.f32.mxu0 %v8701
    %8954 = vmatmul.mubr.f32.gmra.mxu0 %v8700
    %v8955 = vpop.f32.mrf.mxu0
    %v8956 = vadd.f32 0.0, %v8955
    %v8957 = vpop.f32.mrf.mxu0
    %8958 = vmatprep.mubr.f32.mxu0 %v8703
    %8959 = vmatmul.mubr.f32.gmra.mxu0 %v8702
    %v8960 = vpop.f32.mrf.mxu0
    %v8961 = vadd.f32 0.0, %v8960
    %v8962 = vpop.f32.mrf.mxu0
    %8963 = vmatprep.mubr.f32.mxu0 %v8705
    %8964 = vmatmul.mubr.f32.gmra.mxu0 %v8704
    %v8965 = vpop.f32.mrf.mxu0
    %v8966 = vadd.f32 0.0, %v8965
    %v8967 = vpop.f32.mrf.mxu0
    %8968 = vmatprep.mubr.f32.mxu0 %v8707
    %8969 = vmatmul.mubr.f32.gmra.mxu0 %v8706
    %v8970 = vpop.f32.mrf.mxu0
    %v8971 = vadd.f32 0.0, %v8970
    %v8972 = vpop.f32.mrf.mxu0
    %8973 = vmatprep.mubr.f32.mxu0 %v8709
    %8974 = vmatmul.mubr.f32.gmra.mxu0 %v8708
    %v8975 = vpop.f32.mrf.mxu0
    %v8976 = vadd.f32 0.0, %v8975
    %v8977 = vpop.f32.mrf.mxu0
    %8978 = vmatprep.mubr.f32.mxu0 %v8711
    %8979 = vmatmul.mubr.f32.gmra.mxu0 %v8710
    %v8980 = vpop.f32.mrf.mxu0
    %v8981 = vadd.f32 0.0, %v8980
    %v8982 = vpop.f32.mrf.mxu0
    %8983 = vmatprep.mubr.f32.mxu0 %v8713
    %8984 = vmatmul.mubr.f32.gmra.mxu0 %v8712
    %v8985 = vpop.f32.mrf.mxu0
    %v8986 = vadd.f32 0.0, %v8985
    %v8987 = vpop.f32.mrf.mxu0
    %8988 = vmatprep.mubr.f32.mxu0 %v8715
    %8989 = vmatmul.mubr.f32.gmra.mxu0 %v8714
    %v8990 = vpop.f32.mrf.mxu0
    %v8991 = vadd.f32 0.0, %v8990
    %v8992 = vpop.f32.mrf.mxu0
    %8993 = vmatprep.mubr.f32.mxu0 %v8717
    %8994 = vmatmul.mubr.f32.gmra.mxu0 %v8716
    %v8995 = vpop.f32.mrf.mxu0
    %v8996 = vadd.f32 0.0, %v8995
    %v8997 = vpop.f32.mrf.mxu0
    %8998 = vmatprep.mubr.f32.mxu0 %v8719
    %8999 = vmatmul.mubr.f32.gmra.mxu0 %v8718
    %v9000 = vpop.f32.mrf.mxu0
    %v9001 = vadd.f32 0.0, %v9000
    %v9002 = vpop.f32.mrf.mxu0
    %9003 = vmatprep.mubr.f32.mxu0 %v8721
    %9004 = vmatmul.mubr.f32.gmra.mxu0 %v8720
    %v9005 = vpop.f32.mrf.mxu0
    %v9006 = vadd.f32 0.0, %v9005
    %v9007 = vpop.f32.mrf.mxu0
    %9008 = vmatprep.mubr.f32.mxu0 %v8723
    %9009 = vmatmul.mubr.f32.gmra.mxu0 %v8722
    %v9010 = vpop.f32.mrf.mxu0
    %v9011 = vadd.f32 0.0, %v9010
    %v9012 = vpop.f32.mrf.mxu0
    %9013 = vmatprep.mubr.f32.mxu0 %v8725
    %9014 = vmatmul.mubr.f32.gmra.mxu0 %v8724
    %v9015 = vpop.f32.mrf.mxu0
    %v9016 = vadd.f32 0.0, %v9015
    %v9017 = vpop.f32.mrf.mxu0
    %9018 = vmatprep.mubr.f32.mxu0 %v8727
    %9019 = vmatmul.mubr.f32.gmra.mxu0 %v8726
    %v9020 = vpop.f32.mrf.mxu0
    %v9021 = vadd.f32 0.0, %v9020
    %v9022 = vpop.f32.mrf.mxu0
    %9023 = vmatprep.mubr.f32.mxu0 %v8729
    %9024 = vmatmul.mubr.f32.gmra.mxu0 %v8728
    %v9025 = vpop.f32.mrf.mxu0
    %v9026 = vadd.f32 0.0, %v9025
    %v9027 = vpop.f32.mrf.mxu0
    %9028 = vmatprep.mubr.f32.mxu0 %v8731
    %9029 = vmatmul.mubr.f32.gmra.mxu0 %v8730
    %v9030 = vpop.f32.mrf.mxu0
    %v9031 = vadd.f32 0.0, %v9030
    %v9032 = vpop.f32.mrf.mxu0
    %9033 = vmatprep.mubr.f32.mxu0 %v8733
    %9034 = vmatmul.mubr.f32.gmra.mxu0 %v8732
    %v9035 = vpop.f32.mrf.mxu0
    %v9036 = vadd.f32 0.0, %v9035
    %v9037 = vpop.f32.mrf.mxu0
    %9038 = vmatprep.mubr.f32.mxu0 %v8735
    %9039 = vmatmul.mubr.f32.gmra.mxu0 %v8734
    %v9040 = vpop.f32.mrf.mxu0
    %v9041 = vadd.f32 0.0, %v9040
    %v9042 = vpop.f32.mrf.mxu0
    %9043 = vmatprep.mubr.f32.mxu0 %v8737
    %9044 = vmatmul.mubr.f32.gmra.mxu0 %v8736
    %v9045 = vpop.f32.mrf.mxu0
    %v9046 = vadd.f32 0.0, %v9045
    %v9047 = vpop.f32.mrf.mxu0
    %9048 = vmatprep.mubr.f32.mxu0 %v8739
    %9049 = vmatmul.mubr.f32.gmra.mxu0 %v8738
    %v9050 = vpop.f32.mrf.mxu0
    %v9051 = vadd.f32 0.0, %v9050
    %v9052 = vpop.f32.mrf.mxu0
    %9053 = vmatprep.mubr.f32.mxu0 %v8741
    %9054 = vmatmul.mubr.f32.gmra.mxu0 %v8740
    %v9055 = vpop.f32.mrf.mxu0
    %v9056 = vadd.f32 0.0, %v9055
    %v9057 = vpop.f32.mrf.mxu0
    %9058 = vmatprep.mubr.f32.mxu0 %v8743
    %9059 = vmatmul.mubr.f32.gmra.mxu0 %v8742
    %v9060 = vpop.f32.mrf.mxu0
    %v9061 = vadd.f32 0.0, %v9060
    %v9062 = vpop.f32.mrf.mxu0
    %9063 = vmatprep.mubr.f32.mxu0 %v8745
    %9064 = vmatmul.mubr.f32.gmra.mxu0 %v8744
    %v9065 = vpop.f32.mrf.mxu0
    %v9066 = vadd.f32 0.0, %v9065
    %v9067 = vpop.f32.mrf.mxu0
    %9068 = vmatprep.mubr.f32.mxu0 %v8747
    %9069 = vmatmul.mubr.f32.gmra.mxu0 %v8746
    %v9070 = vpop.f32.mrf.mxu0
    %v9071 = vadd.f32 0.0, %v9070
    %v9072 = vpop.f32.mrf.mxu0
    %9073 = vmatprep.mubr.f32.mxu0 %v8749
    %9074 = vmatmul.mubr.f32.gmra.mxu0 %v8748
    %v9075 = vpop.f32.mrf.mxu0
    %v9076 = vadd.f32 0.0, %v9075
    %v9077 = vpop.f32.mrf.mxu0
    %9078 = vmatprep.mubr.f32.mxu0 %v8751
    %9079 = vmatmul.mubr.f32.gmra.mxu0 %v8750
    %v9080 = vpop.f32.mrf.mxu0
    %v9081 = vadd.f32 0.0, %v9080
    %v9082 = vpop.f32.mrf.mxu0
    %9083 = vmatprep.mubr.f32.mxu0 %v8753
    %9084 = vmatmul.mubr.f32.gmra.mxu0 %v8752
    %v9085 = vpop.f32.mrf.mxu0
    %v9086 = vadd.f32 0.0, %v9085
    %v9087 = vpop.f32.mrf.mxu0
    %9088 = vmatprep.mubr.f32.mxu0 %v8755
    %9089 = vmatmul.mubr.f32.gmra.mxu0 %v8754
    %v9090 = vpop.f32.mrf.mxu0
    %v9091 = vadd.f32 0.0, %v9090
    %v9092 = vpop.f32.mrf.mxu0
    %9093 = vmatprep.mubr.f32.mxu0 %v8757
    %9094 = vmatmul.mubr.f32.gmra.mxu0 %v8756
    %v9095 = vpop.f32.mrf.mxu0
    %v9096 = vadd.f32 0.0, %v9095
    %v9097 = vpop.f32.mrf.mxu0
    %9098 = vmatprep.mubr.f32.mxu0 %v8759
    %9099 = vmatmul.mubr.f32.gmra.mxu0 %v8758
    %v9100 = vpop.f32.mrf.mxu0
    %v9101 = vadd.f32 0.0, %v9100
    %v9102 = vpop.f32.mrf.mxu0
    %9103 = vmatprep.mubr.f32.mxu0 %v8761
    %9104 = vmatmul.mubr.f32.gmra.mxu0 %v8760
    %v9105 = vpop.f32.mrf.mxu0
    %v9106 = vadd.f32 0.0, %v9105
    %v9107 = vpop.f32.mrf.mxu0
    %9108 = vmatprep.mubr.f32.mxu0 %v8763
    %9109 = vmatmul.mubr.f32.gmra.mxu0 %v8762
    %v9110 = vpop.f32.mrf.mxu0
    %v9111 = vadd.f32 0.0, %v9110
    %v9112 = vpop.f32.mrf.mxu0
    %9113 = vmatprep.mubr.f32.mxu0 %v8765
    %9114 = vmatmul.mubr.f32.gmra.mxu0 %v8764
    %v9115 = vpop.f32.mrf.mxu0
    %v9116 = vadd.f32 0.0, %v9115
    %v9117 = vpop.f32.mrf.mxu0
    %9118 = vmatprep.mubr.f32.mxu0 %v8767
    %9119 = vmatmul.mubr.f32.gmra.mxu0 %v8766
    %v9120 = vpop.f32.mrf.mxu0
    %v9121 = vadd.f32 0.0, %v9120
    %v9122 = vpop.f32.mrf.mxu0
    %9123 = vmatprep.mubr.f32.mxu0 %v8769
    %9124 = vmatmul.mubr.f32.gmra.mxu0 %v8768
    %v9125 = vpop.f32.mrf.mxu0
    %v9126 = vadd.f32 0.0, %v9125
    %v9127 = vpop.f32.mrf.mxu0
    %9128 = vmatprep.mubr.f32.mxu0 %v8771
    %9129 = vmatmul.mubr.f32.gmra.mxu0 %v8770
    %v9130 = vpop.f32.mrf.mxu0
    %v9131 = vadd.f32 0.0, %v9130
    %v9132 = vpop.f32.mrf.mxu0
    %9133 = vmatprep.mubr.f32.mxu0 %v8773
    %9134 = vmatmul.mubr.f32.gmra.mxu0 %v8772
    %v9135 = vpop.f32.mrf.mxu0
    %v9136 = vadd.f32 0.0, %v9135
    %v9137 = vpop.f32.mrf.mxu0
    %9138 = vmatprep.mubr.f32.mxu0 %v8775
    %9139 = vmatmul.mubr.f32.gmra.mxu0 %v8774
    %v9140 = vpop.f32.mrf.mxu0
    %v9141 = vadd.f32 0.0, %v9140
    %v9142 = vpop.f32.mrf.mxu0
    %9143 = vmatprep.mubr.f32.mxu0 %v8777
    %9144 = vmatmul.mubr.f32.gmra.mxu0 %v8776
    %v9145 = vpop.f32.mrf.mxu0
    %v9146 = vadd.f32 0.0, %v9145
    %v9147 = vpop.f32.mrf.mxu0
    %9148 = vmatprep.mubr.f32.mxu0 %v8779
    %9149 = vmatmul.mubr.f32.gmra.mxu0 %v8778
    %v9150 = vpop.f32.mrf.mxu0
    %v9151 = vadd.f32 0.0, %v9150
    %v9152 = vpop.f32.mrf.mxu0
    %9153 = vmatprep.mubr.f32.mxu0 %v8781
    %9154 = vmatmul.mubr.f32.gmra.mxu0 %v8780
    %v9155 = vpop.f32.mrf.mxu0
    %v9156 = vadd.f32 0.0, %v9155
    %v9157 = vpop.f32.mrf.mxu0
    %9158 = vmatprep.mubr.f32.mxu0 %v8783
    %9159 = vmatmul.mubr.f32.gmra.mxu0 %v8782
    %v9160 = vpop.f32.mrf.mxu0
    %v9161 = vadd.f32 0.0, %v9160
    %v9162 = vpop.f32.mrf.mxu0
    %9163 = vmatprep.mubr.f32.mxu0 %v8785
    %9164 = vmatmul.mubr.f32.gmra.mxu0 %v8784
    %v9165 = vpop.f32.mrf.mxu0
    %v9166 = vadd.f32 0.0, %v9165
    %v9167 = vpop.f32.mrf.mxu0
    %9168 = vmatprep.mubr.f32.mxu0 %v8787
    %9169 = vmatmul.mubr.f32.gmra.mxu0 %v8786
    %v9170 = vpop.f32.mrf.mxu0
    %v9171 = vadd.f32 0.0, %v9170
    %v9172 = vpop.f32.mrf.mxu0
    %9173 = vmatprep.mubr.f32.mxu0 %v8789
    %9174 = vmatmul.mubr.f32.gmra.mxu0 %v8788
    %v9175 = vpop.f32.mrf.mxu0
    %v9176 = vadd.f32 0.0, %v9175
    %v9177 = vpop.f32.mrf.mxu0
    %9178 = vmatprep.mubr.f32.mxu0 %v8791
    %9179 = vmatmul.mubr.f32.gmra.mxu0 %v8790
    %v9180 = vpop.f32.mrf.mxu0
    %v9181 = vadd.f32 0.0, %v9180
    %v9182 = vpop.f32.mrf.mxu0
    %9183 = vmatprep.mubr.f32.mxu0 %v8793
    %9184 = vmatmul.mubr.f32.gmra.mxu0 %v8792
    %v9185 = vpop.f32.mrf.mxu0
    %v9186 = vadd.f32 0.0, %v9185
    %v9187 = vpop.f32.mrf.mxu0
    %9188 = vmatprep.mubr.f32.mxu0 %v8795
    %9189 = vmatmul.mubr.f32.gmra.mxu0 %v8794
    %v9190 = vpop.f32.mrf.mxu0
    %v9191 = vadd.f32 0.0, %v9190
    %v9192 = vpop.f32.mrf.mxu0
    %9193 = vmatprep.mubr.f32.mxu0 %v8797
    %9194 = vmatmul.mubr.f32.gmra.mxu0 %v8796
    %v9195 = vpop.f32.mrf.mxu0
    %v9196 = vadd.f32 0.0, %v9195
    %v9197 = vpop.f32.mrf.mxu0
    %9198 = vmatprep.mubr.f32.mxu0 %v8799
    %9199 = vmatmul.mubr.f32.gmra.mxu0 %v8798
    %v9200 = vpop.f32.mrf.mxu0
    %v9201 = vadd.f32 0.0, %v9200
    %v9202 = vpop.f32.mrf.mxu0
    %9203 = vmatprep.mubr.f32.mxu0 %v8801
    %9204 = vmatmul.mubr.f32.gmra.mxu0 %v8800
    %v9205 = vpop.f32.mrf.mxu0
    %v9206 = vadd.f32 0.0, %v9205
    %v9207 = vpop.f32.mrf.mxu0
    %9208 = vmatprep.mubr.f32.mxu0 %v8803
    %9209 = vmatmul.mubr.f32.gmra.mxu0 %v8802
    %v9210 = vpop.f32.mrf.mxu0
    %v9211 = vadd.f32 0.0, %v9210
    %v9212 = vpop.f32.mrf.mxu0
    %9213 = vmatprep.mubr.f32.mxu0 %v8805
    %9214 = vmatmul.mubr.f32.gmra.mxu0 %v8804
    %v9215 = vpop.f32.mrf.mxu0
    %v9216 = vadd.f32 0.0, %v9215
    %v9217 = vpop.f32.mrf.mxu0
    %9218 = vmatprep.mubr.f32.mxu0 %v8807
    %9219 = vmatmul.mubr.f32.gmra.mxu0 %v8806
    %v9220 = vpop.f32.mrf.mxu0
    %v9221 = vadd.f32 0.0, %v9220
    %v9222 = vpop.f32.mrf.mxu0
    %9223 = vmatprep.mubr.f32.mxu0 %v8809
    %9224 = vmatmul.mubr.f32.gmra.mxu0 %v8808
    %v9225 = vpop.f32.mrf.mxu0
    %v9226 = vadd.f32 0.0, %v9225
    %v9227 = vpop.f32.mrf.mxu0
    %9228 = vmatprep.mubr.f32.mxu0 %v8811
    %9229 = vmatmul.mubr.f32.gmra.mxu0 %v8810
    %v9230 = vpop.f32.mrf.mxu0
    %v9231 = vadd.f32 0.0, %v9230
    %v9232 = vpop.f32.mrf.mxu0
    %9233 = vmatprep.mubr.f32.mxu0 %v8813
    %9234 = vmatmul.mubr.f32.gmra.mxu0 %v8812
    %v9235 = vpop.f32.mrf.mxu0
    %v9236 = vadd.f32 0.0, %v9235
    %v9237 = vpop.f32.mrf.mxu0
    %9238 = vmatprep.mubr.f32.mxu0 %v8815
    %9239 = vmatmul.mubr.f32.gmra.mxu0 %v8814
    %v9240 = vpop.f32.mrf.mxu0
    %v9241 = vadd.f32 0.0, %v9240
    %v9242 = vpop.f32.mrf.mxu0
    %9243 = vmatprep.mubr.f32.mxu0 %v8817
    %9244 = vmatmul.mubr.f32.gmra.mxu0 %v8816
    %v9245 = vpop.f32.mrf.mxu0
    %v9246 = vadd.f32 0.0, %v9245
    %v9247 = vpop.f32.mrf.mxu0
    %9248 = vmatprep.mubr.f32.mxu0 %v8819
    %9249 = vmatmul.mubr.f32.gmra.mxu0 %v8818
    %v9250 = vpop.f32.mrf.mxu0
    %v9251 = vadd.f32 0.0, %v9250
    %v9252 = vpop.f32.mrf.mxu0
    %9253 = vmatprep.mubr.f32.mxu0 %v8821
    %9254 = vmatmul.mubr.f32.gmra.mxu0 %v8820
    %v9255 = vpop.f32.mrf.mxu0
    %v9256 = vadd.f32 0.0, %v9255
    %v9257 = vpop.f32.mrf.mxu0
    %9258 = vmatprep.mubr.f32.mxu0 %v8823
    %9259 = vmatmul.mubr.f32.gmra.mxu0 %v8822
    %v9260 = vpop.f32.mrf.mxu0
    %v9261 = vadd.f32 0.0, %v9260
    %v9262 = vpop.f32.mrf.mxu0
    %9263 = vmatprep.mubr.f32.mxu0 %v8825
    %9264 = vmatmul.mubr.f32.gmra.mxu0 %v8824
    %v9265 = vpop.f32.mrf.mxu0
    %v9266 = vadd.f32 0.0, %v9265
    %v9267 = vpop.f32.mrf.mxu0
    %9268 = vdwg.mxu0
    %9277 = vrot.lane.b32.xlu0 %v8951, 16
    %v9278 = vpop.permute.xlu0 %9277
    %9279 = vrot.lane.b32.xlu0 %v8956, 16
    %v9280 = vpop.permute.xlu0 %9279
    %9281 = vrot.lane.b32.xlu0 %v8961, 16
    %v9282 = vpop.permute.xlu0 %9281
    %9283 = vrot.lane.b32.xlu0 %v8966, 16
    %v9284 = vpop.permute.xlu0 %9283
    %9285 = vrot.lane.b32.xlu0 %v8971, 16
    %v9286 = vpop.permute.xlu0 %9285
    %9287 = vrot.lane.b32.xlu0 %v8976, 16
    %v9288 = vpop.permute.xlu0 %9287
    %9289 = vrot.lane.b32.xlu0 %v8981, 16
    %v9290 = vpop.permute.xlu0 %9289
    %9291 = vrot.lane.b32.xlu0 %v8986, 16
    %v9292 = vpop.permute.xlu0 %9291
    %9309 = vrot.lane.b32.xlu0 %v8991, 32
    %v9310 = vpop.permute.xlu0 %9309
    %9311 = vrot.lane.b32.xlu0 %v8996, 32
    %v9312 = vpop.permute.xlu0 %9311
    %9313 = vrot.lane.b32.xlu0 %v9001, 32
    %v9314 = vpop.permute.xlu0 %9313
    %9315 = vrot.lane.b32.xlu0 %v9006, 32
    %v9316 = vpop.permute.xlu0 %9315
    %9317 = vrot.lane.b32.xlu0 %v9011, 32
    %v9318 = vpop.permute.xlu0 %9317
    %9319 = vrot.lane.b32.xlu0 %v9016, 32
    %v9320 = vpop.permute.xlu0 %9319
    %9321 = vrot.lane.b32.xlu0 %v9021, 32
    %v9322 = vpop.permute.xlu0 %9321
    %9323 = vrot.lane.b32.xlu0 %v9026, 32
    %v9324 = vpop.permute.xlu0 %9323
    %9341 = vrot.lane.b32.xlu0 %v9031, 48
    %v9342 = vpop.permute.xlu0 %9341
    %9343 = vrot.lane.b32.xlu0 %v9036, 48
    %v9344 = vpop.permute.xlu0 %9343
    %9345 = vrot.lane.b32.xlu0 %v9041, 48
    %v9346 = vpop.permute.xlu0 %9345
    %9347 = vrot.lane.b32.xlu0 %v9046, 48
    %v9348 = vpop.permute.xlu0 %9347
    %9349 = vrot.lane.b32.xlu0 %v9051, 48
    %v9350 = vpop.permute.xlu0 %9349
    %9351 = vrot.lane.b32.xlu0 %v9056, 48
    %v9352 = vpop.permute.xlu0 %9351
    %9353 = vrot.lane.b32.xlu0 %v9061, 48
    %v9354 = vpop.permute.xlu0 %9353
    %9355 = vrot.lane.b32.xlu0 %v9066, 48
    %v9356 = vpop.permute.xlu0 %9355
    %9373 = vrot.lane.b32.xlu0 %v9071, 64
    %v9374 = vpop.permute.xlu0 %9373
    %9375 = vrot.lane.b32.xlu0 %v9076, 64
    %v9376 = vpop.permute.xlu0 %9375
    %9377 = vrot.lane.b32.xlu0 %v9081, 64
    %v9378 = vpop.permute.xlu0 %9377
    %9379 = vrot.lane.b32.xlu0 %v9086, 64
    %v9380 = vpop.permute.xlu0 %9379
    %9381 = vrot.lane.b32.xlu0 %v9091, 64
    %v9382 = vpop.permute.xlu0 %9381
    %9383 = vrot.lane.b32.xlu0 %v9096, 64
    %v9384 = vpop.permute.xlu0 %9383
    %9385 = vrot.lane.b32.xlu0 %v9101, 64
    %v9386 = vpop.permute.xlu0 %9385
    %9387 = vrot.lane.b32.xlu0 %v9106, 64
    %v9388 = vpop.permute.xlu0 %9387
    %9405 = vrot.lane.b32.xlu0 %v9111, 80
    %v9406 = vpop.permute.xlu0 %9405
    %9407 = vrot.lane.b32.xlu0 %v9116, 80
    %v9408 = vpop.permute.xlu0 %9407
    %9409 = vrot.lane.b32.xlu0 %v9121, 80
    %v9410 = vpop.permute.xlu0 %9409
    %9411 = vrot.lane.b32.xlu0 %v9126, 80
    %v9412 = vpop.permute.xlu0 %9411
    %9413 = vrot.lane.b32.xlu0 %v9131, 80
    %v9414 = vpop.permute.xlu0 %9413
    %9415 = vrot.lane.b32.xlu0 %v9136, 80
    %v9416 = vpop.permute.xlu0 %9415
    %9417 = vrot.lane.b32.xlu0 %v9141, 80
    %v9418 = vpop.permute.xlu0 %9417
    %9419 = vrot.lane.b32.xlu0 %v9146, 80
    %v9420 = vpop.permute.xlu0 %9419
    %9437 = vrot.lane.b32.xlu0 %v9151, 96
    %v9438 = vpop.permute.xlu0 %9437
    %9439 = vrot.lane.b32.xlu0 %v9156, 96
    %v9440 = vpop.permute.xlu0 %9439
    %9441 = vrot.lane.b32.xlu0 %v9161, 96
    %v9442 = vpop.permute.xlu0 %9441
    %9443 = vrot.lane.b32.xlu0 %v9166, 96
    %v9444 = vpop.permute.xlu0 %9443
    %9445 = vrot.lane.b32.xlu0 %v9171, 96
    %v9446 = vpop.permute.xlu0 %9445
    %9447 = vrot.lane.b32.xlu0 %v9176, 96
    %v9448 = vpop.permute.xlu0 %9447
    %9449 = vrot.lane.b32.xlu0 %v9181, 96
    %v9450 = vpop.permute.xlu0 %9449
    %9451 = vrot.lane.b32.xlu0 %v9186, 96
    %v9452 = vpop.permute.xlu0 %9451
    %9469 = vrot.lane.b32.xlu0 %v9191, 112
    %v9470 = vpop.permute.xlu0 %9469
    %9471 = vrot.lane.b32.xlu0 %v9196, 112
    %v9472 = vpop.permute.xlu0 %9471
    %9473 = vrot.lane.b32.xlu0 %v9201, 112
    %v9474 = vpop.permute.xlu0 %9473
    %9475 = vrot.lane.b32.xlu0 %v9206, 112
    %v9476 = vpop.permute.xlu0 %9475
    %9477 = vrot.lane.b32.xlu0 %v9211, 112
    %v9478 = vpop.permute.xlu0 %9477
    %9479 = vrot.lane.b32.xlu0 %v9216, 112
    %v9480 = vpop.permute.xlu0 %9479
    %9481 = vrot.lane.b32.xlu0 %v9221, 112
    %v9482 = vpop.permute.xlu0 %9481
    %9483 = vrot.lane.b32.xlu0 %v9226, 112
    %v9484 = vpop.permute.xlu0 %9483
    %v9493 = vsel %vm7036, %v8911, %v9278
    %v9494 = vsel %vm7036, %v8916, %v9280
    %v9495 = vsel %vm7036, %v8921, %v9282
    %v9496 = vsel %vm7036, %v8926, %v9284
    %v9497 = vsel %vm7036, %v8931, %v9286
    %v9498 = vsel %vm7036, %v8936, %v9288
    %v9499 = vsel %vm7036, %v8941, %v9290
    %v9500 = vsel %vm7036, %v8946, %v9292
    %v9501 = vsel %vm7164, %v9493, %v9310
    %v9502 = vsel %vm7164, %v9494, %v9312
    %v9503 = vsel %vm7164, %v9495, %v9314
    %v9504 = vsel %vm7164, %v9496, %v9316
    %v9505 = vsel %vm7164, %v9497, %v9318
    %v9506 = vsel %vm7164, %v9498, %v9320
    %v9507 = vsel %vm7164, %v9499, %v9322
    %v9508 = vsel %vm7164, %v9500, %v9324
    %v9509 = vsel %vm7294, %v9501, %v9342
    %v9510 = vsel %vm7294, %v9502, %v9344
    %v9511 = vsel %vm7294, %v9503, %v9346
    %v9512 = vsel %vm7294, %v9504, %v9348
    %v9513 = vsel %vm7294, %v9505, %v9350
    %v9514 = vsel %vm7294, %v9506, %v9352
    %v9515 = vsel %vm7294, %v9507, %v9354
    %v9516 = vsel %vm7294, %v9508, %v9356
    %v9517 = vsel %vm7424, %v9509, %v9374
    %v9518 = vsel %vm7424, %v9510, %v9376
    %v9519 = vsel %vm7424, %v9511, %v9378
    %v9520 = vsel %vm7424, %v9512, %v9380
    %v9521 = vsel %vm7424, %v9513, %v9382
    %v9522 = vsel %vm7424, %v9514, %v9384
    %v9523 = vsel %vm7424, %v9515, %v9386
    %v9524 = vsel %vm7424, %v9516, %v9388
    %vm9525 = vcmask 654336
    %v9526 = vsel %vm9525, %v9517, %v9406
    %v9527 = vsel %vm9525, %v9518, %v9408
    %v9528 = vsel %vm9525, %v9519, %v9410
    %v9529 = vsel %vm9525, %v9520, %v9412
    %v9530 = vsel %vm9525, %v9521, %v9414
    %v9531 = vsel %vm9525, %v9522, %v9416
    %v9532 = vsel %vm9525, %v9523, %v9418
    %v9533 = vsel %vm9525, %v9524, %v9420
    %vm9534 = vcmask 785408
    %v9535 = vsel %vm9534, %v9526, %v9438
    %v9536 = vsel %vm9534, %v9527, %v9440
    %v9537 = vsel %vm9534, %v9528, %v9442
    %v9538 = vsel %vm9534, %v9529, %v9444
    %v9539 = vsel %vm9534, %v9530, %v9446
    %v9540 = vsel %vm9534, %v9531, %v9448
    %v9541 = vsel %vm9534, %v9532, %v9450
    %v9542 = vsel %vm9534, %v9533, %v9452
    %vm9543 = vcmask 916480
    %v9544 = vsel %vm9543, %v9535, %v9470
    %v9545 = vsel %vm9543, %v9536, %v9472
    %v9546 = vsel %vm9543, %v9537, %v9474
    %v9547 = vsel %vm9543, %v9538, %v9476
    %v9548 = vsel %vm9543, %v9539, %v9478
    %v9549 = vsel %vm9543, %v9540, %v9480
    %v9550 = vsel %vm9543, %v9541, %v9482
    %v9551 = vsel %vm9543, %v9542, %v9484
    %9552 = vmatprep.subr.mxu0 0.0
    %9553 = vmatpush1.msra.mxu0 %v8665
    %9554 = vmatprep.subr.mxu0 0.0
    %9555 = vmatpush1.msra.mxu0 %v8664
    %9556 = vmatprep.subr.mxu0 0.0
    %9557 = vmatpush1.msra.mxu0 %v8663
    %9558 = vmatprep.subr.mxu0 0.0
    %9559 = vmatpush1.msra.mxu0 %v8662
    %9560 = vmatprep.subr.mxu0 0.0
    %9561 = vmatpush1.msra.mxu0 %v8661
    %9562 = vmatprep.subr.mxu0 0.0
    %9563 = vmatpush1.msra.mxu0 %v8660
    %9564 = vmatprep.subr.mxu0 0.0
    %9565 = vmatpush1.msra.mxu0 %v8659
    %9566 = vmatprep.subr.mxu0 0.0
    %9567 = vmatpush1.msra.mxu0 %v8658
    %9568 = vmatprep.subr.mxu0 0.0
    %9569 = vmatpush1.msra.mxu0 %v8657
    %9570 = vmatprep.subr.mxu0 0.0
    %9571 = vmatpush1.msra.mxu0 %v8656
    %9572 = vmatprep.subr.mxu0 0.0
    %9573 = vmatpush1.msra.mxu0 %v8655
    %9574 = vmatprep.subr.mxu0 0.0
    %9575 = vmatpush1.msra.mxu0 %v8654
    %9576 = vmatprep.subr.mxu0 0.0
    %9577 = vmatpush1.msra.mxu0 %v8653
    %9578 = vmatprep.subr.mxu0 0.0
    %9579 = vmatpush1.msra.mxu0 %v8652
    %9580 = vmatprep.subr.mxu0 0.0
    %9581 = vmatpush1.msra.mxu0 %v8651
    %9582 = vmatprep.subr.mxu0 0.0
    %9583 = vmatpush1.msra.mxu0 %v8650
    %9584 = vmatprep.subr.mxu0 0.0
    %9585 = vmatpush2.msra.mxu0 %v8681
    %9586 = vmatprep.subr.mxu0 0.0
    %9587 = vmatpush2.msra.mxu0 %v8680
    %9588 = vmatprep.subr.mxu0 0.0
    %9589 = vmatpush2.msra.mxu0 %v8679
    %9590 = vmatprep.subr.mxu0 0.0
    %9591 = vmatpush2.msra.mxu0 %v8678
    %9592 = vmatprep.subr.mxu0 0.0
    %9593 = vmatpush2.msra.mxu0 %v8677
    %9594 = vmatprep.subr.mxu0 0.0
    %9595 = vmatpush2.msra.mxu0 %v8676
    %9596 = vmatprep.subr.mxu0 0.0
    %9597 = vmatpush2.msra.mxu0 %v8675
    %9598 = vmatprep.subr.mxu0 0.0
    %9599 = vmatpush2.msra.mxu0 %v8674
    %9600 = vmatprep.subr.mxu0 0.0
    %9601 = vmatpush2.msra.mxu0 %v8673
    %9602 = vmatprep.subr.mxu0 0.0
    %9603 = vmatpush2.msra.mxu0 %v8672
    %9604 = vmatprep.subr.mxu0 0.0
    %9605 = vmatpush2.msra.mxu0 %v8671
    %9606 = vmatprep.subr.mxu0 0.0
    %9607 = vmatpush2.msra.mxu0 %v8670
    %9608 = vmatprep.subr.mxu0 0.0
    %9609 = vmatpush2.msra.mxu0 %v8669
    %9610 = vmatprep.subr.mxu0 0.0
    %9611 = vmatpush2.msra.mxu0 %v8668
    %9612 = vmatprep.subr.mxu0 0.0
    %9613 = vmatpush2.msra.mxu0 %v8667
    %9614 = vmatprep.subr.mxu0 0.0
    %9615 = vmatpush2.msra.mxu0 %v8666
    %9616 = vmatprep.mubr.f32.mxu0 %v8683
    %9617 = vmatmul.mubr.f32.gmra.mxu0 %v8682
    %v9618 = vpop.f32.mrf.mxu0
    %v9619 = vadd.f32 0.0, %v9618
    %v9620 = vpop.f32.mrf.mxu0
    %9621 = vmatprep.mubr.f32.mxu0 %v8685
    %9622 = vmatmul.mubr.f32.gmra.mxu0 %v8684
    %v9623 = vpop.f32.mrf.mxu0
    %v9624 = vadd.f32 0.0, %v9623
    %v9625 = vpop.f32.mrf.mxu0
    %9626 = vmatprep.mubr.f32.mxu0 %v8687
    %9627 = vmatmul.mubr.f32.gmra.mxu0 %v8686
    %v9628 = vpop.f32.mrf.mxu0
    %v9629 = vadd.f32 0.0, %v9628
    %v9630 = vpop.f32.mrf.mxu0
    %9631 = vmatprep.mubr.f32.mxu0 %v8689
    %9632 = vmatmul.mubr.f32.gmra.mxu0 %v8688
    %v9633 = vpop.f32.mrf.mxu0
    %v9634 = vadd.f32 0.0, %v9633
    %v9635 = vpop.f32.mrf.mxu0
    %9636 = vmatprep.mubr.f32.mxu0 %v8691
    %9637 = vmatmul.mubr.f32.gmra.mxu0 %v8690
    %v9638 = vpop.f32.mrf.mxu0
    %v9639 = vadd.f32 0.0, %v9638
    %v9640 = vpop.f32.mrf.mxu0
    %9641 = vmatprep.mubr.f32.mxu0 %v8693
    %9642 = vmatmul.mubr.f32.gmra.mxu0 %v8692
    %v9643 = vpop.f32.mrf.mxu0
    %v9644 = vadd.f32 0.0, %v9643
    %v9645 = vpop.f32.mrf.mxu0
    %9646 = vmatprep.mubr.f32.mxu0 %v8695
    %9647 = vmatmul.mubr.f32.gmra.mxu0 %v8694
    %v9648 = vpop.f32.mrf.mxu0
    %v9649 = vadd.f32 0.0, %v9648
    %v9650 = vpop.f32.mrf.mxu0
    %9651 = vmatprep.mubr.f32.mxu0 %v8697
    %9652 = vmatmul.mubr.f32.gmra.mxu0 %v8696
    %v9653 = vpop.f32.mrf.mxu0
    %v9654 = vadd.f32 0.0, %v9653
    %v9655 = vpop.f32.mrf.mxu0
    %9656 = vmatprep.mubr.f32.mxu0 %v8699
    %9657 = vmatmul.mubr.f32.gmra.mxu0 %v8698
    %v9658 = vpop.f32.mrf.mxu0
    %v9659 = vadd.f32 0.0, %v9658
    %v9660 = vpop.f32.mrf.mxu0
    %9661 = vmatprep.mubr.f32.mxu0 %v8701
    %9662 = vmatmul.mubr.f32.gmra.mxu0 %v8700
    %v9663 = vpop.f32.mrf.mxu0
    %v9664 = vadd.f32 0.0, %v9663
    %v9665 = vpop.f32.mrf.mxu0
    %9666 = vmatprep.mubr.f32.mxu0 %v8703
    %9667 = vmatmul.mubr.f32.gmra.mxu0 %v8702
    %v9668 = vpop.f32.mrf.mxu0
    %v9669 = vadd.f32 0.0, %v9668
    %v9670 = vpop.f32.mrf.mxu0
    %9671 = vmatprep.mubr.f32.mxu0 %v8705
    %9672 = vmatmul.mubr.f32.gmra.mxu0 %v8704
    %v9673 = vpop.f32.mrf.mxu0
    %v9674 = vadd.f32 0.0, %v9673
    %v9675 = vpop.f32.mrf.mxu0
    %9676 = vmatprep.mubr.f32.mxu0 %v8707
    %9677 = vmatmul.mubr.f32.gmra.mxu0 %v8706
    %v9678 = vpop.f32.mrf.mxu0
    %v9679 = vadd.f32 0.0, %v9678
    %v9680 = vpop.f32.mrf.mxu0
    %9681 = vmatprep.mubr.f32.mxu0 %v8709
    %9682 = vmatmul.mubr.f32.gmra.mxu0 %v8708
    %v9683 = vpop.f32.mrf.mxu0
    %v9684 = vadd.f32 0.0, %v9683
    %v9685 = vpop.f32.mrf.mxu0
    %9686 = vmatprep.mubr.f32.mxu0 %v8711
    %9687 = vmatmul.mubr.f32.gmra.mxu0 %v8710
    %v9688 = vpop.f32.mrf.mxu0
    %v9689 = vadd.f32 0.0, %v9688
    %v9690 = vpop.f32.mrf.mxu0
    %9691 = vmatprep.mubr.f32.mxu0 %v8713
    %9692 = vmatmul.mubr.f32.gmra.mxu0 %v8712
    %v9693 = vpop.f32.mrf.mxu0
    %v9694 = vadd.f32 0.0, %v9693
    %v9695 = vpop.f32.mrf.mxu0
    %9696 = vmatprep.mubr.f32.mxu0 %v8715
    %9697 = vmatmul.mubr.f32.gmra.mxu0 %v8714
    %v9698 = vpop.f32.mrf.mxu0
    %v9699 = vadd.f32 0.0, %v9698
    %v9700 = vpop.f32.mrf.mxu0
    %9701 = vmatprep.mubr.f32.mxu0 %v8717
    %9702 = vmatmul.mubr.f32.gmra.mxu0 %v8716
    %v9703 = vpop.f32.mrf.mxu0
    %v9704 = vadd.f32 0.0, %v9703
    %v9705 = vpop.f32.mrf.mxu0
    %9706 = vmatprep.mubr.f32.mxu0 %v8719
    %9707 = vmatmul.mubr.f32.gmra.mxu0 %v8718
    %v9708 = vpop.f32.mrf.mxu0
    %v9709 = vadd.f32 0.0, %v9708
    %v9710 = vpop.f32.mrf.mxu0
    %9711 = vmatprep.mubr.f32.mxu0 %v8721
    %9712 = vmatmul.mubr.f32.gmra.mxu0 %v8720
    %v9713 = vpop.f32.mrf.mxu0
    %v9714 = vadd.f32 0.0, %v9713
    %v9715 = vpop.f32.mrf.mxu0
    %9716 = vmatprep.mubr.f32.mxu0 %v8723
    %9717 = vmatmul.mubr.f32.gmra.mxu0 %v8722
    %v9718 = vpop.f32.mrf.mxu0
    %v9719 = vadd.f32 0.0, %v9718
    %v9720 = vpop.f32.mrf.mxu0
    %9721 = vmatprep.mubr.f32.mxu0 %v8725
    %9722 = vmatmul.mubr.f32.gmra.mxu0 %v8724
    %v9723 = vpop.f32.mrf.mxu0
    %v9724 = vadd.f32 0.0, %v9723
    %v9725 = vpop.f32.mrf.mxu0
    %9726 = vmatprep.mubr.f32.mxu0 %v8727
    %9727 = vmatmul.mubr.f32.gmra.mxu0 %v8726
    %v9728 = vpop.f32.mrf.mxu0
    %v9729 = vadd.f32 0.0, %v9728
    %v9730 = vpop.f32.mrf.mxu0
    %9731 = vmatprep.mubr.f32.mxu0 %v8729
    %9732 = vmatmul.mubr.f32.gmra.mxu0 %v8728
    %v9733 = vpop.f32.mrf.mxu0
    %v9734 = vadd.f32 0.0, %v9733
    %v9735 = vpop.f32.mrf.mxu0
    %9736 = vmatprep.mubr.f32.mxu0 %v8731
    %9737 = vmatmul.mubr.f32.gmra.mxu0 %v8730
    %v9738 = vpop.f32.mrf.mxu0
    %v9739 = vadd.f32 0.0, %v9738
    %v9740 = vpop.f32.mrf.mxu0
    %9741 = vmatprep.mubr.f32.mxu0 %v8733
    %9742 = vmatmul.mubr.f32.gmra.mxu0 %v8732
    %v9743 = vpop.f32.mrf.mxu0
    %v9744 = vadd.f32 0.0, %v9743
    %v9745 = vpop.f32.mrf.mxu0
    %9746 = vmatprep.mubr.f32.mxu0 %v8735
    %9747 = vmatmul.mubr.f32.gmra.mxu0 %v8734
    %v9748 = vpop.f32.mrf.mxu0
    %v9749 = vadd.f32 0.0, %v9748
    %v9750 = vpop.f32.mrf.mxu0
    %9751 = vmatprep.mubr.f32.mxu0 %v8737
    %9752 = vmatmul.mubr.f32.gmra.mxu0 %v8736
    %v9753 = vpop.f32.mrf.mxu0
    %v9754 = vadd.f32 0.0, %v9753
    %v9755 = vpop.f32.mrf.mxu0
    %9756 = vmatprep.mubr.f32.mxu0 %v8739
    %9757 = vmatmul.mubr.f32.gmra.mxu0 %v8738
    %v9758 = vpop.f32.mrf.mxu0
    %v9759 = vadd.f32 0.0, %v9758
    %v9760 = vpop.f32.mrf.mxu0
    %9761 = vmatprep.mubr.f32.mxu0 %v8741
    %9762 = vmatmul.mubr.f32.gmra.mxu0 %v8740
    %v9763 = vpop.f32.mrf.mxu0
    %v9764 = vadd.f32 0.0, %v9763
    %v9765 = vpop.f32.mrf.mxu0
    %9766 = vmatprep.mubr.f32.mxu0 %v8743
    %9767 = vmatmul.mubr.f32.gmra.mxu0 %v8742
    %v9768 = vpop.f32.mrf.mxu0
    %v9769 = vadd.f32 0.0, %v9768
    %v9770 = vpop.f32.mrf.mxu0
    %9771 = vmatprep.mubr.f32.mxu0 %v8745
    %9772 = vmatmul.mubr.f32.gmra.mxu0 %v8744
    %v9773 = vpop.f32.mrf.mxu0
    %v9774 = vadd.f32 0.0, %v9773
    %v9775 = vpop.f32.mrf.mxu0
    %9776 = vmatprep.mubr.f32.mxu0 %v8747
    %9777 = vmatmul.mubr.f32.gmra.mxu0 %v8746
    %v9778 = vpop.f32.mrf.mxu0
    %v9779 = vadd.f32 0.0, %v9778
    %v9780 = vpop.f32.mrf.mxu0
    %9781 = vmatprep.mubr.f32.mxu0 %v8749
    %9782 = vmatmul.mubr.f32.gmra.mxu0 %v8748
    %v9783 = vpop.f32.mrf.mxu0
    %v9784 = vadd.f32 0.0, %v9783
    %v9785 = vpop.f32.mrf.mxu0
    %9786 = vmatprep.mubr.f32.mxu0 %v8751
    %9787 = vmatmul.mubr.f32.gmra.mxu0 %v8750
    %v9788 = vpop.f32.mrf.mxu0
    %v9789 = vadd.f32 0.0, %v9788
    %v9790 = vpop.f32.mrf.mxu0
    %9791 = vmatprep.mubr.f32.mxu0 %v8753
    %9792 = vmatmul.mubr.f32.gmra.mxu0 %v8752
    %v9793 = vpop.f32.mrf.mxu0
    %v9794 = vadd.f32 0.0, %v9793
    %v9795 = vpop.f32.mrf.mxu0
    %9796 = vmatprep.mubr.f32.mxu0 %v8755
    %9797 = vmatmul.mubr.f32.gmra.mxu0 %v8754
    %v9798 = vpop.f32.mrf.mxu0
    %v9799 = vadd.f32 0.0, %v9798
    %v9800 = vpop.f32.mrf.mxu0
    %9801 = vmatprep.mubr.f32.mxu0 %v8757
    %9802 = vmatmul.mubr.f32.gmra.mxu0 %v8756
    %v9803 = vpop.f32.mrf.mxu0
    %v9804 = vadd.f32 0.0, %v9803
    %v9805 = vpop.f32.mrf.mxu0
    %9806 = vmatprep.mubr.f32.mxu0 %v8759
    %9807 = vmatmul.mubr.f32.gmra.mxu0 %v8758
    %v9808 = vpop.f32.mrf.mxu0
    %v9809 = vadd.f32 0.0, %v9808
    %v9810 = vpop.f32.mrf.mxu0
    %9811 = vmatprep.mubr.f32.mxu0 %v8761
    %9812 = vmatmul.mubr.f32.gmra.mxu0 %v8760
    %v9813 = vpop.f32.mrf.mxu0
    %v9814 = vadd.f32 0.0, %v9813
    %v9815 = vpop.f32.mrf.mxu0
    %9816 = vmatprep.mubr.f32.mxu0 %v8763
    %9817 = vmatmul.mubr.f32.gmra.mxu0 %v8762
    %v9818 = vpop.f32.mrf.mxu0
    %v9819 = vadd.f32 0.0, %v9818
    %v9820 = vpop.f32.mrf.mxu0
    %9821 = vmatprep.mubr.f32.mxu0 %v8765
    %9822 = vmatmul.mubr.f32.gmra.mxu0 %v8764
    %v9823 = vpop.f32.mrf.mxu0
    %v9824 = vadd.f32 0.0, %v9823
    %v9825 = vpop.f32.mrf.mxu0
    %9826 = vmatprep.mubr.f32.mxu0 %v8767
    %9827 = vmatmul.mubr.f32.gmra.mxu0 %v8766
    %v9828 = vpop.f32.mrf.mxu0
    %v9829 = vadd.f32 0.0, %v9828
    %v9830 = vpop.f32.mrf.mxu0
    %9831 = vmatprep.mubr.f32.mxu0 %v8769
    %9832 = vmatmul.mubr.f32.gmra.mxu0 %v8768
    %v9833 = vpop.f32.mrf.mxu0
    %v9834 = vadd.f32 0.0, %v9833
    %v9835 = vpop.f32.mrf.mxu0
    %9836 = vmatprep.mubr.f32.mxu0 %v8771
    %9837 = vmatmul.mubr.f32.gmra.mxu0 %v8770
    %v9838 = vpop.f32.mrf.mxu0
    %v9839 = vadd.f32 0.0, %v9838
    %v9840 = vpop.f32.mrf.mxu0
    %9841 = vmatprep.mubr.f32.mxu0 %v8773
    %9842 = vmatmul.mubr.f32.gmra.mxu0 %v8772
    %v9843 = vpop.f32.mrf.mxu0
    %v9844 = vadd.f32 0.0, %v9843
    %v9845 = vpop.f32.mrf.mxu0
    %9846 = vmatprep.mubr.f32.mxu0 %v8775
    %9847 = vmatmul.mubr.f32.gmra.mxu0 %v8774
    %v9848 = vpop.f32.mrf.mxu0
    %v9849 = vadd.f32 0.0, %v9848
    %v9850 = vpop.f32.mrf.mxu0
    %9851 = vmatprep.mubr.f32.mxu0 %v8777
    %9852 = vmatmul.mubr.f32.gmra.mxu0 %v8776
    %v9853 = vpop.f32.mrf.mxu0
    %v9854 = vadd.f32 0.0, %v9853
    %v9855 = vpop.f32.mrf.mxu0
    %9856 = vmatprep.mubr.f32.mxu0 %v8779
    %9857 = vmatmul.mubr.f32.gmra.mxu0 %v8778
    %v9858 = vpop.f32.mrf.mxu0
    %v9859 = vadd.f32 0.0, %v9858
    %v9860 = vpop.f32.mrf.mxu0
    %9861 = vmatprep.mubr.f32.mxu0 %v8781
    %9862 = vmatmul.mubr.f32.gmra.mxu0 %v8780
    %v9863 = vpop.f32.mrf.mxu0
    %v9864 = vadd.f32 0.0, %v9863
    %v9865 = vpop.f32.mrf.mxu0
    %9866 = vmatprep.mubr.f32.mxu0 %v8783
    %9867 = vmatmul.mubr.f32.gmra.mxu0 %v8782
    %v9868 = vpop.f32.mrf.mxu0
    %v9869 = vadd.f32 0.0, %v9868
    %v9870 = vpop.f32.mrf.mxu0
    %9871 = vmatprep.mubr.f32.mxu0 %v8785
    %9872 = vmatmul.mubr.f32.gmra.mxu0 %v8784
    %v9873 = vpop.f32.mrf.mxu0
    %v9874 = vadd.f32 0.0, %v9873
    %v9875 = vpop.f32.mrf.mxu0
    %9876 = vmatprep.mubr.f32.mxu0 %v8787
    %9877 = vmatmul.mubr.f32.gmra.mxu0 %v8786
    %v9878 = vpop.f32.mrf.mxu0
    %v9879 = vadd.f32 0.0, %v9878
    %v9880 = vpop.f32.mrf.mxu0
    %9881 = vmatprep.mubr.f32.mxu0 %v8789
    %9882 = vmatmul.mubr.f32.gmra.mxu0 %v8788
    %v9883 = vpop.f32.mrf.mxu0
    %v9884 = vadd.f32 0.0, %v9883
    %v9885 = vpop.f32.mrf.mxu0
    %9886 = vmatprep.mubr.f32.mxu0 %v8791
    %9887 = vmatmul.mubr.f32.gmra.mxu0 %v8790
    %v9888 = vpop.f32.mrf.mxu0
    %v9889 = vadd.f32 0.0, %v9888
    %v9890 = vpop.f32.mrf.mxu0
    %9891 = vmatprep.mubr.f32.mxu0 %v8793
    %9892 = vmatmul.mubr.f32.gmra.mxu0 %v8792
    %v9893 = vpop.f32.mrf.mxu0
    %v9894 = vadd.f32 0.0, %v9893
    %v9895 = vpop.f32.mrf.mxu0
    %9896 = vmatprep.mubr.f32.mxu0 %v8795
    %9897 = vmatmul.mubr.f32.gmra.mxu0 %v8794
    %v9898 = vpop.f32.mrf.mxu0
    %v9899 = vadd.f32 0.0, %v9898
    %v9900 = vpop.f32.mrf.mxu0
    %9901 = vmatprep.mubr.f32.mxu0 %v8797
    %9902 = vmatmul.mubr.f32.gmra.mxu0 %v8796
    %v9903 = vpop.f32.mrf.mxu0
    %v9904 = vadd.f32 0.0, %v9903
    %v9905 = vpop.f32.mrf.mxu0
    %9906 = vmatprep.mubr.f32.mxu0 %v8799
    %9907 = vmatmul.mubr.f32.gmra.mxu0 %v8798
    %v9908 = vpop.f32.mrf.mxu0
    %v9909 = vadd.f32 0.0, %v9908
    %v9910 = vpop.f32.mrf.mxu0
    %9911 = vmatprep.mubr.f32.mxu0 %v8801
    %9912 = vmatmul.mubr.f32.gmra.mxu0 %v8800
    %v9913 = vpop.f32.mrf.mxu0
    %v9914 = vadd.f32 0.0, %v9913
    %v9915 = vpop.f32.mrf.mxu0
    %9916 = vmatprep.mubr.f32.mxu0 %v8803
    %9917 = vmatmul.mubr.f32.gmra.mxu0 %v8802
    %v9918 = vpop.f32.mrf.mxu0
    %v9919 = vadd.f32 0.0, %v9918
    %v9920 = vpop.f32.mrf.mxu0
    %9921 = vmatprep.mubr.f32.mxu0 %v8805
    %9922 = vmatmul.mubr.f32.gmra.mxu0 %v8804
    %v9923 = vpop.f32.mrf.mxu0
    %v9924 = vadd.f32 0.0, %v9923
    %v9925 = vpop.f32.mrf.mxu0
    %9926 = vmatprep.mubr.f32.mxu0 %v8807
    %9927 = vmatmul.mubr.f32.gmra.mxu0 %v8806
    %v9928 = vpop.f32.mrf.mxu0
    %v9929 = vadd.f32 0.0, %v9928
    %v9930 = vpop.f32.mrf.mxu0
    %9931 = vmatprep.mubr.f32.mxu0 %v8809
    %9932 = vmatmul.mubr.f32.gmra.mxu0 %v8808
    %v9933 = vpop.f32.mrf.mxu0
    %v9934 = vadd.f32 0.0, %v9933
    %v9935 = vpop.f32.mrf.mxu0
    %9936 = vmatprep.mubr.f32.mxu0 %v8811
    %9937 = vmatmul.mubr.f32.gmra.mxu0 %v8810
    %v9938 = vpop.f32.mrf.mxu0
    %v9939 = vadd.f32 0.0, %v9938
    %v9940 = vpop.f32.mrf.mxu0
    %9941 = vmatprep.mubr.f32.mxu0 %v8813
    %9942 = vmatmul.mubr.f32.gmra.mxu0 %v8812
    %v9943 = vpop.f32.mrf.mxu0
    %v9944 = vadd.f32 0.0, %v9943
    %v9945 = vpop.f32.mrf.mxu0
    %9946 = vmatprep.mubr.f32.mxu0 %v8815
    %9947 = vmatmul.mubr.f32.gmra.mxu0 %v8814
    %v9948 = vpop.f32.mrf.mxu0
    %v9949 = vadd.f32 0.0, %v9948
    %v9950 = vpop.f32.mrf.mxu0
    %9951 = vmatprep.mubr.f32.mxu0 %v8817
    %9952 = vmatmul.mubr.f32.gmra.mxu0 %v8816
    %v9953 = vpop.f32.mrf.mxu0
    %v9954 = vadd.f32 0.0, %v9953
    %v9955 = vpop.f32.mrf.mxu0
    %9956 = vmatprep.mubr.f32.mxu0 %v8819
    %9957 = vmatmul.mubr.f32.gmra.mxu0 %v8818
    %v9958 = vpop.f32.mrf.mxu0
    %v9959 = vadd.f32 0.0, %v9958
    %v9960 = vpop.f32.mrf.mxu0
    %9961 = vmatprep.mubr.f32.mxu0 %v8821
    %9962 = vmatmul.mubr.f32.gmra.mxu0 %v8820
    %v9963 = vpop.f32.mrf.mxu0
    %v9964 = vadd.f32 0.0, %v9963
    %v9965 = vpop.f32.mrf.mxu0
    %9966 = vmatprep.mubr.f32.mxu0 %v8823
    %9967 = vmatmul.mubr.f32.gmra.mxu0 %v8822
    %v9968 = vpop.f32.mrf.mxu0
    %v9969 = vadd.f32 0.0, %v9968
    %v9970 = vpop.f32.mrf.mxu0
    %9971 = vmatprep.mubr.f32.mxu0 %v8825
    %9972 = vmatmul.mubr.f32.gmra.mxu0 %v8824
    %v9973 = vpop.f32.mrf.mxu0
    %v9974 = vadd.f32 0.0, %v9973
    %v9975 = vpop.f32.mrf.mxu0
    %9976 = vdwg.mxu0
    %9985 = vrot.lane.b32.xlu0 %v9659, 16
    %v9986 = vpop.permute.xlu0 %9985
    %9987 = vrot.lane.b32.xlu0 %v9664, 16
    %v9988 = vpop.permute.xlu0 %9987
    %9989 = vrot.lane.b32.xlu0 %v9669, 16
    %v9990 = vpop.permute.xlu0 %9989
    %9991 = vrot.lane.b32.xlu0 %v9674, 16
    %v9992 = vpop.permute.xlu0 %9991
    %9993 = vrot.lane.b32.xlu0 %v9679, 16
    %v9994 = vpop.permute.xlu0 %9993
    %9995 = vrot.lane.b32.xlu0 %v9684, 16
    %v9996 = vpop.permute.xlu0 %9995
    %9997 = vrot.lane.b32.xlu0 %v9689, 16
    %v9998 = vpop.permute.xlu0 %9997
    %9999 = vrot.lane.b32.xlu0 %v9694, 16
    %v10000 = vpop.permute.xlu0 %9999
    %10017 = vrot.lane.b32.xlu0 %v9699, 32
    %v10018 = vpop.permute.xlu0 %10017
    %10019 = vrot.lane.b32.xlu0 %v9704, 32
    %v10020 = vpop.permute.xlu0 %10019
    %10021 = vrot.lane.b32.xlu0 %v9709, 32
    %v10022 = vpop.permute.xlu0 %10021
    %10023 = vrot.lane.b32.xlu0 %v9714, 32
    %v10024 = vpop.permute.xlu0 %10023
    %10025 = vrot.lane.b32.xlu0 %v9719, 32
    %v10026 = vpop.permute.xlu0 %10025
    %10027 = vrot.lane.b32.xlu0 %v9724, 32
    %v10028 = vpop.permute.xlu0 %10027
    %10029 = vrot.lane.b32.xlu0 %v9729, 32
    %v10030 = vpop.permute.xlu0 %10029
    %10031 = vrot.lane.b32.xlu0 %v9734, 32
    %v10032 = vpop.permute.xlu0 %10031
    %10049 = vrot.lane.b32.xlu0 %v9739, 48
    %v10050 = vpop.permute.xlu0 %10049
    %10051 = vrot.lane.b32.xlu0 %v9744, 48
    %v10052 = vpop.permute.xlu0 %10051
    %10053 = vrot.lane.b32.xlu0 %v9749, 48
    %v10054 = vpop.permute.xlu0 %10053
    %10055 = vrot.lane.b32.xlu0 %v9754, 48
    %v10056 = vpop.permute.xlu0 %10055
    %10057 = vrot.lane.b32.xlu0 %v9759, 48
    %v10058 = vpop.permute.xlu0 %10057
    %10059 = vrot.lane.b32.xlu0 %v9764, 48
    %v10060 = vpop.permute.xlu0 %10059
    %10061 = vrot.lane.b32.xlu0 %v9769, 48
    %v10062 = vpop.permute.xlu0 %10061
    %10063 = vrot.lane.b32.xlu0 %v9774, 48
    %v10064 = vpop.permute.xlu0 %10063
    %10081 = vrot.lane.b32.xlu0 %v9779, 64
    %v10082 = vpop.permute.xlu0 %10081
    %10083 = vrot.lane.b32.xlu0 %v9784, 64
    %v10084 = vpop.permute.xlu0 %10083
    %10085 = vrot.lane.b32.xlu0 %v9789, 64
    %v10086 = vpop.permute.xlu0 %10085
    %10087 = vrot.lane.b32.xlu0 %v9794, 64
    %v10088 = vpop.permute.xlu0 %10087
    %10089 = vrot.lane.b32.xlu0 %v9799, 64
    %v10090 = vpop.permute.xlu0 %10089
    %10091 = vrot.lane.b32.xlu0 %v9804, 64
    %v10092 = vpop.permute.xlu0 %10091
    %10093 = vrot.lane.b32.xlu0 %v9809, 64
    %v10094 = vpop.permute.xlu0 %10093
    %10095 = vrot.lane.b32.xlu0 %v9814, 64
    %v10096 = vpop.permute.xlu0 %10095
    %10113 = vrot.lane.b32.xlu0 %v9819, 80
    %v10114 = vpop.permute.xlu0 %10113
    %10115 = vrot.lane.b32.xlu0 %v9824, 80
    %v10116 = vpop.permute.xlu0 %10115
    %10117 = vrot.lane.b32.xlu0 %v9829, 80
    %v10118 = vpop.permute.xlu0 %10117
    %10119 = vrot.lane.b32.xlu0 %v9834, 80
    %v10120 = vpop.permute.xlu0 %10119
    %10121 = vrot.lane.b32.xlu0 %v9839, 80
    %v10122 = vpop.permute.xlu0 %10121
    %10123 = vrot.lane.b32.xlu0 %v9844, 80
    %v10124 = vpop.permute.xlu0 %10123
    %10125 = vrot.lane.b32.xlu0 %v9849, 80
    %v10126 = vpop.permute.xlu0 %10125
    %10127 = vrot.lane.b32.xlu0 %v9854, 80
    %v10128 = vpop.permute.xlu0 %10127
    %10145 = vrot.lane.b32.xlu0 %v9859, 96
    %v10146 = vpop.permute.xlu0 %10145
    %10147 = vrot.lane.b32.xlu0 %v9864, 96
    %v10148 = vpop.permute.xlu0 %10147
    %10149 = vrot.lane.b32.xlu0 %v9869, 96
    %v10150 = vpop.permute.xlu0 %10149
    %10151 = vrot.lane.b32.xlu0 %v9874, 96
    %v10152 = vpop.permute.xlu0 %10151
    %10153 = vrot.lane.b32.xlu0 %v9879, 96
    %v10154 = vpop.permute.xlu0 %10153
    %10155 = vrot.lane.b32.xlu0 %v9884, 96
    %v10156 = vpop.permute.xlu0 %10155
    %10157 = vrot.lane.b32.xlu0 %v9889, 96
    %v10158 = vpop.permute.xlu0 %10157
    %10159 = vrot.lane.b32.xlu0 %v9894, 96
    %v10160 = vpop.permute.xlu0 %10159
    %10177 = vrot.lane.b32.xlu0 %v9899, 112
    %v10178 = vpop.permute.xlu0 %10177
    %10179 = vrot.lane.b32.xlu0 %v9904, 112
    %v10180 = vpop.permute.xlu0 %10179
    %10181 = vrot.lane.b32.xlu0 %v9909, 112
    %v10182 = vpop.permute.xlu0 %10181
    %10183 = vrot.lane.b32.xlu0 %v9914, 112
    %v10184 = vpop.permute.xlu0 %10183
    %10185 = vrot.lane.b32.xlu0 %v9919, 112
    %v10186 = vpop.permute.xlu0 %10185
    %10187 = vrot.lane.b32.xlu0 %v9924, 112
    %v10188 = vpop.permute.xlu0 %10187
    %10189 = vrot.lane.b32.xlu0 %v9929, 112
    %v10190 = vpop.permute.xlu0 %10189
    %10191 = vrot.lane.b32.xlu0 %v9934, 112
    %v10192 = vpop.permute.xlu0 %10191
    %v10201 = vsel %vm7036, %v9619, %v9986
    %v10202 = vsel %vm7036, %v9624, %v9988
    %v10203 = vsel %vm7036, %v9629, %v9990
    %v10204 = vsel %vm7036, %v9634, %v9992
    %v10205 = vsel %vm7036, %v9639, %v9994
    %v10206 = vsel %vm7036, %v9644, %v9996
    %v10207 = vsel %vm7036, %v9649, %v9998
    %v10208 = vsel %vm7036, %v9654, %v10000
    %v10209 = vsel %vm7164, %v10201, %v10018
    %v10210 = vsel %vm7164, %v10202, %v10020
    %v10211 = vsel %vm7164, %v10203, %v10022
    %v10212 = vsel %vm7164, %v10204, %v10024
    %v10213 = vsel %vm7164, %v10205, %v10026
    %v10214 = vsel %vm7164, %v10206, %v10028
    %v10215 = vsel %vm7164, %v10207, %v10030
    %v10216 = vsel %vm7164, %v10208, %v10032
    %v10217 = vsel %vm7294, %v10209, %v10050
    %v10218 = vsel %vm7294, %v10210, %v10052
    %v10219 = vsel %vm7294, %v10211, %v10054
    %v10220 = vsel %vm7294, %v10212, %v10056
    %v10221 = vsel %vm7294, %v10213, %v10058
    %v10222 = vsel %vm7294, %v10214, %v10060
    %v10223 = vsel %vm7294, %v10215, %v10062
    %v10224 = vsel %vm7294, %v10216, %v10064
    %v10225 = vsel %vm7424, %v10217, %v10082
    %v10226 = vsel %vm7424, %v10218, %v10084
    %v10227 = vsel %vm7424, %v10219, %v10086
    %v10228 = vsel %vm7424, %v10220, %v10088
    %v10229 = vsel %vm7424, %v10221, %v10090
    %v10230 = vsel %vm7424, %v10222, %v10092
    %v10231 = vsel %vm7424, %v10223, %v10094
    %v10232 = vsel %vm7424, %v10224, %v10096
    %v10233 = vsel %vm9525, %v10225, %v10114
    %v10234 = vsel %vm9525, %v10226, %v10116
    %v10235 = vsel %vm9525, %v10227, %v10118
    %v10236 = vsel %vm9525, %v10228, %v10120
    %v10237 = vsel %vm9525, %v10229, %v10122
    %v10238 = vsel %vm9525, %v10230, %v10124
    %v10239 = vsel %vm9525, %v10231, %v10126
    %v10240 = vsel %vm9525, %v10232, %v10128
    %v10241 = vsel %vm9534, %v10233, %v10146
    %v10242 = vsel %vm9534, %v10234, %v10148
    %v10243 = vsel %vm9534, %v10235, %v10150
    %v10244 = vsel %vm9534, %v10236, %v10152
    %v10245 = vsel %vm9534, %v10237, %v10154
    %v10246 = vsel %vm9534, %v10238, %v10156
    %v10247 = vsel %vm9534, %v10239, %v10158
    %v10248 = vsel %vm9534, %v10240, %v10160
    %v10249 = vsel %vm9543, %v10241, %v10178
    %v10250 = vsel %vm9543, %v10242, %v10180
    %v10251 = vsel %vm9543, %v10243, %v10182
    %v10252 = vsel %vm9543, %v10244, %v10184
    %v10253 = vsel %vm9543, %v10245, %v10186
    %v10254 = vsel %vm9543, %v10246, %v10188
    %v10255 = vsel %vm9543, %v10247, %v10190
    %v10256 = vsel %vm9543, %v10248, %v10192
    %v10257 = vld [vmem:[%s7] sm:$0x1]
    %v10258 = vld [vmem:[%s7 + $0x1] sm:$0x1]
    %v10259 = vld [vmem:[%s7 + $0x2] sm:$0x1]
    %v10260 = vlaneseq
    %v10261 = vshrl.u32 %v10260, 7
    %v10262 = vsub.s32 0, %v10261
    %v10263 = vrot.slane %v10257, %v10262
    %v10265 = vsel %vm7036, %v9231, 0
    %v10268 = vsel %vm7036, %v9236, 0
    %v10271 = vsel %vm7036, %v9241, 0
    %v10274 = vsel %vm7036, %v9246, 0
    %v10277 = vsel %vm7036, %v9251, 0
    %v10280 = vsel %vm7036, %v9256, 0
    %v10283 = vsel %vm7036, %v9261, 0
    %v10286 = vsel %vm7036, %v9266, 0
    %v10289 = vsel %vm7036, %v9939, 0
    %v10292 = vsel %vm7036, %v9944, 0
    %v10295 = vsel %vm7036, %v9949, 0
    %v10298 = vsel %vm7036, %v9954, 0
    %v10301 = vsel %vm7036, %v9959, 0
    %v10304 = vsel %vm7036, %v9964, 0
    %v10307 = vsel %vm7036, %v9969, 0
    %v10310 = vsel %vm7036, %v9974, 0
    %10312 = vmatprep.subr.mxu0 0.0
    %10313 = vmatpush1.msra.mxu0 %v8841
    %10314 = vmatprep.subr.mxu0 0.0
    %10315 = vmatpush1.msra.mxu0 %v8840
    %10316 = vmatprep.subr.mxu0 0.0
    %10317 = vmatpush1.msra.mxu0 %v8839
    %10318 = vmatprep.subr.mxu0 0.0
    %10319 = vmatpush1.msra.mxu0 %v8838
    %10320 = vmatprep.subr.mxu0 0.0
    %10321 = vmatpush1.msra.mxu0 %v8837
    %10322 = vmatprep.subr.mxu0 0.0
    %10323 = vmatpush1.msra.mxu0 %v8836
    %10324 = vmatprep.subr.mxu0 0.0
    %10325 = vmatpush1.msra.mxu0 %v8835
    %10326 = vmatprep.subr.mxu0 0.0
    %10327 = vmatpush1.msra.mxu0 %v8834
    %10328 = vmatprep.subr.mxu0 0.0
    %10329 = vmatpush1.msra.mxu0 %v8833
    %10330 = vmatprep.subr.mxu0 0.0
    %10331 = vmatpush1.msra.mxu0 %v8832
    %10332 = vmatprep.subr.mxu0 0.0
    %10333 = vmatpush1.msra.mxu0 %v8831
    %10334 = vmatprep.subr.mxu0 0.0
    %10335 = vmatpush1.msra.mxu0 %v8830
    %10336 = vmatprep.subr.mxu0 0.0
    %10337 = vmatpush1.msra.mxu0 %v8829
    %10338 = vmatprep.subr.mxu0 0.0
    %10339 = vmatpush1.msra.mxu0 %v8828
    %10340 = vmatprep.subr.mxu0 0.0
    %10341 = vmatpush1.msra.mxu0 %v8827
    %10342 = vmatprep.subr.mxu0 0.0
    %10343 = vmatpush1.msra.mxu0 %v8826
    %10344 = vmatprep.subr.mxu0 0.0
    %10345 = vmatpush2.msra.mxu0 0.0
    %10346 = vmatprep.subr.mxu0 0.0
    %10347 = vmatpush2.msra.mxu0 0.0
    %10348 = vmatprep.subr.mxu0 0.0
    %10349 = vmatpush2.msra.mxu0 0.0
    %10350 = vmatprep.subr.mxu0 0.0
    %10351 = vmatpush2.msra.mxu0 0.0
    %10352 = vmatprep.subr.mxu0 0.0
    %10353 = vmatpush2.msra.mxu0 0.0
    %10354 = vmatprep.subr.mxu0 0.0
    %10355 = vmatpush2.msra.mxu0 0.0
    %10356 = vmatprep.subr.mxu0 0.0
    %10357 = vmatpush2.msra.mxu0 0.0
    %10358 = vmatprep.subr.mxu0 0.0
    %10359 = vmatpush2.msra.mxu0 0.0
    %10360 = vmatprep.subr.mxu0 0.0
    %10361 = vmatpush2.msra.mxu0 0.0
    %10362 = vmatprep.subr.mxu0 0.0
    %10363 = vmatpush2.msra.mxu0 0.0
    %10364 = vmatprep.subr.mxu0 0.0
    %10365 = vmatpush2.msra.mxu0 0.0
    %10366 = vmatprep.subr.mxu0 0.0
    %10367 = vmatpush2.msra.mxu0 0.0
    %10368 = vmatprep.subr.mxu0 0.0
    %10369 = vmatpush2.msra.mxu0 0.0
    %10370 = vmatprep.subr.mxu0 0.0
    %10371 = vmatpush2.msra.mxu0 0.0
    %10372 = vmatprep.subr.mxu0 0.0
    %10373 = vmatpush2.msra.mxu0 %v8843
    %10374 = vmatprep.subr.mxu0 0.0
    %10375 = vmatpush2.msra.mxu0 %v8842
    %10376 = vmatprep.mubr.f32.mxu0 %v10265
    %10377 = vmatmul.mubr.f32.gmra.mxu0 %v9544
    %v10378 = vpop.f32.mrf.mxu0
    %v10379 = vadd.f32 %v10263, %v10378
    %v10380 = vpop.f32.mrf.mxu0
    %10381 = vmatprep.mubr.f32.mxu0 %v10268
    %10382 = vmatmul.mubr.f32.gmra.mxu0 %v9545
    %v10383 = vpop.f32.mrf.mxu0
    %v10384 = vadd.f32 %v10263, %v10383
    %v10385 = vpop.f32.mrf.mxu0
    %10386 = vmatprep.mubr.f32.mxu0 %v10271
    %10387 = vmatmul.mubr.f32.gmra.mxu0 %v9546
    %v10388 = vpop.f32.mrf.mxu0
    %v10389 = vadd.f32 %v10263, %v10388
    %v10390 = vpop.f32.mrf.mxu0
    %10391 = vmatprep.mubr.f32.mxu0 %v10274
    %10392 = vmatmul.mubr.f32.gmra.mxu0 %v9547
    %v10393 = vpop.f32.mrf.mxu0
    %v10394 = vadd.f32 %v10263, %v10393
    %v10395 = vpop.f32.mrf.mxu0
    %10396 = vmatprep.mubr.f32.mxu0 %v10277
    %10397 = vmatmul.mubr.f32.gmra.mxu0 %v9548
    %v10398 = vpop.f32.mrf.mxu0
    %v10399 = vadd.f32 %v10263, %v10398
    %v10400 = vpop.f32.mrf.mxu0
    %10401 = vmatprep.mubr.f32.mxu0 %v10280
    %10402 = vmatmul.mubr.f32.gmra.mxu0 %v9549
    %v10403 = vpop.f32.mrf.mxu0
    %v10404 = vadd.f32 %v10263, %v10403
    %v10405 = vpop.f32.mrf.mxu0
    %10406 = vmatprep.mubr.f32.mxu0 %v10283
    %10407 = vmatmul.mubr.f32.gmra.mxu0 %v9550
    %v10408 = vpop.f32.mrf.mxu0
    %v10409 = vadd.f32 %v10263, %v10408
    %v10410 = vpop.f32.mrf.mxu0
    %10411 = vmatprep.mubr.f32.mxu0 %v10286
    %10412 = vmatmul.mubr.f32.gmra.mxu0 %v9551
    %v10413 = vpop.f32.mrf.mxu0
    %v10414 = vadd.f32 %v10263, %v10413
    %v10415 = vpop.f32.mrf.mxu0
    %10416 = vmatprep.mubr.f32.mxu0 %v10289
    %10417 = vmatmul.mubr.f32.gmra.mxu0 %v10249
    %v10418 = vpop.f32.mrf.mxu0
    %v10419 = vadd.f32 %v10263, %v10418
    %v10420 = vpop.f32.mrf.mxu0
    %10421 = vmatprep.mubr.f32.mxu0 %v10292
    %10422 = vmatmul.mubr.f32.gmra.mxu0 %v10250
    %v10423 = vpop.f32.mrf.mxu0
    %v10424 = vadd.f32 %v10263, %v10423
    %v10425 = vpop.f32.mrf.mxu0
    %10426 = vmatprep.mubr.f32.mxu0 %v10295
    %10427 = vmatmul.mubr.f32.gmra.mxu0 %v10251
    %v10428 = vpop.f32.mrf.mxu0
    %v10429 = vadd.f32 %v10263, %v10428
    %v10430 = vpop.f32.mrf.mxu0
    %10431 = vmatprep.mubr.f32.mxu0 %v10298
    %10432 = vmatmul.mubr.f32.gmra.mxu0 %v10252
    %v10433 = vpop.f32.mrf.mxu0
    %v10434 = vadd.f32 %v10263, %v10433
    %v10435 = vpop.f32.mrf.mxu0
    %10436 = vmatprep.mubr.f32.mxu0 %v10301
    %10437 = vmatmul.mubr.f32.gmra.mxu0 %v10253
    %v10438 = vpop.f32.mrf.mxu0
    %v10439 = vadd.f32 %v10263, %v10438
    %v10440 = vpop.f32.mrf.mxu0
    %10441 = vmatprep.mubr.f32.mxu0 %v10304
    %10442 = vmatmul.mubr.f32.gmra.mxu0 %v10254
    %v10443 = vpop.f32.mrf.mxu0
    %v10444 = vadd.f32 %v10263, %v10443
    %v10445 = vpop.f32.mrf.mxu0
    %10446 = vmatprep.mubr.f32.mxu0 %v10307
    %10447 = vmatmul.mubr.f32.gmra.mxu0 %v10255
    %v10448 = vpop.f32.mrf.mxu0
    %v10449 = vadd.f32 %v10263, %v10448
    %v10450 = vpop.f32.mrf.mxu0
    %10451 = vmatprep.mubr.f32.mxu0 %v10310
    %10452 = vmatmul.mubr.f32.gmra.mxu0 %v10256
    %v10453 = vpop.f32.mrf.mxu0
    %v10454 = vadd.f32 %v10263, %v10453
    %v10455 = vpop.f32.mrf.mxu0
    %10456 = vdwg.mxu0
    %v10457 = vmax.f32 %v10379, 0.0
    %v10458 = vmax.f32 %v10384, 0.0
    %v10459 = vmax.f32 %v10389, 0.0
    %v10460 = vmax.f32 %v10394, 0.0
    %v10461 = vmax.f32 %v10399, 0.0
    %v10462 = vmax.f32 %v10404, 0.0
    %v10463 = vmax.f32 %v10409, 0.0
    %v10464 = vmax.f32 %v10414, 0.0
    %v10465 = vmax.f32 %v10419, 0.0
    %v10466 = vmax.f32 %v10424, 0.0
    %v10467 = vmax.f32 %v10429, 0.0
    %v10468 = vmax.f32 %v10434, 0.0
    %v10469 = vmax.f32 %v10439, 0.0
    %v10470 = vmax.f32 %v10444, 0.0
    %v10471 = vmax.f32 %v10449, 0.0
    %v10472 = vmax.f32 %v10454, 0.0
    %v10473 = vsel %vm7164, %v10457, 0.0
    %v10474 = vsel %vm7164, %v10458, 0.0
    %v10475 = vadd.f32 %v10473, %v10474
    %v10476 = vsel %vm7164, %v10459, 0.0
    %v10477 = vadd.f32 %v10475, %v10476
    %v10478 = vsel %vm7164, %v10460, 0.0
    %v10479 = vadd.f32 %v10477, %v10478
    %v10480 = vsel %vm7164, %v10461, 0.0
    %v10481 = vadd.f32 %v10479, %v10480
    %v10482 = vsel %vm7164, %v10462, 0.0
    %v10483 = vadd.f32 %v10481, %v10482
    %v10484 = vsel %vm7164, %v10463, 0.0
    %v10485 = vadd.f32 %v10483, %v10484
    %v10486 = vsel %vm7164, %v10464, 0.0
    %v10487 = vadd.f32 %v10485, %v10486
    %v10488 = vsel %vm7164, %v10465, 0.0
    %v10489 = vadd.f32 %v10487, %v10488
    %v10490 = vsel %vm7164, %v10466, 0.0
    %v10491 = vadd.f32 %v10489, %v10490
    %v10492 = vsel %vm7164, %v10467, 0.0
    %v10493 = vadd.f32 %v10491, %v10492
    %v10494 = vsel %vm7164, %v10468, 0.0
    %v10495 = vadd.f32 %v10493, %v10494
    %v10496 = vsel %vm7164, %v10469, 0.0
    %v10497 = vadd.f32 %v10495, %v10496
    %v10498 = vsel %vm7164, %v10470, 0.0
    %v10499 = vadd.f32 %v10497, %v10498
    %v10500 = vsel %vm7164, %v10471, 0.0
    %v10501 = vadd.f32 %v10499, %v10500
    %v10502 = vsel %vm7164, %v10472, 0.0
    %v10503 = vadd.f32 %v10501, %v10502
    %v10504 = vrot.slane %v10503, 4
    %v10505 = vadd.f32 %v10503, %v10504
    %v10506 = vrot.slane %v10505, 2
    %v10507 = vadd.f32 %v10505, %v10506
    %v10508 = vrot.slane %v10507, 1
    %v10509 = vadd.f32 %v10507, %v10508
    %v10510 = vmul.f32 %v10509, 0.0078125
    %v10511 = vsub.f32 %v10457, %v10510
    %v10512 = vsub.f32 %v10458, %v10510
    %v10513 = vsub.f32 %v10459, %v10510
    %v10514 = vsub.f32 %v10460, %v10510
    %v10515 = vsub.f32 %v10461, %v10510
    %v10516 = vsub.f32 %v10462, %v10510
    %v10517 = vsub.f32 %v10463, %v10510
    %v10518 = vsub.f32 %v10464, %v10510
    %v10519 = vsub.f32 %v10465, %v10510
    %v10520 = vsub.f32 %v10466, %v10510
    %v10521 = vsub.f32 %v10467, %v10510
    %v10522 = vsub.f32 %v10468, %v10510
    %v10523 = vsub.f32 %v10469, %v10510
    %v10524 = vsub.f32 %v10470, %v10510
    %v10525 = vsub.f32 %v10471, %v10510
    %v10526 = vsub.f32 %v10472, %v10510
    %v10527 = vmul.f32 %v10511, %v10511
    %v10528 = vmul.f32 %v10512, %v10512
    %v10529 = vmul.f32 %v10513, %v10513
    %v10530 = vmul.f32 %v10514, %v10514
    %v10531 = vmul.f32 %v10515, %v10515
    %v10532 = vmul.f32 %v10516, %v10516
    %v10533 = vmul.f32 %v10517, %v10517
    %v10534 = vmul.f32 %v10518, %v10518
    %v10535 = vmul.f32 %v10519, %v10519
    %v10536 = vmul.f32 %v10520, %v10520
    %v10537 = vmul.f32 %v10521, %v10521
    %v10538 = vmul.f32 %v10522, %v10522
    %v10539 = vmul.f32 %v10523, %v10523
    %v10540 = vmul.f32 %v10524, %v10524
    %v10541 = vmul.f32 %v10525, %v10525
    %v10542 = vmul.f32 %v10526, %v10526
    %v10543 = vsel %vm7164, %v10527, 0.0
    %v10544 = vsel %vm7164, %v10528, 0.0
    %v10545 = vadd.f32 %v10543, %v10544
    %v10546 = vsel %vm7164, %v10529, 0.0
    %v10547 = vadd.f32 %v10545, %v10546
    %v10548 = vsel %vm7164, %v10530, 0.0
    %v10549 = vadd.f32 %v10547, %v10548
    %v10550 = vsel %vm7164, %v10531, 0.0
    %v10551 = vadd.f32 %v10549, %v10550
    %v10552 = vsel %vm7164, %v10532, 0.0
    %v10553 = vadd.f32 %v10551, %v10552
    %v10554 = vsel %vm7164, %v10533, 0.0
    %v10555 = vadd.f32 %v10553, %v10554
    %v10556 = vsel %vm7164, %v10534, 0.0
    %v10557 = vadd.f32 %v10555, %v10556
    %v10558 = vsel %vm7164, %v10535, 0.0
    %v10559 = vadd.f32 %v10557, %v10558
    %v10560 = vsel %vm7164, %v10536, 0.0
    %v10561 = vadd.f32 %v10559, %v10560
    %v10562 = vsel %vm7164, %v10537, 0.0
    %v10563 = vadd.f32 %v10561, %v10562
    %v10564 = vsel %vm7164, %v10538, 0.0
    %v10565 = vadd.f32 %v10563, %v10564
    %v10566 = vsel %vm7164, %v10539, 0.0
    %v10567 = vadd.f32 %v10565, %v10566
    %v10568 = vsel %vm7164, %v10540, 0.0
    %v10569 = vadd.f32 %v10567, %v10568
    %v10570 = vsel %vm7164, %v10541, 0.0
    %v10571 = vadd.f32 %v10569, %v10570
    %v10572 = vsel %vm7164, %v10542, 0.0
    %v10573 = vadd.f32 %v10571, %v10572
    %v10574 = vrot.slane %v10573, 4
    %v10575 = vadd.f32 %v10573, %v10574
    %v10576 = vrot.slane %v10575, 2
    %v10577 = vadd.f32 %v10575, %v10576
    %v10578 = vrot.slane %v10577, 1
    %v10579 = vadd.f32 %v10577, %v10578
    %v10580 = vmul.f32 %v10579, 0.0078125
    %v10581 = vadd.f32 %v10580, 1e-05
    %v10582 = vrsqrt.pop %v10581
    %v10583 = vmul.f32 %v10582, %v10258
    %v10584 = vlaneseq
    %v10585 = vshrl.u32 %v10584, 7
    %v10586 = vsub.s32 0, %v10585
    %v10587 = vrot.slane %v10583, %v10586
    %v10588 = vmul.f32 %v10511, %v10587
    %v10589 = vmul.f32 %v10512, %v10587
    %v10590 = vmul.f32 %v10513, %v10587
    %v10591 = vmul.f32 %v10514, %v10587
    %v10592 = vmul.f32 %v10515, %v10587
    %v10593 = vmul.f32 %v10516, %v10587
    %v10594 = vmul.f32 %v10517, %v10587
    %v10595 = vmul.f32 %v10518, %v10587
    %v10596 = vmul.f32 %v10519, %v10587
    %v10597 = vmul.f32 %v10520, %v10587
    %v10598 = vmul.f32 %v10521, %v10587
    %v10599 = vmul.f32 %v10522, %v10587
    %v10600 = vmul.f32 %v10523, %v10587
    %v10601 = vmul.f32 %v10524, %v10587
    %v10602 = vmul.f32 %v10525, %v10587
    %v10603 = vmul.f32 %v10526, %v10587
    %v10604 = vlaneseq
    %v10605 = vshrl.u32 %v10604, 7
    %v10606 = vsub.s32 0, %v10605
    %v10607 = vrot.slane %v10259, %v10606
    %v10608 = vadd.f32 %v10588, %v10607
    %v10609 = vadd.f32 %v10589, %v10607
    %v10610 = vadd.f32 %v10590, %v10607
    %v10611 = vadd.f32 %v10591, %v10607
    %v10612 = vadd.f32 %v10592, %v10607
    %v10613 = vadd.f32 %v10593, %v10607
    %v10614 = vadd.f32 %v10594, %v10607
    %v10615 = vadd.f32 %v10595, %v10607
    %v10616 = vadd.f32 %v10596, %v10607
    %v10617 = vadd.f32 %v10597, %v10607
    %v10618 = vadd.f32 %v10598, %v10607
    %v10619 = vadd.f32 %v10599, %v10607
    %v10620 = vadd.f32 %v10600, %v10607
    %v10621 = vadd.f32 %v10601, %v10607
    %v10622 = vadd.f32 %v10602, %v10607
    %v10623 = vadd.f32 %v10603, %v10607
    %v10624 = vld [vmem:[%s8] sm:$0xff]
    %v10625 = vld [vmem:[%s8 + $0x8] sm:$0xff]
    %v10626 = vld [vmem:[%s8 + $0x10] sm:$0xff]
    %v10627 = vld [vmem:[%s8 + $0x18] sm:$0xff]
    %v10628 = vld [vmem:[%s8 + $0x20] sm:$0xff]
    %v10629 = vld [vmem:[%s8 + $0x28] sm:$0xff]
    %v10630 = vld [vmem:[%s8 + $0x30] sm:$0xff]
    %v10631 = vld [vmem:[%s8 + $0x38] sm:$0xff]
    %v10632 = vld [vmem:[%s8 + $0x40] sm:$0xff]
    %v10633 = vld [vmem:[%s8 + $0x48] sm:$0xff]
    %v10634 = vld [vmem:[%s8 + $0x50] sm:$0xff]
    %v10635 = vld [vmem:[%s8 + $0x58] sm:$0xff]
    %v10636 = vld [vmem:[%s8 + $0x60] sm:$0xff]
    %v10637 = vld [vmem:[%s8 + $0x68] sm:$0xff]
    %v10638 = vld [vmem:[%s8 + $0x70] sm:$0xff]
    %v10639 = vld [vmem:[%s8 + $0x78] sm:$0xff]
    %v10640 = vld [vmem:[%s8 + $0x80] sm:$0xff]
    %v10641 = vld [vmem:[%s8 + $0x88] sm:$0xff]
    %v10642 = vld [vmem:[%s9] sm:$0xff]
    %v10643 = vld [vmem:[%s9 + $0x8] sm:$0xff]
    %v10644 = vld [vmem:[%s9 + $0x10] sm:$0xff]
    %v10645 = vld [vmem:[%s9 + $0x18] sm:$0xff]
    %v10646 = vld [vmem:[%s9 + $0x20] sm:$0xff]
    %v10647 = vld [vmem:[%s9 + $0x28] sm:$0xff]
    %v10648 = vld [vmem:[%s9 + $0x30] sm:$0xff]
    %v10649 = vld [vmem:[%s9 + $0x38] sm:$0xff]
    %v10650 = vld [vmem:[%s9 + $0x40] sm:$0xff]
    %v10651 = vld [vmem:[%s9 + $0x48] sm:$0xff]
    %v10652 = vld [vmem:[%s9 + $0x50] sm:$0xff]
    %v10653 = vld [vmem:[%s9 + $0x58] sm:$0xff]
    %v10654 = vld [vmem:[%s9 + $0x60] sm:$0xff]
    %v10655 = vld [vmem:[%s9 + $0x68] sm:$0xff]
    %v10656 = vld [vmem:[%s9 + $0x70] sm:$0xff]
    %v10657 = vld [vmem:[%s9 + $0x78] sm:$0xff]
    %v10658 = vld [vmem:[%s9 + $0x80] sm:$0xff]
    %v10659 = vld [vmem:[%s9 + $0x88] sm:$0xff]
    %v10660 = vld [vmem:[%s9 + $0x90] sm:$0xff]
    %v10661 = vld [vmem:[%s9 + $0x98] sm:$0xff]
    %v10662 = vld [vmem:[%s9 + $0xa0] sm:$0xff]
    %v10663 = vld [vmem:[%s9 + $0xa8] sm:$0xff]
    %v10664 = vld [vmem:[%s9 + $0xb0] sm:$0xff]
    %v10665 = vld [vmem:[%s9 + $0xb8] sm:$0xff]
    %v10666 = vld [vmem:[%s9 + $0xc0] sm:$0xff]
    %v10667 = vld [vmem:[%s9 + $0xc8] sm:$0xff]
    %v10668 = vld [vmem:[%s9 + $0xd0] sm:$0xff]
    %v10669 = vld [vmem:[%s9 + $0xd8] sm:$0xff]
    %v10670 = vld [vmem:[%s9 + $0xe0] sm:$0xff]
    %v10671 = vld [vmem:[%s9 + $0xe8] sm:$0xff]
    %v10672 = vld [vmem:[%s9 + $0xf0] sm:$0xff]
    %v10673 = vld [vmem:[%s9 + $0xf8] sm:$0xff]
    %v10674 = vld [vmem:[%s9 + $0x100] sm:$0xff]
    %v10675 = vld [vmem:[%s9 + $0x108] sm:$0xff]
    %v10676 = vld [vmem:[%s9 + $0x110] sm:$0xff]
    %v10677 = vld [vmem:[%s9 + $0x118] sm:$0xff]
    %v10679 = vsel %vm7424, %v10624, 0
    %v10682 = vsel %vm7424, %v10625, 0
    %v10685 = vsel %vm7424, %v10626, 0
    %v10688 = vsel %vm7424, %v10627, 0
    %v10691 = vsel %vm7424, %v10628, 0
    %v10694 = vsel %vm7424, %v10629, 0
    %v10697 = vsel %vm7424, %v10630, 0
    %v10700 = vsel %vm7424, %v10631, 0
    %v10703 = vsel %vm7424, %v10632, 0
    %v10706 = vsel %vm7424, %v10633, 0
    %v10709 = vsel %vm7424, %v10634, 0
    %v10712 = vsel %vm7424, %v10635, 0
    %v10715 = vsel %vm7424, %v10636, 0
    %v10718 = vsel %vm7424, %v10637, 0
    %v10721 = vsel %vm7424, %v10638, 0
    %v10724 = vsel %vm7424, %v10639, 0
    %v10727 = vsel %vm7424, %v10640, 0
    %v10730 = vsel %vm7424, %v10641, 0
    %10732 = vmatprep.subr.mxu0 0.0
    %10733 = vmatpush1.msra.mxu0 0.0
    %10734 = vmatprep.subr.mxu0 0.0
    %10735 = vmatpush1.msra.mxu0 0.0
    %10736 = vmatprep.subr.mxu0 0.0
    %10737 = vmatpush1.msra.mxu0 0.0
    %10738 = vmatprep.subr.mxu0 0.0
    %10739 = vmatpush1.msra.mxu0 0.0
    %10740 = vmatprep.subr.mxu0 0.0
    %10741 = vmatpush1.msra.mxu0 0.0
    %10742 = vmatprep.subr.mxu0 0.0
    %10743 = vmatpush1.msra.mxu0 0.0
    %10744 = vmatprep.subr.mxu0 0.0
    %10745 = vmatpush1.msra.mxu0 0.0
    %10746 = vmatprep.subr.mxu0 0.0
    %10747 = vmatpush1.msra.mxu0 0.0
    %10748 = vmatprep.subr.mxu0 0.0
    %10749 = vmatpush1.msra.mxu0 %v10615
    %10750 = vmatprep.subr.mxu0 0.0
    %10751 = vmatpush1.msra.mxu0 %v10614
    %10752 = vmatprep.subr.mxu0 0.0
    %10753 = vmatpush1.msra.mxu0 %v10613
    %10754 = vmatprep.subr.mxu0 0.0
    %10755 = vmatpush1.msra.mxu0 %v10612
    %10756 = vmatprep.subr.mxu0 0.0
    %10757 = vmatpush1.msra.mxu0 %v10611
    %10758 = vmatprep.subr.mxu0 0.0
    %10759 = vmatpush1.msra.mxu0 %v10610
    %10760 = vmatprep.subr.mxu0 0.0
    %10761 = vmatpush1.msra.mxu0 %v10609
    %10762 = vmatprep.subr.mxu0 0.0
    %10763 = vmatpush1.msra.mxu0 %v10608
    %10764 = vmatprep.subr.mxu0 0.0
    %10765 = vmatpush2.msra.mxu0 0.0
    %10766 = vmatprep.subr.mxu0 0.0
    %10767 = vmatpush2.msra.mxu0 0.0
    %10768 = vmatprep.subr.mxu0 0.0
    %10769 = vmatpush2.msra.mxu0 0.0
    %10770 = vmatprep.subr.mxu0 0.0
    %10771 = vmatpush2.msra.mxu0 0.0
    %10772 = vmatprep.subr.mxu0 0.0
    %10773 = vmatpush2.msra.mxu0 0.0
    %10774 = vmatprep.subr.mxu0 0.0
    %10775 = vmatpush2.msra.mxu0 0.0
    %10776 = vmatprep.subr.mxu0 0.0
    %10777 = vmatpush2.msra.mxu0 0.0
    %10778 = vmatprep.subr.mxu0 0.0
    %10779 = vmatpush2.msra.mxu0 0.0
    %10780 = vmatprep.subr.mxu0 0.0
    %10781 = vmatpush2.msra.mxu0 0.0
    %10782 = vmatprep.subr.mxu0 0.0
    %10783 = vmatpush2.msra.mxu0 0.0
    %10784 = vmatprep.subr.mxu0 0.0
    %10785 = vmatpush2.msra.mxu0 0.0
    %10786 = vmatprep.subr.mxu0 0.0
    %10787 = vmatpush2.msra.mxu0 0.0
    %10788 = vmatprep.subr.mxu0 0.0
    %10789 = vmatpush2.msra.mxu0 0.0
    %10790 = vmatprep.subr.mxu0 0.0
    %10791 = vmatpush2.msra.mxu0 0.0
    %10792 = vmatprep.subr.mxu0 0.0
    %10793 = vmatpush2.msra.mxu0 0.0
    %10794 = vmatprep.subr.mxu0 0.0
    %10795 = vmatpush2.msra.mxu0 0.0
    %10796 = vmatprep.mubr.f32.mxu0 0.0
    %10797 = vmatmul.mubr.f32.gmra.mxu0 %v10679
    %v10798 = vpop.f32.mrf.mxu0
    %v10799 = vadd.f32 0.0, %v10798
    %v10800 = vpop.f32.mrf.mxu0
    %10801 = vmatprep.mubr.f32.mxu0 0.0
    %10802 = vmatmul.mubr.f32.gmra.mxu0 %v10682
    %v10803 = vpop.f32.mrf.mxu0
    %v10804 = vadd.f32 0.0, %v10803
    %v10805 = vpop.f32.mrf.mxu0
    %10806 = vmatprep.mubr.f32.mxu0 0.0
    %10807 = vmatmul.mubr.f32.gmra.mxu0 %v10685
    %v10808 = vpop.f32.mrf.mxu0
    %v10809 = vadd.f32 0.0, %v10808
    %v10810 = vpop.f32.mrf.mxu0
    %10811 = vmatprep.mubr.f32.mxu0 0.0
    %10812 = vmatmul.mubr.f32.gmra.mxu0 %v10688
    %v10813 = vpop.f32.mrf.mxu0
    %v10814 = vadd.f32 0.0, %v10813
    %v10815 = vpop.f32.mrf.mxu0
    %10816 = vmatprep.mubr.f32.mxu0 0.0
    %10817 = vmatmul.mubr.f32.gmra.mxu0 %v10691
    %v10818 = vpop.f32.mrf.mxu0
    %v10819 = vadd.f32 0.0, %v10818
    %v10820 = vpop.f32.mrf.mxu0
    %10821 = vmatprep.mubr.f32.mxu0 0.0
    %10822 = vmatmul.mubr.f32.gmra.mxu0 %v10694
    %v10823 = vpop.f32.mrf.mxu0
    %v10824 = vadd.f32 0.0, %v10823
    %v10825 = vpop.f32.mrf.mxu0
    %10826 = vmatprep.mubr.f32.mxu0 0.0
    %10827 = vmatmul.mubr.f32.gmra.mxu0 %v10697
    %v10828 = vpop.f32.mrf.mxu0
    %v10829 = vadd.f32 0.0, %v10828
    %v10830 = vpop.f32.mrf.mxu0
    %10831 = vmatprep.mubr.f32.mxu0 0.0
    %10832 = vmatmul.mubr.f32.gmra.mxu0 %v10700
    %v10833 = vpop.f32.mrf.mxu0
    %v10834 = vadd.f32 0.0, %v10833
    %v10835 = vpop.f32.mrf.mxu0
    %10836 = vmatprep.mubr.f32.mxu0 0.0
    %10837 = vmatmul.mubr.f32.gmra.mxu0 %v10703
    %v10838 = vpop.f32.mrf.mxu0
    %v10839 = vadd.f32 0.0, %v10838
    %v10840 = vpop.f32.mrf.mxu0
    %10841 = vmatprep.mubr.f32.mxu0 0.0
    %10842 = vmatmul.mubr.f32.gmra.mxu0 %v10706
    %v10843 = vpop.f32.mrf.mxu0
    %v10844 = vadd.f32 0.0, %v10843
    %v10845 = vpop.f32.mrf.mxu0
    %10846 = vmatprep.mubr.f32.mxu0 0.0
    %10847 = vmatmul.mubr.f32.gmra.mxu0 %v10709
    %v10848 = vpop.f32.mrf.mxu0
    %v10849 = vadd.f32 0.0, %v10848
    %v10850 = vpop.f32.mrf.mxu0
    %10851 = vmatprep.mubr.f32.mxu0 0.0
    %10852 = vmatmul.mubr.f32.gmra.mxu0 %v10712
    %v10853 = vpop.f32.mrf.mxu0
    %v10854 = vadd.f32 0.0, %v10853
    %v10855 = vpop.f32.mrf.mxu0
    %10856 = vmatprep.mubr.f32.mxu0 0.0
    %10857 = vmatmul.mubr.f32.gmra.mxu0 %v10715
    %v10858 = vpop.f32.mrf.mxu0
    %v10859 = vadd.f32 0.0, %v10858
    %v10860 = vpop.f32.mrf.mxu0
    %10861 = vmatprep.mubr.f32.mxu0 0.0
    %10862 = vmatmul.mubr.f32.gmra.mxu0 %v10718
    %v10863 = vpop.f32.mrf.mxu0
    %v10864 = vadd.f32 0.0, %v10863
    %v10865 = vpop.f32.mrf.mxu0
    %10866 = vmatprep.mubr.f32.mxu0 0.0
    %10867 = vmatmul.mubr.f32.gmra.mxu0 %v10721
    %v10868 = vpop.f32.mrf.mxu0
    %v10869 = vadd.f32 0.0, %v10868
    %v10870 = vpop.f32.mrf.mxu0
    %10871 = vmatprep.mubr.f32.mxu0 0.0
    %10872 = vmatmul.mubr.f32.gmra.mxu0 %v10724
    %v10873 = vpop.f32.mrf.mxu0
    %v10874 = vadd.f32 0.0, %v10873
    %v10875 = vpop.f32.mrf.mxu0
    %10876 = vmatprep.mubr.f32.mxu0 0.0
    %10877 = vmatmul.mubr.f32.gmra.mxu0 %v10727
    %v10878 = vpop.f32.mrf.mxu0
    %v10879 = vadd.f32 0.0, %v10878
    %v10880 = vpop.f32.mrf.mxu0
    %10881 = vmatprep.mubr.f32.mxu0 0.0
    %10882 = vmatmul.mubr.f32.gmra.mxu0 %v10730
    %v10883 = vpop.f32.mrf.mxu0
    %v10884 = vadd.f32 0.0, %v10883
    %v10885 = vpop.f32.mrf.mxu0
    %10886 = vdwg.mxu0
    %10889 = vrot.lane.b32.xlu0 %v10809, 32
    %v10890 = vpop.permute.xlu0 %10889
    %10891 = vrot.lane.b32.xlu0 %v10814, 32
    %v10892 = vpop.permute.xlu0 %10891
    %10897 = vrot.lane.b32.xlu0 %v10819, 64
    %v10898 = vpop.permute.xlu0 %10897
    %10899 = vrot.lane.b32.xlu0 %v10824, 64
    %v10900 = vpop.permute.xlu0 %10899
    %10905 = vrot.lane.b32.xlu0 %v10829, 96
    %v10906 = vpop.permute.xlu0 %10905
    %10907 = vrot.lane.b32.xlu0 %v10834, 96
    %v10908 = vpop.permute.xlu0 %10907
    %10913 = vrot.lane.b32.xlu0 %v10849, 32
    %v10914 = vpop.permute.xlu0 %10913
    %10915 = vrot.lane.b32.xlu0 %v10854, 32
    %v10916 = vpop.permute.xlu0 %10915
    %10921 = vrot.lane.b32.xlu0 %v10859, 64
    %v10922 = vpop.permute.xlu0 %10921
    %10923 = vrot.lane.b32.xlu0 %v10864, 64
    %v10924 = vpop.permute.xlu0 %10923
    %10929 = vrot.lane.b32.xlu0 %v10869, 96
    %v10930 = vpop.permute.xlu0 %10929
    %10931 = vrot.lane.b32.xlu0 %v10874, 96
    %v10932 = vpop.permute.xlu0 %10931
    %v10935 = vsel %vm7164, %v10799, %v10890
    %v10936 = vsel %vm7164, %v10804, %v10892
    %v10937 = vsel %vm7424, %v10935, %v10898
    %v10938 = vsel %vm7424, %v10936, %v10900
    %v10939 = vsel %vm9534, %v10937, %v10906
    %v10940 = vsel %vm9534, %v10938, %v10908
    %v10941 = vsel %vm7164, %v10839, %v10914
    %v10942 = vsel %vm7164, %v10844, %v10916
    %v10943 = vsel %vm7424, %v10941, %v10922
    %v10944 = vsel %vm7424, %v10942, %v10924
    %v10945 = vsel %vm9534, %v10943, %v10930
    %v10946 = vsel %vm9534, %v10944, %v10932
    %10947 = vmatprep.subr.mxu0 0.0
    %10948 = vmatpush1.msra.mxu0 0.0
    %10949 = vmatprep.subr.mxu0 0.0
    %10950 = vmatpush1.msra.mxu0 0.0
    %10951 = vmatprep.subr.mxu0 0.0
    %10952 = vmatpush1.msra.mxu0 0.0
    %10953 = vmatprep.subr.mxu0 0.0
    %10954 = vmatpush1.msra.mxu0 0.0
    %10955 = vmatprep.subr.mxu0 0.0
    %10956 = vmatpush1.msra.mxu0 0.0
    %10957 = vmatprep.subr.mxu0 0.0
    %10958 = vmatpush1.msra.mxu0 0.0
    %10959 = vmatprep.subr.mxu0 0.0
    %10960 = vmatpush1.msra.mxu0 0.0
    %10961 = vmatprep.subr.mxu0 0.0
    %10962 = vmatpush1.msra.mxu0 0.0
    %10963 = vmatprep.subr.mxu0 0.0
    %10964 = vmatpush1.msra.mxu0 %v10623
    %10965 = vmatprep.subr.mxu0 0.0
    %10966 = vmatpush1.msra.mxu0 %v10622
    %10967 = vmatprep.subr.mxu0 0.0
    %10968 = vmatpush1.msra.mxu0 %v10621
    %10969 = vmatprep.subr.mxu0 0.0
    %10970 = vmatpush1.msra.mxu0 %v10620
    %10971 = vmatprep.subr.mxu0 0.0
    %10972 = vmatpush1.msra.mxu0 %v10619
    %10973 = vmatprep.subr.mxu0 0.0
    %10974 = vmatpush1.msra.mxu0 %v10618
    %10975 = vmatprep.subr.mxu0 0.0
    %10976 = vmatpush1.msra.mxu0 %v10617
    %10977 = vmatprep.subr.mxu0 0.0
    %10978 = vmatpush1.msra.mxu0 %v10616
    %10979 = vmatprep.subr.mxu0 0.0
    %10980 = vmatpush2.msra.mxu0 0.0
    %10981 = vmatprep.subr.mxu0 0.0
    %10982 = vmatpush2.msra.mxu0 0.0
    %10983 = vmatprep.subr.mxu0 0.0
    %10984 = vmatpush2.msra.mxu0 0.0
    %10985 = vmatprep.subr.mxu0 0.0
    %10986 = vmatpush2.msra.mxu0 0.0
    %10987 = vmatprep.subr.mxu0 0.0
    %10988 = vmatpush2.msra.mxu0 0.0
    %10989 = vmatprep.subr.mxu0 0.0
    %10990 = vmatpush2.msra.mxu0 0.0
    %10991 = vmatprep.subr.mxu0 0.0
    %10992 = vmatpush2.msra.mxu0 0.0
    %10993 = vmatprep.subr.mxu0 0.0
    %10994 = vmatpush2.msra.mxu0 0.0
    %10995 = vmatprep.subr.mxu0 0.0
    %10996 = vmatpush2.msra.mxu0 0.0
    %10997 = vmatprep.subr.mxu0 0.0
    %10998 = vmatpush2.msra.mxu0 0.0
    %10999 = vmatprep.subr.mxu0 0.0
    %11000 = vmatpush2.msra.mxu0 0.0
    %11001 = vmatprep.subr.mxu0 0.0
    %11002 = vmatpush2.msra.mxu0 0.0
    %11003 = vmatprep.subr.mxu0 0.0
    %11004 = vmatpush2.msra.mxu0 0.0
    %11005 = vmatprep.subr.mxu0 0.0
    %11006 = vmatpush2.msra.mxu0 0.0
    %11007 = vmatprep.subr.mxu0 0.0
    %11008 = vmatpush2.msra.mxu0 0.0
    %11009 = vmatprep.subr.mxu0 0.0
    %11010 = vmatpush2.msra.mxu0 0.0
    %11011 = vmatprep.mubr.f32.mxu0 0.0
    %11012 = vmatmul.mubr.f32.gmra.mxu0 %v10679
    %v11013 = vpop.f32.mrf.mxu0
    %v11014 = vadd.f32 0.0, %v11013
    %v11015 = vpop.f32.mrf.mxu0
    %11016 = vmatprep.mubr.f32.mxu0 0.0
    %11017 = vmatmul.mubr.f32.gmra.mxu0 %v10682
    %v11018 = vpop.f32.mrf.mxu0
    %v11019 = vadd.f32 0.0, %v11018
    %v11020 = vpop.f32.mrf.mxu0
    %11021 = vmatprep.mubr.f32.mxu0 0.0
    %11022 = vmatmul.mubr.f32.gmra.mxu0 %v10685
    %v11023 = vpop.f32.mrf.mxu0
    %v11024 = vadd.f32 0.0, %v11023
    %v11025 = vpop.f32.mrf.mxu0
    %11026 = vmatprep.mubr.f32.mxu0 0.0
    %11027 = vmatmul.mubr.f32.gmra.mxu0 %v10688
    %v11028 = vpop.f32.mrf.mxu0
    %v11029 = vadd.f32 0.0, %v11028
    %v11030 = vpop.f32.mrf.mxu0
    %11031 = vmatprep.mubr.f32.mxu0 0.0
    %11032 = vmatmul.mubr.f32.gmra.mxu0 %v10691
    %v11033 = vpop.f32.mrf.mxu0
    %v11034 = vadd.f32 0.0, %v11033
    %v11035 = vpop.f32.mrf.mxu0
    %11036 = vmatprep.mubr.f32.mxu0 0.0
    %11037 = vmatmul.mubr.f32.gmra.mxu0 %v10694
    %v11038 = vpop.f32.mrf.mxu0
    %v11039 = vadd.f32 0.0, %v11038
    %v11040 = vpop.f32.mrf.mxu0
    %11041 = vmatprep.mubr.f32.mxu0 0.0
    %11042 = vmatmul.mubr.f32.gmra.mxu0 %v10697
    %v11043 = vpop.f32.mrf.mxu0
    %v11044 = vadd.f32 0.0, %v11043
    %v11045 = vpop.f32.mrf.mxu0
    %11046 = vmatprep.mubr.f32.mxu0 0.0
    %11047 = vmatmul.mubr.f32.gmra.mxu0 %v10700
    %v11048 = vpop.f32.mrf.mxu0
    %v11049 = vadd.f32 0.0, %v11048
    %v11050 = vpop.f32.mrf.mxu0
    %11051 = vmatprep.mubr.f32.mxu0 0.0
    %11052 = vmatmul.mubr.f32.gmra.mxu0 %v10703
    %v11053 = vpop.f32.mrf.mxu0
    %v11054 = vadd.f32 0.0, %v11053
    %v11055 = vpop.f32.mrf.mxu0
    %11056 = vmatprep.mubr.f32.mxu0 0.0
    %11057 = vmatmul.mubr.f32.gmra.mxu0 %v10706
    %v11058 = vpop.f32.mrf.mxu0
    %v11059 = vadd.f32 0.0, %v11058
    %v11060 = vpop.f32.mrf.mxu0
    %11061 = vmatprep.mubr.f32.mxu0 0.0
    %11062 = vmatmul.mubr.f32.gmra.mxu0 %v10709
    %v11063 = vpop.f32.mrf.mxu0
    %v11064 = vadd.f32 0.0, %v11063
    %v11065 = vpop.f32.mrf.mxu0
    %11066 = vmatprep.mubr.f32.mxu0 0.0
    %11067 = vmatmul.mubr.f32.gmra.mxu0 %v10712
    %v11068 = vpop.f32.mrf.mxu0
    %v11069 = vadd.f32 0.0, %v11068
    %v11070 = vpop.f32.mrf.mxu0
    %11071 = vmatprep.mubr.f32.mxu0 0.0
    %11072 = vmatmul.mubr.f32.gmra.mxu0 %v10715
    %v11073 = vpop.f32.mrf.mxu0
    %v11074 = vadd.f32 0.0, %v11073
    %v11075 = vpop.f32.mrf.mxu0
    %11076 = vmatprep.mubr.f32.mxu0 0.0
    %11077 = vmatmul.mubr.f32.gmra.mxu0 %v10718
    %v11078 = vpop.f32.mrf.mxu0
    %v11079 = vadd.f32 0.0, %v11078
    %v11080 = vpop.f32.mrf.mxu0
    %11081 = vmatprep.mubr.f32.mxu0 0.0
    %11082 = vmatmul.mubr.f32.gmra.mxu0 %v10721
    %v11083 = vpop.f32.mrf.mxu0
    %v11084 = vadd.f32 0.0, %v11083
    %v11085 = vpop.f32.mrf.mxu0
    %11086 = vmatprep.mubr.f32.mxu0 0.0
    %11087 = vmatmul.mubr.f32.gmra.mxu0 %v10724
    %v11088 = vpop.f32.mrf.mxu0
    %v11089 = vadd.f32 0.0, %v11088
    %v11090 = vpop.f32.mrf.mxu0
    %11091 = vmatprep.mubr.f32.mxu0 0.0
    %11092 = vmatmul.mubr.f32.gmra.mxu0 %v10727
    %v11093 = vpop.f32.mrf.mxu0
    %v11094 = vadd.f32 0.0, %v11093
    %v11095 = vpop.f32.mrf.mxu0
    %11096 = vmatprep.mubr.f32.mxu0 0.0
    %11097 = vmatmul.mubr.f32.gmra.mxu0 %v10730
    %v11098 = vpop.f32.mrf.mxu0
    %v11099 = vadd.f32 0.0, %v11098
    %v11100 = vpop.f32.mrf.mxu0
    %11101 = vdwg.mxu0
    %11104 = vrot.lane.b32.xlu0 %v11024, 32
    %v11105 = vpop.permute.xlu0 %11104
    %11106 = vrot.lane.b32.xlu0 %v11029, 32
    %v11107 = vpop.permute.xlu0 %11106
    %11112 = vrot.lane.b32.xlu0 %v11034, 64
    %v11113 = vpop.permute.xlu0 %11112
    %11114 = vrot.lane.b32.xlu0 %v11039, 64
    %v11115 = vpop.permute.xlu0 %11114
    %11120 = vrot.lane.b32.xlu0 %v11044, 96
    %v11121 = vpop.permute.xlu0 %11120
    %11122 = vrot.lane.b32.xlu0 %v11049, 96
    %v11123 = vpop.permute.xlu0 %11122
    %11128 = vrot.lane.b32.xlu0 %v11064, 32
    %v11129 = vpop.permute.xlu0 %11128
    %11130 = vrot.lane.b32.xlu0 %v11069, 32
    %v11131 = vpop.permute.xlu0 %11130
    %11136 = vrot.lane.b32.xlu0 %v11074, 64
    %v11137 = vpop.permute.xlu0 %11136
    %11138 = vrot.lane.b32.xlu0 %v11079, 64
    %v11139 = vpop.permute.xlu0 %11138
    %11144 = vrot.lane.b32.xlu0 %v11084, 96
    %v11145 = vpop.permute.xlu0 %11144
    %11146 = vrot.lane.b32.xlu0 %v11089, 96
    %v11147 = vpop.permute.xlu0 %11146
    %v11150 = vsel %vm7164, %v11014, %v11105
    %v11151 = vsel %vm7164, %v11019, %v11107
    %v11152 = vsel %vm7424, %v11150, %v11113
    %v11153 = vsel %vm7424, %v11151, %v11115
    %v11154 = vsel %vm9534, %v11152, %v11121
    %v11155 = vsel %vm9534, %v11153, %v11123
    %v11156 = vsel %vm7164, %v11054, %v11129
    %v11157 = vsel %vm7164, %v11059, %v11131
    %v11158 = vsel %vm7424, %v11156, %v11137
    %v11159 = vsel %vm7424, %v11157, %v11139
    %v11160 = vsel %vm9534, %v11158, %v11145
    %v11161 = vsel %vm9534, %v11159, %v11147
    %v11162 = vld [vmem:[%s10] sm:$0x1]
    %v11163 = vld [vmem:[%s10 + $0x1] sm:$0x1]
    %v11164 = vld [vmem:[%s10 + $0x2] sm:$0x1]
    %v11165 = vlaneseq
    %v11166 = vshrl.u32 %v11165, 7
    %v11167 = vsub.s32 0, %v11166
    %v11168 = vrot.slane %v11162, %v11167
    %v11170 = vsel %vm7164, %v10879, 0
    %v11173 = vsel %vm7164, %v10884, 0
    %v11176 = vsel %vm7164, %v11094, 0
    %v11179 = vsel %vm7164, %v11099, 0
    %11181 = vmatprep.subr.mxu0 0.0
    %11182 = vmatpush1.msra.mxu0 %v10657
    %11183 = vmatprep.subr.mxu0 0.0
    %11184 = vmatpush1.msra.mxu0 %v10656
    %11185 = vmatprep.subr.mxu0 0.0
    %11186 = vmatpush1.msra.mxu0 %v10655
    %11187 = vmatprep.subr.mxu0 0.0
    %11188 = vmatpush1.msra.mxu0 %v10654
    %11189 = vmatprep.subr.mxu0 0.0
    %11190 = vmatpush1.msra.mxu0 %v10653
    %11191 = vmatprep.subr.mxu0 0.0
    %11192 = vmatpush1.msra.mxu0 %v10652
    %11193 = vmatprep.subr.mxu0 0.0
    %11194 = vmatpush1.msra.mxu0 %v10651
    %11195 = vmatprep.subr.mxu0 0.0
    %11196 = vmatpush1.msra.mxu0 %v10650
    %11197 = vmatprep.subr.mxu0 0.0
    %11198 = vmatpush1.msra.mxu0 %v10649
    %11199 = vmatprep.subr.mxu0 0.0
    %11200 = vmatpush1.msra.mxu0 %v10648
    %11201 = vmatprep.subr.mxu0 0.0
    %11202 = vmatpush1.msra.mxu0 %v10647
    %11203 = vmatprep.subr.mxu0 0.0
    %11204 = vmatpush1.msra.mxu0 %v10646
    %11205 = vmatprep.subr.mxu0 0.0
    %11206 = vmatpush1.msra.mxu0 %v10645
    %11207 = vmatprep.subr.mxu0 0.0
    %11208 = vmatpush1.msra.mxu0 %v10644
    %11209 = vmatprep.subr.mxu0 0.0
    %11210 = vmatpush1.msra.mxu0 %v10643
    %11211 = vmatprep.subr.mxu0 0.0
    %11212 = vmatpush1.msra.mxu0 %v10642
    %11213 = vmatprep.subr.mxu0 0.0
    %11214 = vmatpush2.msra.mxu0 %v10673
    %11215 = vmatprep.subr.mxu0 0.0
    %11216 = vmatpush2.msra.mxu0 %v10672
    %11217 = vmatprep.subr.mxu0 0.0
    %11218 = vmatpush2.msra.mxu0 %v10671
    %11219 = vmatprep.subr.mxu0 0.0
    %11220 = vmatpush2.msra.mxu0 %v10670
    %11221 = vmatprep.subr.mxu0 0.0
    %11222 = vmatpush2.msra.mxu0 %v10669
    %11223 = vmatprep.subr.mxu0 0.0
    %11224 = vmatpush2.msra.mxu0 %v10668
    %11225 = vmatprep.subr.mxu0 0.0
    %11226 = vmatpush2.msra.mxu0 %v10667
    %11227 = vmatprep.subr.mxu0 0.0
    %11228 = vmatpush2.msra.mxu0 %v10666
    %11229 = vmatprep.subr.mxu0 0.0
    %11230 = vmatpush2.msra.mxu0 %v10665
    %11231 = vmatprep.subr.mxu0 0.0
    %11232 = vmatpush2.msra.mxu0 %v10664
    %11233 = vmatprep.subr.mxu0 0.0
    %11234 = vmatpush2.msra.mxu0 %v10663
    %11235 = vmatprep.subr.mxu0 0.0
    %11236 = vmatpush2.msra.mxu0 %v10662
    %11237 = vmatprep.subr.mxu0 0.0
    %11238 = vmatpush2.msra.mxu0 %v10661
    %11239 = vmatprep.subr.mxu0 0.0
    %11240 = vmatpush2.msra.mxu0 %v10660
    %11241 = vmatprep.subr.mxu0 0.0
    %11242 = vmatpush2.msra.mxu0 %v10659
    %11243 = vmatprep.subr.mxu0 0.0
    %11244 = vmatpush2.msra.mxu0 %v10658
    %11245 = vmatprep.mubr.f32.mxu0 %v10945
    %11246 = vmatmul.mubr.f32.gmra.mxu0 %v10939
    %v11247 = vpop.f32.mrf.mxu0
    %v11248 = vadd.f32 %v11168, %v11247
    %v11249 = vpop.f32.mrf.mxu0
    %11250 = vmatprep.mubr.f32.mxu0 %v10946
    %11251 = vmatmul.mubr.f32.gmra.mxu0 %v10940
    %v11252 = vpop.f32.mrf.mxu0
    %v11253 = vadd.f32 %v11168, %v11252
    %v11254 = vpop.f32.mrf.mxu0
    %11255 = vmatprep.mubr.f32.mxu0 %v11160
    %11256 = vmatmul.mubr.f32.gmra.mxu0 %v11154
    %v11257 = vpop.f32.mrf.mxu0
    %v11258 = vadd.f32 %v11168, %v11257
    %v11259 = vpop.f32.mrf.mxu0
    %11260 = vmatprep.mubr.f32.mxu0 %v11161
    %11261 = vmatmul.mubr.f32.gmra.mxu0 %v11155
    %v11262 = vpop.f32.mrf.mxu0
    %v11263 = vadd.f32 %v11168, %v11262
    %v11264 = vpop.f32.mrf.mxu0
    %11265 = vdwg.mxu0
    %11266 = vmatprep.subr.mxu0 0.0
    %11267 = vmatpush1.msra.mxu0 0.0
    %11268 = vmatprep.subr.mxu0 0.0
    %11269 = vmatpush1.msra.mxu0 0.0
    %11270 = vmatprep.subr.mxu0 0.0
    %11271 = vmatpush1.msra.mxu0 0.0
    %11272 = vmatprep.subr.mxu0 0.0
    %11273 = vmatpush1.msra.mxu0 0.0
    %11274 = vmatprep.subr.mxu0 0.0
    %11275 = vmatpush1.msra.mxu0 0.0
    %11276 = vmatprep.subr.mxu0 0.0
    %11277 = vmatpush1.msra.mxu0 0.0
    %11278 = vmatprep.subr.mxu0 0.0
    %11279 = vmatpush1.msra.mxu0 0.0
    %11280 = vmatprep.subr.mxu0 0.0
    %11281 = vmatpush1.msra.mxu0 0.0
    %11282 = vmatprep.subr.mxu0 0.0
    %11283 = vmatpush1.msra.mxu0 0.0
    %11284 = vmatprep.subr.mxu0 0.0
    %11285 = vmatpush1.msra.mxu0 0.0
    %11286 = vmatprep.subr.mxu0 0.0
    %11287 = vmatpush1.msra.mxu0 0.0
    %11288 = vmatprep.subr.mxu0 0.0
    %11289 = vmatpush1.msra.mxu0 0.0
    %11290 = vmatprep.subr.mxu0 0.0
    %11291 = vmatpush1.msra.mxu0 %v10677
    %11292 = vmatprep.subr.mxu0 0.0
    %11293 = vmatpush1.msra.mxu0 %v10676
    %11294 = vmatprep.subr.mxu0 0.0
    %11295 = vmatpush1.msra.mxu0 %v10675
    %11296 = vmatprep.subr.mxu0 0.0
    %11297 = vmatpush1.msra.mxu0 %v10674
    %11298 = vmatprep.subr.mxu0 0.0
    %11299 = vmatpush2.msra.mxu0 0.0
    %11300 = vmatprep.subr.mxu0 0.0
    %11301 = vmatpush2.msra.mxu0 0.0
    %11302 = vmatprep.subr.mxu0 0.0
    %11303 = vmatpush2.msra.mxu0 0.0
    %11304 = vmatprep.subr.mxu0 0.0
    %11305 = vmatpush2.msra.mxu0 0.0
    %11306 = vmatprep.subr.mxu0 0.0
    %11307 = vmatpush2.msra.mxu0 0.0
    %11308 = vmatprep.subr.mxu0 0.0
    %11309 = vmatpush2.msra.mxu0 0.0
    %11310 = vmatprep.subr.mxu0 0.0
    %11311 = vmatpush2.msra.mxu0 0.0
    %11312 = vmatprep.subr.mxu0 0.0
    %11313 = vmatpush2.msra.mxu0 0.0
    %11314 = vmatprep.subr.mxu0 0.0
    %11315 = vmatpush2.msra.mxu0 0.0
    %11316 = vmatprep.subr.mxu0 0.0
    %11317 = vmatpush2.msra.mxu0 0.0
    %11318 = vmatprep.subr.mxu0 0.0
    %11319 = vmatpush2.msra.mxu0 0.0
    %11320 = vmatprep.subr.mxu0 0.0
    %11321 = vmatpush2.msra.mxu0 0.0
    %11322 = vmatprep.subr.mxu0 0.0
    %11323 = vmatpush2.msra.mxu0 0.0
    %11324 = vmatprep.subr.mxu0 0.0
    %11325 = vmatpush2.msra.mxu0 0.0
    %11326 = vmatprep.subr.mxu0 0.0
    %11327 = vmatpush2.msra.mxu0 0.0
    %11328 = vmatprep.subr.mxu0 0.0
    %11329 = vmatpush2.msra.mxu0 0.0
    %11330 = vmatprep.mubr.f32.mxu0 0.0
    %11331 = vmatmul.mubr.f32.gmra.mxu0 %v11170
    %v11332 = vpop.f32.mrf.mxu0
    %v11333 = vadd.f32 %v11248, %v11332
    %v11334 = vpop.f32.mrf.mxu0
    %11335 = vmatprep.mubr.f32.mxu0 0.0
    %11336 = vmatmul.mubr.f32.gmra.mxu0 %v11173
    %v11337 = vpop.f32.mrf.mxu0
    %v11338 = vadd.f32 %v11253, %v11337
    %v11339 = vpop.f32.mrf.mxu0
    %11340 = vmatprep.mubr.f32.mxu0 0.0
    %11341 = vmatmul.mubr.f32.gmra.mxu0 %v11176
    %v11342 = vpop.f32.mrf.mxu0
    %v11343 = vadd.f32 %v11258, %v11342
    %v11344 = vpop.f32.mrf.mxu0
    %11345 = vmatprep.mubr.f32.mxu0 0.0
    %11346 = vmatmul.mubr.f32.gmra.mxu0 %v11179
    %v11347 = vpop.f32.mrf.mxu0
    %v11348 = vadd.f32 %v11263, %v11347
    %v11349 = vpop.f32.mrf.mxu0
    %11350 = vdwg.mxu0
    %v11351 = vmax.f32 %v11333, 0.0
    %v11352 = vmax.f32 %v11338, 0.0
    %v11353 = vmax.f32 %v11343, 0.0
    %v11354 = vmax.f32 %v11348, 0.0
    %v11355 = vsel %vm7424, %v11351, 0.0
    %v11356 = vsel %vm7424, %v11352, 0.0
    %v11357 = vadd.f32 %v11355, %v11356
    %v11358 = vsel %vm7424, %v11353, 0.0
    %v11359 = vadd.f32 %v11357, %v11358
    %v11360 = vsel %vm7424, %v11354, 0.0
    %v11361 = vadd.f32 %v11359, %v11360
    %v11362 = vrot.slane %v11361, 4
    %v11363 = vadd.f32 %v11361, %v11362
    %v11364 = vrot.slane %v11363, 2
    %v11365 = vadd.f32 %v11363, %v11364
    %v11366 = vrot.slane %v11365, 1
    %v11367 = vadd.f32 %v11365, %v11366
    %v11368 = vmul.f32 %v11367, 0.03125
    %v11369 = vsub.f32 %v11351, %v11368
    %v11370 = vsub.f32 %v11352, %v11368
    %v11371 = vsub.f32 %v11353, %v11368
    %v11372 = vsub.f32 %v11354, %v11368
    %v11373 = vmul.f32 %v11369, %v11369
    %v11374 = vmul.f32 %v11370, %v11370
    %v11375 = vmul.f32 %v11371, %v11371
    %v11376 = vmul.f32 %v11372, %v11372
    %v11377 = vsel %vm7424, %v11373, 0.0
    %v11378 = vsel %vm7424, %v11374, 0.0
    %v11379 = vadd.f32 %v11377, %v11378
    %v11380 = vsel %vm7424, %v11375, 0.0
    %v11381 = vadd.f32 %v11379, %v11380
    %v11382 = vsel %vm7424, %v11376, 0.0
    %v11383 = vadd.f32 %v11381, %v11382
    %v11384 = vrot.slane %v11383, 4
    %v11385 = vadd.f32 %v11383, %v11384
    %v11386 = vrot.slane %v11385, 2
    %v11387 = vadd.f32 %v11385, %v11386
    %v11388 = vrot.slane %v11387, 1
    %v11389 = vadd.f32 %v11387, %v11388
    %v11390 = vmul.f32 %v11389, 0.03125
    %v11391 = vadd.f32 %v11390, 1e-05
    %v11392 = vrsqrt.pop %v11391
    %v11393 = vmul.f32 %v11392, %v11163
    %v11394 = vlaneseq
    %v11395 = vshrl.u32 %v11394, 7
    %v11396 = vsub.s32 0, %v11395
    %v11397 = vrot.slane %v11393, %v11396
    %v11398 = vmul.f32 %v11369, %v11397
    %v11399 = vmul.f32 %v11370, %v11397
    %v11400 = vmul.f32 %v11371, %v11397
    %v11401 = vmul.f32 %v11372, %v11397
    %v11402 = vlaneseq
    %v11403 = vshrl.u32 %v11402, 7
    %v11404 = vsub.s32 0, %v11403
    %v11405 = vrot.slane %v11164, %v11404
    %v11406 = vadd.f32 %v11398, %v11405
    %v11407 = vadd.f32 %v11399, %v11405
    %v11408 = vadd.f32 %v11400, %v11405
    %v11409 = vadd.f32 %v11401, %v11405
    %v11410 = vld [vmem:[%s11] sm:$0xff]
    %v11411 = vld [vmem:[%s11 + $0x8] sm:$0xff]
    %v11412 = vld [vmem:[%s11 + $0x10] sm:$0xff]
    %v11413 = vld [vmem:[%s11 + $0x18] sm:$0xff]
    %v11414 = vld [vmem:[%s11 + $0x20] sm:$0xf]
    %v11415 = vld [vmem:[%s12] sm:$0xff]
    %v11416 = vld [vmem:[%s12 + $0x8] sm:$0xff]
    %v11417 = vld [vmem:[%s12 + $0x10] sm:$0xff]
    %v11418 = vld [vmem:[%s12 + $0x18] sm:$0xff]
    %v11419 = vld [vmem:[%s12 + $0x20] sm:$0xff]
    %v11420 = vld [vmem:[%s12 + $0x28] sm:$0xff]
    %v11421 = vld [vmem:[%s12 + $0x30] sm:$0xff]
    %v11422 = vld [vmem:[%s12 + $0x38] sm:$0xff]
    %v11423 = vld [vmem:[%s12 + $0x40] sm:$0xff]
    %v11424 = vld [vmem:[%s12 + $0x48] sm:$0xff]
    %v11425 = vld [vmem:[%s12 + $0x50] sm:$0xff]
    %v11426 = vld [vmem:[%s12 + $0x58] sm:$0xff]
    %v11427 = vld [vmem:[%s12 + $0x60] sm:$0xff]
    %v11428 = vld [vmem:[%s12 + $0x68] sm:$0xff]
    %v11429 = vld [vmem:[%s12 + $0x70] sm:$0xff]
    %v11430 = vld [vmem:[%s12 + $0x78] sm:$0xff]
    %v11431 = vld [vmem:[%s12 + $0x80] sm:$0xff]
    %v11432 = vld [vmem:[%s12 + $0x88] sm:$0xff]
    %v11433 = vld [vmem:[%s12 + $0x90] sm:$0xff]
    %v11434 = vld [vmem:[%s12 + $0x98] sm:$0xff]
    %v11435 = vld [vmem:[%s12 + $0xa0] sm:$0xff]
    %v11436 = vld [vmem:[%s12 + $0xa8] sm:$0xff]
    %v11437 = vld [vmem:[%s12 + $0xb0] sm:$0xff]
    %v11438 = vld [vmem:[%s12 + $0xb8] sm:$0xff]
    %v11439 = vld [vmem:[%s12 + $0xc0] sm:$0xff]
    %v11440 = vld [vmem:[%s12 + $0xc8] sm:$0xff]
    %v11441 = vld [vmem:[%s12 + $0xd0] sm:$0xff]
    %v11442 = vld [vmem:[%s12 + $0xd8] sm:$0xff]
    %v11443 = vld [vmem:[%s12 + $0xe0] sm:$0xff]
    %v11444 = vld [vmem:[%s12 + $0xe8] sm:$0xff]
    %v11445 = vld [vmem:[%s12 + $0xf0] sm:$0xff]
    %v11446 = vld [vmem:[%s12 + $0xf8] sm:$0xff]
    %v11447 = vld [vmem:[%s12 + $0x100] sm:$0xff]
    %v11448 = vld [vmem:[%s12 + $0x108] sm:$0xff]
    %v11449 = vld [vmem:[%s12 + $0x110] sm:$0xff]
    %v11450 = vld [vmem:[%s12 + $0x118] sm:$0xff]
    %v11451 = vld [vmem:[%s12 + $0x120] sm:$0xff]
    %v11452 = vld [vmem:[%s12 + $0x128] sm:$0xff]
    %v11453 = vld [vmem:[%s12 + $0x130] sm:$0xff]
    %v11454 = vld [vmem:[%s12 + $0x138] sm:$0xff]
    %v11455 = vld [vmem:[%s12 + $0x140] sm:$0xff]
    %v11456 = vld [vmem:[%s12 + $0x148] sm:$0xff]
    %v11457 = vld [vmem:[%s12 + $0x150] sm:$0xff]
    %v11458 = vld [vmem:[%s12 + $0x158] sm:$0xff]
    %v11459 = vld [vmem:[%s12 + $0x160] sm:$0xff]
    %v11460 = vld [vmem:[%s12 + $0x168] sm:$0xff]
    %v11461 = vld [vmem:[%s12 + $0x170] sm:$0xff]
    %v11462 = vld [vmem:[%s12 + $0x178] sm:$0xff]
    %v11463 = vld [vmem:[%s12 + $0x180] sm:$0xff]
    %v11464 = vld [vmem:[%s12 + $0x188] sm:$0xff]
    %v11465 = vld [vmem:[%s12 + $0x190] sm:$0xff]
    %v11466 = vld [vmem:[%s12 + $0x198] sm:$0xff]
    %v11467 = vld [vmem:[%s12 + $0x1a0] sm:$0xff]
    %v11468 = vld [vmem:[%s12 + $0x1a8] sm:$0xff]
    %v11469 = vld [vmem:[%s12 + $0x1b0] sm:$0xff]
    %v11470 = vld [vmem:[%s12 + $0x1b8] sm:$0xff]
    %v11471 = vld [vmem:[%s12 + $0x1c0] sm:$0xff]
    %v11472 = vld [vmem:[%s12 + $0x1c8] sm:$0xff]
    %v11473 = vld [vmem:[%s12 + $0x1d0] sm:$0xff]
    %v11474 = vld [vmem:[%s12 + $0x1d8] sm:$0xff]
    %v11475 = vld [vmem:[%s12 + $0x1e0] sm:$0xff]
    %v11476 = vld [vmem:[%s12 + $0x1e8] sm:$0xff]
    %v11477 = vld [vmem:[%s12 + $0x1f0] sm:$0xff]
    %v11478 = vld [vmem:[%s12 + $0x1f8] sm:$0xff]
    %v11479 = vld [vmem:[%s12 + $0x200] sm:$0xff]
    %v11480 = vld [vmem:[%s12 + $0x208] sm:$0xff]
    %v11481 = vld [vmem:[%s12 + $0x210] sm:$0xff]
    %v11482 = vld [vmem:[%s12 + $0x218] sm:$0xff]
    %v11483 = vld [vmem:[%s12 + $0x220] sm:$0xff]
    %v11484 = vld [vmem:[%s12 + $0x228] sm:$0xff]
    %v11485 = vld [vmem:[%s12 + $0x230] sm:$0xff]
    %v11486 = vld [vmem:[%s12 + $0x238] sm:$0xff]
    %v11488 = vsel %vm7036, %v11410, 0
    %v11491 = vsel %vm7036, %v11411, 0
    %v11494 = vsel %vm7036, %v11412, 0
    %v11497 = vsel %vm7036, %v11413, 0
    %v11500 = vsel %vm7036, %v11414, 0
    %11502 = vmatprep.subr.mxu0 0.0
    %11503 = vmatpush1.msra.mxu0 0.0
    %11504 = vmatprep.subr.mxu0 0.0
    %11505 = vmatpush1.msra.mxu0 0.0
    %11506 = vmatprep.subr.mxu0 0.0
    %11507 = vmatpush1.msra.mxu0 0.0
    %11508 = vmatprep.subr.mxu0 0.0
    %11509 = vmatpush1.msra.mxu0 0.0
    %11510 = vmatprep.subr.mxu0 0.0
    %11511 = vmatpush1.msra.mxu0 0.0
    %11512 = vmatprep.subr.mxu0 0.0
    %11513 = vmatpush1.msra.mxu0 0.0
    %11514 = vmatprep.subr.mxu0 0.0
    %11515 = vmatpush1.msra.mxu0 0.0
    %11516 = vmatprep.subr.mxu0 0.0
    %11517 = vmatpush1.msra.mxu0 0.0
    %11518 = vmatprep.subr.mxu0 0.0
    %11519 = vmatpush1.msra.mxu0 0.0
    %11520 = vmatprep.subr.mxu0 0.0
    %11521 = vmatpush1.msra.mxu0 0.0
    %11522 = vmatprep.subr.mxu0 0.0
    %11523 = vmatpush1.msra.mxu0 0.0
    %11524 = vmatprep.subr.mxu0 0.0
    %11525 = vmatpush1.msra.mxu0 0.0
    %11526 = vmatprep.subr.mxu0 0.0
    %11527 = vmatpush1.msra.mxu0 0.0
    %11528 = vmatprep.subr.mxu0 0.0
    %11529 = vmatpush1.msra.mxu0 0.0
    %11530 = vmatprep.subr.mxu0 0.0
    %11531 = vmatpush1.msra.mxu0 %v11407
    %11532 = vmatprep.subr.mxu0 0.0
    %11533 = vmatpush1.msra.mxu0 %v11406
    %11534 = vmatprep.subr.mxu0 0.0
    %11535 = vmatpush2.msra.mxu0 0.0
    %11536 = vmatprep.subr.mxu0 0.0
    %11537 = vmatpush2.msra.mxu0 0.0
    %11538 = vmatprep.subr.mxu0 0.0
    %11539 = vmatpush2.msra.mxu0 0.0
    %11540 = vmatprep.subr.mxu0 0.0
    %11541 = vmatpush2.msra.mxu0 0.0
    %11542 = vmatprep.subr.mxu0 0.0
    %11543 = vmatpush2.msra.mxu0 0.0
    %11544 = vmatprep.subr.mxu0 0.0
    %11545 = vmatpush2.msra.mxu0 0.0
    %11546 = vmatprep.subr.mxu0 0.0
    %11547 = vmatpush2.msra.mxu0 0.0
    %11548 = vmatprep.subr.mxu0 0.0
    %11549 = vmatpush2.msra.mxu0 0.0
    %11550 = vmatprep.subr.mxu0 0.0
    %11551 = vmatpush2.msra.mxu0 0.0
    %11552 = vmatprep.subr.mxu0 0.0
    %11553 = vmatpush2.msra.mxu0 0.0
    %11554 = vmatprep.subr.mxu0 0.0
    %11555 = vmatpush2.msra.mxu0 0.0
    %11556 = vmatprep.subr.mxu0 0.0
    %11557 = vmatpush2.msra.mxu0 0.0
    %11558 = vmatprep.subr.mxu0 0.0
    %11559 = vmatpush2.msra.mxu0 0.0
    %11560 = vmatprep.subr.mxu0 0.0
    %11561 = vmatpush2.msra.mxu0 0.0
    %11562 = vmatprep.subr.mxu0 0.0
    %11563 = vmatpush2.msra.mxu0 0.0
    %11564 = vmatprep.subr.mxu0 0.0
    %11565 = vmatpush2.msra.mxu0 0.0
    %11566 = vmatprep.mubr.f32.mxu0 0.0
    %11567 = vmatmul.mubr.f32.gmra.mxu0 %v11488
    %v11568 = vpop.f32.mrf.mxu0
    %v11569 = vadd.f32 0.0, %v11568
    %v11570 = vpop.f32.mrf.mxu0
    %11571 = vmatprep.mubr.f32.mxu0 0.0
    %11572 = vmatmul.mubr.f32.gmra.mxu0 %v11491
    %v11573 = vpop.f32.mrf.mxu0
    %v11574 = vadd.f32 0.0, %v11573
    %v11575 = vpop.f32.mrf.mxu0
    %11576 = vmatprep.mubr.f32.mxu0 0.0
    %11577 = vmatmul.mubr.f32.gmra.mxu0 %v11494
    %v11578 = vpop.f32.mrf.mxu0
    %v11579 = vadd.f32 0.0, %v11578
    %v11580 = vpop.f32.mrf.mxu0
    %11581 = vmatprep.mubr.f32.mxu0 0.0
    %11582 = vmatmul.mubr.f32.gmra.mxu0 %v11497
    %v11583 = vpop.f32.mrf.mxu0
    %v11584 = vadd.f32 0.0, %v11583
    %v11585 = vpop.f32.mrf.mxu0
    %11586 = vmatprep.mubr.f32.mxu0 0.0
    %11587 = vmatmul.mubr.f32.gmra.mxu0 %v11500
    %v11588 = vpop.f32.mrf.mxu0
    %v11589 = vadd.f32 0.0, %v11588
    %v11590 = vpop.f32.mrf.mxu0
    %11591 = vdwg.mxu0
    %v11593 = vrot.slane %v11569, 4
    %11594 = vrot.lane.b32.xlu0 %v11593, 64
    %v11595 = vpop.permute.xlu0 %11594
    %v11598 = vrot.slane %v11574, 4
    %11599 = vrot.lane.b32.xlu0 %v11598, 64
    %v11600 = vpop.permute.xlu0 %11599
    %v11603 = vrot.slane %v11579, 4
    %11604 = vrot.lane.b32.xlu0 %v11603, 64
    %v11605 = vpop.permute.xlu0 %11604
    %v11608 = vrot.slane %v11584, 4
    %11609 = vrot.lane.b32.xlu0 %v11608, 64
    %v11610 = vpop.permute.xlu0 %11609
    %v11612 = vsel %vm7424, %v11569, %v11595
    %v11613 = vsel %vm7424, %v11574, %v11600
    %v11614 = vsel %vm7424, %v11579, %v11605
    %v11615 = vsel %vm7424, %v11584, %v11610
    %11616 = vmatprep.subr.mxu0 0.0
    %11617 = vmatpush1.msra.mxu0 0.0
    %11618 = vmatprep.subr.mxu0 0.0
    %11619 = vmatpush1.msra.mxu0 0.0
    %11620 = vmatprep.subr.mxu0 0.0
    %11621 = vmatpush1.msra.mxu0 0.0
    %11622 = vmatprep.subr.mxu0 0.0
    %11623 = vmatpush1.msra.mxu0 0.0
    %11624 = vmatprep.subr.mxu0 0.0
    %11625 = vmatpush1.msra.mxu0 0.0
    %11626 = vmatprep.subr.mxu0 0.0
    %11627 = vmatpush1.msra.mxu0 0.0
    %11628 = vmatprep.subr.mxu0 0.0
    %11629 = vmatpush1.msra.mxu0 0.0
    %11630 = vmatprep.subr.mxu0 0.0
    %11631 = vmatpush1.msra.mxu0 0.0
    %11632 = vmatprep.subr.mxu0 0.0
    %11633 = vmatpush1.msra.mxu0 0.0
    %11634 = vmatprep.subr.mxu0 0.0
    %11635 = vmatpush1.msra.mxu0 0.0
    %11636 = vmatprep.subr.mxu0 0.0
    %11637 = vmatpush1.msra.mxu0 0.0
    %11638 = vmatprep.subr.mxu0 0.0
    %11639 = vmatpush1.msra.mxu0 0.0
    %11640 = vmatprep.subr.mxu0 0.0
    %11641 = vmatpush1.msra.mxu0 0.0
    %11642 = vmatprep.subr.mxu0 0.0
    %11643 = vmatpush1.msra.mxu0 0.0
    %11644 = vmatprep.subr.mxu0 0.0
    %11645 = vmatpush1.msra.mxu0 %v11409
    %11646 = vmatprep.subr.mxu0 0.0
    %11647 = vmatpush1.msra.mxu0 %v11408
    %11648 = vmatprep.subr.mxu0 0.0
    %11649 = vmatpush2.msra.mxu0 0.0
    %11650 = vmatprep.subr.mxu0 0.0
    %11651 = vmatpush2.msra.mxu0 0.0
    %11652 = vmatprep.subr.mxu0 0.0
    %11653 = vmatpush2.msra.mxu0 0.0
    %11654 = vmatprep.subr.mxu0 0.0
    %11655 = vmatpush2.msra.mxu0 0.0
    %11656 = vmatprep.subr.mxu0 0.0
    %11657 = vmatpush2.msra.mxu0 0.0
    %11658 = vmatprep.subr.mxu0 0.0
    %11659 = vmatpush2.msra.mxu0 0.0
    %11660 = vmatprep.subr.mxu0 0.0
    %11661 = vmatpush2.msra.mxu0 0.0
    %11662 = vmatprep.subr.mxu0 0.0
    %11663 = vmatpush2.msra.mxu0 0.0
    %11664 = vmatprep.subr.mxu0 0.0
    %11665 = vmatpush2.msra.mxu0 0.0
    %11666 = vmatprep.subr.mxu0 0.0
    %11667 = vmatpush2.msra.mxu0 0.0
    %11668 = vmatprep.subr.mxu0 0.0
    %11669 = vmatpush2.msra.mxu0 0.0
    %11670 = vmatprep.subr.mxu0 0.0
    %11671 = vmatpush2.msra.mxu0 0.0
    %11672 = vmatprep.subr.mxu0 0.0
    %11673 = vmatpush2.msra.mxu0 0.0
    %11674 = vmatprep.subr.mxu0 0.0
    %11675 = vmatpush2.msra.mxu0 0.0
    %11676 = vmatprep.subr.mxu0 0.0
    %11677 = vmatpush2.msra.mxu0 0.0
    %11678 = vmatprep.subr.mxu0 0.0
    %11679 = vmatpush2.msra.mxu0 0.0
    %11680 = vmatprep.mubr.f32.mxu0 0.0
    %11681 = vmatmul.mubr.f32.gmra.mxu0 %v11488
    %v11682 = vpop.f32.mrf.mxu0
    %v11683 = vadd.f32 0.0, %v11682
    %v11684 = vpop.f32.mrf.mxu0
    %11685 = vmatprep.mubr.f32.mxu0 0.0
    %11686 = vmatmul.mubr.f32.gmra.mxu0 %v11491
    %v11687 = vpop.f32.mrf.mxu0
    %v11688 = vadd.f32 0.0, %v11687
    %v11689 = vpop.f32.mrf.mxu0
    %11690 = vmatprep.mubr.f32.mxu0 0.0
    %11691 = vmatmul.mubr.f32.gmra.mxu0 %v11494
    %v11692 = vpop.f32.mrf.mxu0
    %v11693 = vadd.f32 0.0, %v11692
    %v11694 = vpop.f32.mrf.mxu0
    %11695 = vmatprep.mubr.f32.mxu0 0.0
    %11696 = vmatmul.mubr.f32.gmra.mxu0 %v11497
    %v11697 = vpop.f32.mrf.mxu0
    %v11698 = vadd.f32 0.0, %v11697
    %v11699 = vpop.f32.mrf.mxu0
    %11700 = vmatprep.mubr.f32.mxu0 0.0
    %11701 = vmatmul.mubr.f32.gmra.mxu0 %v11500
    %v11702 = vpop.f32.mrf.mxu0
    %v11703 = vadd.f32 0.0, %v11702
    %v11704 = vpop.f32.mrf.mxu0
    %11705 = vdwg.mxu0
    %v11707 = vrot.slane %v11683, 4
    %11708 = vrot.lane.b32.xlu0 %v11707, 64
    %v11709 = vpop.permute.xlu0 %11708
    %v11712 = vrot.slane %v11688, 4
    %11713 = vrot.lane.b32.xlu0 %v11712, 64
    %v11714 = vpop.permute.xlu0 %11713
    %v11717 = vrot.slane %v11693, 4
    %11718 = vrot.lane.b32.xlu0 %v11717, 64
    %v11719 = vpop.permute.xlu0 %11718
    %v11722 = vrot.slane %v11698, 4
    %11723 = vrot.lane.b32.xlu0 %v11722, 64
    %v11724 = vpop.permute.xlu0 %11723
    %v11726 = vsel %vm7424, %v11683, %v11709
    %v11727 = vsel %vm7424, %v11688, %v11714
    %v11728 = vsel %vm7424, %v11693, %v11719
    %v11729 = vsel %vm7424, %v11698, %v11724
    %v11735 = vrot.slane %v11726, 4
    %v11736 = vrot.slane %v11727, 4
    %v11737 = vrot.slane %v11728, 4
    %v11738 = vrot.slane %v11729, 4
    %v11739 = vrot.slane %v11703, 4
    %vm11745 = vcmask 1043456
    %v11746 = vsel %vm11745, %v11612, %v11735
    %v11747 = vsel %vm11745, %v11613, %v11736
    %v11748 = vsel %vm11745, %v11614, %v11737
    %v11749 = vsel %vm11745, %v11615, %v11738
    %v11750 = vsel %vm11745, %v11589, %v11739
    %v11751 = vld [vmem:[%s13] sm:$0x1]
    %v11752 = vld [vmem:[%s13 + $0x1] sm:$0x1]
    %v11753 = vld [vmem:[%s13 + $0x2] sm:$0x1]
    %v11754 = vlaneseq
    %v11755 = vshrl.u32 %v11754, 7
    %v11756 = vsub.s32 0, %v11755
    %v11757 = vrot.slane %v11751, %v11756
    %v11759 = vsel %vm7424, %v11750, 0
    %11761 = vmatprep.subr.mxu0 0.0
    %11762 = vmatpush1.msra.mxu0 %v11430
    %11763 = vmatprep.subr.mxu0 0.0
    %11764 = vmatpush1.msra.mxu0 %v11429
    %11765 = vmatprep.subr.mxu0 0.0
    %11766 = vmatpush1.msra.mxu0 %v11428
    %11767 = vmatprep.subr.mxu0 0.0
    %11768 = vmatpush1.msra.mxu0 %v11427
    %11769 = vmatprep.subr.mxu0 0.0
    %11770 = vmatpush1.msra.mxu0 %v11426
    %11771 = vmatprep.subr.mxu0 0.0
    %11772 = vmatpush1.msra.mxu0 %v11425
    %11773 = vmatprep.subr.mxu0 0.0
    %11774 = vmatpush1.msra.mxu0 %v11424
    %11775 = vmatprep.subr.mxu0 0.0
    %11776 = vmatpush1.msra.mxu0 %v11423
    %11777 = vmatprep.subr.mxu0 0.0
    %11778 = vmatpush1.msra.mxu0 %v11422
    %11779 = vmatprep.subr.mxu0 0.0
    %11780 = vmatpush1.msra.mxu0 %v11421
    %11781 = vmatprep.subr.mxu0 0.0
    %11782 = vmatpush1.msra.mxu0 %v11420
    %11783 = vmatprep.subr.mxu0 0.0
    %11784 = vmatpush1.msra.mxu0 %v11419
    %11785 = vmatprep.subr.mxu0 0.0
    %11786 = vmatpush1.msra.mxu0 %v11418
    %11787 = vmatprep.subr.mxu0 0.0
    %11788 = vmatpush1.msra.mxu0 %v11417
    %11789 = vmatprep.subr.mxu0 0.0
    %11790 = vmatpush1.msra.mxu0 %v11416
    %11791 = vmatprep.subr.mxu0 0.0
    %11792 = vmatpush1.msra.mxu0 %v11415
    %11793 = vmatprep.subr.mxu0 0.0
    %11794 = vmatpush2.msra.mxu0 %v11446
    %11795 = vmatprep.subr.mxu0 0.0
    %11796 = vmatpush2.msra.mxu0 %v11445
    %11797 = vmatprep.subr.mxu0 0.0
    %11798 = vmatpush2.msra.mxu0 %v11444
    %11799 = vmatprep.subr.mxu0 0.0
    %11800 = vmatpush2.msra.mxu0 %v11443
    %11801 = vmatprep.subr.mxu0 0.0
    %11802 = vmatpush2.msra.mxu0 %v11442
    %11803 = vmatprep.subr.mxu0 0.0
    %11804 = vmatpush2.msra.mxu0 %v11441
    %11805 = vmatprep.subr.mxu0 0.0
    %11806 = vmatpush2.msra.mxu0 %v11440
    %11807 = vmatprep.subr.mxu0 0.0
    %11808 = vmatpush2.msra.mxu0 %v11439
    %11809 = vmatprep.subr.mxu0 0.0
    %11810 = vmatpush2.msra.mxu0 %v11438
    %11811 = vmatprep.subr.mxu0 0.0
    %11812 = vmatpush2.msra.mxu0 %v11437
    %11813 = vmatprep.subr.mxu0 0.0
    %11814 = vmatpush2.msra.mxu0 %v11436
    %11815 = vmatprep.subr.mxu0 0.0
    %11816 = vmatpush2.msra.mxu0 %v11435
    %11817 = vmatprep.subr.mxu0 0.0
    %11818 = vmatpush2.msra.mxu0 %v11434
    %11819 = vmatprep.subr.mxu0 0.0
    %11820 = vmatpush2.msra.mxu0 %v11433
    %11821 = vmatprep.subr.mxu0 0.0
    %11822 = vmatpush2.msra.mxu0 %v11432
    %11823 = vmatprep.subr.mxu0 0.0
    %11824 = vmatpush2.msra.mxu0 %v11431
    %11825 = vmatprep.mubr.f32.mxu0 %v11747
    %11826 = vmatmul.mubr.f32.gmra.mxu0 %v11746
    %v11827 = vpop.f32.mrf.mxu0
    %v11828 = vadd.f32 %v11757, %v11827
    %v11829 = vpop.f32.mrf.mxu0
    %11830 = vdwg.mxu0
    %11831 = vmatprep.subr.mxu0 0.0
    %11832 = vmatpush1.msra.mxu0 %v11462
    %11833 = vmatprep.subr.mxu0 0.0
    %11834 = vmatpush1.msra.mxu0 %v11461
    %11835 = vmatprep.subr.mxu0 0.0
    %11836 = vmatpush1.msra.mxu0 %v11460
    %11837 = vmatprep.subr.mxu0 0.0
    %11838 = vmatpush1.msra.mxu0 %v11459
    %11839 = vmatprep.subr.mxu0 0.0
    %11840 = vmatpush1.msra.mxu0 %v11458
    %11841 = vmatprep.subr.mxu0 0.0
    %11842 = vmatpush1.msra.mxu0 %v11457
    %11843 = vmatprep.subr.mxu0 0.0
    %11844 = vmatpush1.msra.mxu0 %v11456
    %11845 = vmatprep.subr.mxu0 0.0
    %11846 = vmatpush1.msra.mxu0 %v11455
    %11847 = vmatprep.subr.mxu0 0.0
    %11848 = vmatpush1.msra.mxu0 %v11454
    %11849 = vmatprep.subr.mxu0 0.0
    %11850 = vmatpush1.msra.mxu0 %v11453
    %11851 = vmatprep.subr.mxu0 0.0
    %11852 = vmatpush1.msra.mxu0 %v11452
    %11853 = vmatprep.subr.mxu0 0.0
    %11854 = vmatpush1.msra.mxu0 %v11451
    %11855 = vmatprep.subr.mxu0 0.0
    %11856 = vmatpush1.msra.mxu0 %v11450
    %11857 = vmatprep.subr.mxu0 0.0
    %11858 = vmatpush1.msra.mxu0 %v11449
    %11859 = vmatprep.subr.mxu0 0.0
    %11860 = vmatpush1.msra.mxu0 %v11448
    %11861 = vmatprep.subr.mxu0 0.0
    %11862 = vmatpush1.msra.mxu0 %v11447
    %11863 = vmatprep.subr.mxu0 0.0
    %11864 = vmatpush2.msra.mxu0 %v11478
    %11865 = vmatprep.subr.mxu0 0.0
    %11866 = vmatpush2.msra.mxu0 %v11477
    %11867 = vmatprep.subr.mxu0 0.0
    %11868 = vmatpush2.msra.mxu0 %v11476
    %11869 = vmatprep.subr.mxu0 0.0
    %11870 = vmatpush2.msra.mxu0 %v11475
    %11871 = vmatprep.subr.mxu0 0.0
    %11872 = vmatpush2.msra.mxu0 %v11474
    %11873 = vmatprep.subr.mxu0 0.0
    %11874 = vmatpush2.msra.mxu0 %v11473
    %11875 = vmatprep.subr.mxu0 0.0
    %11876 = vmatpush2.msra.mxu0 %v11472
    %11877 = vmatprep.subr.mxu0 0.0
    %11878 = vmatpush2.msra.mxu0 %v11471
    %11879 = vmatprep.subr.mxu0 0.0
    %11880 = vmatpush2.msra.mxu0 %v11470
    %11881 = vmatprep.subr.mxu0 0.0
    %11882 = vmatpush2.msra.mxu0 %v11469
    %11883 = vmatprep.subr.mxu0 0.0
    %11884 = vmatpush2.msra.mxu0 %v11468
    %11885 = vmatprep.subr.mxu0 0.0
    %11886 = vmatpush2.msra.mxu0 %v11467
    %11887 = vmatprep.subr.mxu0 0.0
    %11888 = vmatpush2.msra.mxu0 %v11466
    %11889 = vmatprep.subr.mxu0 0.0
    %11890 = vmatpush2.msra.mxu0 %v11465
    %11891 = vmatprep.subr.mxu0 0.0
    %11892 = vmatpush2.msra.mxu0 %v11464
    %11893 = vmatprep.subr.mxu0 0.0
    %11894 = vmatpush2.msra.mxu0 %v11463
    %11895 = vmatprep.mubr.f32.mxu0 %v11749
    %11896 = vmatmul.mubr.f32.gmra.mxu0 %v11748
    %v11897 = vpop.f32.mrf.mxu0
    %v11898 = vadd.f32 %v11828, %v11897
    %v11899 = vpop.f32.mrf.mxu0
    %11900 = vdwg.mxu0
    %11901 = vmatprep.subr.mxu0 0.0
    %11902 = vmatpush1.msra.mxu0 0.0
    %11903 = vmatprep.subr.mxu0 0.0
    %11904 = vmatpush1.msra.mxu0 0.0
    %11905 = vmatprep.subr.mxu0 0.0
    %11906 = vmatpush1.msra.mxu0 0.0
    %11907 = vmatprep.subr.mxu0 0.0
    %11908 = vmatpush1.msra.mxu0 0.0
    %11909 = vmatprep.subr.mxu0 0.0
    %11910 = vmatpush1.msra.mxu0 0.0
    %11911 = vmatprep.subr.mxu0 0.0
    %11912 = vmatpush1.msra.mxu0 0.0
    %11913 = vmatprep.subr.mxu0 0.0
    %11914 = vmatpush1.msra.mxu0 0.0
    %11915 = vmatprep.subr.mxu0 0.0
    %11916 = vmatpush1.msra.mxu0 0.0
    %11917 = vmatprep.subr.mxu0 0.0
    %11918 = vmatpush1.msra.mxu0 %v11486
    %11919 = vmatprep.subr.mxu0 0.0
    %11920 = vmatpush1.msra.mxu0 %v11485
    %11921 = vmatprep.subr.mxu0 0.0
    %11922 = vmatpush1.msra.mxu0 %v11484
    %11923 = vmatprep.subr.mxu0 0.0
    %11924 = vmatpush1.msra.mxu0 %v11483
    %11925 = vmatprep.subr.mxu0 0.0
    %11926 = vmatpush1.msra.mxu0 %v11482
    %11927 = vmatprep.subr.mxu0 0.0
    %11928 = vmatpush1.msra.mxu0 %v11481
    %11929 = vmatprep.subr.mxu0 0.0
    %11930 = vmatpush1.msra.mxu0 %v11480
    %11931 = vmatprep.subr.mxu0 0.0
    %11932 = vmatpush1.msra.mxu0 %v11479
    %11933 = vmatprep.subr.mxu0 0.0
    %11934 = vmatpush2.msra.mxu0 0.0
    %11935 = vmatprep.subr.mxu0 0.0
    %11936 = vmatpush2.msra.mxu0 0.0
    %11937 = vmatprep.subr.mxu0 0.0
    %11938 = vmatpush2.msra.mxu0 0.0
    %11939 = vmatprep.subr.mxu0 0.0
    %11940 = vmatpush2.msra.mxu0 0.0
    %11941 = vmatprep.subr.mxu0 0.0
    %11942 = vmatpush2.msra.mxu0 0.0
    %11943 = vmatprep.subr.mxu0 0.0
    %11944 = vmatpush2.msra.mxu0 0.0
    %11945 = vmatprep.subr.mxu0 0.0
    %11946 = vmatpush2.msra.mxu0 0.0
    %11947 = vmatprep.subr.mxu0 0.0
    %11948 = vmatpush2.msra.mxu0 0.0
    %11949 = vmatprep.subr.mxu0 0.0
    %11950 = vmatpush2.msra.mxu0 0.0
    %11951 = vmatprep.subr.mxu0 0.0
    %11952 = vmatpush2.msra.mxu0 0.0
    %11953 = vmatprep.subr.mxu0 0.0
    %11954 = vmatpush2.msra.mxu0 0.0
    %11955 = vmatprep.subr.mxu0 0.0
    %11956 = vmatpush2.msra.mxu0 0.0
    %11957 = vmatprep.subr.mxu0 0.0
    %11958 = vmatpush2.msra.mxu0 0.0
    %11959 = vmatprep.subr.mxu0 0.0
    %11960 = vmatpush2.msra.mxu0 0.0
    %11961 = vmatprep.subr.mxu0 0.0
    %11962 = vmatpush2.msra.mxu0 0.0
    %11963 = vmatprep.subr.mxu0 0.0
    %11964 = vmatpush2.msra.mxu0 0.0
    %11965 = vmatprep.mubr.f32.mxu0 0.0
    %11966 = vmatmul.mubr.f32.gmra.mxu0 %v11759
    %v11967 = vpop.f32.mrf.mxu0
    %v11968 = vadd.f32 %v11898, %v11967
    %v11969 = vpop.f32.mrf.mxu0
    %11970 = vdwg.mxu0
    %v11971 = vmax.f32 %v11968, 0.0
    %v11972 = vrot.slane %v11971, 4
    %v11973 = vadd.f32 %v11971, %v11972
    %v11974 = vrot.slane %v11973, 2
    %v11975 = vadd.f32 %v11973, %v11974
    %v11976 = vrot.slane %v11975, 1
    %v11977 = vadd.f32 %v11975, %v11976
    %v11978 = vmul.f32 %v11977, 0.125
    %v11979 = vsub.f32 %v11971, %v11978
    %v11980 = vmul.f32 %v11979, %v11979
    %v11981 = vrot.slane %v11980, 4
    %v11982 = vadd.f32 %v11980, %v11981
    %v11983 = vrot.slane %v11982, 2
    %v11984 = vadd.f32 %v11982, %v11983
    %v11985 = vrot.slane %v11984, 1
    %v11986 = vadd.f32 %v11984, %v11985
    %v11987 = vmul.f32 %v11986, 0.125
    %v11988 = vadd.f32 %v11987, 1e-05
    %v11989 = vrsqrt.pop %v11988
    %v11990 = vmul.f32 %v11989, %v11752
    %v11991 = vlaneseq
    %v11992 = vshrl.u32 %v11991, 7
    %v11993 = vsub.s32 0, %v11992
    %v11994 = vrot.slane %v11990, %v11993
    %v11995 = vmul.f32 %v11979, %v11994
    %v11996 = vlaneseq
    %v11997 = vshrl.u32 %v11996, 7
    %v11998 = vsub.s32 0, %v11997
    %v11999 = vrot.slane %v11753, %v11998
    %v12000 = vadd.f32 %v11995, %v11999
    %v12001 = vld [vmem:[%s14] sm:$0xff]
    %v12002 = vld [vmem:[%s14 + $0x8] sm:$0x1]
    %v12003 = vld [vmem:[%s15] sm:$0xff]
    %v12004 = vld [vmem:[%s15 + $0x8] sm:$0xff]
    %v12005 = vld [vmem:[%s15 + $0x10] sm:$0xff]
    %v12006 = vld [vmem:[%s15 + $0x18] sm:$0xff]
    %v12007 = vld [vmem:[%s15 + $0x20] sm:$0xff]
    %v12008 = vld [vmem:[%s15 + $0x28] sm:$0xff]
    %v12009 = vld [vmem:[%s15 + $0x30] sm:$0xff]
    %v12010 = vld [vmem:[%s15 + $0x38] sm:$0xff]
    %v12011 = vld [vmem:[%s15 + $0x40] sm:$0xff]
    %v12012 = vld [vmem:[%s15 + $0x48] sm:$0xff]
    %v12013 = vld [vmem:[%s15 + $0x50] sm:$0xff]
    %v12014 = vld [vmem:[%s15 + $0x58] sm:$0xff]
    %v12015 = vld [vmem:[%s15 + $0x60] sm:$0xff]
    %v12016 = vld [vmem:[%s15 + $0x68] sm:$0xff]
    %v12017 = vld [vmem:[%s15 + $0x70] sm:$0xff]
    %v12018 = vld [vmem:[%s15 + $0x78] sm:$0xff]
    %v12019 = vld [vmem:[%s15 + $0x80] sm:$0xff]
    %v12020 = vld [vmem:[%s15 + $0x88] sm:$0xff]
    %v12021 = vld [vmem:[%s15 + $0x90] sm:$0xff]
    %v12022 = vld [vmem:[%s15 + $0x98] sm:$0xff]
    %v12023 = vld [vmem:[%s15 + $0xa0] sm:$0xff]
    %v12024 = vld [vmem:[%s15 + $0xa8] sm:$0xff]
    %v12025 = vld [vmem:[%s15 + $0xb0] sm:$0xff]
    %v12026 = vld [vmem:[%s15 + $0xb8] sm:$0xff]
    %v12027 = vld [vmem:[%s15 + $0xc0] sm:$0xff]
    %v12028 = vld [vmem:[%s15 + $0xc8] sm:$0xff]
    %v12029 = vld [vmem:[%s15 + $0xd0] sm:$0xff]
    %v12030 = vld [vmem:[%s15 + $0xd8] sm:$0xff]
    %v12031 = vld [vmem:[%s15 + $0xe0] sm:$0xff]
    %v12032 = vld [vmem:[%s15 + $0xe8] sm:$0xff]
    %v12033 = vld [vmem:[%s15 + $0xf0] sm:$0xff]
    %v12034 = vld [vmem:[%s15 + $0xf8] sm:$0xff]
    %v12035 = vld [vmem:[%s15 + $0x100] sm:$0xff]
    %v12036 = vld [vmem:[%s15 + $0x108] sm:$0xff]
    %v12037 = vld [vmem:[%s15 + $0x110] sm:$0xff]
    %v12038 = vld [vmem:[%s15 + $0x118] sm:$0xff]
    %v12039 = vld [vmem:[%s15 + $0x120] sm:$0xff]
    %v12040 = vld [vmem:[%s15 + $0x128] sm:$0xff]
    %v12041 = vld [vmem:[%s15 + $0x130] sm:$0xff]
    %v12042 = vld [vmem:[%s15 + $0x138] sm:$0xff]
    %v12043 = vld [vmem:[%s15 + $0x140] sm:$0xff]
    %v12044 = vld [vmem:[%s15 + $0x148] sm:$0xff]
    %v12045 = vld [vmem:[%s15 + $0x150] sm:$0xff]
    %v12046 = vld [vmem:[%s15 + $0x158] sm:$0xff]
    %v12047 = vld [vmem:[%s15 + $0x160] sm:$0xff]
    %v12048 = vld [vmem:[%s15 + $0x168] sm:$0xff]
    %v12049 = vld [vmem:[%s15 + $0x170] sm:$0xff]
    %v12050 = vld [vmem:[%s15 + $0x178] sm:$0xff]
    %v12051 = vld [vmem:[%s15 + $0x180] sm:$0xff]
    %v12052 = vld [vmem:[%s15 + $0x188] sm:$0xff]
    %v12053 = vld [vmem:[%s15 + $0x190] sm:$0xff]
    %v12054 = vld [vmem:[%s15 + $0x198] sm:$0xff]
    %v12055 = vld [vmem:[%s15 + $0x1a0] sm:$0xff]
    %v12056 = vld [vmem:[%s15 + $0x1a8] sm:$0xff]
    %v12057 = vld [vmem:[%s15 + $0x1b0] sm:$0xff]
    %v12058 = vld [vmem:[%s15 + $0x1b8] sm:$0xff]
    %v12059 = vld [vmem:[%s15 + $0x1c0] sm:$0xff]
    %v12060 = vld [vmem:[%s15 + $0x1c8] sm:$0xff]
    %v12061 = vld [vmem:[%s15 + $0x1d0] sm:$0xff]
    %v12062 = vld [vmem:[%s15 + $0x1d8] sm:$0xff]
    %v12063 = vld [vmem:[%s15 + $0x1e0] sm:$0xff]
    %v12064 = vld [vmem:[%s15 + $0x1e8] sm:$0xff]
    %v12065 = vld [vmem:[%s15 + $0x1f0] sm:$0xff]
    %v12066 = vld [vmem:[%s15 + $0x1f8] sm:$0xff]
    %v12067 = vld [vmem:[%s15 + $0x200] sm:$0xff]
    %v12068 = vld [vmem:[%s15 + $0x208] sm:$0xff]
    %v12069 = vld [vmem:[%s15 + $0x210] sm:$0xff]
    %v12070 = vld [vmem:[%s15 + $0x218] sm:$0xff]
    %v12071 = vld [vmem:[%s15 + $0x220] sm:$0xff]
    %v12072 = vld [vmem:[%s15 + $0x228] sm:$0xff]
    %v12073 = vld [vmem:[%s15 + $0x230] sm:$0xff]
    %v12074 = vld [vmem:[%s15 + $0x238] sm:$0xff]
    %v12075 = vld [vmem:[%s15 + $0x240] sm:$0xff]
    %v12076 = vld [vmem:[%s15 + $0x248] sm:$0xff]
    %v12077 = vld [vmem:[%s15 + $0x250] sm:$0xff]
    %v12078 = vld [vmem:[%s15 + $0x258] sm:$0xff]
    %v12079 = vld [vmem:[%s15 + $0x260] sm:$0xff]
    %v12080 = vld [vmem:[%s15 + $0x268] sm:$0xff]
    %v12081 = vld [vmem:[%s15 + $0x270] sm:$0xff]
    %v12082 = vld [vmem:[%s15 + $0x278] sm:$0xff]
    %v12083 = vld [vmem:[%s15 + $0x280] sm:$0xff]
    %v12084 = vld [vmem:[%s15 + $0x288] sm:$0xff]
    %v12085 = vld [vmem:[%s15 + $0x290] sm:$0xff]
    %v12086 = vld [vmem:[%s15 + $0x298] sm:$0xff]
    %v12087 = vld [vmem:[%s15 + $0x2a0] sm:$0xff]
    %v12088 = vld [vmem:[%s15 + $0x2a8] sm:$0xff]
    %v12089 = vld [vmem:[%s15 + $0x2b0] sm:$0xff]
    %v12090 = vld [vmem:[%s15 + $0x2b8] sm:$0xff]
    %v12091 = vld [vmem:[%s15 + $0x2c0] sm:$0xff]
    %v12092 = vld [vmem:[%s15 + $0x2c8] sm:$0xff]
    %v12093 = vld [vmem:[%s15 + $0x2d0] sm:$0xff]
    %v12094 = vld [vmem:[%s15 + $0x2d8] sm:$0xff]
    %v12095 = vld [vmem:[%s15 + $0x2e0] sm:$0xff]
    %v12096 = vld [vmem:[%s15 + $0x2e8] sm:$0xff]
    %v12097 = vld [vmem:[%s15 + $0x2f0] sm:$0xff]
    %v12098 = vld [vmem:[%s15 + $0x2f8] sm:$0xff]
    %v12099 = vld [vmem:[%s15 + $0x300] sm:$0xff]
    %v12100 = vld [vmem:[%s15 + $0x308] sm:$0xff]
    %v12101 = vld [vmem:[%s15 + $0x310] sm:$0xff]
    %v12102 = vld [vmem:[%s15 + $0x318] sm:$0xff]
    %v12103 = vld [vmem:[%s15 + $0x320] sm:$0xff]
    %v12104 = vld [vmem:[%s15 + $0x328] sm:$0xff]
    %v12105 = vld [vmem:[%s15 + $0x330] sm:$0xff]
    %v12106 = vld [vmem:[%s15 + $0x338] sm:$0xff]
    %v12107 = vld [vmem:[%s15 + $0x340] sm:$0xff]
    %v12108 = vld [vmem:[%s15 + $0x348] sm:$0xff]
    %v12109 = vld [vmem:[%s15 + $0x350] sm:$0xff]
    %v12110 = vld [vmem:[%s15 + $0x358] sm:$0xff]
    %v12111 = vld [vmem:[%s15 + $0x360] sm:$0xff]
    %v12112 = vld [vmem:[%s15 + $0x368] sm:$0xff]
    %v12113 = vld [vmem:[%s15 + $0x370] sm:$0xff]
    %v12114 = vld [vmem:[%s15 + $0x378] sm:$0xff]
    %v12115 = vld [vmem:[%s15 + $0x380] sm:$0xff]
    %v12116 = vld [vmem:[%s15 + $0x388] sm:$0xff]
    %v12117 = vld [vmem:[%s15 + $0x390] sm:$0xff]
    %v12118 = vld [vmem:[%s15 + $0x398] sm:$0xff]
    %v12119 = vld [vmem:[%s15 + $0x3a0] sm:$0xff]
    %v12120 = vld [vmem:[%s15 + $0x3a8] sm:$0xff]
    %v12121 = vld [vmem:[%s15 + $0x3b0] sm:$0xff]
    %v12122 = vld [vmem:[%s15 + $0x3b8] sm:$0xff]
    %v12123 = vld [vmem:[%s15 + $0x3c0] sm:$0xff]
    %v12124 = vld [vmem:[%s15 + $0x3c8] sm:$0xff]
    %v12125 = vld [vmem:[%s15 + $0x3d0] sm:$0xff]
    %v12126 = vld [vmem:[%s15 + $0x3d8] sm:$0xff]
    %v12127 = vld [vmem:[%s15 + $0x3e0] sm:$0xff]
    %v12128 = vld [vmem:[%s15 + $0x3e8] sm:$0xff]
    %v12129 = vld [vmem:[%s15 + $0x3f0] sm:$0xff]
    %v12130 = vld [vmem:[%s15 + $0x3f8] sm:$0xff]
    %v12131 = vld [vmem:[%s15 + $0x400] sm:$0xff]
    %v12132 = vld [vmem:[%s15 + $0x408] sm:$0xff]
    %v12133 = vld [vmem:[%s15 + $0x410] sm:$0xff]
    %v12134 = vld [vmem:[%s15 + $0x418] sm:$0xff]
    %v12135 = vld [vmem:[%s15 + $0x420] sm:$0xff]
    %v12136 = vld [vmem:[%s15 + $0x428] sm:$0xff]
    %v12137 = vld [vmem:[%s15 + $0x430] sm:$0xff]
    %v12138 = vld [vmem:[%s15 + $0x438] sm:$0xff]
    %v12139 = vld [vmem:[%s15 + $0x440] sm:$0xff]
    %v12140 = vld [vmem:[%s15 + $0x448] sm:$0xff]
    %v12141 = vld [vmem:[%s15 + $0x450] sm:$0xff]
    %v12142 = vld [vmem:[%s15 + $0x458] sm:$0xff]
    %v12143 = vld [vmem:[%s15 + $0x460] sm:$0xff]
    %v12144 = vld [vmem:[%s15 + $0x468] sm:$0xff]
    %v12145 = vld [vmem:[%s15 + $0x470] sm:$0xff]
    %v12146 = vld [vmem:[%s15 + $0x478] sm:$0xff]
    %v12147 = vld [vmem:[%s15 + $0x480] sm:$0xff]
    %v12148 = vld [vmem:[%s15 + $0x488] sm:$0xff]
    %v12149 = vld [vmem:[%s15 + $0x490] sm:$0xff]
    %v12150 = vld [vmem:[%s15 + $0x498] sm:$0xff]
    %v12151 = vld [vmem:[%s15 + $0x4a0] sm:$0xff]
    %v12152 = vld [vmem:[%s15 + $0x4a8] sm:$0xff]
    %v12153 = vld [vmem:[%s15 + $0x4b0] sm:$0xff]
    %v12154 = vld [vmem:[%s15 + $0x4b8] sm:$0xff]
    %v12155 = vld [vmem:[%s15 + $0x4c0] sm:$0xff]
    %v12156 = vld [vmem:[%s15 + $0x4c8] sm:$0xff]
    %v12157 = vld [vmem:[%s15 + $0x4d0] sm:$0xff]
    %v12158 = vld [vmem:[%s15 + $0x4d8] sm:$0xff]
    %v12159 = vld [vmem:[%s15 + $0x4e0] sm:$0xff]
    %v12160 = vld [vmem:[%s15 + $0x4e8] sm:$0xff]
    %v12161 = vld [vmem:[%s15 + $0x4f0] sm:$0xff]
    %v12162 = vld [vmem:[%s15 + $0x4f8] sm:$0xff]
    %v12163 = vld [vmem:[%s15 + $0x500] sm:$0xff]
    %v12164 = vld [vmem:[%s15 + $0x508] sm:$0xff]
    %v12165 = vld [vmem:[%s15 + $0x510] sm:$0xff]
    %v12166 = vld [vmem:[%s15 + $0x518] sm:$0xff]
    %v12167 = vld [vmem:[%s15 + $0x520] sm:$0xff]
    %v12168 = vld [vmem:[%s15 + $0x528] sm:$0xff]
    %v12169 = vld [vmem:[%s15 + $0x530] sm:$0xff]
    %v12170 = vld [vmem:[%s15 + $0x538] sm:$0xff]
    %v12171 = vld [vmem:[%s15 + $0x540] sm:$0xff]
    %v12172 = vld [vmem:[%s15 + $0x548] sm:$0xff]
    %v12173 = vld [vmem:[%s15 + $0x550] sm:$0xff]
    %v12174 = vld [vmem:[%s15 + $0x558] sm:$0xff]
    %v12175 = vld [vmem:[%s15 + $0x560] sm:$0xff]
    %v12176 = vld [vmem:[%s15 + $0x568] sm:$0xff]
    %v12177 = vld [vmem:[%s15 + $0x570] sm:$0xff]
    %v12178 = vld [vmem:[%s15 + $0x578] sm:$0xff]
    %v12179 = vld [vmem:[%s15 + $0x580] sm:$0xff]
    %v12180 = vld [vmem:[%s15 + $0x588] sm:$0xff]
    %v12181 = vld [vmem:[%s15 + $0x590] sm:$0xff]
    %v12182 = vld [vmem:[%s15 + $0x598] sm:$0xff]
    %v12183 = vld [vmem:[%s15 + $0x5a0] sm:$0xff]
    %v12184 = vld [vmem:[%s15 + $0x5a8] sm:$0xff]
    %v12185 = vld [vmem:[%s15 + $0x5b0] sm:$0xff]
    %v12186 = vld [vmem:[%s15 + $0x5b8] sm:$0xff]
    %v12187 = vld [vmem:[%s15 + $0x5c0] sm:$0xff]
    %v12188 = vld [vmem:[%s15 + $0x5c8] sm:$0xff]
    %v12189 = vld [vmem:[%s15 + $0x5d0] sm:$0xff]
    %v12190 = vld [vmem:[%s15 + $0x5d8] sm:$0xff]
    %v12191 = vld [vmem:[%s15 + $0x5e0] sm:$0xff]
    %v12192 = vld [vmem:[%s15 + $0x5e8] sm:$0xff]
    %v12193 = vld [vmem:[%s15 + $0x5f0] sm:$0xff]
    %v12194 = vld [vmem:[%s15 + $0x5f8] sm:$0xff]
    %v12195 = vld [vmem:[%s15 + $0x600] sm:$0xff]
    %v12196 = vld [vmem:[%s15 + $0x608] sm:$0xff]
    %v12197 = vld [vmem:[%s15 + $0x610] sm:$0xff]
    %v12198 = vld [vmem:[%s15 + $0x618] sm:$0xff]
    %v12199 = vld [vmem:[%s15 + $0x620] sm:$0xff]
    %v12200 = vld [vmem:[%s15 + $0x628] sm:$0xff]
    %v12201 = vld [vmem:[%s15 + $0x630] sm:$0xff]
    %v12202 = vld [vmem:[%s15 + $0x638] sm:$0xff]
    %v12203 = vld [vmem:[%s15 + $0x640] sm:$0xff]
    %v12204 = vld [vmem:[%s15 + $0x648] sm:$0xff]
    %v12205 = vld [vmem:[%s15 + $0x650] sm:$0xff]
    %v12206 = vld [vmem:[%s15 + $0x658] sm:$0xff]
    %v12207 = vld [vmem:[%s15 + $0x660] sm:$0xff]
    %v12208 = vld [vmem:[%s15 + $0x668] sm:$0xff]
    %v12209 = vld [vmem:[%s15 + $0x670] sm:$0xff]
    %v12210 = vld [vmem:[%s15 + $0x678] sm:$0xff]
    %v12211 = vld [vmem:[%s15 + $0x680] sm:$0xff]
    %v12212 = vld [vmem:[%s15 + $0x688] sm:$0xff]
    %v12213 = vld [vmem:[%s15 + $0x690] sm:$0xff]
    %v12214 = vld [vmem:[%s15 + $0x698] sm:$0xff]
    %v12215 = vld [vmem:[%s15 + $0x6a0] sm:$0xff]
    %v12216 = vld [vmem:[%s15 + $0x6a8] sm:$0xff]
    %v12217 = vld [vmem:[%s15 + $0x6b0] sm:$0xff]
    %v12218 = vld [vmem:[%s15 + $0x6b8] sm:$0xff]
    %v12219 = vld [vmem:[%s15 + $0x6c0] sm:$0xff]
    %v12220 = vld [vmem:[%s15 + $0x6c8] sm:$0xff]
    %v12221 = vld [vmem:[%s15 + $0x6d0] sm:$0xff]
    %v12222 = vld [vmem:[%s15 + $0x6d8] sm:$0xff]
    %v12223 = vld [vmem:[%s15 + $0x6e0] sm:$0xff]
    %v12224 = vld [vmem:[%s15 + $0x6e8] sm:$0xff]
    %v12225 = vld [vmem:[%s15 + $0x6f0] sm:$0xff]
    %v12226 = vld [vmem:[%s15 + $0x6f8] sm:$0xff]
    %v12227 = vld [vmem:[%s15 + $0x700] sm:$0xff]
    %v12228 = vld [vmem:[%s15 + $0x708] sm:$0xff]
    %v12229 = vld [vmem:[%s15 + $0x710] sm:$0xff]
    %v12230 = vld [vmem:[%s15 + $0x718] sm:$0xff]
    %v12231 = vld [vmem:[%s15 + $0x720] sm:$0xff]
    %v12232 = vld [vmem:[%s15 + $0x728] sm:$0xff]
    %v12233 = vld [vmem:[%s15 + $0x730] sm:$0xff]
    %v12234 = vld [vmem:[%s15 + $0x738] sm:$0xff]
    %v12235 = vld [vmem:[%s15 + $0x740] sm:$0xff]
    %v12236 = vld [vmem:[%s15 + $0x748] sm:$0xff]
    %v12237 = vld [vmem:[%s15 + $0x750] sm:$0xff]
    %v12238 = vld [vmem:[%s15 + $0x758] sm:$0xff]
    %v12239 = vld [vmem:[%s15 + $0x760] sm:$0xff]
    %v12240 = vld [vmem:[%s15 + $0x768] sm:$0xff]
    %v12241 = vld [vmem:[%s15 + $0x770] sm:$0xff]
    %v12242 = vld [vmem:[%s15 + $0x778] sm:$0xff]
    %v12243 = vld [vmem:[%s15 + $0x780] sm:$0xff]
    %v12244 = vld [vmem:[%s15 + $0x788] sm:$0xff]
    %v12245 = vld [vmem:[%s15 + $0x790] sm:$0xff]
    %v12246 = vld [vmem:[%s15 + $0x798] sm:$0xff]
    %v12247 = vld [vmem:[%s15 + $0x7a0] sm:$0xff]
    %v12248 = vld [vmem:[%s15 + $0x7a8] sm:$0xff]
    %v12249 = vld [vmem:[%s15 + $0x7b0] sm:$0xff]
    %v12250 = vld [vmem:[%s15 + $0x7b8] sm:$0xff]
    %v12251 = vld [vmem:[%s15 + $0x7c0] sm:$0xff]
    %v12252 = vld [vmem:[%s15 + $0x7c8] sm:$0xff]
    %v12253 = vld [vmem:[%s15 + $0x7d0] sm:$0xff]
    %v12254 = vld [vmem:[%s15 + $0x7d8] sm:$0xff]
    %v12255 = vld [vmem:[%s15 + $0x7e0] sm:$0xff]
    %v12256 = vld [vmem:[%s15 + $0x7e8] sm:$0xff]
    %v12257 = vld [vmem:[%s15 + $0x7f0] sm:$0xff]
    %v12258 = vld [vmem:[%s15 + $0x7f8] sm:$0xff]
    %v12259 = vld [vmem:[%s15 + $0x800] sm:$0xff]
    %v12260 = vld [vmem:[%s15 + $0x808] sm:$0xff]
    %v12261 = vld [vmem:[%s15 + $0x810] sm:$0xff]
    %v12262 = vld [vmem:[%s15 + $0x818] sm:$0xff]
    %v12263 = vld [vmem:[%s15 + $0x820] sm:$0xff]
    %v12264 = vld [vmem:[%s15 + $0x828] sm:$0xff]
    %v12265 = vld [vmem:[%s15 + $0x830] sm:$0xff]
    %v12266 = vld [vmem:[%s15 + $0x838] sm:$0xff]
    %v12267 = vld [vmem:[%s15 + $0x840] sm:$0xff]
    %v12268 = vld [vmem:[%s15 + $0x848] sm:$0xff]
    %v12269 = vld [vmem:[%s15 + $0x850] sm:$0xff]
    %v12270 = vld [vmem:[%s15 + $0x858] sm:$0xff]
    %v12271 = vld [vmem:[%s15 + $0x860] sm:$0xff]
    %v12272 = vld [vmem:[%s15 + $0x868] sm:$0xff]
    %v12273 = vld [vmem:[%s15 + $0x870] sm:$0xff]
    %v12274 = vld [vmem:[%s15 + $0x878] sm:$0xff]
    %v12275 = vld [vmem:[%s15 + $0x880] sm:$0xff]
    %v12276 = vld [vmem:[%s15 + $0x888] sm:$0xff]
    %v12277 = vld [vmem:[%s15 + $0x890] sm:$0xff]
    %v12278 = vld [vmem:[%s15 + $0x898] sm:$0xff]
    %v12279 = vld [vmem:[%s15 + $0x8a0] sm:$0xff]
    %v12280 = vld [vmem:[%s15 + $0x8a8] sm:$0xff]
    %v12281 = vld [vmem:[%s15 + $0x8b0] sm:$0xff]
    %v12282 = vld [vmem:[%s15 + $0x8b8] sm:$0xff]
    %v12283 = vld [vmem:[%s15 + $0x8c0] sm:$0xff]
    %v12284 = vld [vmem:[%s15 + $0x8c8] sm:$0xff]
    %v12285 = vld [vmem:[%s15 + $0x8d0] sm:$0xff]
    %v12286 = vld [vmem:[%s15 + $0x8d8] sm:$0xff]
    %v12287 = vld [vmem:[%s15 + $0x8e0] sm:$0xff]
    %v12288 = vld [vmem:[%s15 + $0x8e8] sm:$0xff]
    %v12289 = vld [vmem:[%s15 + $0x8f0] sm:$0xff]
    %v12290 = vld [vmem:[%s15 + $0x8f8] sm:$0xff]
    %vm12291 = vcmask 31744
    %v12293 = vsel %vm12291, %v12001, 0
    %v12296 = vsel %vm12291, %v12002, 0
    %v12299 = vsel %vm11745, %v12000, 0
    %12301 = vmatprep.subr.mxu0 0.0
    %12302 = vmatpush1.msra.mxu0 0.0
    %12303 = vmatprep.subr.mxu0 0.0
    %12304 = vmatpush1.msra.mxu0 0.0
    %12305 = vmatprep.subr.mxu0 0.0
    %12306 = vmatpush1.msra.mxu0 0.0
    %12307 = vmatprep.subr.mxu0 0.0
    %12308 = vmatpush1.msra.mxu0 0.0
    %12309 = vmatprep.subr.mxu0 0.0
    %12310 = vmatpush1.msra.mxu0 0.0
    %12311 = vmatprep.subr.mxu0 0.0
    %12312 = vmatpush1.msra.mxu0 0.0
    %12313 = vmatprep.subr.mxu0 0.0
    %12314 = vmatpush1.msra.mxu0 0.0
    %12315 = vmatprep.subr.mxu0 0.0
    %12316 = vmatpush1.msra.mxu0 0.0
    %12317 = vmatprep.subr.mxu0 0.0
    %12318 = vmatpush1.msra.mxu0 0.0
    %12319 = vmatprep.subr.mxu0 0.0
    %12320 = vmatpush1.msra.mxu0 0.0
    %12321 = vmatprep.subr.mxu0 0.0
    %12322 = vmatpush1.msra.mxu0 0.0
    %12323 = vmatprep.subr.mxu0 0.0
    %12324 = vmatpush1.msra.mxu0 0.0
    %12325 = vmatprep.subr.mxu0 0.0
    %12326 = vmatpush1.msra.mxu0 0.0
    %12327 = vmatprep.subr.mxu0 0.0
    %12328 = vmatpush1.msra.mxu0 0.0
    %12329 = vmatprep.subr.mxu0 0.0
    %12330 = vmatpush1.msra.mxu0 0.0
    %12331 = vmatprep.subr.mxu0 0.0
    %12332 = vmatpush1.msra.mxu0 %v12299
    %12333 = vmatprep.subr.mxu0 0.0
    %12334 = vmatpush2.msra.mxu0 0.0
    %12335 = vmatprep.subr.mxu0 0.0
    %12336 = vmatpush2.msra.mxu0 0.0
    %12337 = vmatprep.subr.mxu0 0.0
    %12338 = vmatpush2.msra.mxu0 0.0
    %12339 = vmatprep.subr.mxu0 0.0
    %12340 = vmatpush2.msra.mxu0 0.0
    %12341 = vmatprep.subr.mxu0 0.0
    %12342 = vmatpush2.msra.mxu0 0.0
    %12343 = vmatprep.subr.mxu0 0.0
    %12344 = vmatpush2.msra.mxu0 0.0
    %12345 = vmatprep.subr.mxu0 0.0
    %12346 = vmatpush2.msra.mxu0 0.0
    %12347 = vmatprep.subr.mxu0 0.0
    %12348 = vmatpush2.msra.mxu0 0.0
    %12349 = vmatprep.subr.mxu0 0.0
    %12350 = vmatpush2.msra.mxu0 0.0
    %12351 = vmatprep.subr.mxu0 0.0
    %12352 = vmatpush2.msra.mxu0 0.0
    %12353 = vmatprep.subr.mxu0 0.0
    %12354 = vmatpush2.msra.mxu0 0.0
    %12355 = vmatprep.subr.mxu0 0.0
    %12356 = vmatpush2.msra.mxu0 0.0
    %12357 = vmatprep.subr.mxu0 0.0
    %12358 = vmatpush2.msra.mxu0 0.0
    %12359 = vmatprep.subr.mxu0 0.0
    %12360 = vmatpush2.msra.mxu0 0.0
    %12361 = vmatprep.subr.mxu0 0.0
    %12362 = vmatpush2.msra.mxu0 0.0
    %12363 = vmatprep.subr.mxu0 0.0
    %12364 = vmatpush2.msra.mxu0 0.0
    %12365 = vmatprep.mubr.f32.mxu0 0.0
    %12366 = vmatmul.mubr.f32.gmra.mxu0 %v12293
    %v12367 = vpop.f32.mrf.mxu0
    %v12368 = vadd.f32 0.0, %v12367
    %v12369 = vpop.f32.mrf.mxu0
    %12370 = vmatprep.mubr.f32.mxu0 0.0
    %12371 = vmatmul.mubr.f32.gmra.mxu0 %v12296
    %v12372 = vpop.f32.mrf.mxu0
    %v12373 = vadd.f32 0.0, %v12372
    %v12374 = vpop.f32.mrf.mxu0
    %12375 = vdwg.mxu0
    %v12377 = vrot.slane %v12368, 1
    %v12379 = vrot.slane %v12368, 2
    %v12381 = vrot.slane %v12368, 3
    %v12383 = vrot.slane %v12368, 4
    %v12385 = vrot.slane %v12368, 5
    %v12387 = vrot.slane %v12368, 6
    %v12389 = vrot.slane %v12368, 7
    %v12391 = vrot.slane %v12000, 4
    %v12392 = vsel %vm11745, %v12391, 0
    %12394 = vmatprep.subr.mxu0 0.0
    %12395 = vmatpush1.msra.mxu0 0.0
    %12396 = vmatprep.subr.mxu0 0.0
    %12397 = vmatpush1.msra.mxu0 0.0
    %12398 = vmatprep.subr.mxu0 0.0
    %12399 = vmatpush1.msra.mxu0 0.0
    %12400 = vmatprep.subr.mxu0 0.0
    %12401 = vmatpush1.msra.mxu0 0.0
    %12402 = vmatprep.subr.mxu0 0.0
    %12403 = vmatpush1.msra.mxu0 0.0
    %12404 = vmatprep.subr.mxu0 0.0
    %12405 = vmatpush1.msra.mxu0 0.0
    %12406 = vmatprep.subr.mxu0 0.0
    %12407 = vmatpush1.msra.mxu0 0.0
    %12408 = vmatprep.subr.mxu0 0.0
    %12409 = vmatpush1.msra.mxu0 0.0
    %12410 = vmatprep.subr.mxu0 0.0
    %12411 = vmatpush1.msra.mxu0 0.0
    %12412 = vmatprep.subr.mxu0 0.0
    %12413 = vmatpush1.msra.mxu0 0.0
    %12414 = vmatprep.subr.mxu0 0.0
    %12415 = vmatpush1.msra.mxu0 0.0
    %12416 = vmatprep.subr.mxu0 0.0
    %12417 = vmatpush1.msra.mxu0 0.0
    %12418 = vmatprep.subr.mxu0 0.0
    %12419 = vmatpush1.msra.mxu0 0.0
    %12420 = vmatprep.subr.mxu0 0.0
    %12421 = vmatpush1.msra.mxu0 0.0
    %12422 = vmatprep.subr.mxu0 0.0
    %12423 = vmatpush1.msra.mxu0 0.0
    %12424 = vmatprep.subr.mxu0 0.0
    %12425 = vmatpush1.msra.mxu0 %v12392
    %12426 = vmatprep.subr.mxu0 0.0
    %12427 = vmatpush2.msra.mxu0 0.0
    %12428 = vmatprep.subr.mxu0 0.0
    %12429 = vmatpush2.msra.mxu0 0.0
    %12430 = vmatprep.subr.mxu0 0.0
    %12431 = vmatpush2.msra.mxu0 0.0
    %12432 = vmatprep.subr.mxu0 0.0
    %12433 = vmatpush2.msra.mxu0 0.0
    %12434 = vmatprep.subr.mxu0 0.0
    %12435 = vmatpush2.msra.mxu0 0.0
    %12436 = vmatprep.subr.mxu0 0.0
    %12437 = vmatpush2.msra.mxu0 0.0
    %12438 = vmatprep.subr.mxu0 0.0
    %12439 = vmatpush2.msra.mxu0 0.0
    %12440 = vmatprep.subr.mxu0 0.0
    %12441 = vmatpush2.msra.mxu0 0.0
    %12442 = vmatprep.subr.mxu0 0.0
    %12443 = vmatpush2.msra.mxu0 0.0
    %12444 = vmatprep.subr.mxu0 0.0
    %12445 = vmatpush2.msra.mxu0 0.0
    %12446 = vmatprep.subr.mxu0 0.0
    %12447 = vmatpush2.msra.mxu0 0.0
    %12448 = vmatprep.subr.mxu0 0.0
    %12449 = vmatpush2.msra.mxu0 0.0
    %12450 = vmatprep.subr.mxu0 0.0
    %12451 = vmatpush2.msra.mxu0 0.0
    %12452 = vmatprep.subr.mxu0 0.0
    %12453 = vmatpush2.msra.mxu0 0.0
    %12454 = vmatprep.subr.mxu0 0.0
    %12455 = vmatpush2.msra.mxu0 0.0
    %12456 = vmatprep.subr.mxu0 0.0
    %12457 = vmatpush2.msra.mxu0 0.0
    %12458 = vmatprep.mubr.f32.mxu0 0.0
    %12459 = vmatmul.mubr.f32.gmra.mxu0 %v12293
    %v12460 = vpop.f32.mrf.mxu0
    %v12461 = vadd.f32 0.0, %v12460
    %v12462 = vpop.f32.mrf.mxu0
    %12463 = vmatprep.mubr.f32.mxu0 0.0
    %12464 = vmatmul.mubr.f32.gmra.mxu0 %v12296
    %v12465 = vpop.f32.mrf.mxu0
    %v12466 = vadd.f32 0.0, %v12465
    %v12467 = vpop.f32.mrf.mxu0
    %12468 = vdwg.mxu0
    %v12470 = vrot.slane %v12461, 1
    %v12471 = vrot.slane %v12461, 2
    %v12472 = vrot.slane %v12461, 3
    %v12473 = vrot.slane %v12461, 4
    %v12474 = vrot.slane %v12461, 5
    %v12475 = vrot.slane %v12461, 6
    %v12476 = vrot.slane %v12461, 7
    %v12478 = vrot.slane %v12470, 7
    %v12479 = vrot.slane %v12471, 7
    %v12480 = vrot.slane %v12472, 7
    %v12481 = vrot.slane %v12473, 7
    %v12482 = vrot.slane %v12474, 7
    %v12483 = vrot.slane %v12475, 7
    %v12484 = vrot.slane %v12476, 7
    %v12485 = vrot.slane %v12466, 7
    %v12495 = vsel %vm4840, %v12368, %v12476
    %v12496 = vsel %vm4840, %v12377, %v12478
    %v12497 = vsel %vm4840, %v12379, %v12479
    %v12498 = vsel %vm4840, %v12381, %v12480
    %v12499 = vsel %vm4840, %v12383, %v12481
    %v12500 = vsel %vm4840, %v12385, %v12482
    %v12501 = vsel %vm4840, %v12387, %v12483
    %v12502 = vsel %vm4840, %v12389, %v12484
    %v12503 = vsel %vm4840, %v12373, %v12485
    %v12504 = vld [vmem:[%s16] ss:$4 sm:$0x3]
    %s12505 = scalar_lea.vmem %s16, 1
    %v12506 = vld [vmem:[%s12505] ss:$4 sm:$0x3]
    %s12507 = scalar_lea.vmem %s16, 2
    %v12508 = vld [vmem:[%s12507] ss:$4 sm:$0x3]
    %v12510 = vlaneseq
    %v12511 = vshrl.u32 %v12510, 7
    %v12512 = vsub.s32 0, %v12511
    %v12513 = vrot.slane %v12504, %v12512
    %v12514 = vlaneseq
    %v12515 = vshrl.u32 %v12514, 7
    %v12516 = vsub.s32 1, %v12515
    %v12517 = vrot.slane %v12504, %v12516
    %12520 = vmatprep.subr.mxu0 %v12034
    %12521 = vmatpush1.msra.mxu0 %v12033
    %12522 = vmatprep.subr.mxu0 %v12032
    %12523 = vmatpush1.msra.mxu0 %v12031
    %12524 = vmatprep.subr.mxu0 %v12030
    %12525 = vmatpush1.msra.mxu0 %v12029
    %12526 = vmatprep.subr.mxu0 %v12028
    %12527 = vmatpush1.msra.mxu0 %v12027
    %12528 = vmatprep.subr.mxu0 %v12026
    %12529 = vmatpush1.msra.mxu0 %v12025
    %12530 = vmatprep.subr.mxu0 %v12024
    %12531 = vmatpush1.msra.mxu0 %v12023
    %12532 = vmatprep.subr.mxu0 %v12022
    %12533 = vmatpush1.msra.mxu0 %v12021
    %12534 = vmatprep.subr.mxu0 %v12020
    %12535 = vmatpush1.msra.mxu0 %v12019
    %12536 = vmatprep.subr.mxu0 %v12018
    %12537 = vmatpush1.msra.mxu0 %v12017
    %12538 = vmatprep.subr.mxu0 %v12016
    %12539 = vmatpush1.msra.mxu0 %v12015
    %12540 = vmatprep.subr.mxu0 %v12014
    %12541 = vmatpush1.msra.mxu0 %v12013
    %12542 = vmatprep.subr.mxu0 %v12012
    %12543 = vmatpush1.msra.mxu0 %v12011
    %12544 = vmatprep.subr.mxu0 %v12010
    %12545 = vmatpush1.msra.mxu0 %v12009
    %12546 = vmatprep.subr.mxu0 %v12008
    %12547 = vmatpush1.msra.mxu0 %v12007
    %12548 = vmatprep.subr.mxu0 %v12006
    %12549 = vmatpush1.msra.mxu0 %v12005
    %12550 = vmatprep.subr.mxu0 %v12004
    %12551 = vmatpush1.msra.mxu0 %v12003
    %12552 = vmatprep.subr.mxu0 %v12066
    %12553 = vmatpush2.msra.mxu0 %v12065
    %12554 = vmatprep.subr.mxu0 %v12064
    %12555 = vmatpush2.msra.mxu0 %v12063
    %12556 = vmatprep.subr.mxu0 %v12062
    %12557 = vmatpush2.msra.mxu0 %v12061
    %12558 = vmatprep.subr.mxu0 %v12060
    %12559 = vmatpush2.msra.mxu0 %v12059
    %12560 = vmatprep.subr.mxu0 %v12058
    %12561 = vmatpush2.msra.mxu0 %v12057
    %12562 = vmatprep.subr.mxu0 %v12056
    %12563 = vmatpush2.msra.mxu0 %v12055
    %12564 = vmatprep.subr.mxu0 %v12054
    %12565 = vmatpush2.msra.mxu0 %v12053
    %12566 = vmatprep.subr.mxu0 %v12052
    %12567 = vmatpush2.msra.mxu0 %v12051
    %12568 = vmatprep.subr.mxu0 %v12050
    %12569 = vmatpush2.msra.mxu0 %v12049
    %12570 = vmatprep.subr.mxu0 %v12048
    %12571 = vmatpush2.msra.mxu0 %v12047
    %12572 = vmatprep.subr.mxu0 %v12046
    %12573 = vmatpush2.msra.mxu0 %v12045
    %12574 = vmatprep.subr.mxu0 %v12044
    %12575 = vmatpush2.msra.mxu0 %v12043
    %12576 = vmatprep.subr.mxu0 %v12042
    %12577 = vmatpush2.msra.mxu0 %v12041
    %12578 = vmatprep.subr.mxu0 %v12040
    %12579 = vmatpush2.msra.mxu0 %v12039
    %12580 = vmatprep.subr.mxu0 %v12038
    %12581 = vmatpush2.msra.mxu0 %v12037
    %12582 = vmatprep.subr.mxu0 %v12036
    %12583 = vmatpush2.msra.mxu0 %v12035
    %12584 = vmatprep.mubr.f32.mxu0 %v12496
    %12585 = vmatmul.mubr.f32.gmra.mxu0 %v12495
    %v12586 = vpop.f32.mrf.mxu0
    %v12587 = vadd.f32 %v12513, %v12586
    %v12588 = vpop.f32.mrf.mxu0
    %v12589 = vadd.f32 %v12517, %v12588
    %12590 = vdwg.mxu0
    %12591 = vmatprep.subr.mxu0 %v12098
    %12592 = vmatpush1.msra.mxu0 %v12097
    %12593 = vmatprep.subr.mxu0 %v12096
    %12594 = vmatpush1.msra.mxu0 %v12095
    %12595 = vmatprep.subr.mxu0 %v12094
    %12596 = vmatpush1.msra.mxu0 %v12093
    %12597 = vmatprep.subr.mxu0 %v12092
    %12598 = vmatpush1.msra.mxu0 %v12091
    %12599 = vmatprep.subr.mxu0 %v12090
    %12600 = vmatpush1.msra.mxu0 %v12089
    %12601 = vmatprep.subr.mxu0 %v12088
    %12602 = vmatpush1.msra.mxu0 %v12087
    %12603 = vmatprep.subr.mxu0 %v12086
    %12604 = vmatpush1.msra.mxu0 %v12085
    %12605 = vmatprep.subr.mxu0 %v12084
    %12606 = vmatpush1.msra.mxu0 %v12083
    %12607 = vmatprep.subr.mxu0 %v12082
    %12608 = vmatpush1.msra.mxu0 %v12081
    %12609 = vmatprep.subr.mxu0 %v12080
    %12610 = vmatpush1.msra.mxu0 %v12079
    %12611 = vmatprep.subr.mxu0 %v12078
    %12612 = vmatpush1.msra.mxu0 %v12077
    %12613 = vmatprep.subr.mxu0 %v12076
    %12614 = vmatpush1.msra.mxu0 %v12075
    %12615 = vmatprep.subr.mxu0 %v12074
    %12616 = vmatpush1.msra.mxu0 %v12073
    %12617 = vmatprep.subr.mxu0 %v12072
    %12618 = vmatpush1.msra.mxu0 %v12071
    %12619 = vmatprep.subr.mxu0 %v12070
    %12620 = vmatpush1.msra.mxu0 %v12069
    %12621 = vmatprep.subr.mxu0 %v12068
    %12622 = vmatpush1.msra.mxu0 %v12067
    %12623 = vmatprep.subr.mxu0 %v12130
    %12624 = vmatpush2.msra.mxu0 %v12129
    %12625 = vmatprep.subr.mxu0 %v12128
    %12626 = vmatpush2.msra.mxu0 %v12127
    %12627 = vmatprep.subr.mxu0 %v12126
    %12628 = vmatpush2.msra.mxu0 %v12125
    %12629 = vmatprep.subr.mxu0 %v12124
    %12630 = vmatpush2.msra.mxu0 %v12123
    %12631 = vmatprep.subr.mxu0 %v12122
    %12632 = vmatpush2.msra.mxu0 %v12121
    %12633 = vmatprep.subr.mxu0 %v12120
    %12634 = vmatpush2.msra.mxu0 %v12119
    %12635 = vmatprep.subr.mxu0 %v12118
    %12636 = vmatpush2.msra.mxu0 %v12117
    %12637 = vmatprep.subr.mxu0 %v12116
    %12638 = vmatpush2.msra.mxu0 %v12115
    %12639 = vmatprep.subr.mxu0 %v12114
    %12640 = vmatpush2.msra.mxu0 %v12113
    %12641 = vmatprep.subr.mxu0 %v12112
    %12642 = vmatpush2.msra.mxu0 %v12111
    %12643 = vmatprep.subr.mxu0 %v12110
    %12644 = vmatpush2.msra.mxu0 %v12109
    %12645 = vmatprep.subr.mxu0 %v12108
    %12646 = vmatpush2.msra.mxu0 %v12107
    %12647 = vmatprep.subr.mxu0 %v12106
    %12648 = vmatpush2.msra.mxu0 %v12105
    %12649 = vmatprep.subr.mxu0 %v12104
    %12650 = vmatpush2.msra.mxu0 %v12103
    %12651 = vmatprep.subr.mxu0 %v12102
    %12652 = vmatpush2.msra.mxu0 %v12101
    %12653 = vmatprep.subr.mxu0 %v12100
    %12654 = vmatpush2.msra.mxu0 %v12099
    %12655 = vmatprep.mubr.f32.mxu0 %v12498
    %12656 = vmatmul.mubr.f32.gmra.mxu0 %v12497
    %v12657 = vpop.f32.mrf.mxu0
    %v12658 = vadd.f32 %v12587, %v12657
    %v12659 = vpop.f32.mrf.mxu0
    %v12660 = vadd.f32 %v12589, %v12659
    %12661 = vdwg.mxu0
    %12662 = vmatprep.subr.mxu0 %v12162
    %12663 = vmatpush1.msra.mxu0 %v12161
    %12664 = vmatprep.subr.mxu0 %v12160
    %12665 = vmatpush1.msra.mxu0 %v12159
    %12666 = vmatprep.subr.mxu0 %v12158
    %12667 = vmatpush1.msra.mxu0 %v12157
    %12668 = vmatprep.subr.mxu0 %v12156
    %12669 = vmatpush1.msra.mxu0 %v12155
    %12670 = vmatprep.subr.mxu0 %v12154
    %12671 = vmatpush1.msra.mxu0 %v12153
    %12672 = vmatprep.subr.mxu0 %v12152
    %12673 = vmatpush1.msra.mxu0 %v12151
    %12674 = vmatprep.subr.mxu0 %v12150
    %12675 = vmatpush1.msra.mxu0 %v12149
    %12676 = vmatprep.subr.mxu0 %v12148
    %12677 = vmatpush1.msra.mxu0 %v12147
    %12678 = vmatprep.subr.mxu0 %v12146
    %12679 = vmatpush1.msra.mxu0 %v12145
    %12680 = vmatprep.subr.mxu0 %v12144
    %12681 = vmatpush1.msra.mxu0 %v12143
    %12682 = vmatprep.subr.mxu0 %v12142
    %12683 = vmatpush1.msra.mxu0 %v12141
    %12684 = vmatprep.subr.mxu0 %v12140
    %12685 = vmatpush1.msra.mxu0 %v12139
    %12686 = vmatprep.subr.mxu0 %v12138
    %12687 = vmatpush1.msra.mxu0 %v12137
    %12688 = vmatprep.subr.mxu0 %v12136
    %12689 = vmatpush1.msra.mxu0 %v12135
    %12690 = vmatprep.subr.mxu0 %v12134
    %12691 = vmatpush1.msra.mxu0 %v12133
    %12692 = vmatprep.subr.mxu0 %v12132
    %12693 = vmatpush1.msra.mxu0 %v12131
    %12694 = vmatprep.subr.mxu0 %v12194
    %12695 = vmatpush2.msra.mxu0 %v12193
    %12696 = vmatprep.subr.mxu0 %v12192
    %12697 = vmatpush2.msra.mxu0 %v12191
    %12698 = vmatprep.subr.mxu0 %v12190
    %12699 = vmatpush2.msra.mxu0 %v12189
    %12700 = vmatprep.subr.mxu0 %v12188
    %12701 = vmatpush2.msra.mxu0 %v12187
    %12702 = vmatprep.subr.mxu0 %v12186
    %12703 = vmatpush2.msra.mxu0 %v12185
    %12704 = vmatprep.subr.mxu0 %v12184
    %12705 = vmatpush2.msra.mxu0 %v12183
    %12706 = vmatprep.subr.mxu0 %v12182
    %12707 = vmatpush2.msra.mxu0 %v12181
    %12708 = vmatprep.subr.mxu0 %v12180
    %12709 = vmatpush2.msra.mxu0 %v12179
    %12710 = vmatprep.subr.mxu0 %v12178
    %12711 = vmatpush2.msra.mxu0 %v12177
    %12712 = vmatprep.subr.mxu0 %v12176
    %12713 = vmatpush2.msra.mxu0 %v12175
    %12714 = vmatprep.subr.mxu0 %v12174
    %12715 = vmatpush2.msra.mxu0 %v12173
    %12716 = vmatprep.subr.mxu0 %v12172
    %12717 = vmatpush2.msra.mxu0 %v12171
    %12718 = vmatprep.subr.mxu0 %v12170
    %12719 = vmatpush2.msra.mxu0 %v12169
    %12720 = vmatprep.subr.mxu0 %v12168
    %12721 = vmatpush2.msra.mxu0 %v12167
    %12722 = vmatprep.subr.mxu0 %v12166
    %12723 = vmatpush2.msra.mxu0 %v12165
    %12724 = vmatprep.subr.mxu0 %v12164
    %12725 = vmatpush2.msra.mxu0 %v12163
    %12726 = vmatprep.mubr.f32.mxu0 %v12500
    %12727 = vmatmul.mubr.f32.gmra.mxu0 %v12499
    %v12728 = vpop.f32.mrf.mxu0
    %v12729 = vadd.f32 %v12658, %v12728
    %v12730 = vpop.f32.mrf.mxu0
    %v12731 = vadd.f32 %v12660, %v12730
    %12732 = vdwg.mxu0
    %12733 = vmatprep.subr.mxu0 %v12226
    %12734 = vmatpush1.msra.mxu0 %v12225
    %12735 = vmatprep.subr.mxu0 %v12224
    %12736 = vmatpush1.msra.mxu0 %v12223
    %12737 = vmatprep.subr.mxu0 %v12222
    %12738 = vmatpush1.msra.mxu0 %v12221
    %12739 = vmatprep.subr.mxu0 %v12220
    %12740 = vmatpush1.msra.mxu0 %v12219
    %12741 = vmatprep.subr.mxu0 %v12218
    %12742 = vmatpush1.msra.mxu0 %v12217
    %12743 = vmatprep.subr.mxu0 %v12216
    %12744 = vmatpush1.msra.mxu0 %v12215
    %12745 = vmatprep.subr.mxu0 %v12214
    %12746 = vmatpush1.msra.mxu0 %v12213
    %12747 = vmatprep.subr.mxu0 %v12212
    %12748 = vmatpush1.msra.mxu0 %v12211
    %12749 = vmatprep.subr.mxu0 %v12210
    %12750 = vmatpush1.msra.mxu0 %v12209
    %12751 = vmatprep.subr.mxu0 %v12208
    %12752 = vmatpush1.msra.mxu0 %v12207
    %12753 = vmatprep.subr.mxu0 %v12206
    %12754 = vmatpush1.msra.mxu0 %v12205
    %12755 = vmatprep.subr.mxu0 %v12204
    %12756 = vmatpush1.msra.mxu0 %v12203
    %12757 = vmatprep.subr.mxu0 %v12202
    %12758 = vmatpush1.msra.mxu0 %v12201
    %12759 = vmatprep.subr.mxu0 %v12200
    %12760 = vmatpush1.msra.mxu0 %v12199
    %12761 = vmatprep.subr.mxu0 %v12198
    %12762 = vmatpush1.msra.mxu0 %v12197
    %12763 = vmatprep.subr.mxu0 %v12196
    %12764 = vmatpush1.msra.mxu0 %v12195
    %12765 = vmatprep.subr.mxu0 %v12258
    %12766 = vmatpush2.msra.mxu0 %v12257
    %12767 = vmatprep.subr.mxu0 %v12256
    %12768 = vmatpush2.msra.mxu0 %v12255
    %12769 = vmatprep.subr.mxu0 %v12254
    %12770 = vmatpush2.msra.mxu0 %v12253
    %12771 = vmatprep.subr.mxu0 %v12252
    %12772 = vmatpush2.msra.mxu0 %v12251
    %12773 = vmatprep.subr.mxu0 %v12250
    %12774 = vmatpush2.msra.mxu0 %v12249
    %12775 = vmatprep.subr.mxu0 %v12248
    %12776 = vmatpush2.msra.mxu0 %v12247
    %12777 = vmatprep.subr.mxu0 %v12246
    %12778 = vmatpush2.msra.mxu0 %v12245
    %12779 = vmatprep.subr.mxu0 %v12244
    %12780 = vmatpush2.msra.mxu0 %v12243
    %12781 = vmatprep.subr.mxu0 %v12242
    %12782 = vmatpush2.msra.mxu0 %v12241
    %12783 = vmatprep.subr.mxu0 %v12240
    %12784 = vmatpush2.msra.mxu0 %v12239
    %12785 = vmatprep.subr.mxu0 %v12238
    %12786 = vmatpush2.msra.mxu0 %v12237
    %12787 = vmatprep.subr.mxu0 %v12236
    %12788 = vmatpush2.msra.mxu0 %v12235
    %12789 = vmatprep.subr.mxu0 %v12234
    %12790 = vmatpush2.msra.mxu0 %v12233
    %12791 = vmatprep.subr.mxu0 %v12232
    %12792 = vmatpush2.msra.mxu0 %v12231
    %12793 = vmatprep.subr.mxu0 %v12230
    %12794 = vmatpush2.msra.mxu0 %v12229
    %12795 = vmatprep.subr.mxu0 %v12228
    %12796 = vmatpush2.msra.mxu0 %v12227
    %12797 = vmatprep.mubr.f32.mxu0 %v12502
    %12798 = vmatmul.mubr.f32.gmra.mxu0 %v12501
    %v12799 = vpop.f32.mrf.mxu0
    %v12800 = vadd.f32 %v12729, %v12799
    %v12801 = vpop.f32.mrf.mxu0
    %v12802 = vadd.f32 %v12731, %v12801
    %12803 = vdwg.mxu0
    %12804 = vmatprep.subr.mxu0 %v12290
    %12805 = vmatpush1.msra.mxu0 %v12289
    %12806 = vmatprep.subr.mxu0 %v12288
    %12807 = vmatpush1.msra.mxu0 %v12287
    %12808 = vmatprep.subr.mxu0 %v12286
    %12809 = vmatpush1.msra.mxu0 %v12285
    %12810 = vmatprep.subr.mxu0 %v12284
    %12811 = vmatpush1.msra.mxu0 %v12283
    %12812 = vmatprep.subr.mxu0 %v12282
    %12813 = vmatpush1.msra.mxu0 %v12281
    %12814 = vmatprep.subr.mxu0 %v12280
    %12815 = vmatpush1.msra.mxu0 %v12279
    %12816 = vmatprep.subr.mxu0 %v12278
    %12817 = vmatpush1.msra.mxu0 %v12277
    %12818 = vmatprep.subr.mxu0 %v12276
    %12819 = vmatpush1.msra.mxu0 %v12275
    %12820 = vmatprep.subr.mxu0 %v12274
    %12821 = vmatpush1.msra.mxu0 %v12273
    %12822 = vmatprep.subr.mxu0 %v12272
    %12823 = vmatpush1.msra.mxu0 %v12271
    %12824 = vmatprep.subr.mxu0 %v12270
    %12825 = vmatpush1.msra.mxu0 %v12269
    %12826 = vmatprep.subr.mxu0 %v12268
    %12827 = vmatpush1.msra.mxu0 %v12267
    %12828 = vmatprep.subr.mxu0 %v12266
    %12829 = vmatpush1.msra.mxu0 %v12265
    %12830 = vmatprep.subr.mxu0 %v12264
    %12831 = vmatpush1.msra.mxu0 %v12263
    %12832 = vmatprep.subr.mxu0 %v12262
    %12833 = vmatpush1.msra.mxu0 %v12261
    %12834 = vmatprep.subr.mxu0 %v12260
    %12835 = vmatpush1.msra.mxu0 %v12259
    %12836 = vmatprep.subr.mxu0 0.0
    %12837 = vmatpush2.msra.mxu0 0.0
    %12838 = vmatprep.subr.mxu0 0.0
    %12839 = vmatpush2.msra.mxu0 0.0
    %12840 = vmatprep.subr.mxu0 0.0
    %12841 = vmatpush2.msra.mxu0 0.0
    %12842 = vmatprep.subr.mxu0 0.0
    %12843 = vmatpush2.msra.mxu0 0.0
    %12844 = vmatprep.subr.mxu0 0.0
    %12845 = vmatpush2.msra.mxu0 0.0
    %12846 = vmatprep.subr.mxu0 0.0
    %12847 = vmatpush2.msra.mxu0 0.0
    %12848 = vmatprep.subr.mxu0 0.0
    %12849 = vmatpush2.msra.mxu0 0.0
    %12850 = vmatprep.subr.mxu0 0.0
    %12851 = vmatpush2.msra.mxu0 0.0
    %12852 = vmatprep.subr.mxu0 0.0
    %12853 = vmatpush2.msra.mxu0 0.0
    %12854 = vmatprep.subr.mxu0 0.0
    %12855 = vmatpush2.msra.mxu0 0.0
    %12856 = vmatprep.subr.mxu0 0.0
    %12857 = vmatpush2.msra.mxu0 0.0
    %12858 = vmatprep.subr.mxu0 0.0
    %12859 = vmatpush2.msra.mxu0 0.0
    %12860 = vmatprep.subr.mxu0 0.0
    %12861 = vmatpush2.msra.mxu0 0.0
    %12862 = vmatprep.subr.mxu0 0.0
    %12863 = vmatpush2.msra.mxu0 0.0
    %12864 = vmatprep.subr.mxu0 0.0
    %12865 = vmatpush2.msra.mxu0 0.0
    %12866 = vmatprep.subr.mxu0 0.0
    %12867 = vmatpush2.msra.mxu0 0.0
    %12868 = vmatprep.mubr.f32.mxu0 0.0
    %12869 = vmatmul.mubr.f32.gmra.mxu0 %v12503
    %v12870 = vpop.f32.mrf.mxu0
    %v12871 = vadd.f32 %v12800, %v12870
    %v12872 = vpop.f32.mrf.mxu0
    %v12873 = vadd.f32 %v12802, %v12872
    %12874 = vdwg.mxu0
    %v12875 = vmax.f32 %v12871, 0.0
    %v12876 = vmax.f32 %v12873, 0.0
    %v12877 = vsel %vm1102, %v12875, 0.0
    %v12878 = vrot.slane %v12877, 4
    %v12879 = vadd.f32 %v12877, %v12878
    %v12880 = vrot.slane %v12879, 2
    %v12881 = vadd.f32 %v12879, %v12880
    %v12882 = vrot.slane %v12881, 1
    %v12883 = vadd.f32 %v12881, %v12882
    %v12884 = vsel %vm1102, %v12876, 0.0
    %v12885 = vrot.slane %v12884, 4
    %v12886 = vadd.f32 %v12884, %v12885
    %v12887 = vrot.slane %v12886, 2
    %v12888 = vadd.f32 %v12886, %v12887
    %v12889 = vrot.slane %v12888, 1
    %v12890 = vadd.f32 %v12888, %v12889
    %v12891 = vmul.f32 %v12883, 0.5
    %v12892 = vmul.f32 %v12890, 0.5
    %v12893 = vsub.f32 %v12875, %v12891
    %v12894 = vsub.f32 %v12876, %v12892
    %v12895 = vmul.f32 %v12893, %v12893
    %v12896 = vmul.f32 %v12894, %v12894
    %v12897 = vsel %vm1102, %v12895, 0.0
    %v12898 = vrot.slane %v12897, 4
    %v12899 = vadd.f32 %v12897, %v12898
    %v12900 = vrot.slane %v12899, 2
    %v12901 = vadd.f32 %v12899, %v12900
    %v12902 = vrot.slane %v12901, 1
    %v12903 = vadd.f32 %v12901, %v12902
    %v12904 = vsel %vm1102, %v12896, 0.0
    %v12905 = vrot.slane %v12904, 4
    %v12906 = vadd.f32 %v12904, %v12905
    %v12907 = vrot.slane %v12906, 2
    %v12908 = vadd.f32 %v12906, %v12907
    %v12909 = vrot.slane %v12908, 1
    %v12910 = vadd.f32 %v12908, %v12909
    %v12911 = vmul.f32 %v12903, 0.5
    %v12912 = vmul.f32 %v12910, 0.5
    %v12913 = vadd.f32 %v12911, 1e-05
    %v12914 = vadd.f32 %v12912, 1e-05
    %v12915 = vrsqrt.pop %v12913
    %v12916 = vrsqrt.pop %v12914
    %v12918 = vlaneseq
    %v12919 = vshrl.u32 %v12918, 7
    %v12920 = vsub.s32 0, %v12919
    %v12921 = vrot.slane %v12506, %v12920
    %v12922 = vlaneseq
    %v12923 = vshrl.u32 %v12922, 7
    %v12924 = vsub.s32 1, %v12923
    %v12925 = vrot.slane %v12506, %v12924
    %v12928 = vmul.f32 %v12915, %v12921
    %v12929 = vmul.f32 %v12916, %v12925
    %v12930 = vlaneseq
    %v12931 = vshrl.u32 %v12930, 7
    %v12932 = vsub.s32 0, %v12931
    %v12933 = vrot.slane %v12928, %v12932
    %v12934 = vlaneseq
    %v12935 = vshrl.u32 %v12934, 7
    %v12936 = vsub.s32 0, %v12935
    %v12937 = vrot.slane %v12929, %v12936
    %v12938 = vmul.f32 %v12893, %v12933
    %v12939 = vmul.f32 %v12894, %v12937
    %v12941 = vlaneseq
    %v12942 = vshrl.u32 %v12941, 7
    %v12943 = vsub.s32 0, %v12942
    %v12944 = vrot.slane %v12508, %v12943
    %v12945 = vlaneseq
    %v12946 = vshrl.u32 %v12945, 7
    %v12947 = vsub.s32 1, %v12946
    %v12948 = vrot.slane %v12508, %v12947
    %v12951 = vadd.f32 %v12938, %v12944
    %v12952 = vadd.f32 %v12939, %v12948
    %v12953 = vld [vmem:[%s17] sm:$0xff]
    %v12954 = vld [vmem:[%s17 + $0x8] sm:$0xff]
    %v12955 = vld [vmem:[%s17 + $0x10] sm:$0xff]
    %v12956 = vld [vmem:[%s17 + $0x18] sm:$0xff]
    %v12957 = vld [vmem:[%s17 + $0x20] sm:$0xff]
    %v12958 = vld [vmem:[%s17 + $0x28] sm:$0xff]
    %v12959 = vld [vmem:[%s17 + $0x30] sm:$0xff]
    %v12960 = vld [vmem:[%s17 + $0x38] sm:$0xff]
    %v12961 = vld [vmem:[%s17 + $0x40] sm:$0xff]
    %v12962 = vld [vmem:[%s17 + $0x48] sm:$0xff]
    %v12963 = vld [vmem:[%s17 + $0x50] sm:$0xff]
    %v12964 = vld [vmem:[%s17 + $0x58] sm:$0xff]
    %v12965 = vld [vmem:[%s17 + $0x60] sm:$0xff]
    %v12966 = vld [vmem:[%s17 + $0x68] sm:$0xff]
    %v12967 = vld [vmem:[%s17 + $0x70] sm:$0xff]
    %v12968 = vld [vmem:[%s17 + $0x78] sm:$0xff]
    %v12969 = vld [vmem:[%s17 + $0x80] sm:$0xff]
    %v12970 = vld [vmem:[%s17 + $0x88] sm:$0xff]
    %v12971 = vld [vmem:[%s17 + $0x90] sm:$0xff]
    %v12972 = vld [vmem:[%s17 + $0x98] sm:$0xff]
    %v12973 = vld [vmem:[%s17 + $0xa0] sm:$0xff]
    %v12974 = vld [vmem:[%s17 + $0xa8] sm:$0xff]
    %v12975 = vld [vmem:[%s17 + $0xb0] sm:$0xff]
    %v12976 = vld [vmem:[%s17 + $0xb8] sm:$0xff]
    %v12977 = vld [vmem:[%s17 + $0xc0] sm:$0xff]
    %v12978 = vld [vmem:[%s17 + $0xc8] sm:$0xff]
    %v12979 = vld [vmem:[%s17 + $0xd0] sm:$0xff]
    %v12980 = vld [vmem:[%s17 + $0xd8] sm:$0xff]
    %v12981 = vld [vmem:[%s17 + $0xe0] sm:$0xff]
    %v12982 = vld [vmem:[%s17 + $0xe8] sm:$0xff]
    %v12983 = vld [vmem:[%s17 + $0xf0] sm:$0xff]
    %v12984 = vld [vmem:[%s17 + $0xf8] sm:$0xff]
    %v12985 = vld [vmem:[%s17 + $0x100] sm:$0xff]
    %v12986 = vld [vmem:[%s17 + $0x108] sm:$0xff]
    %v12987 = vld [vmem:[%s17 + $0x110] sm:$0xff]
    %v12988 = vld [vmem:[%s17 + $0x118] sm:$0xff]
    %v12989 = vld [vmem:[%s17 + $0x120] sm:$0xff]
    %v12990 = vld [vmem:[%s17 + $0x128] sm:$0xff]
    %v12991 = vld [vmem:[%s17 + $0x130] sm:$0xff]
    %v12992 = vld [vmem:[%s17 + $0x138] sm:$0xff]
    %v12993 = vld [vmem:[%s17 + $0x140] sm:$0xff]
    %v12994 = vld [vmem:[%s17 + $0x148] sm:$0xff]
    %v12995 = vld [vmem:[%s17 + $0x150] sm:$0xff]
    %v12996 = vld [vmem:[%s17 + $0x158] sm:$0xff]
    %v12997 = vld [vmem:[%s17 + $0x160] sm:$0xff]
    %v12998 = vld [vmem:[%s17 + $0x168] sm:$0xff]
    %v12999 = vld [vmem:[%s17 + $0x170] sm:$0xff]
    %v13000 = vld [vmem:[%s17 + $0x178] sm:$0xff]
    %v13001 = vld [vmem:[%s17 + $0x180] sm:$0xff]
    %v13002 = vld [vmem:[%s17 + $0x188] sm:$0xff]
    %v13003 = vld [vmem:[%s17 + $0x190] sm:$0xff]
    %v13004 = vld [vmem:[%s17 + $0x198] sm:$0xff]
    %v13005 = vld [vmem:[%s17 + $0x1a0] sm:$0xff]
    %v13006 = vld [vmem:[%s17 + $0x1a8] sm:$0xff]
    %v13007 = vld [vmem:[%s17 + $0x1b0] sm:$0xff]
    %v13008 = vld [vmem:[%s17 + $0x1b8] sm:$0xff]
    %v13009 = vld [vmem:[%s17 + $0x1c0] sm:$0xff]
    %v13010 = vld [vmem:[%s17 + $0x1c8] sm:$0xff]
    %v13011 = vld [vmem:[%s17 + $0x1d0] sm:$0xff]
    %v13012 = vld [vmem:[%s17 + $0x1d8] sm:$0xff]
    %v13013 = vld [vmem:[%s17 + $0x1e0] sm:$0xff]
    %v13014 = vld [vmem:[%s17 + $0x1e8] sm:$0xff]
    %v13015 = vld [vmem:[%s17 + $0x1f0] sm:$0xff]
    %v13016 = vld [vmem:[%s17 + $0x1f8] sm:$0xff]
    %v13017 = vld [vmem:[%s18] sm:$0x3]
    %v13019 = vlaneseq
    %v13020 = vshrl.u32 %v13019, 7
    %v13021 = vsub.s32 0, %v13020
    %v13022 = vrot.slane %v13017, %v13021
    %v13023 = vlaneseq
    %v13024 = vshrl.u32 %v13023, 7
    %v13025 = vsub.s32 1, %v13024
    %v13026 = vrot.slane %v13017, %v13025
    %13029 = vmatprep.subr.mxu0 %v12984
    %13030 = vmatpush1.msra.mxu0 %v12983
    %13031 = vmatprep.subr.mxu0 %v12982
    %13032 = vmatpush1.msra.mxu0 %v12981
    %13033 = vmatprep.subr.mxu0 %v12980
    %13034 = vmatpush1.msra.mxu0 %v12979
    %13035 = vmatprep.subr.mxu0 %v12978
    %13036 = vmatpush1.msra.mxu0 %v12977
    %13037 = vmatprep.subr.mxu0 %v12976
    %13038 = vmatpush1.msra.mxu0 %v12975
    %13039 = vmatprep.subr.mxu0 %v12974
    %13040 = vmatpush1.msra.mxu0 %v12973
    %13041 = vmatprep.subr.mxu0 %v12972
    %13042 = vmatpush1.msra.mxu0 %v12971
    %13043 = vmatprep.subr.mxu0 %v12970
    %13044 = vmatpush1.msra.mxu0 %v12969
    %13045 = vmatprep.subr.mxu0 %v12968
    %13046 = vmatpush1.msra.mxu0 %v12967
    %13047 = vmatprep.subr.mxu0 %v12966
    %13048 = vmatpush1.msra.mxu0 %v12965
    %13049 = vmatprep.subr.mxu0 %v12964
    %13050 = vmatpush1.msra.mxu0 %v12963
    %13051 = vmatprep.subr.mxu0 %v12962
    %13052 = vmatpush1.msra.mxu0 %v12961
    %13053 = vmatprep.subr.mxu0 %v12960
    %13054 = vmatpush1.msra.mxu0 %v12959
    %13055 = vmatprep.subr.mxu0 %v12958
    %13056 = vmatpush1.msra.mxu0 %v12957
    %13057 = vmatprep.subr.mxu0 %v12956
    %13058 = vmatpush1.msra.mxu0 %v12955
    %13059 = vmatprep.subr.mxu0 %v12954
    %13060 = vmatpush1.msra.mxu0 %v12953
    %13061 = vmatprep.subr.mxu0 %v13016
    %13062 = vmatpush2.msra.mxu0 %v13015
    %13063 = vmatprep.subr.mxu0 %v13014
    %13064 = vmatpush2.msra.mxu0 %v13013
    %13065 = vmatprep.subr.mxu0 %v13012
    %13066 = vmatpush2.msra.mxu0 %v13011
    %13067 = vmatprep.subr.mxu0 %v13010
    %13068 = vmatpush2.msra.mxu0 %v13009
    %13069 = vmatprep.subr.mxu0 %v13008
    %13070 = vmatpush2.msra.mxu0 %v13007
    %13071 = vmatprep.subr.mxu0 %v13006
    %13072 = vmatpush2.msra.mxu0 %v13005
    %13073 = vmatprep.subr.mxu0 %v13004
    %13074 = vmatpush2.msra.mxu0 %v13003
    %13075 = vmatprep.subr.mxu0 %v13002
    %13076 = vmatpush2.msra.mxu0 %v13001
    %13077 = vmatprep.subr.mxu0 %v13000
    %13078 = vmatpush2.msra.mxu0 %v12999
    %13079 = vmatprep.subr.mxu0 %v12998
    %13080 = vmatpush2.msra.mxu0 %v12997
    %13081 = vmatprep.subr.mxu0 %v12996
    %13082 = vmatpush2.msra.mxu0 %v12995
    %13083 = vmatprep.subr.mxu0 %v12994
    %13084 = vmatpush2.msra.mxu0 %v12993
    %13085 = vmatprep.subr.mxu0 %v12992
    %13086 = vmatpush2.msra.mxu0 %v12991
    %13087 = vmatprep.subr.mxu0 %v12990
    %13088 = vmatpush2.msra.mxu0 %v12989
    %13089 = vmatprep.subr.mxu0 %v12988
    %13090 = vmatpush2.msra.mxu0 %v12987
    %13091 = vmatprep.subr.mxu0 %v12986
    %13092 = vmatpush2.msra.mxu0 %v12985
    %13093 = vmatprep.mubr.f32.mxu0 %v12952
    %13094 = vmatmul.mubr.f32.gmra.mxu0 %v12951
    %v13095 = vpop.f32.mrf.mxu0
    %v13096 = vadd.f32 %v13022, %v13095
    %v13097 = vpop.f32.mrf.mxu0
    %v13098 = vadd.f32 %v13026, %v13097
    %13099 = vdwg.mxu0
    %v13102 = vcombine.low %v13096, %v13098
    %v13104 = vunpack.c.l.s4 1983009808
    %v13105 = vunpack.c.0.s8 %v13104
    %v13106 = vlaneseq
    %v13107 = vshrl.u32 %v13106, 7
    %v13108 = vsub.s32 %v13105, %v13107
    %v13109 = vrot.slane %v13102, %v13108
    %13111 = vst [vmem:[#allocation2] sm:$0xf] %v13109
    // Predicated region
    $region78: #{forward.1} parent=1 // pred_check
      _
    $region79: #{forward.1} parent=1 // pred_check_branch
      %13113 = sbr.rel (0) target = $region81
    $region80: #{forward.1} parent=1 // pred_region
      %s13115 = ssub.s32 64, 64
      %13116 = vsyncadd [#allocation3], %s13115
      %s13118 = sshll.u32 [#allocation2], 4
      %s13119 = int_to_ptr.vmem [resolvable:$true] %s13118
      %13121 = dma.vmem_to_hbm [thread:$0]  %s13119, 64, %s19, [#allocation3]
    $region81: #{forward.1} parent=1 // pred_fallthru
      _
    // Predicated region
    $region82: #{forward.1} parent=1 // pred_check
      _
    $region83: #{forward.1} parent=1 // pred_check_branch
      %13123 = sbr.rel (0) target = $region85
    $region84: #{forward.1} parent=1 // pred_region
      %13124 = dma.done [#allocation3], 64
    $region85: #{forward.1} parent=1 // pred_fallthru
      _
    %13125 = vsyncpa [#allocation3], 1

</llo_original>
